<compile_context>
chip_gen: v5e
topology: v5e:2x2
jax: 0.10.0
libtpu: 0.0.40
codegen_flags: <defaults>
</compile_context>

<pallas_src>
import functools

import jax
import jax.numpy as jnp
from jax import lax
from jax.experimental import pallas as pl
from jax.experimental.pallas import tpu as pltpu


# Interior columns of the padded VMEM scratches are stored at this
# sublane-aligned offset so every scratch *store* is aligned; the 3x3 window
# *reads* then start at column _PADW - 1 + dx (unaligned reads are cheap and
# were already proven in the previous version of this kernel).
_PADW = 8


# ----------------------------------------------------------------------------
# Fused kernel: upconv2x2 -> pad -> (implicit concat) -> conv1+BN+ReLU ->
#               conv2+BN+ReLU, one batch element per grid step.
# ----------------------------------------------------------------------------
def _fused_up_kernel(x1_ref, x2_ref, wt_ref, bt_ref,
                     w1a_ref, w1b_ref, b1_ref, w2_ref, b2_ref,
                     o_ref, x2p_ref, x1p_ref, hp_ref, *, py, px):
    H1, W1, C = x1_ref.shape
    H2, W2, _ = x2_ref.shape
    Cout = o_ref.shape[-1]
    H2u, W2u = 2 * H1, 2 * W1

    # ---- 1) ConvTranspose2d(C, C, 2, stride=2): one packed MXU dot ---------
    # wt_ref is (C, 4*C), column layout [(a, b), co]: result column
    # (a*2 + b)*C + co is the output value at spatial position (2i+a, 2j+b).
    x1_2d = x1_ref[...].reshape(H1 * W1, C)
    y = jnp.dot(x1_2d, wt_ref[...], preferred_element_type=jnp.float32)
    y = y + bt_ref[...]                                      # (H1*W1, 4*C)

    # Interleave the four stride-2 phases into x1up (2*H1, 2*W1, C) using
    # nearest-neighbour broadcast + parity masks (only lane-preserving
    # reshapes, broadcasts and selects).
    ry = lax.broadcasted_iota(jnp.int32, (H2u, W2u, C), 0) % 2
    rx = lax.broadcasted_iota(jnp.int32, (H2u, W2u, C), 1) % 2
    x1up = jnp.zeros((H2u, W2u, C), jnp.float32)
    for a in range(2):
        for b in range(2):
            k = a * 2 + b
            piece = y[:, k * C:(k + 1) * C].reshape(H1, W1, C)
            rep = jnp.broadcast_to(piece[:, None, :, None, :],
                                   (H1, 2, W1, 2, C))
            # two lane-preserving reshapes (conservative for Mosaic lowering)
            rep = rep.reshape(H2u * W2u, C).reshape(H2u, W2u, C)
            mask = ((ry == a) & (rx == b)).astype(jnp.float32)
            x1up = x1up + rep * mask

    # ---- 2) zero-padded inputs in VMEM (conv halo + F.pad offsets) ---------
    x2p_ref[...] = jnp.zeros_like(x2p_ref)
    x1p_ref[...] = jnp.zeros_like(x1p_ref)
    x2p_ref[1:1 + H2, _PADW:_PADW + W2, :] = x2_ref[...].astype(jnp.float32)
    x1p_ref[1 + py:1 + py + H2u, _PADW + px:_PADW + px + W2u, :] = x1up

    def im2col(xp_ref, cin):
        cols = []
        for dy in range(3):
            for dx in range(3):
                c0 = _PADW - 1 + dx
                cols.append(xp_ref[dy:dy + H2, c0:c0 + W2, :]
                            .reshape(H2 * W2, cin))
        return jnp.concatenate(cols, axis=-1)                # (H2*W2, 9*cin)

    # ---- 3) conv1 (split over [x2, x1up] channels; BN scale pre-folded) ----
    h = (jnp.dot(im2col(x2p_ref, C), w1a_ref[...],
                 preferred_element_type=jnp.float32)
         + jnp.dot(im2col(x1p_ref, C), w1b_ref[...],
                   preferred_element_type=jnp.float32)
         + b1_ref[...])
    h = jnp.maximum(h, 0.0)                                  # (H2*W2, Cout)

    hp_ref[...] = jnp.zeros_like(hp_ref)
    hp_ref[1:1 + H2, _PADW:_PADW + W2, :] = h.reshape(H2, W2, Cout)

    # ---- 4) conv2 + BN + ReLU ----------------------------------------------
    out = jnp.dot(im2col(hp_ref, Cout), w2_ref[...],
                  preferred_element_type=jnp.float32) + b2_ref[...]
    out = jnp.maximum(out, 0.0)
    o_ref[...] = out.reshape(H2, W2, Cout).astype(o_ref.dtype)


# ----------------------------------------------------------------------------
# Parameter setup (deterministic synthetic init) + folding helpers
# ----------------------------------------------------------------------------
def fold_bn(conv_bias, gamma, beta, running_mean, running_var, eps=1e-5):
    scale = gamma / jnp.sqrt(running_var + eps)
    bias = beta + (conv_bias - running_mean) * scale
    return scale, bias


def init_up_params(key, in_ch, out_ch):
    c_half = in_ch // 2
    ks = jax.random.split(key, 8)
    p = {}
    # ConvTranspose2d(c_half, c_half, 2, stride=2): stored as (kH, kW, Cin, Cout)
    p["wt"] = 0.1 * jax.random.normal(ks[0], (2, 2, c_half, c_half), jnp.float32)
    p["bt"] = 0.05 * jax.random.normal(ks[1], (c_half,), jnp.float32)
    # double_conv conv1: in_ch -> out_ch
    w1 = 0.1 * jax.random.normal(ks[2], (3, 3, in_ch, out_ch), jnp.float32)
    b1 = 0.05 * jax.random.normal(ks[3], (out_ch,), jnp.float32)
    g1 = 1.0 + 0.05 * jax.random.normal(ks[4], (out_ch,), jnp.float32)
    be1 = 0.05 * jax.random.normal(ks[5], (out_ch,), jnp.float32)
    s1, bb1 = fold_bn(b1, g1, be1, jnp.zeros(out_ch), jnp.ones(out_ch))
    p["w1"], p["scale1"], p["bias1"] = w1, s1, bb1
    # double_conv conv2: out_ch -> out_ch
    w2 = 0.1 * jax.random.normal(ks[6], (3, 3, out_ch, out_ch), jnp.float32)
    b2 = 0.05 * jax.random.normal(ks[7], (out_ch,), jnp.float32)
    g2 = jnp.ones(out_ch, jnp.float32)
    be2 = jnp.zeros(out_ch, jnp.float32)
    s2, bb2 = fold_bn(b2, g2, be2, jnp.zeros(out_ch), jnp.ones(out_ch))
    p["w2"], p["scale2"], p["bias2"] = w2, s2, bb2
    return p


# ----------------------------------------------------------------------------
# Forward (NCHW in / NCHW out, like the PyTorch module)
# ----------------------------------------------------------------------------
def up_forward(x1_nchw, x2_nchw, params):
    """Pallas-backed forward of `up` (mode=0). Inputs/outputs are NCHW."""
    x1 = jnp.transpose(x1_nchw, (0, 2, 3, 1))  # -> NHWC
    x2 = jnp.transpose(x2_nchw, (0, 2, 3, 1))
    N, H1, W1, C = x1.shape
    _, H2, W2, C2 = x2.shape
    assert C2 == C
    Cout = params["w1"].shape[-1]

    diffY = H2 - 2 * H1
    diffX = W2 - 2 * W1
    if diffY < 0 or diffX < 0:
        raise ValueError("x1 upsampled larger than x2 (cropping) unsupported")
    py, px = diffY // 2, diffX // 2

    # --- pack / fold parameters (tiny, XLA-side, done once per trace) ---
    # (kH, kW, Cin, Cout) -> (Cin, 4*Cout) with column layout [(a, b), co].
    wt_packed = params["wt"].transpose(2, 0, 1, 3).reshape(C, 4 * C)
    bt_packed = jnp.tile(params["bt"], 4).reshape(1, 4 * C)
    # Conv weights with BN scale folded in; flattened to im2col row order
    # (dy, dx, ci) -> (dy*3 + dx)*Cin + ci.
    w1f = params["w1"] * params["scale1"]
    w1a = w1f[:, :, :C, :].reshape(9 * C, Cout)      # x2 channel half
    w1b = w1f[:, :, C:, :].reshape(9 * C, Cout)      # upsampled-x1 half
    b1 = params["bias1"].reshape(1, Cout)
    w2f = (params["w2"] * params["scale2"]).reshape(9 * Cout, Cout)
    b2 = params["bias2"].reshape(1, Cout)

    flops = int(N * (2 * H1 * W1 * C * 4 * C
                     + 2 * H2 * W2 * 9 * C * Cout * 2
                     + 2 * H2 * W2 * 9 * Cout * Cout))
    bytes_accessed = int(4 * (x1.size + x2.size + N * H2 * W2 * Cout
                              + wt_packed.size + bt_packed.size
                              + w1a.size + w1b.size + b1.size
                              + w2f.size + b2.size))

    kernel = functools.partial(_fused_up_kernel, py=py, px=px)
    pw = W2 + _PADW + 1  # padded scratch width (aligned interior + halo)

    out = pl.pallas_call(
        kernel,
        out_shape=jax.ShapeDtypeStruct((N, H2, W2, Cout), x1.dtype),
        grid=(N,),
        in_specs=[
            pl.BlockSpec((None, H1, W1, C), lambda n: (n, 0, 0, 0)),
            pl.BlockSpec((None, H2, W2, C), lambda n: (n, 0, 0, 0)),
            pl.BlockSpec((C, 4 * C), lambda n: (0, 0)),
            pl.BlockSpec((1, 4 * C), lambda n: (0, 0)),
            pl.BlockSpec((9 * C, Cout), lambda n: (0, 0)),
            pl.BlockSpec((9 * C, Cout), lambda n: (0, 0)),
            pl.BlockSpec((1, Cout), lambda n: (0, 0)),
            pl.BlockSpec((9 * Cout, Cout), lambda n: (0, 0)),
            pl.BlockSpec((1, Cout), lambda n: (0, 0)),
        ],
        out_specs=pl.BlockSpec((None, H2, W2, Cout), lambda n: (n, 0, 0, 0)),
        scratch_shapes=[
            pltpu.VMEM((H2 + 2, pw, C), jnp.float32),     # padded x2
            pltpu.VMEM((H2 + 2, pw, C), jnp.float32),     # padded upsampled x1
            pltpu.VMEM((H2 + 2, pw, Cout), jnp.float32),  # padded conv1 output
        ],
        compiler_params=pltpu.CompilerParams(
            dimension_semantics=("parallel",)),
        cost_estimate=pl.CostEstimate(flops=flops, transcendentals=0,
                                      bytes_accessed=bytes_accessed),
    )(x1, x2, wt_packed, bt_packed, w1a, w1b, b1, w2f, b2)

    return jnp.transpose(out, (0, 3, 1, 2))  # -> NCHW


# ----------------------------------------------------------------------------
# Pure-JAX reference (sanity check)
# ----------------------------------------------------------------------------
def ref_forward(x1_nchw, x2_nchw, p):
    x1 = jnp.transpose(x1_nchw, (0, 2, 3, 1))
    x2 = jnp.transpose(x2_nchw, (0, 2, 3, 1))
    N, H, W, C = x1.shape
    y = jnp.einsum("nhwc,abcd->nhwabd", x1, p["wt"]) + p["bt"]
    x1 = y.transpose(0, 1, 3, 2, 4, 5).reshape(N, 2 * H, 2 * W, C)
    diffY = x2.shape[1] - x1.shape[1]
    diffX = x2.shape[2] - x1.shape[2]
    x1 = jnp.pad(x1, ((0, 0),
                      (diffY // 2, diffY - diffY // 2),
                      (diffX // 2, diffX - diffX // 2),
                      (0, 0)))
    x = jnp.concatenate([x2, x1], axis=-1)
    dn = ("NHWC", "HWIO", "NHWC")
    x = lax.conv_general_dilated(x, p["w1"], (1, 1), "SAME",
                                 dimension_numbers=dn)
    x = jnp.maximum(x * p["scale1"] + p["bias1"], 0.0)
    x = lax.conv_general_dilated(x, p["w2"], (1, 1), "SAME",
                                 dimension_numbers=dn)
    x = jnp.maximum(x * p["scale2"] + p["bias2"], 0.0)
    return jnp.transpose(x, (0, 3, 1, 2))


# ----------------------------------------------------------------------------
if __name__ == "__main__":
    in_ch, out_ch = 8, 4          # up(in_ch=8, out_ch=4), bilinear=False
    N, H1, W1 = 2, 8, 8           # x1: (N, in_ch//2, 8, 8)
    H2, W2 = 16, 16               # x2: (N, in_ch//2, 16, 16)

    key = jax.random.PRNGKey(0)
    k_x1, k_x2, k_p = jax.random.split(key, 3)
    x1 = jax.random.normal(k_x1, (N, in_ch // 2, H1, W1), jnp.float32)
    x2 = jax.random.normal(k_x2, (N, in_ch // 2, H2, W2), jnp.float32)
    params = init_up_params(k_p, in_ch, out_ch)

    fwd = jax.jit(up_forward)
    out = jax.block_until_ready(fwd(x1, x2, params))

    ref = jax.block_until_ready(ref_forward(x1, x2, params))
    assert out.shape == (N, out_ch, H2, W2), out.shape
    max_err = float(jnp.max(jnp.abs(out - ref)))
    assert max_err < 1e-4, f"mismatch vs reference: {max_err}"

    print("KERNEL_OK")
</pallas_src>

<mosaic_0001>
module attributes {stable_mosaic.version = 11 : i64} {
  func.func @_fused_up_kernel(%arg0: i32, %arg1: memref<1x8x8x4xf32, #tpu.memory_space<vmem>>, %arg2: memref<1x16x16x4xf32, #tpu.memory_space<vmem>>, %arg3: memref<4x16xf32, #tpu.memory_space<vmem>>, %arg4: memref<1x16xf32, #tpu.memory_space<vmem>>, %arg5: memref<36x4xf32, #tpu.memory_space<vmem>>, %arg6: memref<36x4xf32, #tpu.memory_space<vmem>>, %arg7: memref<1x4xf32, #tpu.memory_space<vmem>>, %arg8: memref<36x4xf32, #tpu.memory_space<vmem>>, %arg9: memref<1x4xf32, #tpu.memory_space<vmem>>, %arg10: memref<1x16x16x4xf32, #tpu.memory_space<vmem>>, %arg11: memref<18x25x4xf32, #tpu.memory_space<vmem>>, %arg12: memref<18x25x4xf32, #tpu.memory_space<vmem>>, %arg13: memref<18x25x4xf32, #tpu.memory_space<vmem>>) attributes {dimension_semantics = [#tpu.dimension_semantics<parallel>], iteration_bounds = array<i64: 2>, scalar_prefetch = 0 : i64, scratch_operands = 3 : i64, tpu.core_type = #tpu.core_type<tc>, window_params = [{transform_indices = @transform_0, window_bounds = array<i64: 1, 8, 8, 4>}, {transform_indices = @transform_1, window_bounds = array<i64: 1, 16, 16, 4>}, {pipeline_mode = #tpu.pipeline_mode<synchronous>, transform_indices = @transform_2, window_bounds = array<i64: 4, 16>}, {pipeline_mode = #tpu.pipeline_mode<synchronous>, transform_indices = @transform_3, window_bounds = array<i64: 1, 16>}, {pipeline_mode = #tpu.pipeline_mode<synchronous>, transform_indices = @transform_4, window_bounds = array<i64: 36, 4>}, {pipeline_mode = #tpu.pipeline_mode<synchronous>, transform_indices = @transform_5, window_bounds = array<i64: 36, 4>}, {pipeline_mode = #tpu.pipeline_mode<synchronous>, transform_indices = @transform_6, window_bounds = array<i64: 1, 4>}, {pipeline_mode = #tpu.pipeline_mode<synchronous>, transform_indices = @transform_7, window_bounds = array<i64: 36, 4>}, {pipeline_mode = #tpu.pipeline_mode<synchronous>, transform_indices = @transform_8, window_bounds = array<i64: 1, 4>}, {transform_indices = @transform_9, window_bounds = array<i64: 1, 16, 16, 4>}]} {
    %c0 = arith.constant 0 : index
    %c0_0 = arith.constant 0 : index
    %c0_1 = arith.constant 0 : index
    %c0_2 = arith.constant 0 : index
    %0 = vector.load %arg1[%c0, %c0_0, %c0_1, %c0_2] : memref<1x8x8x4xf32, #tpu.memory_space<vmem>>, vector<1x8x8x4xf32>
    %1 = vector.shape_cast %0 : vector<1x8x8x4xf32> to vector<8x8x4xf32>
    %2 = vector.shape_cast %1 : vector<8x8x4xf32> to vector<64x4xf32>
    %c0_3 = arith.constant 0 : index
    %c0_4 = arith.constant 0 : index
    %3 = vector.load %arg3[%c0_3, %c0_4] : memref<4x16xf32, #tpu.memory_space<vmem>>, vector<4x16xf32>
    %cst = arith.constant dense<0.000000e+00> : vector<64x16xf32>
    %4 = tpu.matmul %2, %3, %cst {dimension_numbers = #tpu.dot_dimension_numbers<[1], [0], [0], [1], [0, 0, 1, 1], [], []>} : vector<64x4xf32>, vector<4x16xf32>, vector<64x16xf32> -> vector<64x16xf32>
    %c0_5 = arith.constant 0 : index
    %c0_6 = arith.constant 0 : index
    %5 = vector.load %arg4[%c0_5, %c0_6] : memref<1x16xf32, #tpu.memory_space<vmem>>, vector<1x16xf32>
    %6 = vector.broadcast %5 : vector<1x16xf32> to vector<64x16xf32>
    %7 = arith.addf %4, %6 : vector<64x16xf32>
    %8 = tpu.iota {dimensions = array<i32: 0>} : vector<16x16x4xi32>
    %c2_i32 = arith.constant 2 : i32
    %c0_i32 = arith.constant 0 : i32
    %9 = arith.cmpi eq, %c2_i32, %c0_i32 : i32
    %c1_i32 = arith.constant 1 : i32
    %10 = arith.select %9, %c1_i32, %c2_i32 : i32
    %11 = vector.broadcast %10 : i32 to vector<16x16x4xi32>
    %12 = arith.remsi %8, %11 : vector<16x16x4xi32>
    %c0_i32_7 = arith.constant 0 : i32
    %13 = vector.broadcast %c0_i32_7 : i32 to vector<16x16x4xi32>
    %14 = arith.cmpi ne, %12, %13 : vector<16x16x4xi32>
    %c0_i32_8 = arith.constant 0 : i32
    %15 = vector.broadcast %c0_i32_8 : i32 to vector<16x16x4xi32>
    %16 = arith.cmpi slt, %12, %15 : vector<16x16x4xi32>
    %c0_i32_9 = arith.constant 0 : i32
    %17 = arith.cmpi slt, %10, %c0_i32_9 : i32
    %18 = vector.broadcast %17 : i1 to vector<16x16x4xi1>
    %19 = vector.broadcast %18 : vector<16x16x4xi1> to vector<16x16x4xi1>
    %20 = arith.xori %16, %19 : vector<16x16x4xi1>
    %21 = arith.andi %20, %14 : vector<16x16x4xi1>
    %22 = vector.broadcast %10 : i32 to vector<16x16x4xi32>
    %23 = arith.addi %12, %22 : vector<16x16x4xi32>
    %24 = arith.select %21, %23, %12 : vector<16x16x4xi1>, vector<16x16x4xi32>
    %25 = tpu.iota {dimensions = array<i32: 1>} : vector<16x16x4xi32>
    %c2_i32_10 = arith.constant 2 : i32
    %c0_i32_11 = arith.constant 0 : i32
    %26 = arith.cmpi eq, %c2_i32_10, %c0_i32_11 : i32
    %c1_i32_12 = arith.constant 1 : i32
    %27 = arith.select %26, %c1_i32_12, %c2_i32_10 : i32
    %28 = vector.broadcast %27 : i32 to vector<16x16x4xi32>
    %29 = arith.remsi %25, %28 : vector<16x16x4xi32>
    %c0_i32_13 = arith.constant 0 : i32
    %30 = vector.broadcast %c0_i32_13 : i32 to vector<16x16x4xi32>
    %31 = arith.cmpi ne, %29, %30 : vector<16x16x4xi32>
    %c0_i32_14 = arith.constant 0 : i32
    %32 = vector.broadcast %c0_i32_14 : i32 to vector<16x16x4xi32>
    %33 = arith.cmpi slt, %29, %32 : vector<16x16x4xi32>
    %c0_i32_15 = arith.constant 0 : i32
    %34 = arith.cmpi slt, %27, %c0_i32_15 : i32
    %35 = vector.broadcast %34 : i1 to vector<16x16x4xi1>
    %36 = vector.broadcast %35 : vector<16x16x4xi1> to vector<16x16x4xi1>
    %37 = arith.xori %33, %36 : vector<16x16x4xi1>
    %38 = arith.andi %37, %31 : vector<16x16x4xi1>
    %39 = vector.broadcast %27 : i32 to vector<16x16x4xi32>
    %40 = arith.addi %29, %39 : vector<16x16x4xi32>
    %41 = arith.select %38, %40, %29 : vector<16x16x4xi1>, vector<16x16x4xi32>
    %cst_16 = arith.constant 0.000000e+00 : f32
    %42 = vector.broadcast %cst_16 : f32 to vector<16x16x4xf32>
    %43 = vector.extract_strided_slice %7 {offsets = [0, 0], sizes = [64, 4], strides = [1, 1]} : vector<64x16xf32> to vector<64x4xf32>
    %44 = vector.shape_cast %43 : vector<64x4xf32> to vector<8x8x4xf32>
    %45 = vector.shape_cast %44 : vector<8x8x4xf32> to vector<8x1x8x1x4xf32>
    %46 = vector.shape_cast %45 : vector<8x1x8x1x4xf32> to vector<8x1x8x1x4xf32>
    %47 = vector.broadcast %46 : vector<8x1x8x1x4xf32> to vector<8x2x8x2x4xf32>
    %48 = vector.shape_cast %47 : vector<8x2x8x2x4xf32> to vector<256x4xf32>
    %49 = vector.shape_cast %48 : vector<256x4xf32> to vector<16x16x4xf32>
    %c0_i32_17 = arith.constant 0 : i32
    %50 = vector.broadcast %c0_i32_17 : i32 to vector<16x16x4xi32>
    %51 = arith.cmpi eq, %24, %50 : vector<16x16x4xi32>
    %c0_i32_18 = arith.constant 0 : i32
    %52 = vector.broadcast %c0_i32_18 : i32 to vector<16x16x4xi32>
    %53 = arith.cmpi eq, %41, %52 : vector<16x16x4xi32>
    %54 = arith.andi %51, %53 : vector<16x16x4xi1>
    %55 = arith.extui %54 : vector<16x16x4xi1> to vector<16x16x4xi32>
    %56 = arith.sitofp %55 : vector<16x16x4xi32> to vector<16x16x4xf32>
    %57 = arith.mulf %49, %56 : vector<16x16x4xf32>
    %58 = arith.addf %42, %57 : vector<16x16x4xf32>
    %59 = vector.extract_strided_slice %7 {offsets = [0, 4], sizes = [64, 4], strides = [1, 1]} : vector<64x16xf32> to vector<64x4xf32>
    %60 = vector.shape_cast %59 : vector<64x4xf32> to vector<8x8x4xf32>
    %61 = vector.shape_cast %60 : vector<8x8x4xf32> to vector<8x1x8x1x4xf32>
    %62 = vector.shape_cast %61 : vector<8x1x8x1x4xf32> to vector<8x1x8x1x4xf32>
    %63 = vector.broadcast %62 : vector<8x1x8x1x4xf32> to vector<8x2x8x2x4xf32>
    %64 = vector.shape_cast %63 : vector<8x2x8x2x4xf32> to vector<256x4xf32>
    %65 = vector.shape_cast %64 : vector<256x4xf32> to vector<16x16x4xf32>
    %c0_i32_19 = arith.constant 0 : i32
    %66 = vector.broadcast %c0_i32_19 : i32 to vector<16x16x4xi32>
    %67 = arith.cmpi eq, %24, %66 : vector<16x16x4xi32>
    %c1_i32_20 = arith.constant 1 : i32
    %68 = vector.broadcast %c1_i32_20 : i32 to vector<16x16x4xi32>
    %69 = arith.cmpi eq, %41, %68 : vector<16x16x4xi32>
    %70 = arith.andi %67, %69 : vector<16x16x4xi1>
    %71 = arith.extui %70 : vector<16x16x4xi1> to vector<16x16x4xi32>
    %72 = arith.sitofp %71 : vector<16x16x4xi32> to vector<16x16x4xf32>
    %73 = arith.mulf %65, %72 : vector<16x16x4xf32>
    %74 = arith.addf %58, %73 : vector<16x16x4xf32>
    %75 = vector.extract_strided_slice %7 {offsets = [0, 8], sizes = [64, 4], strides = [1, 1]} : vector<64x16xf32> to vector<64x4xf32>
    %76 = vector.shape_cast %75 : vector<64x4xf32> to vector<8x8x4xf32>
    %77 = vector.shape_cast %76 : vector<8x8x4xf32> to vector<8x1x8x1x4xf32>
    %78 = vector.shape_cast %77 : vector<8x1x8x1x4xf32> to vector<8x1x8x1x4xf32>
    %79 = vector.broadcast %78 : vector<8x1x8x1x4xf32> to vector<8x2x8x2x4xf32>
    %80 = vector.shape_cast %79 : vector<8x2x8x2x4xf32> to vector<256x4xf32>
    %81 = vector.shape_cast %80 : vector<256x4xf32> to vector<16x16x4xf32>
    %c1_i32_21 = arith.constant 1 : i32
    %82 = vector.broadcast %c1_i32_21 : i32 to vector<16x16x4xi32>
    %83 = arith.cmpi eq, %24, %82 : vector<16x16x4xi32>
    %c0_i32_22 = arith.constant 0 : i32
    %84 = vector.broadcast %c0_i32_22 : i32 to vector<16x16x4xi32>
    %85 = arith.cmpi eq, %41, %84 : vector<16x16x4xi32>
    %86 = arith.andi %83, %85 : vector<16x16x4xi1>
    %87 = arith.extui %86 : vector<16x16x4xi1> to vector<16x16x4xi32>
    %88 = arith.sitofp %87 : vector<16x16x4xi32> to vector<16x16x4xf32>
    %89 = arith.mulf %81, %88 : vector<16x16x4xf32>
    %90 = arith.addf %74, %89 : vector<16x16x4xf32>
    %91 = vector.extract_strided_slice %7 {offsets = [0, 12], sizes = [64, 4], strides = [1, 1]} : vector<64x16xf32> to vector<64x4xf32>
    %92 = vector.shape_cast %91 : vector<64x4xf32> to vector<8x8x4xf32>
    %93 = vector.shape_cast %92 : vector<8x8x4xf32> to vector<8x1x8x1x4xf32>
    %94 = vector.shape_cast %93 : vector<8x1x8x1x4xf32> to vector<8x1x8x1x4xf32>
    %95 = vector.broadcast %94 : vector<8x1x8x1x4xf32> to vector<8x2x8x2x4xf32>
    %96 = vector.shape_cast %95 : vector<8x2x8x2x4xf32> to vector<256x4xf32>
    %97 = vector.shape_cast %96 : vector<256x4xf32> to vector<16x16x4xf32>
    %c1_i32_23 = arith.constant 1 : i32
    %98 = vector.broadcast %c1_i32_23 : i32 to vector<16x16x4xi32>
    %99 = arith.cmpi eq, %24, %98 : vector<16x16x4xi32>
    %c1_i32_24 = arith.constant 1 : i32
    %100 = vector.broadcast %c1_i32_24 : i32 to vector<16x16x4xi32>
    %101 = arith.cmpi eq, %41, %100 : vector<16x16x4xi32>
    %102 = arith.andi %99, %101 : vector<16x16x4xi1>
    %103 = arith.extui %102 : vector<16x16x4xi1> to vector<16x16x4xi32>
    %104 = arith.sitofp %103 : vector<16x16x4xi32> to vector<16x16x4xf32>
    %105 = arith.mulf %97, %104 : vector<16x16x4xf32>
    %106 = arith.addf %90, %105 : vector<16x16x4xf32>
    %cst_25 = arith.constant 0.000000e+00 : f32
    %107 = vector.broadcast %cst_25 : f32 to vector<18x25x4xf32>
    %c0_26 = arith.constant 0 : index
    %c0_27 = arith.constant 0 : index
    %c0_28 = arith.constant 0 : index
    %108 = vector.load %arg11[%c0_26, %c0_27, %c0_28] : memref<18x25x4xf32, #tpu.memory_space<vmem>>, vector<18x25x4xf32>
    tpu.vector_store %arg11[%c0_26, %c0_27, %c0_28], %107 {strides = array<i32>} : memref<18x25x4xf32, #tpu.memory_space<vmem>>, vector<18x25x4xf32>,
    %cst_29 = arith.constant 0.000000e+00 : f32
    %109 = vector.broadcast %cst_29 : f32 to vector<18x25x4xf32>
    %c0_30 = arith.constant 0 : index
    %c0_31 = arith.constant 0 : index
    %c0_32 = arith.constant 0 : index
    %110 = vector.load %arg12[%c0_30, %c0_31, %c0_32] : memref<18x25x4xf32, #tpu.memory_space<vmem>>, vector<18x25x4xf32>
    tpu.vector_store %arg12[%c0_30, %c0_31, %c0_32], %109 {strides = array<i32>} : memref<18x25x4xf32, #tpu.memory_space<vmem>>, vector<18x25x4xf32>,
    %c0_33 = arith.constant 0 : index
    %c0_34 = arith.constant 0 : index
    %c0_35 = arith.constant 0 : index
    %c0_36 = arith.constant 0 : index
    %111 = vector.load %arg2[%c0_33, %c0_34, %c0_35, %c0_36] : memref<1x16x16x4xf32, #tpu.memory_space<vmem>>, vector<1x16x16x4xf32>
    %112 = vector.shape_cast %111 : vector<1x16x16x4xf32> to vector<16x16x4xf32>
    %c1 = arith.constant 1 : index
    %c8 = arith.constant 8 : index
    %c0_37 = arith.constant 0 : index
    %113 = vector.load %arg11[%c1, %c8, %c0_37] : memref<18x25x4xf32, #tpu.memory_space<vmem>>, vector<16x16x4xf32>
    tpu.vector_store %arg11[%c1, %c8, %c0_37], %112 {strides = array<i32>} : memref<18x25x4xf32, #tpu.memory_space<vmem>>, vector<16x16x4xf32>,
    %c1_38 = arith.constant 1 : index
    %c8_39 = arith.constant 8 : index
    %c0_40 = arith.constant 0 : index
    %114 = vector.load %arg12[%c1_38, %c8_39, %c0_40] : memref<18x25x4xf32, #tpu.memory_space<vmem>>, vector<16x16x4xf32>
    tpu.vector_store %arg12[%c1_38, %c8_39, %c0_40], %106 {strides = array<i32>} : memref<18x25x4xf32, #tpu.memory_space<vmem>>, vector<16x16x4xf32>,
    %c0_41 = arith.constant 0 : index
    %c7 = arith.constant 7 : index
    %c0_42 = arith.constant 0 : index
    %115 = vector.load %arg11[%c0_41, %c7, %c0_42] : memref<18x25x4xf32, #tpu.memory_space<vmem>>, vector<16x16x4xf32>
    %116 = vector.shape_cast %115 : vector<16x16x4xf32> to vector<256x4xf32>
    %c0_43 = arith.constant 0 : index
    %c8_44 = arith.constant 8 : index
    %c0_45 = arith.constant 0 : index
    %117 = vector.load %arg11[%c0_43, %c8_44, %c0_45] : memref<18x25x4xf32, #tpu.memory_space<vmem>>, vector<16x16x4xf32>
    %118 = vector.shape_cast %117 : vector<16x16x4xf32> to vector<256x4xf32>
    %c0_46 = arith.constant 0 : index
    %c9 = arith.constant 9 : index
    %c0_47 = arith.constant 0 : index
    %119 = vector.load %arg11[%c0_46, %c9, %c0_47] : memref<18x25x4xf32, #tpu.memory_space<vmem>>, vector<16x16x4xf32>
    %120 = vector.shape_cast %119 : vector<16x16x4xf32> to vector<256x4xf32>
    %c1_48 = arith.constant 1 : index
    %c7_49 = arith.constant 7 : index
    %c0_50 = arith.constant 0 : index
    %121 = vector.load %arg11[%c1_48, %c7_49, %c0_50] : memref<18x25x4xf32, #tpu.memory_space<vmem>>, vector<16x16x4xf32>
    %122 = vector.shape_cast %121 : vector<16x16x4xf32> to vector<256x4xf32>
    %c1_51 = arith.constant 1 : index
    %c8_52 = arith.constant 8 : index
    %c0_53 = arith.constant 0 : index
    %123 = vector.load %arg11[%c1_51, %c8_52, %c0_53] : memref<18x25x4xf32, #tpu.memory_space<vmem>>, vector<16x16x4xf32>
    %124 = vector.shape_cast %123 : vector<16x16x4xf32> to vector<256x4xf32>
    %c1_54 = arith.constant 1 : index
    %c9_55 = arith.constant 9 : index
    %c0_56 = arith.constant 0 : index
    %125 = vector.load %arg11[%c1_54, %c9_55, %c0_56] : memref<18x25x4xf32, #tpu.memory_space<vmem>>, vector<16x16x4xf32>
    %126 = vector.shape_cast %125 : vector<16x16x4xf32> to vector<256x4xf32>
    %c2 = arith.constant 2 : index
    %c7_57 = arith.constant 7 : index
    %c0_58 = arith.constant 0 : index
    %127 = vector.load %arg11[%c2, %c7_57, %c0_58] : memref<18x25x4xf32, #tpu.memory_space<vmem>>, vector<16x16x4xf32>
    %128 = vector.shape_cast %127 : vector<16x16x4xf32> to vector<256x4xf32>
    %c2_59 = arith.constant 2 : index
    %c8_60 = arith.constant 8 : index
    %c0_61 = arith.constant 0 : index
    %129 = vector.load %arg11[%c2_59, %c8_60, %c0_61] : memref<18x25x4xf32, #tpu.memory_space<vmem>>, vector<16x16x4xf32>
    %130 = vector.shape_cast %129 : vector<16x16x4xf32> to vector<256x4xf32>
    %c2_62 = arith.constant 2 : index
    %c9_63 = arith.constant 9 : index
    %c0_64 = arith.constant 0 : index
    %131 = vector.load %arg11[%c2_62, %c9_63, %c0_64] : memref<18x25x4xf32, #tpu.memory_space<vmem>>, vector<16x16x4xf32>
    %132 = vector.shape_cast %131 : vector<16x16x4xf32> to vector<256x4xf32>
    %133 = tpu.concatenate %116, %118, %120, %122, %124, %126, %128, %130, %132 in 1 : vector<256x4xf32>, vector<256x4xf32>, vector<256x4xf32>, vector<256x4xf32>, vector<256x4xf32>, vector<256x4xf32>, vector<256x4xf32>, vector<256x4xf32>, vector<256x4xf32> -> vector<256x36xf32>
    %c0_65 = arith.constant 0 : index
    %c0_66 = arith.constant 0 : index
    %134 = vector.load %arg5[%c0_65, %c0_66] : memref<36x4xf32, #tpu.memory_space<vmem>>, vector<36x4xf32>
    %cst_67 = arith.constant dense<0.000000e+00> : vector<256x4xf32>
    %135 = tpu.matmul %133, %134, %cst_67 {dimension_numbers = #tpu.dot_dimension_numbers<[1], [0], [0], [1], [0, 0, 1, 1], [], []>} : vector<256x36xf32>, vector<36x4xf32>, vector<256x4xf32> -> vector<256x4xf32>
    %c0_68 = arith.constant 0 : index
    %c7_69 = arith.constant 7 : index
    %c0_70 = arith.constant 0 : index
    %136 = vector.load %arg12[%c0_68, %c7_69, %c0_70] : memref<18x25x4xf32, #tpu.memory_space<vmem>>, vector<16x16x4xf32>
    %137 = vector.shape_cast %136 : vector<16x16x4xf32> to vector<256x4xf32>
    %c0_71 = arith.constant 0 : index
    %c8_72 = arith.constant 8 : index
    %c0_73 = arith.constant 0 : index
    %138 = vector.load %arg12[%c0_71, %c8_72, %c0_73] : memref<18x25x4xf32, #tpu.memory_space<vmem>>, vector<16x16x4xf32>
    %139 = vector.shape_cast %138 : vector<16x16x4xf32> to vector<256x4xf32>
    %c0_74 = arith.constant 0 : index
    %c9_75 = arith.constant 9 : index
    %c0_76 = arith.constant 0 : index
    %140 = vector.load %arg12[%c0_74, %c9_75, %c0_76] : memref<18x25x4xf32, #tpu.memory_space<vmem>>, vector<16x16x4xf32>
    %141 = vector.shape_cast %140 : vector<16x16x4xf32> to vector<256x4xf32>
    %c1_77 = arith.constant 1 : index
    %c7_78 = arith.constant 7 : index
    %c0_79 = arith.constant 0 : index
    %142 = vector.load %arg12[%c1_77, %c7_78, %c0_79] : memref<18x25x4xf32, #tpu.memory_space<vmem>>, vector<16x16x4xf32>
    %143 = vector.shape_cast %142 : vector<16x16x4xf32> to vector<256x4xf32>
    %c1_80 = arith.constant 1 : index
    %c8_81 = arith.constant 8 : index
    %c0_82 = arith.constant 0 : index
    %144 = vector.load %arg12[%c1_80, %c8_81, %c0_82] : memref<18x25x4xf32, #tpu.memory_space<vmem>>, vector<16x16x4xf32>
    %145 = vector.shape_cast %144 : vector<16x16x4xf32> to vector<256x4xf32>
    %c1_83 = arith.constant 1 : index
    %c9_84 = arith.constant 9 : index
    %c0_85 = arith.constant 0 : index
    %146 = vector.load %arg12[%c1_83, %c9_84, %c0_85] : memref<18x25x4xf32, #tpu.memory_space<vmem>>, vector<16x16x4xf32>
    %147 = vector.shape_cast %146 : vector<16x16x4xf32> to vector<256x4xf32>
    %c2_86 = arith.constant 2 : index
    %c7_87 = arith.constant 7 : index
    %c0_88 = arith.constant 0 : index
    %148 = vector.load %arg12[%c2_86, %c7_87, %c0_88] : memref<18x25x4xf32, #tpu.memory_space<vmem>>, vector<16x16x4xf32>
    %149 = vector.shape_cast %148 : vector<16x16x4xf32> to vector<256x4xf32>
    %c2_89 = arith.constant 2 : index
    %c8_90 = arith.constant 8 : index
    %c0_91 = arith.constant 0 : index
    %150 = vector.load %arg12[%c2_89, %c8_90, %c0_91] : memref<18x25x4xf32, #tpu.memory_space<vmem>>, vector<16x16x4xf32>
    %151 = vector.shape_cast %150 : vector<16x16x4xf32> to vector<256x4xf32>
    %c2_92 = arith.constant 2 : index
    %c9_93 = arith.constant 9 : index
    %c0_94 = arith.constant 0 : index
    %152 = vector.load %arg12[%c2_92, %c9_93, %c0_94] : memref<18x25x4xf32, #tpu.memory_space<vmem>>, vector<16x16x4xf32>
    %153 = vector.shape_cast %152 : vector<16x16x4xf32> to vector<256x4xf32>
    %154 = tpu.concatenate %137, %139, %141, %143, %145, %147, %149, %151, %153 in 1 : vector<256x4xf32>, vector<256x4xf32>, vector<256x4xf32>, vector<256x4xf32>, vector<256x4xf32>, vector<256x4xf32>, vector<256x4xf32>, vector<256x4xf32>, vector<256x4xf32> -> vector<256x36xf32>
    %c0_95 = arith.constant 0 : index
    %c0_96 = arith.constant 0 : index
    %155 = vector.load %arg6[%c0_95, %c0_96] : memref<36x4xf32, #tpu.memory_space<vmem>>, vector<36x4xf32>
    %cst_97 = arith.constant dense<0.000000e+00> : vector<256x4xf32>
    %156 = tpu.matmul %154, %155, %cst_97 {dimension_numbers = #tpu.dot_dimension_numbers<[1], [0], [0], [1], [0, 0, 1, 1], [], []>} : vector<256x36xf32>, vector<36x4xf32>, vector<256x4xf32> -> vector<256x4xf32>
    %157 = arith.addf %135, %156 : vector<256x4xf32>
    %c0_98 = arith.constant 0 : index
    %c0_99 = arith.constant 0 : index
    %158 = vector.load %arg7[%c0_98, %c0_99] : memref<1x4xf32, #tpu.memory_space<vmem>>, vector<1x4xf32>
    %159 = vector.broadcast %158 : vector<1x4xf32> to vector<256x4xf32>
    %160 = arith.addf %157, %159 : vector<256x4xf32>
    %cst_100 = arith.constant 0.000000e+00 : f32
    %161 = vector.broadcast %cst_100 : f32 to vector<256x4xf32>
    %162 = arith.maximumf %160, %161 : vector<256x4xf32>
    %cst_101 = arith.constant 0.000000e+00 : f32
    %163 = vector.broadcast %cst_101 : f32 to vector<18x25x4xf32>
    %c0_102 = arith.constant 0 : index
    %c0_103 = arith.constant 0 : index
    %c0_104 = arith.constant 0 : index
    %164 = vector.load %arg13[%c0_102, %c0_103, %c0_104] : memref<18x25x4xf32, #tpu.memory_space<vmem>>, vector<18x25x4xf32>
    tpu.vector_store %arg13[%c0_102, %c0_103, %c0_104], %163 {strides = array<i32>} : memref<18x25x4xf32, #tpu.memory_space<vmem>>, vector<18x25x4xf32>,
    %165 = vector.shape_cast %162 : vector<256x4xf32> to vector<16x16x4xf32>
    %c1_105 = arith.constant 1 : index
    %c8_106 = arith.constant 8 : index
    %c0_107 = arith.constant 0 : index
    %166 = vector.load %arg13[%c1_105, %c8_106, %c0_107] : memref<18x25x4xf32, #tpu.memory_space<vmem>>, vector<16x16x4xf32>
    tpu.vector_store %arg13[%c1_105, %c8_106, %c0_107], %165 {strides = array<i32>} : memref<18x25x4xf32, #tpu.memory_space<vmem>>, vector<16x16x4xf32>,
    %c0_108 = arith.constant 0 : index
    %c7_109 = arith.constant 7 : index
    %c0_110 = arith.constant 0 : index
    %167 = vector.load %arg13[%c0_108, %c7_109, %c0_110] : memref<18x25x4xf32, #tpu.memory_space<vmem>>, vector<16x16x4xf32>
    %168 = vector.shape_cast %167 : vector<16x16x4xf32> to vector<256x4xf32>
    %c0_111 = arith.constant 0 : index
    %c8_112 = arith.constant 8 : index
    %c0_113 = arith.constant 0 : index
    %169 = vector.load %arg13[%c0_111, %c8_112, %c0_113] : memref<18x25x4xf32, #tpu.memory_space<vmem>>, vector<16x16x4xf32>
    %170 = vector.shape_cast %169 : vector<16x16x4xf32> to vector<256x4xf32>
    %c0_114 = arith.constant 0 : index
    %c9_115 = arith.constant 9 : index
    %c0_116 = arith.constant 0 : index
    %171 = vector.load %arg13[%c0_114, %c9_115, %c0_116] : memref<18x25x4xf32, #tpu.memory_space<vmem>>, vector<16x16x4xf32>
    %172 = vector.shape_cast %171 : vector<16x16x4xf32> to vector<256x4xf32>
    %c1_117 = arith.constant 1 : index
    %c7_118 = arith.constant 7 : index
    %c0_119 = arith.constant 0 : index
    %173 = vector.load %arg13[%c1_117, %c7_118, %c0_119] : memref<18x25x4xf32, #tpu.memory_space<vmem>>, vector<16x16x4xf32>
    %174 = vector.shape_cast %173 : vector<16x16x4xf32> to vector<256x4xf32>
    %c1_120 = arith.constant 1 : index
    %c8_121 = arith.constant 8 : index
    %c0_122 = arith.constant 0 : index
    %175 = vector.load %arg13[%c1_120, %c8_121, %c0_122] : memref<18x25x4xf32, #tpu.memory_space<vmem>>, vector<16x16x4xf32>
    %176 = vector.shape_cast %175 : vector<16x16x4xf32> to vector<256x4xf32>
    %c1_123 = arith.constant 1 : index
    %c9_124 = arith.constant 9 : index
    %c0_125 = arith.constant 0 : index
    %177 = vector.load %arg13[%c1_123, %c9_124, %c0_125] : memref<18x25x4xf32, #tpu.memory_space<vmem>>, vector<16x16x4xf32>
    %178 = vector.shape_cast %177 : vector<16x16x4xf32> to vector<256x4xf32>
    %c2_126 = arith.constant 2 : index
    %c7_127 = arith.constant 7 : index
    %c0_128 = arith.constant 0 : index
    %179 = vector.load %arg13[%c2_126, %c7_127, %c0_128] : memref<18x25x4xf32, #tpu.memory_space<vmem>>, vector<16x16x4xf32>
    %180 = vector.shape_cast %179 : vector<16x16x4xf32> to vector<256x4xf32>
    %c2_129 = arith.constant 2 : index
    %c8_130 = arith.constant 8 : index
    %c0_131 = arith.constant 0 : index
    %181 = vector.load %arg13[%c2_129, %c8_130, %c0_131] : memref<18x25x4xf32, #tpu.memory_space<vmem>>, vector<16x16x4xf32>
    %182 = vector.shape_cast %181 : vector<16x16x4xf32> to vector<256x4xf32>
    %c2_132 = arith.constant 2 : index
    %c9_133 = arith.constant 9 : index
    %c0_134 = arith.constant 0 : index
    %183 = vector.load %arg13[%c2_132, %c9_133, %c0_134] : memref<18x25x4xf32, #tpu.memory_space<vmem>>, vector<16x16x4xf32>
    %184 = vector.shape_cast %183 : vector<16x16x4xf32> to vector<256x4xf32>
    %185 = tpu.concatenate %168, %170, %172, %174, %176, %178, %180, %182, %184 in 1 : vector<256x4xf32>, vector<256x4xf32>, vector<256x4xf32>, vector<256x4xf32>, vector<256x4xf32>, vector<256x4xf32>, vector<256x4xf32>, vector<256x4xf32>, vector<256x4xf32> -> vector<256x36xf32>
    %c0_135 = arith.constant 0 : index
    %c0_136 = arith.constant 0 : index
    %186 = vector.load %arg8[%c0_135, %c0_136] : memref<36x4xf32, #tpu.memory_space<vmem>>, vector<36x4xf32>
    %cst_137 = arith.constant dense<0.000000e+00> : vector<256x4xf32>
    %187 = tpu.matmul %185, %186, %cst_137 {dimension_numbers = #tpu.dot_dimension_numbers<[1], [0], [0], [1], [0, 0, 1, 1], [], []>} : vector<256x36xf32>, vector<36x4xf32>, vector<256x4xf32> -> vector<256x4xf32>
    %c0_138 = arith.constant 0 : index
    %c0_139 = arith.constant 0 : index
    %188 = vector.load %arg9[%c0_138, %c0_139] : memref<1x4xf32, #tpu.memory_space<vmem>>, vector<1x4xf32>
    %189 = vector.broadcast %188 : vector<1x4xf32> to vector<256x4xf32>
    %190 = arith.addf %187, %189 : vector<256x4xf32>
    %cst_140 = arith.constant 0.000000e+00 : f32
    %191 = vector.broadcast %cst_140 : f32 to vector<256x4xf32>
    %192 = arith.maximumf %190, %191 : vector<256x4xf32>
    %193 = vector.shape_cast %192 : vector<256x4xf32> to vector<16x16x4xf32>
    %c0_141 = arith.constant 0 : index
    %c0_142 = arith.constant 0 : index
    %c0_143 = arith.constant 0 : index
    %c0_144 = arith.constant 0 : index
    %194 = vector.load %arg10[%c0_141, %c0_142, %c0_143, %c0_144] : memref<1x16x16x4xf32, #tpu.memory_space<vmem>>, vector<1x16x16x4xf32>
    %195 = vector.shape_cast %194 : vector<1x16x16x4xf32> to vector<16x16x4xf32>
    %196 = vector.shape_cast %193 : vector<16x16x4xf32> to vector<1x16x16x4xf32>
    tpu.vector_store %arg10[%c0_141, %c0_142, %c0_143, %c0_144], %196 {strides = array<i32>} : memref<1x16x16x4xf32, #tpu.memory_space<vmem>>, vector<1x16x16x4xf32>,
    return
  }
  func.func @transform_0(%arg0: i32) -> (i32, i32, i32, i32) {
    %c0_i32 = arith.constant 0 : i32
    %c0_i32_0 = arith.constant 0 : i32
    %c0_i32_1 = arith.constant 0 : i32
    %c0_i32_2 = arith.constant 0 : i32
    return %arg0, %c0_i32, %c0_i32_0, %c0_i32_1 : i32, i32, i32, i32
  }
  func.func @transform_1(%arg0: i32) -> (i32, i32, i32, i32) {
    %c0_i32 = arith.constant 0 : i32
    %c0_i32_0 = arith.constant 0 : i32
    %c0_i32_1 = arith.constant 0 : i32
    %c0_i32_2 = arith.constant 0 : i32
    return %arg0, %c0_i32, %c0_i32_0, %c0_i32_1 : i32, i32, i32, i32
  }
  func.func @transform_2(%arg0: i32) -> (i32, i32) {
    %c0_i32 = arith.constant 0 : i32
    %c0_i32_0 = arith.constant 0 : i32
    %c0_i32_1 = arith.constant 0 : i32
    return %c0_i32, %c0_i32_0 : i32, i32
  }
  func.func @transform_3(%arg0: i32) -> (i32, i32) {
    %c0_i32 = arith.constant 0 : i32
    %c0_i32_0 = arith.constant 0 : i32
    %c0_i32_1 = arith.constant 0 : i32
    return %c0_i32, %c0_i32_0 : i32, i32
  }
  func.func @transform_4(%arg0: i32) -> (i32, i32) {
    %c0_i32 = arith.constant 0 : i32
    %c0_i32_0 = arith.constant 0 : i32
    %c0_i32_1 = arith.constant 0 : i32
    return %c0_i32, %c0_i32_0 : i32, i32
  }
  func.func @transform_5(%arg0: i32) -> (i32, i32) {
    %c0_i32 = arith.constant 0 : i32
    %c0_i32_0 = arith.constant 0 : i32
    %c0_i32_1 = arith.constant 0 : i32
    return %c0_i32, %c0_i32_0 : i32, i32
  }
  func.func @transform_6(%arg0: i32) -> (i32, i32) {
    %c0_i32 = arith.constant 0 : i32
    %c0_i32_0 = arith.constant 0 : i32
    %c0_i32_1 = arith.constant 0 : i32
    return %c0_i32, %c0_i32_0 : i32, i32
  }
  func.func @transform_7(%arg0: i32) -> (i32, i32) {
    %c0_i32 = arith.constant 0 : i32
    %c0_i32_0 = arith.constant 0 : i32
    %c0_i32_1 = arith.constant 0 : i32
    return %c0_i32, %c0_i32_0 : i32, i32
  }
  func.func @transform_8(%arg0: i32) -> (i32, i32) {
    %c0_i32 = arith.constant 0 : i32
    %c0_i32_0 = arith.constant 0 : i32
    %c0_i32_1 = arith.constant 0 : i32
    return %c0_i32, %c0_i32_0 : i32, i32
  }
  func.func @transform_9(%arg0: i32) -> (i32, i32, i32, i32) {
    %c0_i32 = arith.constant 0 : i32
    %c0_i32_0 = arith.constant 0 : i32
    %c0_i32_1 = arith.constant 0 : i32
    %c0_i32_2 = arith.constant 0 : i32
    return %arg0, %c0_i32, %c0_i32_0, %c0_i32_1 : i32, i32, i32, i32
  }
}

</mosaic_0001>

<llo_original>
// kernel: tile.9
$region0: #{tile.9}
  %s0 = inlined_call_operand.vmem [shape: f32[4,4], index: 0, kind: input, shape index: {}]
  %s1 = inlined_call_operand.vmem [shape: f32[1,16], index: 1, kind: output, shape index: {}]
  $region1: #{tile.9} parent=0
    #allocation0 [shape = 'u8[4096]{0}', space=vmem, size = 0x1000, scoped, tag = 'scoped mem for output reshape']
    #allocation1 [shape = 'u8[4096]{0}', space=vmem, size = 0x1000, scoped, tag = 'scoped mem for input reshape']
    %s3 = ssub.s32 16, 1
    %v4 = vld [vmem:[%s0] sm:%s3]
    %5 = vst [vmem:[#allocation1] sm:%s3] %v4
    %v6 = vld [vmem:[#allocation1] sm:$0x1]
    %vm7 = vcmask 31744
    %8 = vst.msk [vmem:[#allocation0] sm:$0x1] %vm7, %v6
    %s9 = scalar_lea.vmem [#allocation1], 3
    %v10 = vld [vmem:[%s9] sm:$0x1]
    %11 = vrot.lane.b32.xlu0 %v10, 12
    %v12 = vpop.permute.xlu0 %11
    %vm13 = vcmask 130144
    %14 = vst.msk [vmem:[#allocation0] sm:$0x1] %vm13, %v12
    %s15 = scalar_lea.vmem [#allocation1], 2
    %v16 = vld [vmem:[%s15] sm:$0x1]
    %17 = vrot.lane.b32.xlu0 %v16, 8
    %v18 = vpop.permute.xlu0 %17
    %vm19 = vcmask 97344
    %20 = vst.msk [vmem:[#allocation0] sm:$0x1] %vm19, %v18
    %s21 = scalar_lea.vmem [#allocation1], 1
    %v22 = vld [vmem:[%s21] sm:$0x1]
    %23 = vrot.lane.b32.xlu0 %v22, 4
    %v24 = vpop.permute.xlu0 %23
    %vm25 = vcmask 64544
    %26 = vst.msk [vmem:[#allocation0] sm:$0x1] %vm25, %v24
    %s28 = ssub.s32 2, 1
    %v29 = vld [vmem:[#allocation0] sm:%s28]
    %s31 = ssub.s32 2, 1
    %32 = vst [vmem:[%s1] sm:%s31] %v29

// kernel: tile.8
$region0: #{tile.8}
  #allocation2 [shape = 's32[1]{0}', space=sflag, size = 0x4, scoped, tag = 'scoped memory for tile.8']
  %s0 = inlined_call_operand.hbm [shape: f32[4], index: 0, kind: input, shape index: {}]
  %s1 = inlined_call_operand.vmem [shape: f32[4,4], index: 1, kind: output, shape index: {}]
  $region1: #{tile.8} parent=0
    #allocation0 [shape = 'u8[512]{0}', space=vmem, size = 0x400, scoped, tag = 'operand span for operand 0']
    #allocation1 [shape = 's32[1]{0}', space=sflag, size = 0x4, scoped, tag = 'scoped memory for tile.8']
    %2 = vsyncpa [#allocation1], 0
    // Predicated region
    $region2: #{tile.8} parent=1 // pred_check
      _
    $region3: #{tile.8} parent=1 // pred_check_branch
      %4 = sbr.rel (0) target = $region5
    $region4: #{tile.8} parent=1 // pred_region
      %6 = vsyncadd [#allocation1], 0
      %s8 = sshll.u32 %s0, 4
      %s9 = int_to_ptr.hbm [resolvable:$true] %s8
      %s10 = sshll.u32 [#allocation0], 4
      %s11 = int_to_ptr.vmem [resolvable:$true] %s10
      %13 = dma.hbm_to_vmem [thread:$0]  %s9, 16, %s11, [#allocation1]
    $region5: #{tile.8} parent=1 // pred_fallthru
      _
    // Predicated region
    $region6: #{tile.8} parent=1 // pred_check
      _
    $region7: #{tile.8} parent=1 // pred_check_branch
      %15 = sbr.rel (0) target = $region9
    $region8: #{tile.8} parent=1 // pred_region
      %17 = dma.done [#allocation1], 16
    $region9: #{tile.8} parent=1 // pred_fallthru
      _
    %v18 = vld [vmem:[#allocation0] ss:$0 sm:$0xff]
    %19 = vst [vmem:[%s1] sm:$0xf] %v18
    %20 = vsyncpa [#allocation1], 1

// kernel: up_forward.1
$region0: #{up_forward.1}
  #allocation0 [shape = 'u32[]', space=smem, size = 0x4, offset = 0x4, fixed_abs, tag = 'smem constant byte address 0x4 - core index']
  #allocation1 [shape = 'u32[72,128]{1,0:T(1,128)}', space=vmem, size = 0x9000, scoped, tag = 'internal scratch']
  #allocation2 [shape = 'f32[18,25,4]{2,1,0:T(8,128)}', space=vmem, size = 0x48000, scoped, tag = 'scratch operand']
  #allocation3 [shape = 'f32[18,25,4]{2,1,0:T(8,128)}', space=vmem, size = 0x48000, scoped, tag = 'scratch operand']
  #allocation4 [shape = 'f32[18,25,4]{2,1,0:T(8,128)}', space=vmem, size = 0x48000, scoped, tag = 'scratch operand']
  %s0 = inlined_call_operand.vmem [shape: f32[2,8,8,4], index: 0, kind: input, shape index: {}]
  %s1 = inlined_call_operand.vmem [shape: f32[2,16,16,4], index: 1, kind: input, shape index: {}]
  %s2 = inlined_call_operand.vmem [shape: f32[4,16], index: 2, kind: input, shape index: {}]
  %s3 = inlined_call_operand.vmem [shape: f32[1,16], index: 3, kind: input, shape index: {}]
  %s4 = inlined_call_operand.vmem [shape: f32[36,4], index: 4, kind: input, shape index: {}]
  %s5 = inlined_call_operand.vmem [shape: f32[36,4], index: 5, kind: input, shape index: {}]
  %s6 = inlined_call_operand.vmem [shape: f32[1,4], index: 6, kind: input, shape index: {}]
  %s7 = inlined_call_operand.vmem [shape: f32[36,4], index: 7, kind: input, shape index: {}]
  %s8 = inlined_call_operand.vmem [shape: f32[1,4], index: 8, kind: input, shape index: {}]
  %s9 = inlined_call_operand.vmem [shape: f32[2,16,16,4], index: 9, kind: output, shape index: {}]
  %s10 = sld [smem:[#allocation0]]
  $region69: #{up_forward.1} parent=0
    _
  %s12 = ssub.s32 1, %s10
  %s13 = scalar_select 0, %s12, %s10
  loop: start=0, step=1, limit=4
  $region2: #{up_forward.1} parent=0 // loop_pre_header
    _
  $region3: #{up_forward.1} parent=0 // loop_header
    %s15 = sphi 0, %s19
    %p16 = scmp.ge.s32.totalorder %s15, 4
    %s25 = sphi 0, %s27
    %s28 = sphi 0, %s25
    %s29 = sphi 0, %s28
    %s45 = sphi 0, %s29
    %s51 = sphi 0, %s53
    %s54 = sphi 0, %s51
    %s55 = sphi 0, %s54
    %s71 = sphi 0, %s55
    %s75 = sphi 0, %s75
    %s77 = sphi 0, %s75
    %s78 = sphi 0, %s77
    %s92 = sphi 0, %s78
    %s96 = sphi 0, %s96
    %s98 = sphi 0, %s96
    %s99 = sphi 0, %s98
    %s113 = sphi 0, %s99
    %s117 = sphi 0, %s117
    %s119 = sphi 0, %s117
    %s120 = sphi 0, %s119
    %s134 = sphi 0, %s120
    %s138 = sphi 0, %s138
    %s140 = sphi 0, %s138
    %s141 = sphi 0, %s140
    %s155 = sphi 0, %s141
    %s159 = sphi 0, %s159
    %s161 = sphi 0, %s159
    %s162 = sphi 0, %s161
    %s176 = sphi 0, %s162
    %s180 = sphi 0, %s180
    %s182 = sphi 0, %s180
    %s183 = sphi 0, %s182
    %s197 = sphi 0, %s183
    %s201 = sphi 0, %s201
    %s203 = sphi 0, %s201
    %s204 = sphi 0, %s203
    %s218 = sphi 0, %s204
    %s224 = sphi 0, %s226
    %s227 = sphi 0, %s224
    %s228 = sphi 0, %s227
    %s244 = sphi 0, %s228
  $region4: #{up_forward.1} parent=0 // loop_header_branch
    %18 = sbr.rel (%p16) target = $region8
  $region5: #{up_forward.1} parent=0 // loop_body
    %s20 = ssub.s32 %s15, 1
    %s21 = ssub.s32 %s15, 2
    %s22 = sadd.s32 %s15, 1
    %s23 = ssub.s32 %s15, %s22
    %p24 = scmp.eq.s32.totalorder %s23, 0
    %s26 = sadd.s32 %s25, 1
    %s27 = scalar_select %p24, %s25, %s26
    %p30 = pneg %p24
    %p31 = scmp.eq.s32.totalorder %s15, 1
    %p32 = por %p30, %p31
    %p33 = scmp.ne.s32.totalorder %s25, %s28
    %p34 = scmp.eq.s32.totalorder %s15, 0
    %p35 = por %p33, %p34
    %p36 = scmp.ne.s32.totalorder %s25, %s28
    %p37 = scmp.eq.s32.totalorder %s20, 1
    %p38 = por %p36, %p37
    %p39 = scmp.ne.s32.totalorder %s28, %s29
    %p40 = scmp.eq.s32.totalorder %s20, 0
    %p41 = por %p39, %p40
    %p42 = scmp.ne.s32.totalorder %s28, %s29
    %p43 = scmp.eq.s32.totalorder %s21, 1
    %p44 = por %p42, %p43
    %p46 = scmp.ne.s32.totalorder %s29, %s45
    %p47 = scmp.eq.s32.totalorder %s21, 0
    %p48 = por %p46, %p47
    %s49 = ssub.s32 %s15, %s22
    %p50 = scmp.eq.s32.totalorder %s49, 0
    %s52 = sadd.s32 %s51, 1
    %s53 = scalar_select %p50, %s51, %s52
    %p56 = pneg %p50
    %p57 = scmp.eq.s32.totalorder %s15, 1
    %p58 = por %p56, %p57
    %p59 = scmp.ne.s32.totalorder %s51, %s54
    %p60 = scmp.eq.s32.totalorder %s15, 0
    %p61 = por %p59, %p60
    %p62 = scmp.ne.s32.totalorder %s51, %s54
    %p63 = scmp.eq.s32.totalorder %s20, 1
    %p64 = por %p62, %p63
    %p65 = scmp.ne.s32.totalorder %s54, %s55
    %p66 = scmp.eq.s32.totalorder %s20, 0
    %p67 = por %p65, %p66
    %p68 = scmp.ne.s32.totalorder %s54, %s55
    %p69 = scmp.eq.s32.totalorder %s21, 1
    %p70 = por %p68, %p69
    %p72 = scmp.ne.s32.totalorder %s55, %s71
    %p73 = scmp.eq.s32.totalorder %s21, 0
    %p74 = por %p72, %p73
    %s76 = sadd.s32 %s75, 1
    %p79 = scmp.eq.s32.totalorder %s15, 1
    %p80 = scmp.ne.s32.totalorder %s75, %s77
    %p81 = scmp.eq.s32.totalorder %s15, 0
    %p82 = por %p80, %p81
    %p83 = scmp.ne.s32.totalorder %s75, %s77
    %p84 = scmp.eq.s32.totalorder %s20, 1
    %p85 = por %p83, %p84
    %p86 = scmp.ne.s32.totalorder %s77, %s78
    %p87 = scmp.eq.s32.totalorder %s20, 0
    %p88 = por %p86, %p87
    %p89 = scmp.ne.s32.totalorder %s77, %s78
    %p90 = scmp.eq.s32.totalorder %s21, 1
    %p91 = por %p89, %p90
    %p93 = scmp.ne.s32.totalorder %s78, %s92
    %p94 = scmp.eq.s32.totalorder %s21, 0
    %p95 = por %p93, %p94
    %s97 = sadd.s32 %s96, 1
    %p100 = scmp.eq.s32.totalorder %s15, 1
    %p101 = scmp.ne.s32.totalorder %s96, %s98
    %p102 = scmp.eq.s32.totalorder %s15, 0
    %p103 = por %p101, %p102
    %p104 = scmp.ne.s32.totalorder %s96, %s98
    %p105 = scmp.eq.s32.totalorder %s20, 1
    %p106 = por %p104, %p105
    %p107 = scmp.ne.s32.totalorder %s98, %s99
    %p108 = scmp.eq.s32.totalorder %s20, 0
    %p109 = por %p107, %p108
    %p110 = scmp.ne.s32.totalorder %s98, %s99
    %p111 = scmp.eq.s32.totalorder %s21, 1
    %p112 = por %p110, %p111
    %p114 = scmp.ne.s32.totalorder %s99, %s113
    %p115 = scmp.eq.s32.totalorder %s21, 0
    %p116 = por %p114, %p115
    %s118 = sadd.s32 %s117, 1
    %p121 = scmp.eq.s32.totalorder %s15, 1
    %p122 = scmp.ne.s32.totalorder %s117, %s119
    %p123 = scmp.eq.s32.totalorder %s15, 0
    %p124 = por %p122, %p123
    %p125 = scmp.ne.s32.totalorder %s117, %s119
    %p126 = scmp.eq.s32.totalorder %s20, 1
    %p127 = por %p125, %p126
    %p128 = scmp.ne.s32.totalorder %s119, %s120
    %p129 = scmp.eq.s32.totalorder %s20, 0
    %p130 = por %p128, %p129
    %p131 = scmp.ne.s32.totalorder %s119, %s120
    %p132 = scmp.eq.s32.totalorder %s21, 1
    %p133 = por %p131, %p132
    %p135 = scmp.ne.s32.totalorder %s120, %s134
    %p136 = scmp.eq.s32.totalorder %s21, 0
    %p137 = por %p135, %p136
    %s139 = sadd.s32 %s138, 1
    %p142 = scmp.eq.s32.totalorder %s15, 1
    %p143 = scmp.ne.s32.totalorder %s138, %s140
    %p144 = scmp.eq.s32.totalorder %s15, 0
    %p145 = por %p143, %p144
    %p146 = scmp.ne.s32.totalorder %s138, %s140
    %p147 = scmp.eq.s32.totalorder %s20, 1
    %p148 = por %p146, %p147
    %p149 = scmp.ne.s32.totalorder %s140, %s141
    %p150 = scmp.eq.s32.totalorder %s20, 0
    %p151 = por %p149, %p150
    %p152 = scmp.ne.s32.totalorder %s140, %s141
    %p153 = scmp.eq.s32.totalorder %s21, 1
    %p154 = por %p152, %p153
    %p156 = scmp.ne.s32.totalorder %s141, %s155
    %p157 = scmp.eq.s32.totalorder %s21, 0
    %p158 = por %p156, %p157
    %s160 = sadd.s32 %s159, 1
    %p163 = scmp.eq.s32.totalorder %s15, 1
    %p164 = scmp.ne.s32.totalorder %s159, %s161
    %p165 = scmp.eq.s32.totalorder %s15, 0
    %p166 = por %p164, %p165
    %p167 = scmp.ne.s32.totalorder %s159, %s161
    %p168 = scmp.eq.s32.totalorder %s20, 1
    %p169 = por %p167, %p168
    %p170 = scmp.ne.s32.totalorder %s161, %s162
    %p171 = scmp.eq.s32.totalorder %s20, 0
    %p172 = por %p170, %p171
    %p173 = scmp.ne.s32.totalorder %s161, %s162
    %p174 = scmp.eq.s32.totalorder %s21, 1
    %p175 = por %p173, %p174
    %p177 = scmp.ne.s32.totalorder %s162, %s176
    %p178 = scmp.eq.s32.totalorder %s21, 0
    %p179 = por %p177, %p178
    %s181 = sadd.s32 %s180, 1
    %p184 = scmp.eq.s32.totalorder %s15, 1
    %p185 = scmp.ne.s32.totalorder %s180, %s182
    %p186 = scmp.eq.s32.totalorder %s15, 0
    %p187 = por %p185, %p186
    %p188 = scmp.ne.s32.totalorder %s180, %s182
    %p189 = scmp.eq.s32.totalorder %s20, 1
    %p190 = por %p188, %p189
    %p191 = scmp.ne.s32.totalorder %s182, %s183
    %p192 = scmp.eq.s32.totalorder %s20, 0
    %p193 = por %p191, %p192
    %p194 = scmp.ne.s32.totalorder %s182, %s183
    %p195 = scmp.eq.s32.totalorder %s21, 1
    %p196 = por %p194, %p195
    %p198 = scmp.ne.s32.totalorder %s183, %s197
    %p199 = scmp.eq.s32.totalorder %s21, 0
    %p200 = por %p198, %p199
    %s202 = sadd.s32 %s201, 1
    %p205 = scmp.eq.s32.totalorder %s15, 1
    %p206 = scmp.ne.s32.totalorder %s201, %s203
    %p207 = scmp.eq.s32.totalorder %s15, 0
    %p208 = por %p206, %p207
    %p209 = scmp.ne.s32.totalorder %s201, %s203
    %p210 = scmp.eq.s32.totalorder %s20, 1
    %p211 = por %p209, %p210
    %p212 = scmp.ne.s32.totalorder %s203, %s204
    %p213 = scmp.eq.s32.totalorder %s20, 0
    %p214 = por %p212, %p213
    %p215 = scmp.ne.s32.totalorder %s203, %s204
    %p216 = scmp.eq.s32.totalorder %s21, 1
    %p217 = por %p215, %p216
    %p219 = scmp.ne.s32.totalorder %s204, %s218
    %p220 = scmp.eq.s32.totalorder %s21, 0
    %p221 = por %p219, %p220
    %s222 = ssub.s32 %s15, %s22
    %p223 = scmp.eq.s32.totalorder %s222, 0
    %s225 = sadd.s32 %s224, 1
    %s226 = scalar_select %p223, %s224, %s225
    %p229 = pneg %p223
    %p230 = scmp.eq.s32.totalorder %s15, 1
    %p231 = por %p229, %p230
    %p232 = scmp.ne.s32.totalorder %s224, %s227
    %p233 = scmp.eq.s32.totalorder %s15, 0
    %p234 = por %p232, %p233
    %p235 = scmp.ne.s32.totalorder %s224, %s227
    %p236 = scmp.eq.s32.totalorder %s20, 1
    %p237 = por %p235, %p236
    %p238 = scmp.ne.s32.totalorder %s227, %s228
    %p239 = scmp.eq.s32.totalorder %s20, 0
    %p240 = por %p238, %p239
    %p241 = scmp.ne.s32.totalorder %s227, %s228
    %p242 = scmp.eq.s32.totalorder %s21, 1
    %p243 = por %p241, %p242
    %p245 = scmp.ne.s32.totalorder %s228, %s244
    %p246 = scmp.eq.s32.totalorder %s21, 0
    %p247 = por %p245, %p246
    %p248 = scmp.le.s32.totalorder 1, %s15
    %p249 = scmp.lt.s32.totalorder %s15, 3
    %p250 = pnand %p248, %p249
    %p251 = pneg %p250
    // Predicated region
    $region9: #{up_forward.1} parent=5 // pred_check
      _
    $region10: #{up_forward.1} parent=5 // pred_check_branch
      %253 = sbr.rel (%p250) target = $region12
    $region11: #{up_forward.1} parent=5 // pred_region
      %s254 = ssub.s32 %s15, 1
      // Predicated region
      $region13: #{up_forward.1} parent=11 // pred_check
        %p255 = pneg %p88
      $region14: #{up_forward.1} parent=11 // pred_check_branch
        %257 = sbr.rel (%p255) target = $region16
      $region15: #{up_forward.1} parent=11 // pred_region
        _
      $region16: #{up_forward.1} parent=11 // pred_fallthru
        _
      // Predicated region
      $region17: #{up_forward.1} parent=11 // pred_check
        %p258 = pneg %p109
      $region18: #{up_forward.1} parent=11 // pred_check_branch
        %260 = sbr.rel (%p258) target = $region20
      $region19: #{up_forward.1} parent=11 // pred_region
        _
      $region20: #{up_forward.1} parent=11 // pred_fallthru
        _
      // Predicated region
      $region21: #{up_forward.1} parent=11 // pred_check
        %p261 = pneg %p130
      $region22: #{up_forward.1} parent=11 // pred_check_branch
        %263 = sbr.rel (%p261) target = $region24
      $region23: #{up_forward.1} parent=11 // pred_region
        _
      $region24: #{up_forward.1} parent=11 // pred_fallthru
        _
      // Predicated region
      $region25: #{up_forward.1} parent=11 // pred_check
        %p264 = pneg %p151
      $region26: #{up_forward.1} parent=11 // pred_check_branch
        %266 = sbr.rel (%p264) target = $region28
      $region27: #{up_forward.1} parent=11 // pred_region
        _
      $region28: #{up_forward.1} parent=11 // pred_fallthru
        _
      // Predicated region
      $region29: #{up_forward.1} parent=11 // pred_check
        %p267 = pneg %p172
      $region30: #{up_forward.1} parent=11 // pred_check_branch
        %269 = sbr.rel (%p267) target = $region32
      $region31: #{up_forward.1} parent=11 // pred_region
        _
      $region32: #{up_forward.1} parent=11 // pred_fallthru
        _
      // Predicated region
      $region33: #{up_forward.1} parent=11 // pred_check
        %p270 = pneg %p193
      $region34: #{up_forward.1} parent=11 // pred_check_branch
        %272 = sbr.rel (%p270) target = $region36
      $region35: #{up_forward.1} parent=11 // pred_region
        _
      $region36: #{up_forward.1} parent=11 // pred_fallthru
        _
      // Predicated region
      $region37: #{up_forward.1} parent=11 // pred_check
        %p273 = pneg %p214
      $region38: #{up_forward.1} parent=11 // pred_check_branch
        %275 = sbr.rel (%p273) target = $region40
      $region39: #{up_forward.1} parent=11 // pred_region
        _
      $region40: #{up_forward.1} parent=11 // pred_fallthru
        _
    $region12: #{up_forward.1} parent=5 // pred_fallthru
      _
    %p276 = scmp.lt.s32.totalorder %s15, 2
    // Predicated region
    $region41: #{up_forward.1} parent=5 // pred_check
      %p277 = pneg %p276
    $region42: #{up_forward.1} parent=5 // pred_check_branch
      %279 = sbr.rel (%p277) target = $region44
    $region43: #{up_forward.1} parent=5 // pred_region
      // Predicated region
      $region45: #{up_forward.1} parent=43 // pred_check
        %p280 = pneg %p35
      $region46: #{up_forward.1} parent=43 // pred_check_branch
        %282 = sbr.rel (%p280) target = $region48
      $region47: #{up_forward.1} parent=43 // pred_region
        %p283 = scmp.lt.s32.totalorder %s15, 1
        %s284 = scalar_select %p283, %s15, 1
        %s285 = smul.addr %s284, 8
        %s286 = smul.addr %s285, 8
        %s287 = scalar_lea.vmem %s0, %s286
      $region48: #{up_forward.1} parent=43 // pred_fallthru
        _
      // Predicated region
      $region49: #{up_forward.1} parent=43 // pred_check
        %p288 = pneg %p61
      $region50: #{up_forward.1} parent=43 // pred_check_branch
        %290 = sbr.rel (%p288) target = $region52
      $region51: #{up_forward.1} parent=43 // pred_region
        %p291 = scmp.lt.s32.totalorder %s15, 1
        %s292 = scalar_select %p291, %s15, 1
        %s293 = smul.addr %s292, 32
        %s294 = smul.addr %s293, 8
        %s295 = scalar_lea.vmem %s1, %s294
      $region52: #{up_forward.1} parent=43 // pred_fallthru
        _
    $region44: #{up_forward.1} parent=5 // pred_fallthru
      _
    %p296 = scmp.le.s32.totalorder 1, %s15
    %p297 = scmp.lt.s32.totalorder %s15, 3
    %p298 = pnand %p296, %p297
    %p299 = pneg %p298
    // Predicated region
    $region53: #{up_forward.1} parent=5 // pred_check
      _
    $region54: #{up_forward.1} parent=5 // pred_check_branch
      %301 = sbr.rel (%p298) target = $region56
    $region55: #{up_forward.1} parent=5 // pred_region
      %s302 = ssub.s32 %s15, 1
      %p303 = scmp.lt.s32.totalorder %s20, 1
      %s304 = scalar_select %p303, %s20, 1
      %s305 = smul.addr %s304, 8
      %s306 = smul.addr %s305, 8
      %s307 = scalar_lea.vmem %s0, %s306
      %p308 = pneg %p41
      %p309 = pneg %p38
      %p310 = scmp.lt.s32.totalorder %s20, 1
      %s311 = scalar_select %p310, %s20, 1
      %s312 = smul.addr %s311, 32
      %s313 = smul.addr %s312, 8
      %s314 = scalar_lea.vmem %s1, %s313
      %p315 = pneg %p67
      %p316 = pneg %p64
      %p317 = pneg %p88
      %p318 = pneg %p85
      %p319 = pneg %p109
      %p320 = pneg %p106
      %p321 = pneg %p130
      %p322 = pneg %p127
      %p323 = pneg %p151
      %p324 = pneg %p148
      %p325 = pneg %p172
      %p326 = pneg %p169
      %p327 = pneg %p193
      %p328 = pneg %p190
      %p329 = pneg %p214
      %p330 = pneg %p211
      %p331 = pneg %p240
      %p332 = pneg %p237
      %p333 = scmp.lt.s32.totalorder %s20, 1
      %s334 = scalar_select %p333, %s20, 1
      %s335 = smul.addr %s334, 32
      %s336 = smul.addr %s335, 8
      %s337 = scalar_lea.vmem %s9, %s336
      %p338 = scmp.lt.s32.totalorder %s20, 1
      %s339 = scalar_select %p338, %s20, 1
      %s340 = smul.addr %s339, 8
      %s341 = smul.addr %s340, 8
      %s342 = scalar_lea.vmem %s0, %s341
      %p343 = scmp.lt.s32.totalorder %s20, 1
      %s344 = scalar_select %p343, %s20, 1
      %s345 = smul.addr %s344, 32
      %s346 = smul.addr %s345, 8
      %s347 = scalar_lea.vmem %s1, %s346
      %p348 = scmp.lt.s32.totalorder %s20, 1
      %s349 = scalar_select %p348, %s20, 1
      %s350 = smul.addr %s349, 32
      %s351 = smul.addr %s350, 8
      %s352 = scalar_lea.vmem %s9, %s351
      %v353 = vld [vmem:[%s342] sm:$0xff]
      %v354 = vld [vmem:[%s342 + $0x8] sm:$0xff]
      %v355 = vld [vmem:[%s342 + $0x10] sm:$0xff]
      %v356 = vld [vmem:[%s342 + $0x18] sm:$0xff]
      %v357 = vld [vmem:[%s342 + $0x20] sm:$0xff]
      %v358 = vld [vmem:[%s342 + $0x28] sm:$0xff]
      %v359 = vld [vmem:[%s342 + $0x30] sm:$0xff]
      %v360 = vld [vmem:[%s342 + $0x38] sm:$0xff]
      %v361 = vld [vmem:[%s2] sm:$0xf]
      %v362 = vld [vmem:[%s3] sm:$0x1]
      %v364 = vperm.slane %v362, 0
      %vm366 = vcmask 31744
      %v368 = vsel %vm366, %v353, 0
      %v371 = vsel %vm366, %v354, 0
      %v374 = vsel %vm366, %v355, 0
      %v377 = vsel %vm366, %v356, 0
      %v380 = vsel %vm366, %v357, 0
      %v383 = vsel %vm366, %v358, 0
      %v386 = vsel %vm366, %v359, 0
      %v389 = vsel %vm366, %v360, 0
      %vm391 = vcmask 1043456
      %v393 = vsel %vm391, %v361, 0
      %395 = vmatpush.msra.mxu0 0.0
      %396 = vmatpush.msra.mxu0 0.0
      %397 = vmatpush.msra.mxu0 0.0
      %398 = vmatpush.msra.mxu0 0.0
      %399 = vmatpush.msra.mxu0 0.0
      %400 = vmatpush.msra.mxu0 0.0
      %401 = vmatpush.msra.mxu0 0.0
      %402 = vmatpush.msra.mxu0 0.0
      %403 = vmatpush.msra.mxu0 0.0
      %404 = vmatpush.msra.mxu0 0.0
      %405 = vmatpush.msra.mxu0 0.0
      %406 = vmatpush.msra.mxu0 0.0
      %407 = vmatpush.msra.mxu0 0.0
      %408 = vmatpush.msra.mxu0 0.0
      %409 = vmatpush.msra.mxu0 0.0
      %410 = vmatpush.msra.mxu0 %v393
      %411 = vmatmul.f32.gmra.mxu0 %v368
      %v412 = vpop.f32.mrf.mxu0
      %v413 = vadd.f32 %v364, %v412
      %414 = vmatmul.f32.gmra.mxu0 %v371
      %v415 = vpop.f32.mrf.mxu0
      %v416 = vadd.f32 %v364, %v415
      %417 = vmatmul.f32.gmra.mxu0 %v374
      %v418 = vpop.f32.mrf.mxu0
      %v419 = vadd.f32 %v364, %v418
      %420 = vmatmul.f32.gmra.mxu0 %v377
      %v421 = vpop.f32.mrf.mxu0
      %v422 = vadd.f32 %v364, %v421
      %423 = vmatmul.f32.gmra.mxu0 %v380
      %v424 = vpop.f32.mrf.mxu0
      %v425 = vadd.f32 %v364, %v424
      %426 = vmatmul.f32.gmra.mxu0 %v383
      %v427 = vpop.f32.mrf.mxu0
      %v428 = vadd.f32 %v364, %v427
      %429 = vmatmul.f32.gmra.mxu0 %v386
      %v430 = vpop.f32.mrf.mxu0
      %v431 = vadd.f32 %v364, %v430
      %432 = vmatmul.f32.gmra.mxu0 %v389
      %v433 = vpop.f32.mrf.mxu0
      %v434 = vadd.f32 %v364, %v433
      %435 = vdwg.mxu0
      %v436 = vlaneseq
      %v437 = vshrl.u32 %v436, 7
      %v438 = vadd.s32 %v437, 8
      %vm439 = vcmp.lt.s32.totalorder %v437, 0
      %v440 = vsub.s32 0, %v437
      %v441 = vsel %vm439, %v440, %v437
      %v442 = vshrl.u32 %v441, 1
      %v443 = vand.u32 %v441, 1
      %v444 = vsub.s32 0, %v443
      %v445 = vsel %vm439, %v444, %v443
      %vm446 = vcmp.lt.s32.totalorder %v438, 0
      %v447 = vsub.s32 0, %v438
      %v448 = vsel %vm446, %v447, %v438
      %v449 = vshrl.u32 %v448, 1
      %v450 = vand.u32 %v448, 1
      %v451 = vsub.s32 0, %v450
      %v452 = vsel %vm446, %v451, %v450
      %vm453 = vcmp.ne.s32.totalorder %v445, 0
      %vm454 = vcmp.ne.s32.totalorder %v452, 0
      %vm455 = vcmp.lt.s32.totalorder %v445, 0
      %vm456 = vcmp.lt.s32.totalorder %v452, 0
      %vm457 = vmand %vm455, %vm453
      %vm458 = vmand %vm456, %vm454
      %v459 = vadd.s32 %v445, 2
      %v460 = vadd.s32 %v452, 2
      %v461 = vsel %vm457, %v459, %v445
      %v462 = vsel %vm458, %v460, %v452
      %v471 = vrot.slane %v413, 1
      %v472 = vrot.slane %v413, 2
      %v473 = vrot.slane %v413, 3
      %v474 = vrot.slane %v413, 4
      %v475 = vrot.slane %v413, 5
      %v476 = vrot.slane %v413, 6
      %v477 = vrot.slane %v413, 7
      %v478 = vrot.slane %v416, 1
      %v479 = vrot.slane %v416, 2
      %v480 = vrot.slane %v416, 3
      %v481 = vrot.slane %v416, 4
      %v482 = vrot.slane %v416, 5
      %v483 = vrot.slane %v416, 6
      %v484 = vrot.slane %v416, 7
      %v485 = vrot.slane %v419, 1
      %v486 = vrot.slane %v419, 2
      %v487 = vrot.slane %v419, 3
      %v488 = vrot.slane %v419, 4
      %v489 = vrot.slane %v419, 5
      %v490 = vrot.slane %v419, 6
      %v491 = vrot.slane %v419, 7
      %v492 = vrot.slane %v422, 1
      %v493 = vrot.slane %v422, 2
      %v494 = vrot.slane %v422, 3
      %v495 = vrot.slane %v422, 4
      %v496 = vrot.slane %v422, 5
      %v497 = vrot.slane %v422, 6
      %v498 = vrot.slane %v422, 7
      %v499 = vrot.slane %v425, 1
      %v500 = vrot.slane %v425, 2
      %v501 = vrot.slane %v425, 3
      %v502 = vrot.slane %v425, 4
      %v503 = vrot.slane %v425, 5
      %v504 = vrot.slane %v425, 6
      %v505 = vrot.slane %v425, 7
      %v506 = vrot.slane %v428, 1
      %v507 = vrot.slane %v428, 2
      %v508 = vrot.slane %v428, 3
      %v509 = vrot.slane %v428, 4
      %v510 = vrot.slane %v428, 5
      %v511 = vrot.slane %v428, 6
      %v512 = vrot.slane %v428, 7
      %v513 = vrot.slane %v431, 1
      %v514 = vrot.slane %v431, 2
      %v515 = vrot.slane %v431, 3
      %v516 = vrot.slane %v431, 4
      %v517 = vrot.slane %v431, 5
      %v518 = vrot.slane %v431, 6
      %v519 = vrot.slane %v431, 7
      %v520 = vrot.slane %v434, 1
      %v521 = vrot.slane %v434, 2
      %v522 = vrot.slane %v434, 3
      %v523 = vrot.slane %v434, 4
      %v524 = vrot.slane %v434, 5
      %v525 = vrot.slane %v434, 6
      %v526 = vrot.slane %v434, 7
      %v527 = vperm.slane %v413, 0
      %v528 = vperm.slane %v471, 0
      %v529 = vperm.slane %v472, 0
      %v530 = vperm.slane %v473, 0
      %v531 = vperm.slane %v474, 0
      %v532 = vperm.slane %v475, 0
      %v533 = vperm.slane %v476, 0
      %v534 = vperm.slane %v477, 0
      %v535 = vperm.slane %v416, 0
      %v536 = vperm.slane %v478, 0
      %v537 = vperm.slane %v479, 0
      %v538 = vperm.slane %v480, 0
      %v539 = vperm.slane %v481, 0
      %v540 = vperm.slane %v482, 0
      %v541 = vperm.slane %v483, 0
      %v542 = vperm.slane %v484, 0
      %v543 = vperm.slane %v419, 0
      %v544 = vperm.slane %v485, 0
      %v545 = vperm.slane %v486, 0
      %v546 = vperm.slane %v487, 0
      %v547 = vperm.slane %v488, 0
      %v548 = vperm.slane %v489, 0
      %v549 = vperm.slane %v490, 0
      %v550 = vperm.slane %v491, 0
      %v551 = vperm.slane %v422, 0
      %v552 = vperm.slane %v492, 0
      %v553 = vperm.slane %v493, 0
      %v554 = vperm.slane %v494, 0
      %v555 = vperm.slane %v495, 0
      %v556 = vperm.slane %v496, 0
      %v557 = vperm.slane %v497, 0
      %v558 = vperm.slane %v498, 0
      %v559 = vperm.slane %v425, 0
      %v560 = vperm.slane %v499, 0
      %v561 = vperm.slane %v500, 0
      %v562 = vperm.slane %v501, 0
      %v563 = vperm.slane %v502, 0
      %v564 = vperm.slane %v503, 0
      %v565 = vperm.slane %v504, 0
      %v566 = vperm.slane %v505, 0
      %v567 = vperm.slane %v428, 0
      %v568 = vperm.slane %v506, 0
      %v569 = vperm.slane %v507, 0
      %v570 = vperm.slane %v508, 0
      %v571 = vperm.slane %v509, 0
      %v572 = vperm.slane %v510, 0
      %v573 = vperm.slane %v511, 0
      %v574 = vperm.slane %v512, 0
      %v575 = vperm.slane %v431, 0
      %v576 = vperm.slane %v513, 0
      %v577 = vperm.slane %v514, 0
      %v578 = vperm.slane %v515, 0
      %v579 = vperm.slane %v516, 0
      %v580 = vperm.slane %v517, 0
      %v581 = vperm.slane %v518, 0
      %v582 = vperm.slane %v519, 0
      %v583 = vperm.slane %v434, 0
      %v584 = vperm.slane %v520, 0
      %v585 = vperm.slane %v521, 0
      %v586 = vperm.slane %v522, 0
      %v587 = vperm.slane %v523, 0
      %v588 = vperm.slane %v524, 0
      %v589 = vperm.slane %v525, 0
      %v590 = vperm.slane %v526, 0
      %vm655 = vcmp.eq.s32.totalorder %v461, 0
      %vm656 = vcmp.eq.s32.totalorder %v462, 0
      %vm657 = vmand 1, %vm655
      %vm658 = vmand 1, %vm656
      %vm659 = vmand 0, %vm655
      %vm660 = vmand 0, %vm656
      %v661 = vsel %vm657, 1, 0
      %v662 = vsel %vm658, 1, 0
      %v663 = vsel %vm659, 1, 0
      %v664 = vsel %vm660, 1, 0
      %v665 = vcvt.s32.f32 %v661
      %v666 = vcvt.s32.f32 %v662
      %v667 = vcvt.s32.f32 %v663
      %v668 = vcvt.s32.f32 %v664
      %v674 = vunpack.c.l.s4 269488144
      %v675 = vunpack.c.0.s8 %v674
      %v676 = vperm.slane %v665, %v675
      %v678 = vunpack.c.l.s4 842150450
      %v679 = vunpack.c.0.s8 %v678
      %v680 = vperm.slane %v665, %v679
      %v682 = vunpack.c.l.s4 1414812756
      %v683 = vunpack.c.0.s8 %v682
      %v684 = vperm.slane %v665, %v683
      %v686 = vunpack.c.l.s4 1987475062
      %v687 = vunpack.c.0.s8 %v686
      %v688 = vperm.slane %v665, %v687
      %v690 = vunpack.c.l.s4 269488144
      %v691 = vunpack.c.0.s8 %v690
      %v692 = vperm.slane %v666, %v691
      %v694 = vunpack.c.l.s4 842150450
      %v695 = vunpack.c.0.s8 %v694
      %v696 = vperm.slane %v666, %v695
      %v698 = vunpack.c.l.s4 1414812756
      %v699 = vunpack.c.0.s8 %v698
      %v700 = vperm.slane %v666, %v699
      %v702 = vunpack.c.l.s4 1987475062
      %v703 = vunpack.c.0.s8 %v702
      %v704 = vperm.slane %v666, %v703
      %v706 = vunpack.c.l.s4 269488144
      %v707 = vunpack.c.0.s8 %v706
      %v708 = vperm.slane %v667, %v707
      %v710 = vunpack.c.l.s4 842150450
      %v711 = vunpack.c.0.s8 %v710
      %v712 = vperm.slane %v667, %v711
      %v714 = vunpack.c.l.s4 1414812756
      %v715 = vunpack.c.0.s8 %v714
      %v716 = vperm.slane %v667, %v715
      %v718 = vunpack.c.l.s4 1987475062
      %v719 = vunpack.c.0.s8 %v718
      %v720 = vperm.slane %v667, %v719
      %v722 = vunpack.c.l.s4 269488144
      %v723 = vunpack.c.0.s8 %v722
      %v724 = vperm.slane %v668, %v723
      %v726 = vunpack.c.l.s4 842150450
      %v727 = vunpack.c.0.s8 %v726
      %v728 = vperm.slane %v668, %v727
      %v730 = vunpack.c.l.s4 1414812756
      %v731 = vunpack.c.0.s8 %v730
      %v732 = vperm.slane %v668, %v731
      %v734 = vunpack.c.l.s4 1987475062
      %v735 = vunpack.c.0.s8 %v734
      %v736 = vperm.slane %v668, %v735
      %v753 = vmul.f32 %v527, %v676
      %v754 = vmul.f32 %v528, %v680
      %v755 = vmul.f32 %v529, %v684
      %v756 = vmul.f32 %v530, %v688
      %v757 = vmul.f32 %v531, %v692
      %v758 = vmul.f32 %v532, %v696
      %v759 = vmul.f32 %v533, %v700
      %v760 = vmul.f32 %v534, %v704
      %v761 = vmul.f32 %v527, %v708
      %v762 = vmul.f32 %v528, %v712
      %v763 = vmul.f32 %v529, %v716
      %v764 = vmul.f32 %v530, %v720
      %v765 = vmul.f32 %v531, %v724
      %v766 = vmul.f32 %v532, %v728
      %v767 = vmul.f32 %v533, %v732
      %v768 = vmul.f32 %v534, %v736
      %v769 = vmul.f32 %v535, %v676
      %v770 = vmul.f32 %v536, %v680
      %v771 = vmul.f32 %v537, %v684
      %v772 = vmul.f32 %v538, %v688
      %v773 = vmul.f32 %v539, %v692
      %v774 = vmul.f32 %v540, %v696
      %v775 = vmul.f32 %v541, %v700
      %v776 = vmul.f32 %v542, %v704
      %v777 = vmul.f32 %v535, %v708
      %v778 = vmul.f32 %v536, %v712
      %v779 = vmul.f32 %v537, %v716
      %v780 = vmul.f32 %v538, %v720
      %v781 = vmul.f32 %v539, %v724
      %v782 = vmul.f32 %v540, %v728
      %v783 = vmul.f32 %v541, %v732
      %v784 = vmul.f32 %v542, %v736
      %v785 = vmul.f32 %v543, %v676
      %v786 = vmul.f32 %v544, %v680
      %v787 = vmul.f32 %v545, %v684
      %v788 = vmul.f32 %v546, %v688
      %v789 = vmul.f32 %v547, %v692
      %v790 = vmul.f32 %v548, %v696
      %v791 = vmul.f32 %v549, %v700
      %v792 = vmul.f32 %v550, %v704
      %v793 = vmul.f32 %v543, %v708
      %v794 = vmul.f32 %v544, %v712
      %v795 = vmul.f32 %v545, %v716
      %v796 = vmul.f32 %v546, %v720
      %v797 = vmul.f32 %v547, %v724
      %v798 = vmul.f32 %v548, %v728
      %v799 = vmul.f32 %v549, %v732
      %v800 = vmul.f32 %v550, %v736
      %v801 = vmul.f32 %v551, %v676
      %v802 = vmul.f32 %v552, %v680
      %v803 = vmul.f32 %v553, %v684
      %v804 = vmul.f32 %v554, %v688
      %v805 = vmul.f32 %v555, %v692
      %v806 = vmul.f32 %v556, %v696
      %v807 = vmul.f32 %v557, %v700
      %v808 = vmul.f32 %v558, %v704
      %v809 = vmul.f32 %v551, %v708
      %v810 = vmul.f32 %v552, %v712
      %v811 = vmul.f32 %v553, %v716
      %v812 = vmul.f32 %v554, %v720
      %v813 = vmul.f32 %v555, %v724
      %v814 = vmul.f32 %v556, %v728
      %v815 = vmul.f32 %v557, %v732
      %v816 = vmul.f32 %v558, %v736
      %v817 = vmul.f32 %v559, %v676
      %v818 = vmul.f32 %v560, %v680
      %v819 = vmul.f32 %v561, %v684
      %v820 = vmul.f32 %v562, %v688
      %v821 = vmul.f32 %v563, %v692
      %v822 = vmul.f32 %v564, %v696
      %v823 = vmul.f32 %v565, %v700
      %v824 = vmul.f32 %v566, %v704
      %v825 = vmul.f32 %v559, %v708
      %v826 = vmul.f32 %v560, %v712
      %v827 = vmul.f32 %v561, %v716
      %v828 = vmul.f32 %v562, %v720
      %v829 = vmul.f32 %v563, %v724
      %v830 = vmul.f32 %v564, %v728
      %v831 = vmul.f32 %v565, %v732
      %v832 = vmul.f32 %v566, %v736
      %v833 = vmul.f32 %v567, %v676
      %v834 = vmul.f32 %v568, %v680
      %v835 = vmul.f32 %v569, %v684
      %v836 = vmul.f32 %v570, %v688
      %v837 = vmul.f32 %v571, %v692
      %v838 = vmul.f32 %v572, %v696
      %v839 = vmul.f32 %v573, %v700
      %v840 = vmul.f32 %v574, %v704
      %v841 = vmul.f32 %v567, %v708
      %v842 = vmul.f32 %v568, %v712
      %v843 = vmul.f32 %v569, %v716
      %v844 = vmul.f32 %v570, %v720
      %v845 = vmul.f32 %v571, %v724
      %v846 = vmul.f32 %v572, %v728
      %v847 = vmul.f32 %v573, %v732
      %v848 = vmul.f32 %v574, %v736
      %v849 = vmul.f32 %v575, %v676
      %v850 = vmul.f32 %v576, %v680
      %v851 = vmul.f32 %v577, %v684
      %v852 = vmul.f32 %v578, %v688
      %v853 = vmul.f32 %v579, %v692
      %v854 = vmul.f32 %v580, %v696
      %v855 = vmul.f32 %v581, %v700
      %v856 = vmul.f32 %v582, %v704
      %v857 = vmul.f32 %v575, %v708
      %v858 = vmul.f32 %v576, %v712
      %v859 = vmul.f32 %v577, %v716
      %v860 = vmul.f32 %v578, %v720
      %v861 = vmul.f32 %v579, %v724
      %v862 = vmul.f32 %v580, %v728
      %v863 = vmul.f32 %v581, %v732
      %v864 = vmul.f32 %v582, %v736
      %v865 = vmul.f32 %v583, %v676
      %v866 = vmul.f32 %v584, %v680
      %v867 = vmul.f32 %v585, %v684
      %v868 = vmul.f32 %v586, %v688
      %v869 = vmul.f32 %v587, %v692
      %v870 = vmul.f32 %v588, %v696
      %v871 = vmul.f32 %v589, %v700
      %v872 = vmul.f32 %v590, %v704
      %v873 = vmul.f32 %v583, %v708
      %v874 = vmul.f32 %v584, %v712
      %v875 = vmul.f32 %v585, %v716
      %v876 = vmul.f32 %v586, %v720
      %v877 = vmul.f32 %v587, %v724
      %v878 = vmul.f32 %v588, %v728
      %v879 = vmul.f32 %v589, %v732
      %v880 = vmul.f32 %v590, %v736
      %v881 = vadd.f32 %v753, 0.0
      %v882 = vadd.f32 %v754, 0.0
      %v883 = vadd.f32 %v755, 0.0
      %v884 = vadd.f32 %v756, 0.0
      %v885 = vadd.f32 %v757, 0.0
      %v886 = vadd.f32 %v758, 0.0
      %v887 = vadd.f32 %v759, 0.0
      %v888 = vadd.f32 %v760, 0.0
      %v889 = vadd.f32 %v761, 0.0
      %v890 = vadd.f32 %v762, 0.0
      %v891 = vadd.f32 %v763, 0.0
      %v892 = vadd.f32 %v764, 0.0
      %v893 = vadd.f32 %v765, 0.0
      %v894 = vadd.f32 %v766, 0.0
      %v895 = vadd.f32 %v767, 0.0
      %v896 = vadd.f32 %v768, 0.0
      %v897 = vadd.f32 %v769, 0.0
      %v898 = vadd.f32 %v770, 0.0
      %v899 = vadd.f32 %v771, 0.0
      %v900 = vadd.f32 %v772, 0.0
      %v901 = vadd.f32 %v773, 0.0
      %v902 = vadd.f32 %v774, 0.0
      %v903 = vadd.f32 %v775, 0.0
      %v904 = vadd.f32 %v776, 0.0
      %v905 = vadd.f32 %v777, 0.0
      %v906 = vadd.f32 %v778, 0.0
      %v907 = vadd.f32 %v779, 0.0
      %v908 = vadd.f32 %v780, 0.0
      %v909 = vadd.f32 %v781, 0.0
      %v910 = vadd.f32 %v782, 0.0
      %v911 = vadd.f32 %v783, 0.0
      %v912 = vadd.f32 %v784, 0.0
      %v913 = vadd.f32 %v785, 0.0
      %v914 = vadd.f32 %v786, 0.0
      %v915 = vadd.f32 %v787, 0.0
      %v916 = vadd.f32 %v788, 0.0
      %v917 = vadd.f32 %v789, 0.0
      %v918 = vadd.f32 %v790, 0.0
      %v919 = vadd.f32 %v791, 0.0
      %v920 = vadd.f32 %v792, 0.0
      %v921 = vadd.f32 %v793, 0.0
      %v922 = vadd.f32 %v794, 0.0
      %v923 = vadd.f32 %v795, 0.0
      %v924 = vadd.f32 %v796, 0.0
      %v925 = vadd.f32 %v797, 0.0
      %v926 = vadd.f32 %v798, 0.0
      %v927 = vadd.f32 %v799, 0.0
      %v928 = vadd.f32 %v800, 0.0
      %v929 = vadd.f32 %v801, 0.0
      %v930 = vadd.f32 %v802, 0.0
      %v931 = vadd.f32 %v803, 0.0
      %v932 = vadd.f32 %v804, 0.0
      %v933 = vadd.f32 %v805, 0.0
      %v934 = vadd.f32 %v806, 0.0
      %v935 = vadd.f32 %v807, 0.0
      %v936 = vadd.f32 %v808, 0.0
      %v937 = vadd.f32 %v809, 0.0
      %v938 = vadd.f32 %v810, 0.0
      %v939 = vadd.f32 %v811, 0.0
      %v940 = vadd.f32 %v812, 0.0
      %v941 = vadd.f32 %v813, 0.0
      %v942 = vadd.f32 %v814, 0.0
      %v943 = vadd.f32 %v815, 0.0
      %v944 = vadd.f32 %v816, 0.0
      %v945 = vadd.f32 %v817, 0.0
      %v946 = vadd.f32 %v818, 0.0
      %v947 = vadd.f32 %v819, 0.0
      %v948 = vadd.f32 %v820, 0.0
      %v949 = vadd.f32 %v821, 0.0
      %v950 = vadd.f32 %v822, 0.0
      %v951 = vadd.f32 %v823, 0.0
      %v952 = vadd.f32 %v824, 0.0
      %v953 = vadd.f32 %v825, 0.0
      %v954 = vadd.f32 %v826, 0.0
      %v955 = vadd.f32 %v827, 0.0
      %v956 = vadd.f32 %v828, 0.0
      %v957 = vadd.f32 %v829, 0.0
      %v958 = vadd.f32 %v830, 0.0
      %v959 = vadd.f32 %v831, 0.0
      %v960 = vadd.f32 %v832, 0.0
      %v961 = vadd.f32 %v833, 0.0
      %v962 = vadd.f32 %v834, 0.0
      %v963 = vadd.f32 %v835, 0.0
      %v964 = vadd.f32 %v836, 0.0
      %v965 = vadd.f32 %v837, 0.0
      %v966 = vadd.f32 %v838, 0.0
      %v967 = vadd.f32 %v839, 0.0
      %v968 = vadd.f32 %v840, 0.0
      %v969 = vadd.f32 %v841, 0.0
      %v970 = vadd.f32 %v842, 0.0
      %v971 = vadd.f32 %v843, 0.0
      %v972 = vadd.f32 %v844, 0.0
      %v973 = vadd.f32 %v845, 0.0
      %v974 = vadd.f32 %v846, 0.0
      %v975 = vadd.f32 %v847, 0.0
      %v976 = vadd.f32 %v848, 0.0
      %v977 = vadd.f32 %v849, 0.0
      %v978 = vadd.f32 %v850, 0.0
      %v979 = vadd.f32 %v851, 0.0
      %v980 = vadd.f32 %v852, 0.0
      %v981 = vadd.f32 %v853, 0.0
      %v982 = vadd.f32 %v854, 0.0
      %v983 = vadd.f32 %v855, 0.0
      %v984 = vadd.f32 %v856, 0.0
      %v985 = vadd.f32 %v857, 0.0
      %v986 = vadd.f32 %v858, 0.0
      %v987 = vadd.f32 %v859, 0.0
      %v988 = vadd.f32 %v860, 0.0
      %v989 = vadd.f32 %v861, 0.0
      %v990 = vadd.f32 %v862, 0.0
      %v991 = vadd.f32 %v863, 0.0
      %v992 = vadd.f32 %v864, 0.0
      %v993 = vadd.f32 %v865, 0.0
      %v994 = vadd.f32 %v866, 0.0
      %v995 = vadd.f32 %v867, 0.0
      %v996 = vadd.f32 %v868, 0.0
      %v997 = vadd.f32 %v869, 0.0
      %v998 = vadd.f32 %v870, 0.0
      %v999 = vadd.f32 %v871, 0.0
      %v1000 = vadd.f32 %v872, 0.0
      %v1001 = vadd.f32 %v873, 0.0
      %v1002 = vadd.f32 %v874, 0.0
      %v1003 = vadd.f32 %v875, 0.0
      %v1004 = vadd.f32 %v876, 0.0
      %v1005 = vadd.f32 %v877, 0.0
      %v1006 = vadd.f32 %v878, 0.0
      %v1007 = vadd.f32 %v879, 0.0
      %v1008 = vadd.f32 %v880, 0.0
      %vm1009 = vcmp.eq.s32.totalorder %v461, 1
      %vm1010 = vcmp.eq.s32.totalorder %v462, 1
      %vm1011 = vmand 1, %vm1009
      %vm1012 = vmand 1, %vm1010
      %vm1013 = vmand 0, %vm1009
      %vm1014 = vmand 0, %vm1010
      %v1015 = vsel %vm1011, 1, 0
      %v1016 = vsel %vm1012, 1, 0
      %v1017 = vsel %vm1013, 1, 0
      %v1018 = vsel %vm1014, 1, 0
      %v1019 = vcvt.s32.f32 %v1015
      %v1020 = vcvt.s32.f32 %v1016
      %v1021 = vcvt.s32.f32 %v1017
      %v1022 = vcvt.s32.f32 %v1018
      %v1028 = vunpack.c.l.s4 269488144
      %v1029 = vunpack.c.0.s8 %v1028
      %v1030 = vperm.slane %v1019, %v1029
      %v1032 = vunpack.c.l.s4 842150450
      %v1033 = vunpack.c.0.s8 %v1032
      %v1034 = vperm.slane %v1019, %v1033
      %v1036 = vunpack.c.l.s4 1414812756
      %v1037 = vunpack.c.0.s8 %v1036
      %v1038 = vperm.slane %v1019, %v1037
      %v1040 = vunpack.c.l.s4 1987475062
      %v1041 = vunpack.c.0.s8 %v1040
      %v1042 = vperm.slane %v1019, %v1041
      %v1044 = vunpack.c.l.s4 269488144
      %v1045 = vunpack.c.0.s8 %v1044
      %v1046 = vperm.slane %v1020, %v1045
      %v1048 = vunpack.c.l.s4 842150450
      %v1049 = vunpack.c.0.s8 %v1048
      %v1050 = vperm.slane %v1020, %v1049
      %v1052 = vunpack.c.l.s4 1414812756
      %v1053 = vunpack.c.0.s8 %v1052
      %v1054 = vperm.slane %v1020, %v1053
      %v1056 = vunpack.c.l.s4 1987475062
      %v1057 = vunpack.c.0.s8 %v1056
      %v1058 = vperm.slane %v1020, %v1057
      %v1060 = vunpack.c.l.s4 269488144
      %v1061 = vunpack.c.0.s8 %v1060
      %v1062 = vperm.slane %v1021, %v1061
      %v1064 = vunpack.c.l.s4 842150450
      %v1065 = vunpack.c.0.s8 %v1064
      %v1066 = vperm.slane %v1021, %v1065
      %v1068 = vunpack.c.l.s4 1414812756
      %v1069 = vunpack.c.0.s8 %v1068
      %v1070 = vperm.slane %v1021, %v1069
      %v1072 = vunpack.c.l.s4 1987475062
      %v1073 = vunpack.c.0.s8 %v1072
      %v1074 = vperm.slane %v1021, %v1073
      %v1076 = vunpack.c.l.s4 269488144
      %v1077 = vunpack.c.0.s8 %v1076
      %v1078 = vperm.slane %v1022, %v1077
      %v1080 = vunpack.c.l.s4 842150450
      %v1081 = vunpack.c.0.s8 %v1080
      %v1082 = vperm.slane %v1022, %v1081
      %v1084 = vunpack.c.l.s4 1414812756
      %v1085 = vunpack.c.0.s8 %v1084
      %v1086 = vperm.slane %v1022, %v1085
      %v1088 = vunpack.c.l.s4 1987475062
      %v1089 = vunpack.c.0.s8 %v1088
      %v1090 = vperm.slane %v1022, %v1089
      %v1107 = vmul.f32 %v527, %v1030
      %v1108 = vmul.f32 %v528, %v1034
      %v1109 = vmul.f32 %v529, %v1038
      %v1110 = vmul.f32 %v530, %v1042
      %v1111 = vmul.f32 %v531, %v1046
      %v1112 = vmul.f32 %v532, %v1050
      %v1113 = vmul.f32 %v533, %v1054
      %v1114 = vmul.f32 %v534, %v1058
      %v1115 = vmul.f32 %v527, %v1062
      %v1116 = vmul.f32 %v528, %v1066
      %v1117 = vmul.f32 %v529, %v1070
      %v1118 = vmul.f32 %v530, %v1074
      %v1119 = vmul.f32 %v531, %v1078
      %v1120 = vmul.f32 %v532, %v1082
      %v1121 = vmul.f32 %v533, %v1086
      %v1122 = vmul.f32 %v534, %v1090
      %v1123 = vmul.f32 %v535, %v1030
      %v1124 = vmul.f32 %v536, %v1034
      %v1125 = vmul.f32 %v537, %v1038
      %v1126 = vmul.f32 %v538, %v1042
      %v1127 = vmul.f32 %v539, %v1046
      %v1128 = vmul.f32 %v540, %v1050
      %v1129 = vmul.f32 %v541, %v1054
      %v1130 = vmul.f32 %v542, %v1058
      %v1131 = vmul.f32 %v535, %v1062
      %v1132 = vmul.f32 %v536, %v1066
      %v1133 = vmul.f32 %v537, %v1070
      %v1134 = vmul.f32 %v538, %v1074
      %v1135 = vmul.f32 %v539, %v1078
      %v1136 = vmul.f32 %v540, %v1082
      %v1137 = vmul.f32 %v541, %v1086
      %v1138 = vmul.f32 %v542, %v1090
      %v1139 = vmul.f32 %v543, %v1030
      %v1140 = vmul.f32 %v544, %v1034
      %v1141 = vmul.f32 %v545, %v1038
      %v1142 = vmul.f32 %v546, %v1042
      %v1143 = vmul.f32 %v547, %v1046
      %v1144 = vmul.f32 %v548, %v1050
      %v1145 = vmul.f32 %v549, %v1054
      %v1146 = vmul.f32 %v550, %v1058
      %v1147 = vmul.f32 %v543, %v1062
      %v1148 = vmul.f32 %v544, %v1066
      %v1149 = vmul.f32 %v545, %v1070
      %v1150 = vmul.f32 %v546, %v1074
      %v1151 = vmul.f32 %v547, %v1078
      %v1152 = vmul.f32 %v548, %v1082
      %v1153 = vmul.f32 %v549, %v1086
      %v1154 = vmul.f32 %v550, %v1090
      %v1155 = vmul.f32 %v551, %v1030
      %v1156 = vmul.f32 %v552, %v1034
      %v1157 = vmul.f32 %v553, %v1038
      %v1158 = vmul.f32 %v554, %v1042
      %v1159 = vmul.f32 %v555, %v1046
      %v1160 = vmul.f32 %v556, %v1050
      %v1161 = vmul.f32 %v557, %v1054
      %v1162 = vmul.f32 %v558, %v1058
      %v1163 = vmul.f32 %v551, %v1062
      %v1164 = vmul.f32 %v552, %v1066
      %v1165 = vmul.f32 %v553, %v1070
      %v1166 = vmul.f32 %v554, %v1074
      %v1167 = vmul.f32 %v555, %v1078
      %v1168 = vmul.f32 %v556, %v1082
      %v1169 = vmul.f32 %v557, %v1086
      %v1170 = vmul.f32 %v558, %v1090
      %v1171 = vmul.f32 %v559, %v1030
      %v1172 = vmul.f32 %v560, %v1034
      %v1173 = vmul.f32 %v561, %v1038
      %v1174 = vmul.f32 %v562, %v1042
      %v1175 = vmul.f32 %v563, %v1046
      %v1176 = vmul.f32 %v564, %v1050
      %v1177 = vmul.f32 %v565, %v1054
      %v1178 = vmul.f32 %v566, %v1058
      %v1179 = vmul.f32 %v559, %v1062
      %v1180 = vmul.f32 %v560, %v1066
      %v1181 = vmul.f32 %v561, %v1070
      %v1182 = vmul.f32 %v562, %v1074
      %v1183 = vmul.f32 %v563, %v1078
      %v1184 = vmul.f32 %v564, %v1082
      %v1185 = vmul.f32 %v565, %v1086
      %v1186 = vmul.f32 %v566, %v1090
      %v1187 = vmul.f32 %v567, %v1030
      %v1188 = vmul.f32 %v568, %v1034
      %v1189 = vmul.f32 %v569, %v1038
      %v1190 = vmul.f32 %v570, %v1042
      %v1191 = vmul.f32 %v571, %v1046
      %v1192 = vmul.f32 %v572, %v1050
      %v1193 = vmul.f32 %v573, %v1054
      %v1194 = vmul.f32 %v574, %v1058
      %v1195 = vmul.f32 %v567, %v1062
      %v1196 = vmul.f32 %v568, %v1066
      %v1197 = vmul.f32 %v569, %v1070
      %v1198 = vmul.f32 %v570, %v1074
      %v1199 = vmul.f32 %v571, %v1078
      %v1200 = vmul.f32 %v572, %v1082
      %v1201 = vmul.f32 %v573, %v1086
      %v1202 = vmul.f32 %v574, %v1090
      %v1203 = vmul.f32 %v575, %v1030
      %v1204 = vmul.f32 %v576, %v1034
      %v1205 = vmul.f32 %v577, %v1038
      %v1206 = vmul.f32 %v578, %v1042
      %v1207 = vmul.f32 %v579, %v1046
      %v1208 = vmul.f32 %v580, %v1050
      %v1209 = vmul.f32 %v581, %v1054
      %v1210 = vmul.f32 %v582, %v1058
      %v1211 = vmul.f32 %v575, %v1062
      %v1212 = vmul.f32 %v576, %v1066
      %v1213 = vmul.f32 %v577, %v1070
      %v1214 = vmul.f32 %v578, %v1074
      %v1215 = vmul.f32 %v579, %v1078
      %v1216 = vmul.f32 %v580, %v1082
      %v1217 = vmul.f32 %v581, %v1086
      %v1218 = vmul.f32 %v582, %v1090
      %v1219 = vmul.f32 %v583, %v1030
      %v1220 = vmul.f32 %v584, %v1034
      %v1221 = vmul.f32 %v585, %v1038
      %v1222 = vmul.f32 %v586, %v1042
      %v1223 = vmul.f32 %v587, %v1046
      %v1224 = vmul.f32 %v588, %v1050
      %v1225 = vmul.f32 %v589, %v1054
      %v1226 = vmul.f32 %v590, %v1058
      %v1227 = vmul.f32 %v583, %v1062
      %v1228 = vmul.f32 %v584, %v1066
      %v1229 = vmul.f32 %v585, %v1070
      %v1230 = vmul.f32 %v586, %v1074
      %v1231 = vmul.f32 %v587, %v1078
      %v1232 = vmul.f32 %v588, %v1082
      %v1233 = vmul.f32 %v589, %v1086
      %v1234 = vmul.f32 %v590, %v1090
      %1363 = vrot.lane.b32.xlu0 %v1107, 124
      %v1364 = vpop.permute.xlu0 %1363
      %1365 = vrot.lane.b32.xlu0 %v1108, 124
      %v1366 = vpop.permute.xlu0 %1365
      %1367 = vrot.lane.b32.xlu0 %v1109, 124
      %v1368 = vpop.permute.xlu0 %1367
      %1369 = vrot.lane.b32.xlu0 %v1110, 124
      %v1370 = vpop.permute.xlu0 %1369
      %1371 = vrot.lane.b32.xlu0 %v1111, 124
      %v1372 = vpop.permute.xlu0 %1371
      %1373 = vrot.lane.b32.xlu0 %v1112, 124
      %v1374 = vpop.permute.xlu0 %1373
      %1375 = vrot.lane.b32.xlu0 %v1113, 124
      %v1376 = vpop.permute.xlu0 %1375
      %1377 = vrot.lane.b32.xlu0 %v1114, 124
      %v1378 = vpop.permute.xlu0 %1377
      %1379 = vrot.lane.b32.xlu0 %v1115, 124
      %v1380 = vpop.permute.xlu0 %1379
      %1381 = vrot.lane.b32.xlu0 %v1116, 124
      %v1382 = vpop.permute.xlu0 %1381
      %1383 = vrot.lane.b32.xlu0 %v1117, 124
      %v1384 = vpop.permute.xlu0 %1383
      %1385 = vrot.lane.b32.xlu0 %v1118, 124
      %v1386 = vpop.permute.xlu0 %1385
      %1387 = vrot.lane.b32.xlu0 %v1119, 124
      %v1388 = vpop.permute.xlu0 %1387
      %1389 = vrot.lane.b32.xlu0 %v1120, 124
      %v1390 = vpop.permute.xlu0 %1389
      %1391 = vrot.lane.b32.xlu0 %v1121, 124
      %v1392 = vpop.permute.xlu0 %1391
      %1393 = vrot.lane.b32.xlu0 %v1122, 124
      %v1394 = vpop.permute.xlu0 %1393
      %1395 = vrot.lane.b32.xlu0 %v1123, 124
      %v1396 = vpop.permute.xlu0 %1395
      %1397 = vrot.lane.b32.xlu0 %v1124, 124
      %v1398 = vpop.permute.xlu0 %1397
      %1399 = vrot.lane.b32.xlu0 %v1125, 124
      %v1400 = vpop.permute.xlu0 %1399
      %1401 = vrot.lane.b32.xlu0 %v1126, 124
      %v1402 = vpop.permute.xlu0 %1401
      %1403 = vrot.lane.b32.xlu0 %v1127, 124
      %v1404 = vpop.permute.xlu0 %1403
      %1405 = vrot.lane.b32.xlu0 %v1128, 124
      %v1406 = vpop.permute.xlu0 %1405
      %1407 = vrot.lane.b32.xlu0 %v1129, 124
      %v1408 = vpop.permute.xlu0 %1407
      %1409 = vrot.lane.b32.xlu0 %v1130, 124
      %v1410 = vpop.permute.xlu0 %1409
      %1411 = vrot.lane.b32.xlu0 %v1131, 124
      %v1412 = vpop.permute.xlu0 %1411
      %1413 = vrot.lane.b32.xlu0 %v1132, 124
      %v1414 = vpop.permute.xlu0 %1413
      %1415 = vrot.lane.b32.xlu0 %v1133, 124
      %v1416 = vpop.permute.xlu0 %1415
      %1417 = vrot.lane.b32.xlu0 %v1134, 124
      %v1418 = vpop.permute.xlu0 %1417
      %1419 = vrot.lane.b32.xlu0 %v1135, 124
      %v1420 = vpop.permute.xlu0 %1419
      %1421 = vrot.lane.b32.xlu0 %v1136, 124
      %v1422 = vpop.permute.xlu0 %1421
      %1423 = vrot.lane.b32.xlu0 %v1137, 124
      %v1424 = vpop.permute.xlu0 %1423
      %1425 = vrot.lane.b32.xlu0 %v1138, 124
      %v1426 = vpop.permute.xlu0 %1425
      %1427 = vrot.lane.b32.xlu0 %v1139, 124
      %v1428 = vpop.permute.xlu0 %1427
      %1429 = vrot.lane.b32.xlu0 %v1140, 124
      %v1430 = vpop.permute.xlu0 %1429
      %1431 = vrot.lane.b32.xlu0 %v1141, 124
      %v1432 = vpop.permute.xlu0 %1431
      %1433 = vrot.lane.b32.xlu0 %v1142, 124
      %v1434 = vpop.permute.xlu0 %1433
      %1435 = vrot.lane.b32.xlu0 %v1143, 124
      %v1436 = vpop.permute.xlu0 %1435
      %1437 = vrot.lane.b32.xlu0 %v1144, 124
      %v1438 = vpop.permute.xlu0 %1437
      %1439 = vrot.lane.b32.xlu0 %v1145, 124
      %v1440 = vpop.permute.xlu0 %1439
      %1441 = vrot.lane.b32.xlu0 %v1146, 124
      %v1442 = vpop.permute.xlu0 %1441
      %1443 = vrot.lane.b32.xlu0 %v1147, 124
      %v1444 = vpop.permute.xlu0 %1443
      %1445 = vrot.lane.b32.xlu0 %v1148, 124
      %v1446 = vpop.permute.xlu0 %1445
      %1447 = vrot.lane.b32.xlu0 %v1149, 124
      %v1448 = vpop.permute.xlu0 %1447
      %1449 = vrot.lane.b32.xlu0 %v1150, 124
      %v1450 = vpop.permute.xlu0 %1449
      %1451 = vrot.lane.b32.xlu0 %v1151, 124
      %v1452 = vpop.permute.xlu0 %1451
      %1453 = vrot.lane.b32.xlu0 %v1152, 124
      %v1454 = vpop.permute.xlu0 %1453
      %1455 = vrot.lane.b32.xlu0 %v1153, 124
      %v1456 = vpop.permute.xlu0 %1455
      %1457 = vrot.lane.b32.xlu0 %v1154, 124
      %v1458 = vpop.permute.xlu0 %1457
      %1459 = vrot.lane.b32.xlu0 %v1155, 124
      %v1460 = vpop.permute.xlu0 %1459
      %1461 = vrot.lane.b32.xlu0 %v1156, 124
      %v1462 = vpop.permute.xlu0 %1461
      %1463 = vrot.lane.b32.xlu0 %v1157, 124
      %v1464 = vpop.permute.xlu0 %1463
      %1465 = vrot.lane.b32.xlu0 %v1158, 124
      %v1466 = vpop.permute.xlu0 %1465
      %1467 = vrot.lane.b32.xlu0 %v1159, 124
      %v1468 = vpop.permute.xlu0 %1467
      %1469 = vrot.lane.b32.xlu0 %v1160, 124
      %v1470 = vpop.permute.xlu0 %1469
      %1471 = vrot.lane.b32.xlu0 %v1161, 124
      %v1472 = vpop.permute.xlu0 %1471
      %1473 = vrot.lane.b32.xlu0 %v1162, 124
      %v1474 = vpop.permute.xlu0 %1473
      %1475 = vrot.lane.b32.xlu0 %v1163, 124
      %v1476 = vpop.permute.xlu0 %1475
      %1477 = vrot.lane.b32.xlu0 %v1164, 124
      %v1478 = vpop.permute.xlu0 %1477
      %1479 = vrot.lane.b32.xlu0 %v1165, 124
      %v1480 = vpop.permute.xlu0 %1479
      %1481 = vrot.lane.b32.xlu0 %v1166, 124
      %v1482 = vpop.permute.xlu0 %1481
      %1483 = vrot.lane.b32.xlu0 %v1167, 124
      %v1484 = vpop.permute.xlu0 %1483
      %1485 = vrot.lane.b32.xlu0 %v1168, 124
      %v1486 = vpop.permute.xlu0 %1485
      %1487 = vrot.lane.b32.xlu0 %v1169, 124
      %v1488 = vpop.permute.xlu0 %1487
      %1489 = vrot.lane.b32.xlu0 %v1170, 124
      %v1490 = vpop.permute.xlu0 %1489
      %1491 = vrot.lane.b32.xlu0 %v1171, 124
      %v1492 = vpop.permute.xlu0 %1491
      %1493 = vrot.lane.b32.xlu0 %v1172, 124
      %v1494 = vpop.permute.xlu0 %1493
      %1495 = vrot.lane.b32.xlu0 %v1173, 124
      %v1496 = vpop.permute.xlu0 %1495
      %1497 = vrot.lane.b32.xlu0 %v1174, 124
      %v1498 = vpop.permute.xlu0 %1497
      %1499 = vrot.lane.b32.xlu0 %v1175, 124
      %v1500 = vpop.permute.xlu0 %1499
      %1501 = vrot.lane.b32.xlu0 %v1176, 124
      %v1502 = vpop.permute.xlu0 %1501
      %1503 = vrot.lane.b32.xlu0 %v1177, 124
      %v1504 = vpop.permute.xlu0 %1503
      %1505 = vrot.lane.b32.xlu0 %v1178, 124
      %v1506 = vpop.permute.xlu0 %1505
      %1507 = vrot.lane.b32.xlu0 %v1179, 124
      %v1508 = vpop.permute.xlu0 %1507
      %1509 = vrot.lane.b32.xlu0 %v1180, 124
      %v1510 = vpop.permute.xlu0 %1509
      %1511 = vrot.lane.b32.xlu0 %v1181, 124
      %v1512 = vpop.permute.xlu0 %1511
      %1513 = vrot.lane.b32.xlu0 %v1182, 124
      %v1514 = vpop.permute.xlu0 %1513
      %1515 = vrot.lane.b32.xlu0 %v1183, 124
      %v1516 = vpop.permute.xlu0 %1515
      %1517 = vrot.lane.b32.xlu0 %v1184, 124
      %v1518 = vpop.permute.xlu0 %1517
      %1519 = vrot.lane.b32.xlu0 %v1185, 124
      %v1520 = vpop.permute.xlu0 %1519
      %1521 = vrot.lane.b32.xlu0 %v1186, 124
      %v1522 = vpop.permute.xlu0 %1521
      %1523 = vrot.lane.b32.xlu0 %v1187, 124
      %v1524 = vpop.permute.xlu0 %1523
      %1525 = vrot.lane.b32.xlu0 %v1188, 124
      %v1526 = vpop.permute.xlu0 %1525
      %1527 = vrot.lane.b32.xlu0 %v1189, 124
      %v1528 = vpop.permute.xlu0 %1527
      %1529 = vrot.lane.b32.xlu0 %v1190, 124
      %v1530 = vpop.permute.xlu0 %1529
      %1531 = vrot.lane.b32.xlu0 %v1191, 124
      %v1532 = vpop.permute.xlu0 %1531
      %1533 = vrot.lane.b32.xlu0 %v1192, 124
      %v1534 = vpop.permute.xlu0 %1533
      %1535 = vrot.lane.b32.xlu0 %v1193, 124
      %v1536 = vpop.permute.xlu0 %1535
      %1537 = vrot.lane.b32.xlu0 %v1194, 124
      %v1538 = vpop.permute.xlu0 %1537
      %1539 = vrot.lane.b32.xlu0 %v1195, 124
      %v1540 = vpop.permute.xlu0 %1539
      %1541 = vrot.lane.b32.xlu0 %v1196, 124
      %v1542 = vpop.permute.xlu0 %1541
      %1543 = vrot.lane.b32.xlu0 %v1197, 124
      %v1544 = vpop.permute.xlu0 %1543
      %1545 = vrot.lane.b32.xlu0 %v1198, 124
      %v1546 = vpop.permute.xlu0 %1545
      %1547 = vrot.lane.b32.xlu0 %v1199, 124
      %v1548 = vpop.permute.xlu0 %1547
      %1549 = vrot.lane.b32.xlu0 %v1200, 124
      %v1550 = vpop.permute.xlu0 %1549
      %1551 = vrot.lane.b32.xlu0 %v1201, 124
      %v1552 = vpop.permute.xlu0 %1551
      %1553 = vrot.lane.b32.xlu0 %v1202, 124
      %v1554 = vpop.permute.xlu0 %1553
      %1555 = vrot.lane.b32.xlu0 %v1203, 124
      %v1556 = vpop.permute.xlu0 %1555
      %1557 = vrot.lane.b32.xlu0 %v1204, 124
      %v1558 = vpop.permute.xlu0 %1557
      %1559 = vrot.lane.b32.xlu0 %v1205, 124
      %v1560 = vpop.permute.xlu0 %1559
      %1561 = vrot.lane.b32.xlu0 %v1206, 124
      %v1562 = vpop.permute.xlu0 %1561
      %1563 = vrot.lane.b32.xlu0 %v1207, 124
      %v1564 = vpop.permute.xlu0 %1563
      %1565 = vrot.lane.b32.xlu0 %v1208, 124
      %v1566 = vpop.permute.xlu0 %1565
      %1567 = vrot.lane.b32.xlu0 %v1209, 124
      %v1568 = vpop.permute.xlu0 %1567
      %1569 = vrot.lane.b32.xlu0 %v1210, 124
      %v1570 = vpop.permute.xlu0 %1569
      %1571 = vrot.lane.b32.xlu0 %v1211, 124
      %v1572 = vpop.permute.xlu0 %1571
      %1573 = vrot.lane.b32.xlu0 %v1212, 124
      %v1574 = vpop.permute.xlu0 %1573
      %1575 = vrot.lane.b32.xlu0 %v1213, 124
      %v1576 = vpop.permute.xlu0 %1575
      %1577 = vrot.lane.b32.xlu0 %v1214, 124
      %v1578 = vpop.permute.xlu0 %1577
      %1579 = vrot.lane.b32.xlu0 %v1215, 124
      %v1580 = vpop.permute.xlu0 %1579
      %1581 = vrot.lane.b32.xlu0 %v1216, 124
      %v1582 = vpop.permute.xlu0 %1581
      %1583 = vrot.lane.b32.xlu0 %v1217, 124
      %v1584 = vpop.permute.xlu0 %1583
      %1585 = vrot.lane.b32.xlu0 %v1218, 124
      %v1586 = vpop.permute.xlu0 %1585
      %1587 = vrot.lane.b32.xlu0 %v1219, 124
      %v1588 = vpop.permute.xlu0 %1587
      %1589 = vrot.lane.b32.xlu0 %v1220, 124
      %v1590 = vpop.permute.xlu0 %1589
      %1591 = vrot.lane.b32.xlu0 %v1221, 124
      %v1592 = vpop.permute.xlu0 %1591
      %1593 = vrot.lane.b32.xlu0 %v1222, 124
      %v1594 = vpop.permute.xlu0 %1593
      %1595 = vrot.lane.b32.xlu0 %v1223, 124
      %v1596 = vpop.permute.xlu0 %1595
      %1597 = vrot.lane.b32.xlu0 %v1224, 124
      %v1598 = vpop.permute.xlu0 %1597
      %1599 = vrot.lane.b32.xlu0 %v1225, 124
      %v1600 = vpop.permute.xlu0 %1599
      %1601 = vrot.lane.b32.xlu0 %v1226, 124
      %v1602 = vpop.permute.xlu0 %1601
      %1603 = vrot.lane.b32.xlu0 %v1227, 124
      %v1604 = vpop.permute.xlu0 %1603
      %1605 = vrot.lane.b32.xlu0 %v1228, 124
      %v1606 = vpop.permute.xlu0 %1605
      %1607 = vrot.lane.b32.xlu0 %v1229, 124
      %v1608 = vpop.permute.xlu0 %1607
      %1609 = vrot.lane.b32.xlu0 %v1230, 124
      %v1610 = vpop.permute.xlu0 %1609
      %1611 = vrot.lane.b32.xlu0 %v1231, 124
      %v1612 = vpop.permute.xlu0 %1611
      %1613 = vrot.lane.b32.xlu0 %v1232, 124
      %v1614 = vpop.permute.xlu0 %1613
      %1615 = vrot.lane.b32.xlu0 %v1233, 124
      %v1616 = vpop.permute.xlu0 %1615
      %1617 = vrot.lane.b32.xlu0 %v1234, 124
      %v1618 = vpop.permute.xlu0 %1617
      %v1747 = vadd.f32 %v881, %v1364
      %v1748 = vadd.f32 %v882, %v1366
      %v1749 = vadd.f32 %v883, %v1368
      %v1750 = vadd.f32 %v884, %v1370
      %v1751 = vadd.f32 %v885, %v1372
      %v1752 = vadd.f32 %v886, %v1374
      %v1753 = vadd.f32 %v887, %v1376
      %v1754 = vadd.f32 %v888, %v1378
      %v1755 = vadd.f32 %v889, %v1380
      %v1756 = vadd.f32 %v890, %v1382
      %v1757 = vadd.f32 %v891, %v1384
      %v1758 = vadd.f32 %v892, %v1386
      %v1759 = vadd.f32 %v893, %v1388
      %v1760 = vadd.f32 %v894, %v1390
      %v1761 = vadd.f32 %v895, %v1392
      %v1762 = vadd.f32 %v896, %v1394
      %v1763 = vadd.f32 %v897, %v1396
      %v1764 = vadd.f32 %v898, %v1398
      %v1765 = vadd.f32 %v899, %v1400
      %v1766 = vadd.f32 %v900, %v1402
      %v1767 = vadd.f32 %v901, %v1404
      %v1768 = vadd.f32 %v902, %v1406
      %v1769 = vadd.f32 %v903, %v1408
      %v1770 = vadd.f32 %v904, %v1410
      %v1771 = vadd.f32 %v905, %v1412
      %v1772 = vadd.f32 %v906, %v1414
      %v1773 = vadd.f32 %v907, %v1416
      %v1774 = vadd.f32 %v908, %v1418
      %v1775 = vadd.f32 %v909, %v1420
      %v1776 = vadd.f32 %v910, %v1422
      %v1777 = vadd.f32 %v911, %v1424
      %v1778 = vadd.f32 %v912, %v1426
      %v1779 = vadd.f32 %v913, %v1428
      %v1780 = vadd.f32 %v914, %v1430
      %v1781 = vadd.f32 %v915, %v1432
      %v1782 = vadd.f32 %v916, %v1434
      %v1783 = vadd.f32 %v917, %v1436
      %v1784 = vadd.f32 %v918, %v1438
      %v1785 = vadd.f32 %v919, %v1440
      %v1786 = vadd.f32 %v920, %v1442
      %v1787 = vadd.f32 %v921, %v1444
      %v1788 = vadd.f32 %v922, %v1446
      %v1789 = vadd.f32 %v923, %v1448
      %v1790 = vadd.f32 %v924, %v1450
      %v1791 = vadd.f32 %v925, %v1452
      %v1792 = vadd.f32 %v926, %v1454
      %v1793 = vadd.f32 %v927, %v1456
      %v1794 = vadd.f32 %v928, %v1458
      %v1795 = vadd.f32 %v929, %v1460
      %v1796 = vadd.f32 %v930, %v1462
      %v1797 = vadd.f32 %v931, %v1464
      %v1798 = vadd.f32 %v932, %v1466
      %v1799 = vadd.f32 %v933, %v1468
      %v1800 = vadd.f32 %v934, %v1470
      %v1801 = vadd.f32 %v935, %v1472
      %v1802 = vadd.f32 %v936, %v1474
      %v1803 = vadd.f32 %v937, %v1476
      %v1804 = vadd.f32 %v938, %v1478
      %v1805 = vadd.f32 %v939, %v1480
      %v1806 = vadd.f32 %v940, %v1482
      %v1807 = vadd.f32 %v941, %v1484
      %v1808 = vadd.f32 %v942, %v1486
      %v1809 = vadd.f32 %v943, %v1488
      %v1810 = vadd.f32 %v944, %v1490
      %v1811 = vadd.f32 %v945, %v1492
      %v1812 = vadd.f32 %v946, %v1494
      %v1813 = vadd.f32 %v947, %v1496
      %v1814 = vadd.f32 %v948, %v1498
      %v1815 = vadd.f32 %v949, %v1500
      %v1816 = vadd.f32 %v950, %v1502
      %v1817 = vadd.f32 %v951, %v1504
      %v1818 = vadd.f32 %v952, %v1506
      %v1819 = vadd.f32 %v953, %v1508
      %v1820 = vadd.f32 %v954, %v1510
      %v1821 = vadd.f32 %v955, %v1512
      %v1822 = vadd.f32 %v956, %v1514
      %v1823 = vadd.f32 %v957, %v1516
      %v1824 = vadd.f32 %v958, %v1518
      %v1825 = vadd.f32 %v959, %v1520
      %v1826 = vadd.f32 %v960, %v1522
      %v1827 = vadd.f32 %v961, %v1524
      %v1828 = vadd.f32 %v962, %v1526
      %v1829 = vadd.f32 %v963, %v1528
      %v1830 = vadd.f32 %v964, %v1530
      %v1831 = vadd.f32 %v965, %v1532
      %v1832 = vadd.f32 %v966, %v1534
      %v1833 = vadd.f32 %v967, %v1536
      %v1834 = vadd.f32 %v968, %v1538
      %v1835 = vadd.f32 %v969, %v1540
      %v1836 = vadd.f32 %v970, %v1542
      %v1837 = vadd.f32 %v971, %v1544
      %v1838 = vadd.f32 %v972, %v1546
      %v1839 = vadd.f32 %v973, %v1548
      %v1840 = vadd.f32 %v974, %v1550
      %v1841 = vadd.f32 %v975, %v1552
      %v1842 = vadd.f32 %v976, %v1554
      %v1843 = vadd.f32 %v977, %v1556
      %v1844 = vadd.f32 %v978, %v1558
      %v1845 = vadd.f32 %v979, %v1560
      %v1846 = vadd.f32 %v980, %v1562
      %v1847 = vadd.f32 %v981, %v1564
      %v1848 = vadd.f32 %v982, %v1566
      %v1849 = vadd.f32 %v983, %v1568
      %v1850 = vadd.f32 %v984, %v1570
      %v1851 = vadd.f32 %v985, %v1572
      %v1852 = vadd.f32 %v986, %v1574
      %v1853 = vadd.f32 %v987, %v1576
      %v1854 = vadd.f32 %v988, %v1578
      %v1855 = vadd.f32 %v989, %v1580
      %v1856 = vadd.f32 %v990, %v1582
      %v1857 = vadd.f32 %v991, %v1584
      %v1858 = vadd.f32 %v992, %v1586
      %v1859 = vadd.f32 %v993, %v1588
      %v1860 = vadd.f32 %v994, %v1590
      %v1861 = vadd.f32 %v995, %v1592
      %v1862 = vadd.f32 %v996, %v1594
      %v1863 = vadd.f32 %v997, %v1596
      %v1864 = vadd.f32 %v998, %v1598
      %v1865 = vadd.f32 %v999, %v1600
      %v1866 = vadd.f32 %v1000, %v1602
      %v1867 = vadd.f32 %v1001, %v1604
      %v1868 = vadd.f32 %v1002, %v1606
      %v1869 = vadd.f32 %v1003, %v1608
      %v1870 = vadd.f32 %v1004, %v1610
      %v1871 = vadd.f32 %v1005, %v1612
      %v1872 = vadd.f32 %v1006, %v1614
      %v1873 = vadd.f32 %v1007, %v1616
      %v1874 = vadd.f32 %v1008, %v1618
      %2003 = vrot.lane.b32.xlu0 %v761, 120
      %v2004 = vpop.permute.xlu0 %2003
      %2005 = vrot.lane.b32.xlu0 %v762, 120
      %v2006 = vpop.permute.xlu0 %2005
      %2007 = vrot.lane.b32.xlu0 %v763, 120
      %v2008 = vpop.permute.xlu0 %2007
      %2009 = vrot.lane.b32.xlu0 %v764, 120
      %v2010 = vpop.permute.xlu0 %2009
      %2011 = vrot.lane.b32.xlu0 %v765, 120
      %v2012 = vpop.permute.xlu0 %2011
      %2013 = vrot.lane.b32.xlu0 %v766, 120
      %v2014 = vpop.permute.xlu0 %2013
      %2015 = vrot.lane.b32.xlu0 %v767, 120
      %v2016 = vpop.permute.xlu0 %2015
      %2017 = vrot.lane.b32.xlu0 %v768, 120
      %v2018 = vpop.permute.xlu0 %2017
      %2019 = vrot.lane.b32.xlu0 %v753, 120
      %v2020 = vpop.permute.xlu0 %2019
      %2021 = vrot.lane.b32.xlu0 %v754, 120
      %v2022 = vpop.permute.xlu0 %2021
      %2023 = vrot.lane.b32.xlu0 %v755, 120
      %v2024 = vpop.permute.xlu0 %2023
      %2025 = vrot.lane.b32.xlu0 %v756, 120
      %v2026 = vpop.permute.xlu0 %2025
      %2027 = vrot.lane.b32.xlu0 %v757, 120
      %v2028 = vpop.permute.xlu0 %2027
      %2029 = vrot.lane.b32.xlu0 %v758, 120
      %v2030 = vpop.permute.xlu0 %2029
      %2031 = vrot.lane.b32.xlu0 %v759, 120
      %v2032 = vpop.permute.xlu0 %2031
      %2033 = vrot.lane.b32.xlu0 %v760, 120
      %v2034 = vpop.permute.xlu0 %2033
      %2035 = vrot.lane.b32.xlu0 %v777, 120
      %v2036 = vpop.permute.xlu0 %2035
      %2037 = vrot.lane.b32.xlu0 %v778, 120
      %v2038 = vpop.permute.xlu0 %2037
      %2039 = vrot.lane.b32.xlu0 %v779, 120
      %v2040 = vpop.permute.xlu0 %2039
      %2041 = vrot.lane.b32.xlu0 %v780, 120
      %v2042 = vpop.permute.xlu0 %2041
      %2043 = vrot.lane.b32.xlu0 %v781, 120
      %v2044 = vpop.permute.xlu0 %2043
      %2045 = vrot.lane.b32.xlu0 %v782, 120
      %v2046 = vpop.permute.xlu0 %2045
      %2047 = vrot.lane.b32.xlu0 %v783, 120
      %v2048 = vpop.permute.xlu0 %2047
      %2049 = vrot.lane.b32.xlu0 %v784, 120
      %v2050 = vpop.permute.xlu0 %2049
      %2051 = vrot.lane.b32.xlu0 %v769, 120
      %v2052 = vpop.permute.xlu0 %2051
      %2053 = vrot.lane.b32.xlu0 %v770, 120
      %v2054 = vpop.permute.xlu0 %2053
      %2055 = vrot.lane.b32.xlu0 %v771, 120
      %v2056 = vpop.permute.xlu0 %2055
      %2057 = vrot.lane.b32.xlu0 %v772, 120
      %v2058 = vpop.permute.xlu0 %2057
      %2059 = vrot.lane.b32.xlu0 %v773, 120
      %v2060 = vpop.permute.xlu0 %2059
      %2061 = vrot.lane.b32.xlu0 %v774, 120
      %v2062 = vpop.permute.xlu0 %2061
      %2063 = vrot.lane.b32.xlu0 %v775, 120
      %v2064 = vpop.permute.xlu0 %2063
      %2065 = vrot.lane.b32.xlu0 %v776, 120
      %v2066 = vpop.permute.xlu0 %2065
      %2067 = vrot.lane.b32.xlu0 %v793, 120
      %v2068 = vpop.permute.xlu0 %2067
      %2069 = vrot.lane.b32.xlu0 %v794, 120
      %v2070 = vpop.permute.xlu0 %2069
      %2071 = vrot.lane.b32.xlu0 %v795, 120
      %v2072 = vpop.permute.xlu0 %2071
      %2073 = vrot.lane.b32.xlu0 %v796, 120
      %v2074 = vpop.permute.xlu0 %2073
      %2075 = vrot.lane.b32.xlu0 %v797, 120
      %v2076 = vpop.permute.xlu0 %2075
      %2077 = vrot.lane.b32.xlu0 %v798, 120
      %v2078 = vpop.permute.xlu0 %2077
      %2079 = vrot.lane.b32.xlu0 %v799, 120
      %v2080 = vpop.permute.xlu0 %2079
      %2081 = vrot.lane.b32.xlu0 %v800, 120
      %v2082 = vpop.permute.xlu0 %2081
      %2083 = vrot.lane.b32.xlu0 %v785, 120
      %v2084 = vpop.permute.xlu0 %2083
      %2085 = vrot.lane.b32.xlu0 %v786, 120
      %v2086 = vpop.permute.xlu0 %2085
      %2087 = vrot.lane.b32.xlu0 %v787, 120
      %v2088 = vpop.permute.xlu0 %2087
      %2089 = vrot.lane.b32.xlu0 %v788, 120
      %v2090 = vpop.permute.xlu0 %2089
      %2091 = vrot.lane.b32.xlu0 %v789, 120
      %v2092 = vpop.permute.xlu0 %2091
      %2093 = vrot.lane.b32.xlu0 %v790, 120
      %v2094 = vpop.permute.xlu0 %2093
      %2095 = vrot.lane.b32.xlu0 %v791, 120
      %v2096 = vpop.permute.xlu0 %2095
      %2097 = vrot.lane.b32.xlu0 %v792, 120
      %v2098 = vpop.permute.xlu0 %2097
      %2099 = vrot.lane.b32.xlu0 %v809, 120
      %v2100 = vpop.permute.xlu0 %2099
      %2101 = vrot.lane.b32.xlu0 %v810, 120
      %v2102 = vpop.permute.xlu0 %2101
      %2103 = vrot.lane.b32.xlu0 %v811, 120
      %v2104 = vpop.permute.xlu0 %2103
      %2105 = vrot.lane.b32.xlu0 %v812, 120
      %v2106 = vpop.permute.xlu0 %2105
      %2107 = vrot.lane.b32.xlu0 %v813, 120
      %v2108 = vpop.permute.xlu0 %2107
      %2109 = vrot.lane.b32.xlu0 %v814, 120
      %v2110 = vpop.permute.xlu0 %2109
      %2111 = vrot.lane.b32.xlu0 %v815, 120
      %v2112 = vpop.permute.xlu0 %2111
      %2113 = vrot.lane.b32.xlu0 %v816, 120
      %v2114 = vpop.permute.xlu0 %2113
      %2115 = vrot.lane.b32.xlu0 %v801, 120
      %v2116 = vpop.permute.xlu0 %2115
      %2117 = vrot.lane.b32.xlu0 %v802, 120
      %v2118 = vpop.permute.xlu0 %2117
      %2119 = vrot.lane.b32.xlu0 %v803, 120
      %v2120 = vpop.permute.xlu0 %2119
      %2121 = vrot.lane.b32.xlu0 %v804, 120
      %v2122 = vpop.permute.xlu0 %2121
      %2123 = vrot.lane.b32.xlu0 %v805, 120
      %v2124 = vpop.permute.xlu0 %2123
      %2125 = vrot.lane.b32.xlu0 %v806, 120
      %v2126 = vpop.permute.xlu0 %2125
      %2127 = vrot.lane.b32.xlu0 %v807, 120
      %v2128 = vpop.permute.xlu0 %2127
      %2129 = vrot.lane.b32.xlu0 %v808, 120
      %v2130 = vpop.permute.xlu0 %2129
      %2131 = vrot.lane.b32.xlu0 %v825, 120
      %v2132 = vpop.permute.xlu0 %2131
      %2133 = vrot.lane.b32.xlu0 %v826, 120
      %v2134 = vpop.permute.xlu0 %2133
      %2135 = vrot.lane.b32.xlu0 %v827, 120
      %v2136 = vpop.permute.xlu0 %2135
      %2137 = vrot.lane.b32.xlu0 %v828, 120
      %v2138 = vpop.permute.xlu0 %2137
      %2139 = vrot.lane.b32.xlu0 %v829, 120
      %v2140 = vpop.permute.xlu0 %2139
      %2141 = vrot.lane.b32.xlu0 %v830, 120
      %v2142 = vpop.permute.xlu0 %2141
      %2143 = vrot.lane.b32.xlu0 %v831, 120
      %v2144 = vpop.permute.xlu0 %2143
      %2145 = vrot.lane.b32.xlu0 %v832, 120
      %v2146 = vpop.permute.xlu0 %2145
      %2147 = vrot.lane.b32.xlu0 %v817, 120
      %v2148 = vpop.permute.xlu0 %2147
      %2149 = vrot.lane.b32.xlu0 %v818, 120
      %v2150 = vpop.permute.xlu0 %2149
      %2151 = vrot.lane.b32.xlu0 %v819, 120
      %v2152 = vpop.permute.xlu0 %2151
      %2153 = vrot.lane.b32.xlu0 %v820, 120
      %v2154 = vpop.permute.xlu0 %2153
      %2155 = vrot.lane.b32.xlu0 %v821, 120
      %v2156 = vpop.permute.xlu0 %2155
      %2157 = vrot.lane.b32.xlu0 %v822, 120
      %v2158 = vpop.permute.xlu0 %2157
      %2159 = vrot.lane.b32.xlu0 %v823, 120
      %v2160 = vpop.permute.xlu0 %2159
      %2161 = vrot.lane.b32.xlu0 %v824, 120
      %v2162 = vpop.permute.xlu0 %2161
      %2163 = vrot.lane.b32.xlu0 %v841, 120
      %v2164 = vpop.permute.xlu0 %2163
      %2165 = vrot.lane.b32.xlu0 %v842, 120
      %v2166 = vpop.permute.xlu0 %2165
      %2167 = vrot.lane.b32.xlu0 %v843, 120
      %v2168 = vpop.permute.xlu0 %2167
      %2169 = vrot.lane.b32.xlu0 %v844, 120
      %v2170 = vpop.permute.xlu0 %2169
      %2171 = vrot.lane.b32.xlu0 %v845, 120
      %v2172 = vpop.permute.xlu0 %2171
      %2173 = vrot.lane.b32.xlu0 %v846, 120
      %v2174 = vpop.permute.xlu0 %2173
      %2175 = vrot.lane.b32.xlu0 %v847, 120
      %v2176 = vpop.permute.xlu0 %2175
      %2177 = vrot.lane.b32.xlu0 %v848, 120
      %v2178 = vpop.permute.xlu0 %2177
      %2179 = vrot.lane.b32.xlu0 %v833, 120
      %v2180 = vpop.permute.xlu0 %2179
      %2181 = vrot.lane.b32.xlu0 %v834, 120
      %v2182 = vpop.permute.xlu0 %2181
      %2183 = vrot.lane.b32.xlu0 %v835, 120
      %v2184 = vpop.permute.xlu0 %2183
      %2185 = vrot.lane.b32.xlu0 %v836, 120
      %v2186 = vpop.permute.xlu0 %2185
      %2187 = vrot.lane.b32.xlu0 %v837, 120
      %v2188 = vpop.permute.xlu0 %2187
      %2189 = vrot.lane.b32.xlu0 %v838, 120
      %v2190 = vpop.permute.xlu0 %2189
      %2191 = vrot.lane.b32.xlu0 %v839, 120
      %v2192 = vpop.permute.xlu0 %2191
      %2193 = vrot.lane.b32.xlu0 %v840, 120
      %v2194 = vpop.permute.xlu0 %2193
      %2195 = vrot.lane.b32.xlu0 %v857, 120
      %v2196 = vpop.permute.xlu0 %2195
      %2197 = vrot.lane.b32.xlu0 %v858, 120
      %v2198 = vpop.permute.xlu0 %2197
      %2199 = vrot.lane.b32.xlu0 %v859, 120
      %v2200 = vpop.permute.xlu0 %2199
      %2201 = vrot.lane.b32.xlu0 %v860, 120
      %v2202 = vpop.permute.xlu0 %2201
      %2203 = vrot.lane.b32.xlu0 %v861, 120
      %v2204 = vpop.permute.xlu0 %2203
      %2205 = vrot.lane.b32.xlu0 %v862, 120
      %v2206 = vpop.permute.xlu0 %2205
      %2207 = vrot.lane.b32.xlu0 %v863, 120
      %v2208 = vpop.permute.xlu0 %2207
      %2209 = vrot.lane.b32.xlu0 %v864, 120
      %v2210 = vpop.permute.xlu0 %2209
      %2211 = vrot.lane.b32.xlu0 %v849, 120
      %v2212 = vpop.permute.xlu0 %2211
      %2213 = vrot.lane.b32.xlu0 %v850, 120
      %v2214 = vpop.permute.xlu0 %2213
      %2215 = vrot.lane.b32.xlu0 %v851, 120
      %v2216 = vpop.permute.xlu0 %2215
      %2217 = vrot.lane.b32.xlu0 %v852, 120
      %v2218 = vpop.permute.xlu0 %2217
      %2219 = vrot.lane.b32.xlu0 %v853, 120
      %v2220 = vpop.permute.xlu0 %2219
      %2221 = vrot.lane.b32.xlu0 %v854, 120
      %v2222 = vpop.permute.xlu0 %2221
      %2223 = vrot.lane.b32.xlu0 %v855, 120
      %v2224 = vpop.permute.xlu0 %2223
      %2225 = vrot.lane.b32.xlu0 %v856, 120
      %v2226 = vpop.permute.xlu0 %2225
      %2227 = vrot.lane.b32.xlu0 %v873, 120
      %v2228 = vpop.permute.xlu0 %2227
      %2229 = vrot.lane.b32.xlu0 %v874, 120
      %v2230 = vpop.permute.xlu0 %2229
      %2231 = vrot.lane.b32.xlu0 %v875, 120
      %v2232 = vpop.permute.xlu0 %2231
      %2233 = vrot.lane.b32.xlu0 %v876, 120
      %v2234 = vpop.permute.xlu0 %2233
      %2235 = vrot.lane.b32.xlu0 %v877, 120
      %v2236 = vpop.permute.xlu0 %2235
      %2237 = vrot.lane.b32.xlu0 %v878, 120
      %v2238 = vpop.permute.xlu0 %2237
      %2239 = vrot.lane.b32.xlu0 %v879, 120
      %v2240 = vpop.permute.xlu0 %2239
      %2241 = vrot.lane.b32.xlu0 %v880, 120
      %v2242 = vpop.permute.xlu0 %2241
      %2243 = vrot.lane.b32.xlu0 %v865, 120
      %v2244 = vpop.permute.xlu0 %2243
      %2245 = vrot.lane.b32.xlu0 %v866, 120
      %v2246 = vpop.permute.xlu0 %2245
      %2247 = vrot.lane.b32.xlu0 %v867, 120
      %v2248 = vpop.permute.xlu0 %2247
      %2249 = vrot.lane.b32.xlu0 %v868, 120
      %v2250 = vpop.permute.xlu0 %2249
      %2251 = vrot.lane.b32.xlu0 %v869, 120
      %v2252 = vpop.permute.xlu0 %2251
      %2253 = vrot.lane.b32.xlu0 %v870, 120
      %v2254 = vpop.permute.xlu0 %2253
      %2255 = vrot.lane.b32.xlu0 %v871, 120
      %v2256 = vpop.permute.xlu0 %2255
      %2257 = vrot.lane.b32.xlu0 %v872, 120
      %v2258 = vpop.permute.xlu0 %2257
      %v2387 = vadd.f32 %v1747, %v2004
      %v2388 = vadd.f32 %v1748, %v2006
      %v2389 = vadd.f32 %v1749, %v2008
      %v2390 = vadd.f32 %v1750, %v2010
      %v2391 = vadd.f32 %v1751, %v2012
      %v2392 = vadd.f32 %v1752, %v2014
      %v2393 = vadd.f32 %v1753, %v2016
      %v2394 = vadd.f32 %v1754, %v2018
      %v2395 = vadd.f32 %v1755, %v2020
      %v2396 = vadd.f32 %v1756, %v2022
      %v2397 = vadd.f32 %v1757, %v2024
      %v2398 = vadd.f32 %v1758, %v2026
      %v2399 = vadd.f32 %v1759, %v2028
      %v2400 = vadd.f32 %v1760, %v2030
      %v2401 = vadd.f32 %v1761, %v2032
      %v2402 = vadd.f32 %v1762, %v2034
      %v2403 = vadd.f32 %v1763, %v2036
      %v2404 = vadd.f32 %v1764, %v2038
      %v2405 = vadd.f32 %v1765, %v2040
      %v2406 = vadd.f32 %v1766, %v2042
      %v2407 = vadd.f32 %v1767, %v2044
      %v2408 = vadd.f32 %v1768, %v2046
      %v2409 = vadd.f32 %v1769, %v2048
      %v2410 = vadd.f32 %v1770, %v2050
      %v2411 = vadd.f32 %v1771, %v2052
      %v2412 = vadd.f32 %v1772, %v2054
      %v2413 = vadd.f32 %v1773, %v2056
      %v2414 = vadd.f32 %v1774, %v2058
      %v2415 = vadd.f32 %v1775, %v2060
      %v2416 = vadd.f32 %v1776, %v2062
      %v2417 = vadd.f32 %v1777, %v2064
      %v2418 = vadd.f32 %v1778, %v2066
      %v2419 = vadd.f32 %v1779, %v2068
      %v2420 = vadd.f32 %v1780, %v2070
      %v2421 = vadd.f32 %v1781, %v2072
      %v2422 = vadd.f32 %v1782, %v2074
      %v2423 = vadd.f32 %v1783, %v2076
      %v2424 = vadd.f32 %v1784, %v2078
      %v2425 = vadd.f32 %v1785, %v2080
      %v2426 = vadd.f32 %v1786, %v2082
      %v2427 = vadd.f32 %v1787, %v2084
      %v2428 = vadd.f32 %v1788, %v2086
      %v2429 = vadd.f32 %v1789, %v2088
      %v2430 = vadd.f32 %v1790, %v2090
      %v2431 = vadd.f32 %v1791, %v2092
      %v2432 = vadd.f32 %v1792, %v2094
      %v2433 = vadd.f32 %v1793, %v2096
      %v2434 = vadd.f32 %v1794, %v2098
      %v2435 = vadd.f32 %v1795, %v2100
      %v2436 = vadd.f32 %v1796, %v2102
      %v2437 = vadd.f32 %v1797, %v2104
      %v2438 = vadd.f32 %v1798, %v2106
      %v2439 = vadd.f32 %v1799, %v2108
      %v2440 = vadd.f32 %v1800, %v2110
      %v2441 = vadd.f32 %v1801, %v2112
      %v2442 = vadd.f32 %v1802, %v2114
      %v2443 = vadd.f32 %v1803, %v2116
      %v2444 = vadd.f32 %v1804, %v2118
      %v2445 = vadd.f32 %v1805, %v2120
      %v2446 = vadd.f32 %v1806, %v2122
      %v2447 = vadd.f32 %v1807, %v2124
      %v2448 = vadd.f32 %v1808, %v2126
      %v2449 = vadd.f32 %v1809, %v2128
      %v2450 = vadd.f32 %v1810, %v2130
      %v2451 = vadd.f32 %v1811, %v2132
      %v2452 = vadd.f32 %v1812, %v2134
      %v2453 = vadd.f32 %v1813, %v2136
      %v2454 = vadd.f32 %v1814, %v2138
      %v2455 = vadd.f32 %v1815, %v2140
      %v2456 = vadd.f32 %v1816, %v2142
      %v2457 = vadd.f32 %v1817, %v2144
      %v2458 = vadd.f32 %v1818, %v2146
      %v2459 = vadd.f32 %v1819, %v2148
      %v2460 = vadd.f32 %v1820, %v2150
      %v2461 = vadd.f32 %v1821, %v2152
      %v2462 = vadd.f32 %v1822, %v2154
      %v2463 = vadd.f32 %v1823, %v2156
      %v2464 = vadd.f32 %v1824, %v2158
      %v2465 = vadd.f32 %v1825, %v2160
      %v2466 = vadd.f32 %v1826, %v2162
      %v2467 = vadd.f32 %v1827, %v2164
      %v2468 = vadd.f32 %v1828, %v2166
      %v2469 = vadd.f32 %v1829, %v2168
      %v2470 = vadd.f32 %v1830, %v2170
      %v2471 = vadd.f32 %v1831, %v2172
      %v2472 = vadd.f32 %v1832, %v2174
      %v2473 = vadd.f32 %v1833, %v2176
      %v2474 = vadd.f32 %v1834, %v2178
      %v2475 = vadd.f32 %v1835, %v2180
      %v2476 = vadd.f32 %v1836, %v2182
      %v2477 = vadd.f32 %v1837, %v2184
      %v2478 = vadd.f32 %v1838, %v2186
      %v2479 = vadd.f32 %v1839, %v2188
      %v2480 = vadd.f32 %v1840, %v2190
      %v2481 = vadd.f32 %v1841, %v2192
      %v2482 = vadd.f32 %v1842, %v2194
      %v2483 = vadd.f32 %v1843, %v2196
      %v2484 = vadd.f32 %v1844, %v2198
      %v2485 = vadd.f32 %v1845, %v2200
      %v2486 = vadd.f32 %v1846, %v2202
      %v2487 = vadd.f32 %v1847, %v2204
      %v2488 = vadd.f32 %v1848, %v2206
      %v2489 = vadd.f32 %v1849, %v2208
      %v2490 = vadd.f32 %v1850, %v2210
      %v2491 = vadd.f32 %v1851, %v2212
      %v2492 = vadd.f32 %v1852, %v2214
      %v2493 = vadd.f32 %v1853, %v2216
      %v2494 = vadd.f32 %v1854, %v2218
      %v2495 = vadd.f32 %v1855, %v2220
      %v2496 = vadd.f32 %v1856, %v2222
      %v2497 = vadd.f32 %v1857, %v2224
      %v2498 = vadd.f32 %v1858, %v2226
      %v2499 = vadd.f32 %v1859, %v2228
      %v2500 = vadd.f32 %v1860, %v2230
      %v2501 = vadd.f32 %v1861, %v2232
      %v2502 = vadd.f32 %v1862, %v2234
      %v2503 = vadd.f32 %v1863, %v2236
      %v2504 = vadd.f32 %v1864, %v2238
      %v2505 = vadd.f32 %v1865, %v2240
      %v2506 = vadd.f32 %v1866, %v2242
      %v2507 = vadd.f32 %v1867, %v2244
      %v2508 = vadd.f32 %v1868, %v2246
      %v2509 = vadd.f32 %v1869, %v2248
      %v2510 = vadd.f32 %v1870, %v2250
      %v2511 = vadd.f32 %v1871, %v2252
      %v2512 = vadd.f32 %v1872, %v2254
      %v2513 = vadd.f32 %v1873, %v2256
      %v2514 = vadd.f32 %v1874, %v2258
      %2515 = vrot.lane.b32.xlu0 %v1115, 116
      %v2516 = vpop.permute.xlu0 %2515
      %2517 = vrot.lane.b32.xlu0 %v1116, 116
      %v2518 = vpop.permute.xlu0 %2517
      %2519 = vrot.lane.b32.xlu0 %v1117, 116
      %v2520 = vpop.permute.xlu0 %2519
      %2521 = vrot.lane.b32.xlu0 %v1118, 116
      %v2522 = vpop.permute.xlu0 %2521
      %2523 = vrot.lane.b32.xlu0 %v1119, 116
      %v2524 = vpop.permute.xlu0 %2523
      %2525 = vrot.lane.b32.xlu0 %v1120, 116
      %v2526 = vpop.permute.xlu0 %2525
      %2527 = vrot.lane.b32.xlu0 %v1121, 116
      %v2528 = vpop.permute.xlu0 %2527
      %2529 = vrot.lane.b32.xlu0 %v1122, 116
      %v2530 = vpop.permute.xlu0 %2529
      %2531 = vrot.lane.b32.xlu0 %v1107, 116
      %v2532 = vpop.permute.xlu0 %2531
      %2533 = vrot.lane.b32.xlu0 %v1108, 116
      %v2534 = vpop.permute.xlu0 %2533
      %2535 = vrot.lane.b32.xlu0 %v1109, 116
      %v2536 = vpop.permute.xlu0 %2535
      %2537 = vrot.lane.b32.xlu0 %v1110, 116
      %v2538 = vpop.permute.xlu0 %2537
      %2539 = vrot.lane.b32.xlu0 %v1111, 116
      %v2540 = vpop.permute.xlu0 %2539
      %2541 = vrot.lane.b32.xlu0 %v1112, 116
      %v2542 = vpop.permute.xlu0 %2541
      %2543 = vrot.lane.b32.xlu0 %v1113, 116
      %v2544 = vpop.permute.xlu0 %2543
      %2545 = vrot.lane.b32.xlu0 %v1114, 116
      %v2546 = vpop.permute.xlu0 %2545
      %2547 = vrot.lane.b32.xlu0 %v1131, 116
      %v2548 = vpop.permute.xlu0 %2547
      %2549 = vrot.lane.b32.xlu0 %v1132, 116
      %v2550 = vpop.permute.xlu0 %2549
      %2551 = vrot.lane.b32.xlu0 %v1133, 116
      %v2552 = vpop.permute.xlu0 %2551
      %2553 = vrot.lane.b32.xlu0 %v1134, 116
      %v2554 = vpop.permute.xlu0 %2553
      %2555 = vrot.lane.b32.xlu0 %v1135, 116
      %v2556 = vpop.permute.xlu0 %2555
      %2557 = vrot.lane.b32.xlu0 %v1136, 116
      %v2558 = vpop.permute.xlu0 %2557
      %2559 = vrot.lane.b32.xlu0 %v1137, 116
      %v2560 = vpop.permute.xlu0 %2559
      %2561 = vrot.lane.b32.xlu0 %v1138, 116
      %v2562 = vpop.permute.xlu0 %2561
      %2563 = vrot.lane.b32.xlu0 %v1123, 116
      %v2564 = vpop.permute.xlu0 %2563
      %2565 = vrot.lane.b32.xlu0 %v1124, 116
      %v2566 = vpop.permute.xlu0 %2565
      %2567 = vrot.lane.b32.xlu0 %v1125, 116
      %v2568 = vpop.permute.xlu0 %2567
      %2569 = vrot.lane.b32.xlu0 %v1126, 116
      %v2570 = vpop.permute.xlu0 %2569
      %2571 = vrot.lane.b32.xlu0 %v1127, 116
      %v2572 = vpop.permute.xlu0 %2571
      %2573 = vrot.lane.b32.xlu0 %v1128, 116
      %v2574 = vpop.permute.xlu0 %2573
      %2575 = vrot.lane.b32.xlu0 %v1129, 116
      %v2576 = vpop.permute.xlu0 %2575
      %2577 = vrot.lane.b32.xlu0 %v1130, 116
      %v2578 = vpop.permute.xlu0 %2577
      %2579 = vrot.lane.b32.xlu0 %v1147, 116
      %v2580 = vpop.permute.xlu0 %2579
      %2581 = vrot.lane.b32.xlu0 %v1148, 116
      %v2582 = vpop.permute.xlu0 %2581
      %2583 = vrot.lane.b32.xlu0 %v1149, 116
      %v2584 = vpop.permute.xlu0 %2583
      %2585 = vrot.lane.b32.xlu0 %v1150, 116
      %v2586 = vpop.permute.xlu0 %2585
      %2587 = vrot.lane.b32.xlu0 %v1151, 116
      %v2588 = vpop.permute.xlu0 %2587
      %2589 = vrot.lane.b32.xlu0 %v1152, 116
      %v2590 = vpop.permute.xlu0 %2589
      %2591 = vrot.lane.b32.xlu0 %v1153, 116
      %v2592 = vpop.permute.xlu0 %2591
      %2593 = vrot.lane.b32.xlu0 %v1154, 116
      %v2594 = vpop.permute.xlu0 %2593
      %2595 = vrot.lane.b32.xlu0 %v1139, 116
      %v2596 = vpop.permute.xlu0 %2595
      %2597 = vrot.lane.b32.xlu0 %v1140, 116
      %v2598 = vpop.permute.xlu0 %2597
      %2599 = vrot.lane.b32.xlu0 %v1141, 116
      %v2600 = vpop.permute.xlu0 %2599
      %2601 = vrot.lane.b32.xlu0 %v1142, 116
      %v2602 = vpop.permute.xlu0 %2601
      %2603 = vrot.lane.b32.xlu0 %v1143, 116
      %v2604 = vpop.permute.xlu0 %2603
      %2605 = vrot.lane.b32.xlu0 %v1144, 116
      %v2606 = vpop.permute.xlu0 %2605
      %2607 = vrot.lane.b32.xlu0 %v1145, 116
      %v2608 = vpop.permute.xlu0 %2607
      %2609 = vrot.lane.b32.xlu0 %v1146, 116
      %v2610 = vpop.permute.xlu0 %2609
      %2611 = vrot.lane.b32.xlu0 %v1163, 116
      %v2612 = vpop.permute.xlu0 %2611
      %2613 = vrot.lane.b32.xlu0 %v1164, 116
      %v2614 = vpop.permute.xlu0 %2613
      %2615 = vrot.lane.b32.xlu0 %v1165, 116
      %v2616 = vpop.permute.xlu0 %2615
      %2617 = vrot.lane.b32.xlu0 %v1166, 116
      %v2618 = vpop.permute.xlu0 %2617
      %2619 = vrot.lane.b32.xlu0 %v1167, 116
      %v2620 = vpop.permute.xlu0 %2619
      %2621 = vrot.lane.b32.xlu0 %v1168, 116
      %v2622 = vpop.permute.xlu0 %2621
      %2623 = vrot.lane.b32.xlu0 %v1169, 116
      %v2624 = vpop.permute.xlu0 %2623
      %2625 = vrot.lane.b32.xlu0 %v1170, 116
      %v2626 = vpop.permute.xlu0 %2625
      %2627 = vrot.lane.b32.xlu0 %v1155, 116
      %v2628 = vpop.permute.xlu0 %2627
      %2629 = vrot.lane.b32.xlu0 %v1156, 116
      %v2630 = vpop.permute.xlu0 %2629
      %2631 = vrot.lane.b32.xlu0 %v1157, 116
      %v2632 = vpop.permute.xlu0 %2631
      %2633 = vrot.lane.b32.xlu0 %v1158, 116
      %v2634 = vpop.permute.xlu0 %2633
      %2635 = vrot.lane.b32.xlu0 %v1159, 116
      %v2636 = vpop.permute.xlu0 %2635
      %2637 = vrot.lane.b32.xlu0 %v1160, 116
      %v2638 = vpop.permute.xlu0 %2637
      %2639 = vrot.lane.b32.xlu0 %v1161, 116
      %v2640 = vpop.permute.xlu0 %2639
      %2641 = vrot.lane.b32.xlu0 %v1162, 116
      %v2642 = vpop.permute.xlu0 %2641
      %2643 = vrot.lane.b32.xlu0 %v1179, 116
      %v2644 = vpop.permute.xlu0 %2643
      %2645 = vrot.lane.b32.xlu0 %v1180, 116
      %v2646 = vpop.permute.xlu0 %2645
      %2647 = vrot.lane.b32.xlu0 %v1181, 116
      %v2648 = vpop.permute.xlu0 %2647
      %2649 = vrot.lane.b32.xlu0 %v1182, 116
      %v2650 = vpop.permute.xlu0 %2649
      %2651 = vrot.lane.b32.xlu0 %v1183, 116
      %v2652 = vpop.permute.xlu0 %2651
      %2653 = vrot.lane.b32.xlu0 %v1184, 116
      %v2654 = vpop.permute.xlu0 %2653
      %2655 = vrot.lane.b32.xlu0 %v1185, 116
      %v2656 = vpop.permute.xlu0 %2655
      %2657 = vrot.lane.b32.xlu0 %v1186, 116
      %v2658 = vpop.permute.xlu0 %2657
      %2659 = vrot.lane.b32.xlu0 %v1171, 116
      %v2660 = vpop.permute.xlu0 %2659
      %2661 = vrot.lane.b32.xlu0 %v1172, 116
      %v2662 = vpop.permute.xlu0 %2661
      %2663 = vrot.lane.b32.xlu0 %v1173, 116
      %v2664 = vpop.permute.xlu0 %2663
      %2665 = vrot.lane.b32.xlu0 %v1174, 116
      %v2666 = vpop.permute.xlu0 %2665
      %2667 = vrot.lane.b32.xlu0 %v1175, 116
      %v2668 = vpop.permute.xlu0 %2667
      %2669 = vrot.lane.b32.xlu0 %v1176, 116
      %v2670 = vpop.permute.xlu0 %2669
      %2671 = vrot.lane.b32.xlu0 %v1177, 116
      %v2672 = vpop.permute.xlu0 %2671
      %2673 = vrot.lane.b32.xlu0 %v1178, 116
      %v2674 = vpop.permute.xlu0 %2673
      %2675 = vrot.lane.b32.xlu0 %v1195, 116
      %v2676 = vpop.permute.xlu0 %2675
      %2677 = vrot.lane.b32.xlu0 %v1196, 116
      %v2678 = vpop.permute.xlu0 %2677
      %2679 = vrot.lane.b32.xlu0 %v1197, 116
      %v2680 = vpop.permute.xlu0 %2679
      %2681 = vrot.lane.b32.xlu0 %v1198, 116
      %v2682 = vpop.permute.xlu0 %2681
      %2683 = vrot.lane.b32.xlu0 %v1199, 116
      %v2684 = vpop.permute.xlu0 %2683
      %2685 = vrot.lane.b32.xlu0 %v1200, 116
      %v2686 = vpop.permute.xlu0 %2685
      %2687 = vrot.lane.b32.xlu0 %v1201, 116
      %v2688 = vpop.permute.xlu0 %2687
      %2689 = vrot.lane.b32.xlu0 %v1202, 116
      %v2690 = vpop.permute.xlu0 %2689
      %2691 = vrot.lane.b32.xlu0 %v1187, 116
      %v2692 = vpop.permute.xlu0 %2691
      %2693 = vrot.lane.b32.xlu0 %v1188, 116
      %v2694 = vpop.permute.xlu0 %2693
      %2695 = vrot.lane.b32.xlu0 %v1189, 116
      %v2696 = vpop.permute.xlu0 %2695
      %2697 = vrot.lane.b32.xlu0 %v1190, 116
      %v2698 = vpop.permute.xlu0 %2697
      %2699 = vrot.lane.b32.xlu0 %v1191, 116
      %v2700 = vpop.permute.xlu0 %2699
      %2701 = vrot.lane.b32.xlu0 %v1192, 116
      %v2702 = vpop.permute.xlu0 %2701
      %2703 = vrot.lane.b32.xlu0 %v1193, 116
      %v2704 = vpop.permute.xlu0 %2703
      %2705 = vrot.lane.b32.xlu0 %v1194, 116
      %v2706 = vpop.permute.xlu0 %2705
      %2707 = vrot.lane.b32.xlu0 %v1211, 116
      %v2708 = vpop.permute.xlu0 %2707
      %2709 = vrot.lane.b32.xlu0 %v1212, 116
      %v2710 = vpop.permute.xlu0 %2709
      %2711 = vrot.lane.b32.xlu0 %v1213, 116
      %v2712 = vpop.permute.xlu0 %2711
      %2713 = vrot.lane.b32.xlu0 %v1214, 116
      %v2714 = vpop.permute.xlu0 %2713
      %2715 = vrot.lane.b32.xlu0 %v1215, 116
      %v2716 = vpop.permute.xlu0 %2715
      %2717 = vrot.lane.b32.xlu0 %v1216, 116
      %v2718 = vpop.permute.xlu0 %2717
      %2719 = vrot.lane.b32.xlu0 %v1217, 116
      %v2720 = vpop.permute.xlu0 %2719
      %2721 = vrot.lane.b32.xlu0 %v1218, 116
      %v2722 = vpop.permute.xlu0 %2721
      %2723 = vrot.lane.b32.xlu0 %v1203, 116
      %v2724 = vpop.permute.xlu0 %2723
      %2725 = vrot.lane.b32.xlu0 %v1204, 116
      %v2726 = vpop.permute.xlu0 %2725
      %2727 = vrot.lane.b32.xlu0 %v1205, 116
      %v2728 = vpop.permute.xlu0 %2727
      %2729 = vrot.lane.b32.xlu0 %v1206, 116
      %v2730 = vpop.permute.xlu0 %2729
      %2731 = vrot.lane.b32.xlu0 %v1207, 116
      %v2732 = vpop.permute.xlu0 %2731
      %2733 = vrot.lane.b32.xlu0 %v1208, 116
      %v2734 = vpop.permute.xlu0 %2733
      %2735 = vrot.lane.b32.xlu0 %v1209, 116
      %v2736 = vpop.permute.xlu0 %2735
      %2737 = vrot.lane.b32.xlu0 %v1210, 116
      %v2738 = vpop.permute.xlu0 %2737
      %2739 = vrot.lane.b32.xlu0 %v1227, 116
      %v2740 = vpop.permute.xlu0 %2739
      %2741 = vrot.lane.b32.xlu0 %v1228, 116
      %v2742 = vpop.permute.xlu0 %2741
      %2743 = vrot.lane.b32.xlu0 %v1229, 116
      %v2744 = vpop.permute.xlu0 %2743
      %2745 = vrot.lane.b32.xlu0 %v1230, 116
      %v2746 = vpop.permute.xlu0 %2745
      %2747 = vrot.lane.b32.xlu0 %v1231, 116
      %v2748 = vpop.permute.xlu0 %2747
      %2749 = vrot.lane.b32.xlu0 %v1232, 116
      %v2750 = vpop.permute.xlu0 %2749
      %2751 = vrot.lane.b32.xlu0 %v1233, 116
      %v2752 = vpop.permute.xlu0 %2751
      %2753 = vrot.lane.b32.xlu0 %v1234, 116
      %v2754 = vpop.permute.xlu0 %2753
      %2755 = vrot.lane.b32.xlu0 %v1219, 116
      %v2756 = vpop.permute.xlu0 %2755
      %2757 = vrot.lane.b32.xlu0 %v1220, 116
      %v2758 = vpop.permute.xlu0 %2757
      %2759 = vrot.lane.b32.xlu0 %v1221, 116
      %v2760 = vpop.permute.xlu0 %2759
      %2761 = vrot.lane.b32.xlu0 %v1222, 116
      %v2762 = vpop.permute.xlu0 %2761
      %2763 = vrot.lane.b32.xlu0 %v1223, 116
      %v2764 = vpop.permute.xlu0 %2763
      %2765 = vrot.lane.b32.xlu0 %v1224, 116
      %v2766 = vpop.permute.xlu0 %2765
      %2767 = vrot.lane.b32.xlu0 %v1225, 116
      %v2768 = vpop.permute.xlu0 %2767
      %2769 = vrot.lane.b32.xlu0 %v1226, 116
      %v2770 = vpop.permute.xlu0 %2769
      %v2899 = vadd.f32 %v2387, %v2516
      %v2900 = vadd.f32 %v2388, %v2518
      %v2901 = vadd.f32 %v2389, %v2520
      %v2902 = vadd.f32 %v2390, %v2522
      %v2903 = vadd.f32 %v2391, %v2524
      %v2904 = vadd.f32 %v2392, %v2526
      %v2905 = vadd.f32 %v2393, %v2528
      %v2906 = vadd.f32 %v2394, %v2530
      %v2907 = vadd.f32 %v2395, %v2532
      %v2908 = vadd.f32 %v2396, %v2534
      %v2909 = vadd.f32 %v2397, %v2536
      %v2910 = vadd.f32 %v2398, %v2538
      %v2911 = vadd.f32 %v2399, %v2540
      %v2912 = vadd.f32 %v2400, %v2542
      %v2913 = vadd.f32 %v2401, %v2544
      %v2914 = vadd.f32 %v2402, %v2546
      %v2915 = vadd.f32 %v2403, %v2548
      %v2916 = vadd.f32 %v2404, %v2550
      %v2917 = vadd.f32 %v2405, %v2552
      %v2918 = vadd.f32 %v2406, %v2554
      %v2919 = vadd.f32 %v2407, %v2556
      %v2920 = vadd.f32 %v2408, %v2558
      %v2921 = vadd.f32 %v2409, %v2560
      %v2922 = vadd.f32 %v2410, %v2562
      %v2923 = vadd.f32 %v2411, %v2564
      %v2924 = vadd.f32 %v2412, %v2566
      %v2925 = vadd.f32 %v2413, %v2568
      %v2926 = vadd.f32 %v2414, %v2570
      %v2927 = vadd.f32 %v2415, %v2572
      %v2928 = vadd.f32 %v2416, %v2574
      %v2929 = vadd.f32 %v2417, %v2576
      %v2930 = vadd.f32 %v2418, %v2578
      %v2931 = vadd.f32 %v2419, %v2580
      %v2932 = vadd.f32 %v2420, %v2582
      %v2933 = vadd.f32 %v2421, %v2584
      %v2934 = vadd.f32 %v2422, %v2586
      %v2935 = vadd.f32 %v2423, %v2588
      %v2936 = vadd.f32 %v2424, %v2590
      %v2937 = vadd.f32 %v2425, %v2592
      %v2938 = vadd.f32 %v2426, %v2594
      %v2939 = vadd.f32 %v2427, %v2596
      %v2940 = vadd.f32 %v2428, %v2598
      %v2941 = vadd.f32 %v2429, %v2600
      %v2942 = vadd.f32 %v2430, %v2602
      %v2943 = vadd.f32 %v2431, %v2604
      %v2944 = vadd.f32 %v2432, %v2606
      %v2945 = vadd.f32 %v2433, %v2608
      %v2946 = vadd.f32 %v2434, %v2610
      %v2947 = vadd.f32 %v2435, %v2612
      %v2948 = vadd.f32 %v2436, %v2614
      %v2949 = vadd.f32 %v2437, %v2616
      %v2950 = vadd.f32 %v2438, %v2618
      %v2951 = vadd.f32 %v2439, %v2620
      %v2952 = vadd.f32 %v2440, %v2622
      %v2953 = vadd.f32 %v2441, %v2624
      %v2954 = vadd.f32 %v2442, %v2626
      %v2955 = vadd.f32 %v2443, %v2628
      %v2956 = vadd.f32 %v2444, %v2630
      %v2957 = vadd.f32 %v2445, %v2632
      %v2958 = vadd.f32 %v2446, %v2634
      %v2959 = vadd.f32 %v2447, %v2636
      %v2960 = vadd.f32 %v2448, %v2638
      %v2961 = vadd.f32 %v2449, %v2640
      %v2962 = vadd.f32 %v2450, %v2642
      %v2963 = vadd.f32 %v2451, %v2644
      %v2964 = vadd.f32 %v2452, %v2646
      %v2965 = vadd.f32 %v2453, %v2648
      %v2966 = vadd.f32 %v2454, %v2650
      %v2967 = vadd.f32 %v2455, %v2652
      %v2968 = vadd.f32 %v2456, %v2654
      %v2969 = vadd.f32 %v2457, %v2656
      %v2970 = vadd.f32 %v2458, %v2658
      %v2971 = vadd.f32 %v2459, %v2660
      %v2972 = vadd.f32 %v2460, %v2662
      %v2973 = vadd.f32 %v2461, %v2664
      %v2974 = vadd.f32 %v2462, %v2666
      %v2975 = vadd.f32 %v2463, %v2668
      %v2976 = vadd.f32 %v2464, %v2670
      %v2977 = vadd.f32 %v2465, %v2672
      %v2978 = vadd.f32 %v2466, %v2674
      %v2979 = vadd.f32 %v2467, %v2676
      %v2980 = vadd.f32 %v2468, %v2678
      %v2981 = vadd.f32 %v2469, %v2680
      %v2982 = vadd.f32 %v2470, %v2682
      %v2983 = vadd.f32 %v2471, %v2684
      %v2984 = vadd.f32 %v2472, %v2686
      %v2985 = vadd.f32 %v2473, %v2688
      %v2986 = vadd.f32 %v2474, %v2690
      %v2987 = vadd.f32 %v2475, %v2692
      %v2988 = vadd.f32 %v2476, %v2694
      %v2989 = vadd.f32 %v2477, %v2696
      %v2990 = vadd.f32 %v2478, %v2698
      %v2991 = vadd.f32 %v2479, %v2700
      %v2992 = vadd.f32 %v2480, %v2702
      %v2993 = vadd.f32 %v2481, %v2704
      %v2994 = vadd.f32 %v2482, %v2706
      %v2995 = vadd.f32 %v2483, %v2708
      %v2996 = vadd.f32 %v2484, %v2710
      %v2997 = vadd.f32 %v2485, %v2712
      %v2998 = vadd.f32 %v2486, %v2714
      %v2999 = vadd.f32 %v2487, %v2716
      %v3000 = vadd.f32 %v2488, %v2718
      %v3001 = vadd.f32 %v2489, %v2720
      %v3002 = vadd.f32 %v2490, %v2722
      %v3003 = vadd.f32 %v2491, %v2724
      %v3004 = vadd.f32 %v2492, %v2726
      %v3005 = vadd.f32 %v2493, %v2728
      %v3006 = vadd.f32 %v2494, %v2730
      %v3007 = vadd.f32 %v2495, %v2732
      %v3008 = vadd.f32 %v2496, %v2734
      %v3009 = vadd.f32 %v2497, %v2736
      %v3010 = vadd.f32 %v2498, %v2738
      %v3011 = vadd.f32 %v2499, %v2740
      %v3012 = vadd.f32 %v2500, %v2742
      %v3013 = vadd.f32 %v2501, %v2744
      %v3014 = vadd.f32 %v2502, %v2746
      %v3015 = vadd.f32 %v2503, %v2748
      %v3016 = vadd.f32 %v2504, %v2750
      %v3017 = vadd.f32 %v2505, %v2752
      %v3018 = vadd.f32 %v2506, %v2754
      %v3019 = vadd.f32 %v2507, %v2756
      %v3020 = vadd.f32 %v2508, %v2758
      %v3021 = vadd.f32 %v2509, %v2760
      %v3022 = vadd.f32 %v2510, %v2762
      %v3023 = vadd.f32 %v2511, %v2764
      %v3024 = vadd.f32 %v2512, %v2766
      %v3025 = vadd.f32 %v2513, %v2768
      %v3026 = vadd.f32 %v2514, %v2770
      %3027 = vst.msk [vmem:[#allocation2] sm:$0xff] %vm366, 0.0
      %3028 = vst.msk [vmem:[#allocation2 + $0x8] sm:$0xff] %vm366, 0.0
      %3029 = vst.msk [vmem:[#allocation2 + $0x10] sm:$0xff] %vm366, 0.0
      %vm3030 = vcmask 24576
      %3031 = vst.msk [vmem:[#allocation2 + $0x18] sm:$0x1] %vm3030, 0.0
      %3032 = vst.msk [vmem:[#allocation2 + $0x20] sm:$0xff] %vm366, 0.0
      %3033 = vst.msk [vmem:[#allocation2 + $0x28] sm:$0xff] %vm366, 0.0
      %3034 = vst.msk [vmem:[#allocation2 + $0x30] sm:$0xff] %vm366, 0.0
      %3035 = vst.msk [vmem:[#allocation2 + $0x38] sm:$0x1] %vm3030, 0.0
      %3036 = vst.msk [vmem:[#allocation2 + $0x40] sm:$0xff] %vm366, 0.0
      %3037 = vst.msk [vmem:[#allocation2 + $0x48] sm:$0xff] %vm366, 0.0
      %3038 = vst.msk [vmem:[#allocation2 + $0x50] sm:$0xff] %vm366, 0.0
      %3039 = vst.msk [vmem:[#allocation2 + $0x58] sm:$0x1] %vm3030, 0.0
      %3040 = vst.msk [vmem:[#allocation2 + $0x60] sm:$0xff] %vm366, 0.0
      %3041 = vst.msk [vmem:[#allocation2 + $0x68] sm:$0xff] %vm366, 0.0
      %3042 = vst.msk [vmem:[#allocation2 + $0x70] sm:$0xff] %vm366, 0.0
      %3043 = vst.msk [vmem:[#allocation2 + $0x78] sm:$0x1] %vm3030, 0.0
      %3044 = vst.msk [vmem:[#allocation2 + $0x80] sm:$0xff] %vm366, 0.0
      %3045 = vst.msk [vmem:[#allocation2 + $0x88] sm:$0xff] %vm366, 0.0
      %3046 = vst.msk [vmem:[#allocation2 + $0x90] sm:$0xff] %vm366, 0.0
      %3047 = vst.msk [vmem:[#allocation2 + $0x98] sm:$0x1] %vm3030, 0.0
      %3048 = vst.msk [vmem:[#allocation2 + $0xa0] sm:$0xff] %vm366, 0.0
      %3049 = vst.msk [vmem:[#allocation2 + $0xa8] sm:$0xff] %vm366, 0.0
      %3050 = vst.msk [vmem:[#allocation2 + $0xb0] sm:$0xff] %vm366, 0.0
      %3051 = vst.msk [vmem:[#allocation2 + $0xb8] sm:$0x1] %vm3030, 0.0
      %3052 = vst.msk [vmem:[#allocation2 + $0xc0] sm:$0xff] %vm366, 0.0
      %3053 = vst.msk [vmem:[#allocation2 + $0xc8] sm:$0xff] %vm366, 0.0
      %3054 = vst.msk [vmem:[#allocation2 + $0xd0] sm:$0xff] %vm366, 0.0
      %3055 = vst.msk [vmem:[#allocation2 + $0xd8] sm:$0x1] %vm3030, 0.0
      %3056 = vst.msk [vmem:[#allocation2 + $0xe0] sm:$0xff] %vm366, 0.0
      %3057 = vst.msk [vmem:[#allocation2 + $0xe8] sm:$0xff] %vm366, 0.0
      %3058 = vst.msk [vmem:[#allocation2 + $0xf0] sm:$0xff] %vm366, 0.0
      %3059 = vst.msk [vmem:[#allocation2 + $0xf8] sm:$0x1] %vm3030, 0.0
      %3060 = vst.msk [vmem:[#allocation2 + $0x100] sm:$0xff] %vm366, 0.0
      %3061 = vst.msk [vmem:[#allocation2 + $0x108] sm:$0xff] %vm366, 0.0
      %3062 = vst.msk [vmem:[#allocation2 + $0x110] sm:$0xff] %vm366, 0.0
      %3063 = vst.msk [vmem:[#allocation2 + $0x118] sm:$0x1] %vm3030, 0.0
      %3064 = vst.msk [vmem:[#allocation2 + $0x120] sm:$0xff] %vm366, 0.0
      %3065 = vst.msk [vmem:[#allocation2 + $0x128] sm:$0xff] %vm366, 0.0
      %3066 = vst.msk [vmem:[#allocation2 + $0x130] sm:$0xff] %vm366, 0.0
      %3067 = vst.msk [vmem:[#allocation2 + $0x138] sm:$0x1] %vm3030, 0.0
      %3068 = vst.msk [vmem:[#allocation2 + $0x140] sm:$0xff] %vm366, 0.0
      %3069 = vst.msk [vmem:[#allocation2 + $0x148] sm:$0xff] %vm366, 0.0
      %3070 = vst.msk [vmem:[#allocation2 + $0x150] sm:$0xff] %vm366, 0.0
      %3071 = vst.msk [vmem:[#allocation2 + $0x158] sm:$0x1] %vm3030, 0.0
      %3072 = vst.msk [vmem:[#allocation2 + $0x160] sm:$0xff] %vm366, 0.0
      %3073 = vst.msk [vmem:[#allocation2 + $0x168] sm:$0xff] %vm366, 0.0
      %3074 = vst.msk [vmem:[#allocation2 + $0x170] sm:$0xff] %vm366, 0.0
      %3075 = vst.msk [vmem:[#allocation2 + $0x178] sm:$0x1] %vm3030, 0.0
      %3076 = vst.msk [vmem:[#allocation2 + $0x180] sm:$0xff] %vm366, 0.0
      %3077 = vst.msk [vmem:[#allocation2 + $0x188] sm:$0xff] %vm366, 0.0
      %3078 = vst.msk [vmem:[#allocation2 + $0x190] sm:$0xff] %vm366, 0.0
      %3079 = vst.msk [vmem:[#allocation2 + $0x198] sm:$0x1] %vm3030, 0.0
      %3080 = vst.msk [vmem:[#allocation2 + $0x1a0] sm:$0xff] %vm366, 0.0
      %3081 = vst.msk [vmem:[#allocation2 + $0x1a8] sm:$0xff] %vm366, 0.0
      %3082 = vst.msk [vmem:[#allocation2 + $0x1b0] sm:$0xff] %vm366, 0.0
      %3083 = vst.msk [vmem:[#allocation2 + $0x1b8] sm:$0x1] %vm3030, 0.0
      %3084 = vst.msk [vmem:[#allocation2 + $0x1c0] sm:$0xff] %vm366, 0.0
      %3085 = vst.msk [vmem:[#allocation2 + $0x1c8] sm:$0xff] %vm366, 0.0
      %3086 = vst.msk [vmem:[#allocation2 + $0x1d0] sm:$0xff] %vm366, 0.0
      %3087 = vst.msk [vmem:[#allocation2 + $0x1d8] sm:$0x1] %vm3030, 0.0
      %3088 = vst.msk [vmem:[#allocation2 + $0x1e0] sm:$0xff] %vm366, 0.0
      %3089 = vst.msk [vmem:[#allocation2 + $0x1e8] sm:$0xff] %vm366, 0.0
      %3090 = vst.msk [vmem:[#allocation2 + $0x1f0] sm:$0xff] %vm366, 0.0
      %3091 = vst.msk [vmem:[#allocation2 + $0x1f8] sm:$0x1] %vm3030, 0.0
      %3092 = vst.msk [vmem:[#allocation2 + $0x200] sm:$0xff] %vm366, 0.0
      %3093 = vst.msk [vmem:[#allocation2 + $0x208] sm:$0xff] %vm366, 0.0
      %3094 = vst.msk [vmem:[#allocation2 + $0x210] sm:$0xff] %vm366, 0.0
      %3095 = vst.msk [vmem:[#allocation2 + $0x218] sm:$0x1] %vm3030, 0.0
      %3096 = vst.msk [vmem:[#allocation2 + $0x220] sm:$0xff] %vm366, 0.0
      %3097 = vst.msk [vmem:[#allocation2 + $0x228] sm:$0xff] %vm366, 0.0
      %3098 = vst.msk [vmem:[#allocation2 + $0x230] sm:$0xff] %vm366, 0.0
      %3099 = vst.msk [vmem:[#allocation2 + $0x238] sm:$0x1] %vm3030, 0.0
      %3100 = vst.msk [vmem:[#allocation3] sm:$0xff] %vm366, 0.0
      %3101 = vst.msk [vmem:[#allocation3 + $0x8] sm:$0xff] %vm366, 0.0
      %3102 = vst.msk [vmem:[#allocation3 + $0x10] sm:$0xff] %vm366, 0.0
      %3103 = vst.msk [vmem:[#allocation3 + $0x18] sm:$0x1] %vm3030, 0.0
      %3104 = vst.msk [vmem:[#allocation3 + $0x20] sm:$0xff] %vm366, 0.0
      %3105 = vst.msk [vmem:[#allocation3 + $0x28] sm:$0xff] %vm366, 0.0
      %3106 = vst.msk [vmem:[#allocation3 + $0x30] sm:$0xff] %vm366, 0.0
      %3107 = vst.msk [vmem:[#allocation3 + $0x38] sm:$0x1] %vm3030, 0.0
      %3108 = vst.msk [vmem:[#allocation3 + $0x40] sm:$0xff] %vm366, 0.0
      %3109 = vst.msk [vmem:[#allocation3 + $0x48] sm:$0xff] %vm366, 0.0
      %3110 = vst.msk [vmem:[#allocation3 + $0x50] sm:$0xff] %vm366, 0.0
      %3111 = vst.msk [vmem:[#allocation3 + $0x58] sm:$0x1] %vm3030, 0.0
      %3112 = vst.msk [vmem:[#allocation3 + $0x60] sm:$0xff] %vm366, 0.0
      %3113 = vst.msk [vmem:[#allocation3 + $0x68] sm:$0xff] %vm366, 0.0
      %3114 = vst.msk [vmem:[#allocation3 + $0x70] sm:$0xff] %vm366, 0.0
      %3115 = vst.msk [vmem:[#allocation3 + $0x78] sm:$0x1] %vm3030, 0.0
      %3116 = vst.msk [vmem:[#allocation3 + $0x80] sm:$0xff] %vm366, 0.0
      %3117 = vst.msk [vmem:[#allocation3 + $0x88] sm:$0xff] %vm366, 0.0
      %3118 = vst.msk [vmem:[#allocation3 + $0x90] sm:$0xff] %vm366, 0.0
      %3119 = vst.msk [vmem:[#allocation3 + $0x98] sm:$0x1] %vm3030, 0.0
      %3120 = vst.msk [vmem:[#allocation3 + $0xa0] sm:$0xff] %vm366, 0.0
      %3121 = vst.msk [vmem:[#allocation3 + $0xa8] sm:$0xff] %vm366, 0.0
      %3122 = vst.msk [vmem:[#allocation3 + $0xb0] sm:$0xff] %vm366, 0.0
      %3123 = vst.msk [vmem:[#allocation3 + $0xb8] sm:$0x1] %vm3030, 0.0
      %3124 = vst.msk [vmem:[#allocation3 + $0xc0] sm:$0xff] %vm366, 0.0
      %3125 = vst.msk [vmem:[#allocation3 + $0xc8] sm:$0xff] %vm366, 0.0
      %3126 = vst.msk [vmem:[#allocation3 + $0xd0] sm:$0xff] %vm366, 0.0
      %3127 = vst.msk [vmem:[#allocation3 + $0xd8] sm:$0x1] %vm3030, 0.0
      %3128 = vst.msk [vmem:[#allocation3 + $0xe0] sm:$0xff] %vm366, 0.0
      %3129 = vst.msk [vmem:[#allocation3 + $0xe8] sm:$0xff] %vm366, 0.0
      %3130 = vst.msk [vmem:[#allocation3 + $0xf0] sm:$0xff] %vm366, 0.0
      %3131 = vst.msk [vmem:[#allocation3 + $0xf8] sm:$0x1] %vm3030, 0.0
      %3132 = vst.msk [vmem:[#allocation3 + $0x100] sm:$0xff] %vm366, 0.0
      %3133 = vst.msk [vmem:[#allocation3 + $0x108] sm:$0xff] %vm366, 0.0
      %3134 = vst.msk [vmem:[#allocation3 + $0x110] sm:$0xff] %vm366, 0.0
      %3135 = vst.msk [vmem:[#allocation3 + $0x118] sm:$0x1] %vm3030, 0.0
      %3136 = vst.msk [vmem:[#allocation3 + $0x120] sm:$0xff] %vm366, 0.0
      %3137 = vst.msk [vmem:[#allocation3 + $0x128] sm:$0xff] %vm366, 0.0
      %3138 = vst.msk [vmem:[#allocation3 + $0x130] sm:$0xff] %vm366, 0.0
      %3139 = vst.msk [vmem:[#allocation3 + $0x138] sm:$0x1] %vm3030, 0.0
      %3140 = vst.msk [vmem:[#allocation3 + $0x140] sm:$0xff] %vm366, 0.0
      %3141 = vst.msk [vmem:[#allocation3 + $0x148] sm:$0xff] %vm366, 0.0
      %3142 = vst.msk [vmem:[#allocation3 + $0x150] sm:$0xff] %vm366, 0.0
      %3143 = vst.msk [vmem:[#allocation3 + $0x158] sm:$0x1] %vm3030, 0.0
      %3144 = vst.msk [vmem:[#allocation3 + $0x160] sm:$0xff] %vm366, 0.0
      %3145 = vst.msk [vmem:[#allocation3 + $0x168] sm:$0xff] %vm366, 0.0
      %3146 = vst.msk [vmem:[#allocation3 + $0x170] sm:$0xff] %vm366, 0.0
      %3147 = vst.msk [vmem:[#allocation3 + $0x178] sm:$0x1] %vm3030, 0.0
      %3148 = vst.msk [vmem:[#allocation3 + $0x180] sm:$0xff] %vm366, 0.0
      %3149 = vst.msk [vmem:[#allocation3 + $0x188] sm:$0xff] %vm366, 0.0
      %3150 = vst.msk [vmem:[#allocation3 + $0x190] sm:$0xff] %vm366, 0.0
      %3151 = vst.msk [vmem:[#allocation3 + $0x198] sm:$0x1] %vm3030, 0.0
      %3152 = vst.msk [vmem:[#allocation3 + $0x1a0] sm:$0xff] %vm366, 0.0
      %3153 = vst.msk [vmem:[#allocation3 + $0x1a8] sm:$0xff] %vm366, 0.0
      %3154 = vst.msk [vmem:[#allocation3 + $0x1b0] sm:$0xff] %vm366, 0.0
      %3155 = vst.msk [vmem:[#allocation3 + $0x1b8] sm:$0x1] %vm3030, 0.0
      %3156 = vst.msk [vmem:[#allocation3 + $0x1c0] sm:$0xff] %vm366, 0.0
      %3157 = vst.msk [vmem:[#allocation3 + $0x1c8] sm:$0xff] %vm366, 0.0
      %3158 = vst.msk [vmem:[#allocation3 + $0x1d0] sm:$0xff] %vm366, 0.0
      %3159 = vst.msk [vmem:[#allocation3 + $0x1d8] sm:$0x1] %vm3030, 0.0
      %3160 = vst.msk [vmem:[#allocation3 + $0x1e0] sm:$0xff] %vm366, 0.0
      %3161 = vst.msk [vmem:[#allocation3 + $0x1e8] sm:$0xff] %vm366, 0.0
      %3162 = vst.msk [vmem:[#allocation3 + $0x1f0] sm:$0xff] %vm366, 0.0
      %3163 = vst.msk [vmem:[#allocation3 + $0x1f8] sm:$0x1] %vm3030, 0.0
      %3164 = vst.msk [vmem:[#allocation3 + $0x200] sm:$0xff] %vm366, 0.0
      %3165 = vst.msk [vmem:[#allocation3 + $0x208] sm:$0xff] %vm366, 0.0
      %3166 = vst.msk [vmem:[#allocation3 + $0x210] sm:$0xff] %vm366, 0.0
      %3167 = vst.msk [vmem:[#allocation3 + $0x218] sm:$0x1] %vm3030, 0.0
      %3168 = vst.msk [vmem:[#allocation3 + $0x220] sm:$0xff] %vm366, 0.0
      %3169 = vst.msk [vmem:[#allocation3 + $0x228] sm:$0xff] %vm366, 0.0
      %3170 = vst.msk [vmem:[#allocation3 + $0x230] sm:$0xff] %vm366, 0.0
      %3171 = vst.msk [vmem:[#allocation3 + $0x238] sm:$0x1] %vm3030, 0.0
      %v3172 = vld [vmem:[%s347] sm:$0xff]
      %v3173 = vld [vmem:[%s347 + $0x8] sm:$0xff]
      %v3174 = vld [vmem:[%s347 + $0x10] sm:$0xff]
      %v3175 = vld [vmem:[%s347 + $0x18] sm:$0xff]
      %v3176 = vld [vmem:[%s347 + $0x20] sm:$0xff]
      %v3177 = vld [vmem:[%s347 + $0x28] sm:$0xff]
      %v3178 = vld [vmem:[%s347 + $0x30] sm:$0xff]
      %v3179 = vld [vmem:[%s347 + $0x38] sm:$0xff]
      %v3180 = vld [vmem:[%s347 + $0x40] sm:$0xff]
      %v3181 = vld [vmem:[%s347 + $0x48] sm:$0xff]
      %v3182 = vld [vmem:[%s347 + $0x50] sm:$0xff]
      %v3183 = vld [vmem:[%s347 + $0x58] sm:$0xff]
      %v3184 = vld [vmem:[%s347 + $0x60] sm:$0xff]
      %v3185 = vld [vmem:[%s347 + $0x68] sm:$0xff]
      %v3186 = vld [vmem:[%s347 + $0x70] sm:$0xff]
      %v3187 = vld [vmem:[%s347 + $0x78] sm:$0xff]
      %v3188 = vld [vmem:[%s347 + $0x80] sm:$0xff]
      %v3189 = vld [vmem:[%s347 + $0x88] sm:$0xff]
      %v3190 = vld [vmem:[%s347 + $0x90] sm:$0xff]
      %v3191 = vld [vmem:[%s347 + $0x98] sm:$0xff]
      %v3192 = vld [vmem:[%s347 + $0xa0] sm:$0xff]
      %v3193 = vld [vmem:[%s347 + $0xa8] sm:$0xff]
      %v3194 = vld [vmem:[%s347 + $0xb0] sm:$0xff]
      %v3195 = vld [vmem:[%s347 + $0xb8] sm:$0xff]
      %v3196 = vld [vmem:[%s347 + $0xc0] sm:$0xff]
      %v3197 = vld [vmem:[%s347 + $0xc8] sm:$0xff]
      %v3198 = vld [vmem:[%s347 + $0xd0] sm:$0xff]
      %v3199 = vld [vmem:[%s347 + $0xd8] sm:$0xff]
      %v3200 = vld [vmem:[%s347 + $0xe0] sm:$0xff]
      %v3201 = vld [vmem:[%s347 + $0xe8] sm:$0xff]
      %v3202 = vld [vmem:[%s347 + $0xf0] sm:$0xff]
      %v3203 = vld [vmem:[%s347 + $0xf8] sm:$0xff]
      %s3204 = scalar_lea.vmem [#allocation2], 32
      %3205 = vst.msk [vmem:[%s3204 + $0x8] sm:$0xff] %vm366, %v3172
      %3206 = vst.msk [vmem:[%s3204 + $0x10] sm:$0xff] %vm366, %v3173
      %3207 = vst.msk [vmem:[%s3204 + $0x28] sm:$0xff] %vm366, %v3174
      %3208 = vst.msk [vmem:[%s3204 + $0x30] sm:$0xff] %vm366, %v3175
      %3209 = vst.msk [vmem:[%s3204 + $0x48] sm:$0xff] %vm366, %v3176
      %3210 = vst.msk [vmem:[%s3204 + $0x50] sm:$0xff] %vm366, %v3177
      %3211 = vst.msk [vmem:[%s3204 + $0x68] sm:$0xff] %vm366, %v3178
      %3212 = vst.msk [vmem:[%s3204 + $0x70] sm:$0xff] %vm366, %v3179
      %3213 = vst.msk [vmem:[%s3204 + $0x88] sm:$0xff] %vm366, %v3180
      %3214 = vst.msk [vmem:[%s3204 + $0x90] sm:$0xff] %vm366, %v3181
      %3215 = vst.msk [vmem:[%s3204 + $0xa8] sm:$0xff] %vm366, %v3182
      %3216 = vst.msk [vmem:[%s3204 + $0xb0] sm:$0xff] %vm366, %v3183
      %3217 = vst.msk [vmem:[%s3204 + $0xc8] sm:$0xff] %vm366, %v3184
      %3218 = vst.msk [vmem:[%s3204 + $0xd0] sm:$0xff] %vm366, %v3185
      %3219 = vst.msk [vmem:[%s3204 + $0xe8] sm:$0xff] %vm366, %v3186
      %3220 = vst.msk [vmem:[%s3204 + $0xf0] sm:$0xff] %vm366, %v3187
      %3221 = vst.msk [vmem:[%s3204 + $0x108] sm:$0xff] %vm366, %v3188
      %3222 = vst.msk [vmem:[%s3204 + $0x110] sm:$0xff] %vm366, %v3189
      %3223 = vst.msk [vmem:[%s3204 + $0x128] sm:$0xff] %vm366, %v3190
      %3224 = vst.msk [vmem:[%s3204 + $0x130] sm:$0xff] %vm366, %v3191
      %3225 = vst.msk [vmem:[%s3204 + $0x148] sm:$0xff] %vm366, %v3192
      %3226 = vst.msk [vmem:[%s3204 + $0x150] sm:$0xff] %vm366, %v3193
      %3227 = vst.msk [vmem:[%s3204 + $0x168] sm:$0xff] %vm366, %v3194
      %3228 = vst.msk [vmem:[%s3204 + $0x170] sm:$0xff] %vm366, %v3195
      %3229 = vst.msk [vmem:[%s3204 + $0x188] sm:$0xff] %vm366, %v3196
      %3230 = vst.msk [vmem:[%s3204 + $0x190] sm:$0xff] %vm366, %v3197
      %3231 = vst.msk [vmem:[%s3204 + $0x1a8] sm:$0xff] %vm366, %v3198
      %3232 = vst.msk [vmem:[%s3204 + $0x1b0] sm:$0xff] %vm366, %v3199
      %3233 = vst.msk [vmem:[%s3204 + $0x1c8] sm:$0xff] %vm366, %v3200
      %3234 = vst.msk [vmem:[%s3204 + $0x1d0] sm:$0xff] %vm366, %v3201
      %3235 = vst.msk [vmem:[%s3204 + $0x1e8] sm:$0xff] %vm366, %v3202
      %3236 = vst.msk [vmem:[%s3204 + $0x1f0] sm:$0xff] %vm366, %v3203
      %3365 = vst [vmem:[#allocation1] ss:$4 sm:$0xff] %v2899
      %s3366 = scalar_lea.vmem [#allocation1], 1
      %3367 = vst [vmem:[%s3366] ss:$4 sm:$0xff] %v2900
      %s3368 = scalar_lea.vmem [#allocation1], 2
      %3369 = vst [vmem:[%s3368] ss:$4 sm:$0xff] %v2901
      %s3370 = scalar_lea.vmem [#allocation1], 3
      %3371 = vst [vmem:[%s3370] ss:$4 sm:$0xff] %v2902
      %s3372 = scalar_lea.vmem [#allocation1], 32
      %3373 = vst [vmem:[%s3372] ss:$4 sm:$0xff] %v2903
      %s3374 = scalar_lea.vmem [#allocation1], 33
      %3375 = vst [vmem:[%s3374] ss:$4 sm:$0xff] %v2904
      %s3376 = scalar_lea.vmem [#allocation1], 34
      %3377 = vst [vmem:[%s3376] ss:$4 sm:$0xff] %v2905
      %s3378 = scalar_lea.vmem [#allocation1], 35
      %3379 = vst [vmem:[%s3378] ss:$4 sm:$0xff] %v2906
      %v3380 = vld.sshfl [vmem:[#allocation1] sm:$0xff pattern:$0x73625140]
      %v3381 = vld.sshfl [vmem:[#allocation1 + $0x20] sm:$0xff pattern:$0x73625140]
      %3382 = vst [vmem:[#allocation1] ss:$4 sm:$0xff] %v2907
      %3383 = vst [vmem:[%s3366] ss:$4 sm:$0xff] %v2908
      %3384 = vst [vmem:[%s3368] ss:$4 sm:$0xff] %v2909
      %3385 = vst [vmem:[%s3370] ss:$4 sm:$0xff] %v2910
      %3386 = vst [vmem:[%s3372] ss:$4 sm:$0xff] %v2911
      %3387 = vst [vmem:[%s3374] ss:$4 sm:$0xff] %v2912
      %3388 = vst [vmem:[%s3376] ss:$4 sm:$0xff] %v2913
      %3389 = vst [vmem:[%s3378] ss:$4 sm:$0xff] %v2914
      %v3390 = vld.sshfl [vmem:[#allocation1] sm:$0xff pattern:$0x73625140]
      %v3391 = vld.sshfl [vmem:[#allocation1 + $0x20] sm:$0xff pattern:$0x73625140]
      %3392 = vst [vmem:[#allocation1] ss:$4 sm:$0xff] %v2915
      %3393 = vst [vmem:[%s3366] ss:$4 sm:$0xff] %v2916
      %3394 = vst [vmem:[%s3368] ss:$4 sm:$0xff] %v2917
      %3395 = vst [vmem:[%s3370] ss:$4 sm:$0xff] %v2918
      %3396 = vst [vmem:[%s3372] ss:$4 sm:$0xff] %v2919
      %3397 = vst [vmem:[%s3374] ss:$4 sm:$0xff] %v2920
      %3398 = vst [vmem:[%s3376] ss:$4 sm:$0xff] %v2921
      %3399 = vst [vmem:[%s3378] ss:$4 sm:$0xff] %v2922
      %v3400 = vld.sshfl [vmem:[#allocation1] sm:$0xff pattern:$0x73625140]
      %v3401 = vld.sshfl [vmem:[#allocation1 + $0x20] sm:$0xff pattern:$0x73625140]
      %3402 = vst [vmem:[#allocation1] ss:$4 sm:$0xff] %v2923
      %3403 = vst [vmem:[%s3366] ss:$4 sm:$0xff] %v2924
      %3404 = vst [vmem:[%s3368] ss:$4 sm:$0xff] %v2925
      %3405 = vst [vmem:[%s3370] ss:$4 sm:$0xff] %v2926
      %3406 = vst [vmem:[%s3372] ss:$4 sm:$0xff] %v2927
      %3407 = vst [vmem:[%s3374] ss:$4 sm:$0xff] %v2928
      %3408 = vst [vmem:[%s3376] ss:$4 sm:$0xff] %v2929
      %3409 = vst [vmem:[%s3378] ss:$4 sm:$0xff] %v2930
      %v3410 = vld.sshfl [vmem:[#allocation1] sm:$0xff pattern:$0x73625140]
      %v3411 = vld.sshfl [vmem:[#allocation1 + $0x20] sm:$0xff pattern:$0x73625140]
      %3412 = vst [vmem:[#allocation1] ss:$4 sm:$0xff] %v2931
      %3413 = vst [vmem:[%s3366] ss:$4 sm:$0xff] %v2932
      %3414 = vst [vmem:[%s3368] ss:$4 sm:$0xff] %v2933
      %3415 = vst [vmem:[%s3370] ss:$4 sm:$0xff] %v2934
      %3416 = vst [vmem:[%s3372] ss:$4 sm:$0xff] %v2935
      %3417 = vst [vmem:[%s3374] ss:$4 sm:$0xff] %v2936
      %3418 = vst [vmem:[%s3376] ss:$4 sm:$0xff] %v2937
      %3419 = vst [vmem:[%s3378] ss:$4 sm:$0xff] %v2938
      %v3420 = vld.sshfl [vmem:[#allocation1] sm:$0xff pattern:$0x73625140]
      %v3421 = vld.sshfl [vmem:[#allocation1 + $0x20] sm:$0xff pattern:$0x73625140]
      %3422 = vst [vmem:[#allocation1] ss:$4 sm:$0xff] %v2939
      %3423 = vst [vmem:[%s3366] ss:$4 sm:$0xff] %v2940
      %3424 = vst [vmem:[%s3368] ss:$4 sm:$0xff] %v2941
      %3425 = vst [vmem:[%s3370] ss:$4 sm:$0xff] %v2942
      %3426 = vst [vmem:[%s3372] ss:$4 sm:$0xff] %v2943
      %3427 = vst [vmem:[%s3374] ss:$4 sm:$0xff] %v2944
      %3428 = vst [vmem:[%s3376] ss:$4 sm:$0xff] %v2945
      %3429 = vst [vmem:[%s3378] ss:$4 sm:$0xff] %v2946
      %v3430 = vld.sshfl [vmem:[#allocation1] sm:$0xff pattern:$0x73625140]
      %v3431 = vld.sshfl [vmem:[#allocation1 + $0x20] sm:$0xff pattern:$0x73625140]
      %3432 = vst [vmem:[#allocation1] ss:$4 sm:$0xff] %v2947
      %3433 = vst [vmem:[%s3366] ss:$4 sm:$0xff] %v2948
      %3434 = vst [vmem:[%s3368] ss:$4 sm:$0xff] %v2949
      %3435 = vst [vmem:[%s3370] ss:$4 sm:$0xff] %v2950
      %3436 = vst [vmem:[%s3372] ss:$4 sm:$0xff] %v2951
      %3437 = vst [vmem:[%s3374] ss:$4 sm:$0xff] %v2952
      %3438 = vst [vmem:[%s3376] ss:$4 sm:$0xff] %v2953
      %3439 = vst [vmem:[%s3378] ss:$4 sm:$0xff] %v2954
      %v3440 = vld.sshfl [vmem:[#allocation1] sm:$0xff pattern:$0x73625140]
      %v3441 = vld.sshfl [vmem:[#allocation1 + $0x20] sm:$0xff pattern:$0x73625140]
      %3442 = vst [vmem:[#allocation1] ss:$4 sm:$0xff] %v2955
      %3443 = vst [vmem:[%s3366] ss:$4 sm:$0xff] %v2956
      %3444 = vst [vmem:[%s3368] ss:$4 sm:$0xff] %v2957
      %3445 = vst [vmem:[%s3370] ss:$4 sm:$0xff] %v2958
      %3446 = vst [vmem:[%s3372] ss:$4 sm:$0xff] %v2959
      %3447 = vst [vmem:[%s3374] ss:$4 sm:$0xff] %v2960
      %3448 = vst [vmem:[%s3376] ss:$4 sm:$0xff] %v2961
      %3449 = vst [vmem:[%s3378] ss:$4 sm:$0xff] %v2962
      %v3450 = vld.sshfl [vmem:[#allocation1] sm:$0xff pattern:$0x73625140]
      %v3451 = vld.sshfl [vmem:[#allocation1 + $0x20] sm:$0xff pattern:$0x73625140]
      %3452 = vst [vmem:[#allocation1] ss:$4 sm:$0xff] %v2963
      %3453 = vst [vmem:[%s3366] ss:$4 sm:$0xff] %v2964
      %3454 = vst [vmem:[%s3368] ss:$4 sm:$0xff] %v2965
      %3455 = vst [vmem:[%s3370] ss:$4 sm:$0xff] %v2966
      %3456 = vst [vmem:[%s3372] ss:$4 sm:$0xff] %v2967
      %3457 = vst [vmem:[%s3374] ss:$4 sm:$0xff] %v2968
      %3458 = vst [vmem:[%s3376] ss:$4 sm:$0xff] %v2969
      %3459 = vst [vmem:[%s3378] ss:$4 sm:$0xff] %v2970
      %v3460 = vld.sshfl [vmem:[#allocation1] sm:$0xff pattern:$0x73625140]
      %v3461 = vld.sshfl [vmem:[#allocation1 + $0x20] sm:$0xff pattern:$0x73625140]
      %3462 = vst [vmem:[#allocation1] ss:$4 sm:$0xff] %v2971
      %3463 = vst [vmem:[%s3366] ss:$4 sm:$0xff] %v2972
      %3464 = vst [vmem:[%s3368] ss:$4 sm:$0xff] %v2973
      %3465 = vst [vmem:[%s3370] ss:$4 sm:$0xff] %v2974
      %3466 = vst [vmem:[%s3372] ss:$4 sm:$0xff] %v2975
      %3467 = vst [vmem:[%s3374] ss:$4 sm:$0xff] %v2976
      %3468 = vst [vmem:[%s3376] ss:$4 sm:$0xff] %v2977
      %3469 = vst [vmem:[%s3378] ss:$4 sm:$0xff] %v2978
      %v3470 = vld.sshfl [vmem:[#allocation1] sm:$0xff pattern:$0x73625140]
      %v3471 = vld.sshfl [vmem:[#allocation1 + $0x20] sm:$0xff pattern:$0x73625140]
      %3472 = vst [vmem:[#allocation1] ss:$4 sm:$0xff] %v2979
      %3473 = vst [vmem:[%s3366] ss:$4 sm:$0xff] %v2980
      %3474 = vst [vmem:[%s3368] ss:$4 sm:$0xff] %v2981
      %3475 = vst [vmem:[%s3370] ss:$4 sm:$0xff] %v2982
      %3476 = vst [vmem:[%s3372] ss:$4 sm:$0xff] %v2983
      %3477 = vst [vmem:[%s3374] ss:$4 sm:$0xff] %v2984
      %3478 = vst [vmem:[%s3376] ss:$4 sm:$0xff] %v2985
      %3479 = vst [vmem:[%s3378] ss:$4 sm:$0xff] %v2986
      %v3480 = vld.sshfl [vmem:[#allocation1] sm:$0xff pattern:$0x73625140]
      %v3481 = vld.sshfl [vmem:[#allocation1 + $0x20] sm:$0xff pattern:$0x73625140]
      %3482 = vst [vmem:[#allocation1] ss:$4 sm:$0xff] %v2987
      %3483 = vst [vmem:[%s3366] ss:$4 sm:$0xff] %v2988
      %3484 = vst [vmem:[%s3368] ss:$4 sm:$0xff] %v2989
      %3485 = vst [vmem:[%s3370] ss:$4 sm:$0xff] %v2990
      %3486 = vst [vmem:[%s3372] ss:$4 sm:$0xff] %v2991
      %3487 = vst [vmem:[%s3374] ss:$4 sm:$0xff] %v2992
      %3488 = vst [vmem:[%s3376] ss:$4 sm:$0xff] %v2993
      %3489 = vst [vmem:[%s3378] ss:$4 sm:$0xff] %v2994
      %v3490 = vld.sshfl [vmem:[#allocation1] sm:$0xff pattern:$0x73625140]
      %v3491 = vld.sshfl [vmem:[#allocation1 + $0x20] sm:$0xff pattern:$0x73625140]
      %3492 = vst [vmem:[#allocation1] ss:$4 sm:$0xff] %v2995
      %3493 = vst [vmem:[%s3366] ss:$4 sm:$0xff] %v2996
      %3494 = vst [vmem:[%s3368] ss:$4 sm:$0xff] %v2997
      %3495 = vst [vmem:[%s3370] ss:$4 sm:$0xff] %v2998
      %3496 = vst [vmem:[%s3372] ss:$4 sm:$0xff] %v2999
      %3497 = vst [vmem:[%s3374] ss:$4 sm:$0xff] %v3000
      %3498 = vst [vmem:[%s3376] ss:$4 sm:$0xff] %v3001
      %3499 = vst [vmem:[%s3378] ss:$4 sm:$0xff] %v3002
      %v3500 = vld.sshfl [vmem:[#allocation1] sm:$0xff pattern:$0x73625140]
      %v3501 = vld.sshfl [vmem:[#allocation1 + $0x20] sm:$0xff pattern:$0x73625140]
      %3502 = vst [vmem:[#allocation1] ss:$4 sm:$0xff] %v3003
      %3503 = vst [vmem:[%s3366] ss:$4 sm:$0xff] %v3004
      %3504 = vst [vmem:[%s3368] ss:$4 sm:$0xff] %v3005
      %3505 = vst [vmem:[%s3370] ss:$4 sm:$0xff] %v3006
      %3506 = vst [vmem:[%s3372] ss:$4 sm:$0xff] %v3007
      %3507 = vst [vmem:[%s3374] ss:$4 sm:$0xff] %v3008
      %3508 = vst [vmem:[%s3376] ss:$4 sm:$0xff] %v3009
      %3509 = vst [vmem:[%s3378] ss:$4 sm:$0xff] %v3010
      %v3510 = vld.sshfl [vmem:[#allocation1] sm:$0xff pattern:$0x73625140]
      %v3511 = vld.sshfl [vmem:[#allocation1 + $0x20] sm:$0xff pattern:$0x73625140]
      %3512 = vst [vmem:[#allocation1] ss:$4 sm:$0xff] %v3011
      %3513 = vst [vmem:[%s3366] ss:$4 sm:$0xff] %v3012
      %3514 = vst [vmem:[%s3368] ss:$4 sm:$0xff] %v3013
      %3515 = vst [vmem:[%s3370] ss:$4 sm:$0xff] %v3014
      %3516 = vst [vmem:[%s3372] ss:$4 sm:$0xff] %v3015
      %3517 = vst [vmem:[%s3374] ss:$4 sm:$0xff] %v3016
      %3518 = vst [vmem:[%s3376] ss:$4 sm:$0xff] %v3017
      %3519 = vst [vmem:[%s3378] ss:$4 sm:$0xff] %v3018
      %v3520 = vld.sshfl [vmem:[#allocation1] sm:$0xff pattern:$0x73625140]
      %v3521 = vld.sshfl [vmem:[#allocation1 + $0x20] sm:$0xff pattern:$0x73625140]
      %3522 = vst [vmem:[#allocation1] ss:$4 sm:$0xff] %v3019
      %3523 = vst [vmem:[%s3366] ss:$4 sm:$0xff] %v3020
      %3524 = vst [vmem:[%s3368] ss:$4 sm:$0xff] %v3021
      %3525 = vst [vmem:[%s3370] ss:$4 sm:$0xff] %v3022
      %3526 = vst [vmem:[%s3372] ss:$4 sm:$0xff] %v3023
      %3527 = vst [vmem:[%s3374] ss:$4 sm:$0xff] %v3024
      %3528 = vst [vmem:[%s3376] ss:$4 sm:$0xff] %v3025
      %3529 = vst [vmem:[%s3378] ss:$4 sm:$0xff] %v3026
      %v3530 = vld.sshfl [vmem:[#allocation1] sm:$0xff pattern:$0x73625140]
      %v3531 = vld.sshfl [vmem:[#allocation1 + $0x20] sm:$0xff pattern:$0x73625140]
      %s3564 = scalar_lea.vmem [#allocation3], 32
      %3565 = vst.msk [vmem:[%s3564 + $0x8] sm:$0xff] %vm366, %v3380
      %3566 = vst.msk [vmem:[%s3564 + $0x10] sm:$0xff] %vm366, %v3381
      %3567 = vst.msk [vmem:[%s3564 + $0x28] sm:$0xff] %vm366, %v3390
      %3568 = vst.msk [vmem:[%s3564 + $0x30] sm:$0xff] %vm366, %v3391
      %3569 = vst.msk [vmem:[%s3564 + $0x48] sm:$0xff] %vm366, %v3400
      %3570 = vst.msk [vmem:[%s3564 + $0x50] sm:$0xff] %vm366, %v3401
      %3571 = vst.msk [vmem:[%s3564 + $0x68] sm:$0xff] %vm366, %v3410
      %3572 = vst.msk [vmem:[%s3564 + $0x70] sm:$0xff] %vm366, %v3411
      %3573 = vst.msk [vmem:[%s3564 + $0x88] sm:$0xff] %vm366, %v3420
      %3574 = vst.msk [vmem:[%s3564 + $0x90] sm:$0xff] %vm366, %v3421
      %3575 = vst.msk [vmem:[%s3564 + $0xa8] sm:$0xff] %vm366, %v3430
      %3576 = vst.msk [vmem:[%s3564 + $0xb0] sm:$0xff] %vm366, %v3431
      %3577 = vst.msk [vmem:[%s3564 + $0xc8] sm:$0xff] %vm366, %v3440
      %3578 = vst.msk [vmem:[%s3564 + $0xd0] sm:$0xff] %vm366, %v3441
      %3579 = vst.msk [vmem:[%s3564 + $0xe8] sm:$0xff] %vm366, %v3450
      %3580 = vst.msk [vmem:[%s3564 + $0xf0] sm:$0xff] %vm366, %v3451
      %3581 = vst.msk [vmem:[%s3564 + $0x108] sm:$0xff] %vm366, %v3460
      %3582 = vst.msk [vmem:[%s3564 + $0x110] sm:$0xff] %vm366, %v3461
      %3583 = vst.msk [vmem:[%s3564 + $0x128] sm:$0xff] %vm366, %v3470
      %3584 = vst.msk [vmem:[%s3564 + $0x130] sm:$0xff] %vm366, %v3471
      %3585 = vst.msk [vmem:[%s3564 + $0x148] sm:$0xff] %vm366, %v3480
      %3586 = vst.msk [vmem:[%s3564 + $0x150] sm:$0xff] %vm366, %v3481
      %3587 = vst.msk [vmem:[%s3564 + $0x168] sm:$0xff] %vm366, %v3490
      %3588 = vst.msk [vmem:[%s3564 + $0x170] sm:$0xff] %vm366, %v3491
      %3589 = vst.msk [vmem:[%s3564 + $0x188] sm:$0xff] %vm366, %v3500
      %3590 = vst.msk [vmem:[%s3564 + $0x190] sm:$0xff] %vm366, %v3501
      %3591 = vst.msk [vmem:[%s3564 + $0x1a8] sm:$0xff] %vm366, %v3510
      %3592 = vst.msk [vmem:[%s3564 + $0x1b0] sm:$0xff] %vm366, %v3511
      %3593 = vst.msk [vmem:[%s3564 + $0x1c8] sm:$0xff] %vm366, %v3520
      %3594 = vst.msk [vmem:[%s3564 + $0x1d0] sm:$0xff] %vm366, %v3521
      %3595 = vst.msk [vmem:[%s3564 + $0x1e8] sm:$0xff] %vm366, %v3530
      %3596 = vst.msk [vmem:[%s3564 + $0x1f0] sm:$0xff] %vm366, %v3531
      %v3597 = vld [vmem:[#allocation2 + $0x7] sm:$0xff]
      %v3598 = vld [vmem:[#allocation2 + $0xf] sm:$0xff]
      %v3599 = vld [vmem:[#allocation2 + $0x27] sm:$0xff]
      %v3600 = vld [vmem:[#allocation2 + $0x2f] sm:$0xff]
      %v3601 = vld [vmem:[#allocation2 + $0x47] sm:$0xff]
      %v3602 = vld [vmem:[#allocation2 + $0x4f] sm:$0xff]
      %v3603 = vld [vmem:[#allocation2 + $0x67] sm:$0xff]
      %v3604 = vld [vmem:[#allocation2 + $0x6f] sm:$0xff]
      %v3605 = vld [vmem:[#allocation2 + $0x87] sm:$0xff]
      %v3606 = vld [vmem:[#allocation2 + $0x8f] sm:$0xff]
      %v3607 = vld [vmem:[#allocation2 + $0xa7] sm:$0xff]
      %v3608 = vld [vmem:[#allocation2 + $0xaf] sm:$0xff]
      %v3609 = vld [vmem:[#allocation2 + $0xc7] sm:$0xff]
      %v3610 = vld [vmem:[#allocation2 + $0xcf] sm:$0xff]
      %v3611 = vld [vmem:[#allocation2 + $0xe7] sm:$0xff]
      %v3612 = vld [vmem:[#allocation2 + $0xef] sm:$0xff]
      %v3613 = vld [vmem:[#allocation2 + $0x107] sm:$0xff]
      %v3614 = vld [vmem:[#allocation2 + $0x10f] sm:$0xff]
      %v3615 = vld [vmem:[#allocation2 + $0x127] sm:$0xff]
      %v3616 = vld [vmem:[#allocation2 + $0x12f] sm:$0xff]
      %v3617 = vld [vmem:[#allocation2 + $0x147] sm:$0xff]
      %v3618 = vld [vmem:[#allocation2 + $0x14f] sm:$0xff]
      %v3619 = vld [vmem:[#allocation2 + $0x167] sm:$0xff]
      %v3620 = vld [vmem:[#allocation2 + $0x16f] sm:$0xff]
      %v3621 = vld [vmem:[#allocation2 + $0x187] sm:$0xff]
      %v3622 = vld [vmem:[#allocation2 + $0x18f] sm:$0xff]
      %v3623 = vld [vmem:[#allocation2 + $0x1a7] sm:$0xff]
      %v3624 = vld [vmem:[#allocation2 + $0x1af] sm:$0xff]
      %v3625 = vld [vmem:[#allocation2 + $0x1c7] sm:$0xff]
      %v3626 = vld [vmem:[#allocation2 + $0x1cf] sm:$0xff]
      %v3627 = vld [vmem:[#allocation2 + $0x1e7] sm:$0xff]
      %v3628 = vld [vmem:[#allocation2 + $0x1ef] sm:$0xff]
      %v3629 = vld [vmem:[#allocation2 + $0x8] sm:$0xff]
      %v3630 = vld [vmem:[#allocation2 + $0x10] sm:$0xff]
      %v3631 = vld [vmem:[#allocation2 + $0x28] sm:$0xff]
      %v3632 = vld [vmem:[#allocation2 + $0x30] sm:$0xff]
      %v3633 = vld [vmem:[#allocation2 + $0x48] sm:$0xff]
      %v3634 = vld [vmem:[#allocation2 + $0x50] sm:$0xff]
      %v3635 = vld [vmem:[#allocation2 + $0x68] sm:$0xff]
      %v3636 = vld [vmem:[#allocation2 + $0x70] sm:$0xff]
      %v3637 = vld [vmem:[#allocation2 + $0x88] sm:$0xff]
      %v3638 = vld [vmem:[#allocation2 + $0x90] sm:$0xff]
      %v3639 = vld [vmem:[#allocation2 + $0xa8] sm:$0xff]
      %v3640 = vld [vmem:[#allocation2 + $0xb0] sm:$0xff]
      %v3641 = vld [vmem:[#allocation2 + $0xc8] sm:$0xff]
      %v3642 = vld [vmem:[#allocation2 + $0xd0] sm:$0xff]
      %v3643 = vld [vmem:[#allocation2 + $0xe8] sm:$0xff]
      %v3644 = vld [vmem:[#allocation2 + $0xf0] sm:$0xff]
      %v3645 = vld [vmem:[#allocation2 + $0x108] sm:$0xff]
      %v3646 = vld [vmem:[#allocation2 + $0x110] sm:$0xff]
      %v3647 = vld [vmem:[#allocation2 + $0x128] sm:$0xff]
      %v3648 = vld [vmem:[#allocation2 + $0x130] sm:$0xff]
      %v3649 = vld [vmem:[#allocation2 + $0x148] sm:$0xff]
      %v3650 = vld [vmem:[#allocation2 + $0x150] sm:$0xff]
      %v3651 = vld [vmem:[#allocation2 + $0x168] sm:$0xff]
      %v3652 = vld [vmem:[#allocation2 + $0x170] sm:$0xff]
      %v3653 = vld [vmem:[#allocation2 + $0x188] sm:$0xff]
      %v3654 = vld [vmem:[#allocation2 + $0x190] sm:$0xff]
      %v3655 = vld [vmem:[#allocation2 + $0x1a8] sm:$0xff]
      %v3656 = vld [vmem:[#allocation2 + $0x1b0] sm:$0xff]
      %v3657 = vld [vmem:[#allocation2 + $0x1c8] sm:$0xff]
      %v3658 = vld [vmem:[#allocation2 + $0x1d0] sm:$0xff]
      %v3659 = vld [vmem:[#allocation2 + $0x1e8] sm:$0xff]
      %v3660 = vld [vmem:[#allocation2 + $0x1f0] sm:$0xff]
      %v3661 = vld [vmem:[#allocation2 + $0x9] sm:$0xff]
      %v3662 = vld [vmem:[#allocation2 + $0x11] sm:$0xff]
      %v3663 = vld [vmem:[#allocation2 + $0x29] sm:$0xff]
      %v3664 = vld [vmem:[#allocation2 + $0x31] sm:$0xff]
      %v3665 = vld [vmem:[#allocation2 + $0x49] sm:$0xff]
      %v3666 = vld [vmem:[#allocation2 + $0x51] sm:$0xff]
      %v3667 = vld [vmem:[#allocation2 + $0x69] sm:$0xff]
      %v3668 = vld [vmem:[#allocation2 + $0x71] sm:$0xff]
      %v3669 = vld [vmem:[#allocation2 + $0x89] sm:$0xff]
      %v3670 = vld [vmem:[#allocation2 + $0x91] sm:$0xff]
      %v3671 = vld [vmem:[#allocation2 + $0xa9] sm:$0xff]
      %v3672 = vld [vmem:[#allocation2 + $0xb1] sm:$0xff]
      %v3673 = vld [vmem:[#allocation2 + $0xc9] sm:$0xff]
      %v3674 = vld [vmem:[#allocation2 + $0xd1] sm:$0xff]
      %v3675 = vld [vmem:[#allocation2 + $0xe9] sm:$0xff]
      %v3676 = vld [vmem:[#allocation2 + $0xf1] sm:$0xff]
      %v3677 = vld [vmem:[#allocation2 + $0x109] sm:$0xff]
      %v3678 = vld [vmem:[#allocation2 + $0x111] sm:$0xff]
      %v3679 = vld [vmem:[#allocation2 + $0x129] sm:$0xff]
      %v3680 = vld [vmem:[#allocation2 + $0x131] sm:$0xff]
      %v3681 = vld [vmem:[#allocation2 + $0x149] sm:$0xff]
      %v3682 = vld [vmem:[#allocation2 + $0x151] sm:$0xff]
      %v3683 = vld [vmem:[#allocation2 + $0x169] sm:$0xff]
      %v3684 = vld [vmem:[#allocation2 + $0x171] sm:$0xff]
      %v3685 = vld [vmem:[#allocation2 + $0x189] sm:$0xff]
      %v3686 = vld [vmem:[#allocation2 + $0x191] sm:$0xff]
      %v3687 = vld [vmem:[#allocation2 + $0x1a9] sm:$0xff]
      %v3688 = vld [vmem:[#allocation2 + $0x1b1] sm:$0xff]
      %v3689 = vld [vmem:[#allocation2 + $0x1c9] sm:$0xff]
      %v3690 = vld [vmem:[#allocation2 + $0x1d1] sm:$0xff]
      %v3691 = vld [vmem:[#allocation2 + $0x1e9] sm:$0xff]
      %v3692 = vld [vmem:[#allocation2 + $0x1f1] sm:$0xff]
      %v3693 = vld [vmem:[%s3204 + $0x7] sm:$0xff]
      %v3694 = vld [vmem:[%s3204 + $0xf] sm:$0xff]
      %v3695 = vld [vmem:[%s3204 + $0x27] sm:$0xff]
      %v3696 = vld [vmem:[%s3204 + $0x2f] sm:$0xff]
      %v3697 = vld [vmem:[%s3204 + $0x47] sm:$0xff]
      %v3698 = vld [vmem:[%s3204 + $0x4f] sm:$0xff]
      %v3699 = vld [vmem:[%s3204 + $0x67] sm:$0xff]
      %v3700 = vld [vmem:[%s3204 + $0x6f] sm:$0xff]
      %v3701 = vld [vmem:[%s3204 + $0x87] sm:$0xff]
      %v3702 = vld [vmem:[%s3204 + $0x8f] sm:$0xff]
      %v3703 = vld [vmem:[%s3204 + $0xa7] sm:$0xff]
      %v3704 = vld [vmem:[%s3204 + $0xaf] sm:$0xff]
      %v3705 = vld [vmem:[%s3204 + $0xc7] sm:$0xff]
      %v3706 = vld [vmem:[%s3204 + $0xcf] sm:$0xff]
      %v3707 = vld [vmem:[%s3204 + $0xe7] sm:$0xff]
      %v3708 = vld [vmem:[%s3204 + $0xef] sm:$0xff]
      %v3709 = vld [vmem:[%s3204 + $0x107] sm:$0xff]
      %v3710 = vld [vmem:[%s3204 + $0x10f] sm:$0xff]
      %v3711 = vld [vmem:[%s3204 + $0x127] sm:$0xff]
      %v3712 = vld [vmem:[%s3204 + $0x12f] sm:$0xff]
      %v3713 = vld [vmem:[%s3204 + $0x147] sm:$0xff]
      %v3714 = vld [vmem:[%s3204 + $0x14f] sm:$0xff]
      %v3715 = vld [vmem:[%s3204 + $0x167] sm:$0xff]
      %v3716 = vld [vmem:[%s3204 + $0x16f] sm:$0xff]
      %v3717 = vld [vmem:[%s3204 + $0x187] sm:$0xff]
      %v3718 = vld [vmem:[%s3204 + $0x18f] sm:$0xff]
      %v3719 = vld [vmem:[%s3204 + $0x1a7] sm:$0xff]
      %v3720 = vld [vmem:[%s3204 + $0x1af] sm:$0xff]
      %v3721 = vld [vmem:[%s3204 + $0x1c7] sm:$0xff]
      %v3722 = vld [vmem:[%s3204 + $0x1cf] sm:$0xff]
      %v3723 = vld [vmem:[%s3204 + $0x1e7] sm:$0xff]
      %v3724 = vld [vmem:[%s3204 + $0x1ef] sm:$0xff]
      %v3725 = vld [vmem:[%s3204 + $0x8] sm:$0xff]
      %v3726 = vld [vmem:[%s3204 + $0x10] sm:$0xff]
      %v3727 = vld [vmem:[%s3204 + $0x28] sm:$0xff]
      %v3728 = vld [vmem:[%s3204 + $0x30] sm:$0xff]
      %v3729 = vld [vmem:[%s3204 + $0x48] sm:$0xff]
      %v3730 = vld [vmem:[%s3204 + $0x50] sm:$0xff]
      %v3731 = vld [vmem:[%s3204 + $0x68] sm:$0xff]
      %v3732 = vld [vmem:[%s3204 + $0x70] sm:$0xff]
      %v3733 = vld [vmem:[%s3204 + $0x88] sm:$0xff]
      %v3734 = vld [vmem:[%s3204 + $0x90] sm:$0xff]
      %v3735 = vld [vmem:[%s3204 + $0xa8] sm:$0xff]
      %v3736 = vld [vmem:[%s3204 + $0xb0] sm:$0xff]
      %v3737 = vld [vmem:[%s3204 + $0xc8] sm:$0xff]
      %v3738 = vld [vmem:[%s3204 + $0xd0] sm:$0xff]
      %v3739 = vld [vmem:[%s3204 + $0xe8] sm:$0xff]
      %v3740 = vld [vmem:[%s3204 + $0xf0] sm:$0xff]
      %v3741 = vld [vmem:[%s3204 + $0x108] sm:$0xff]
      %v3742 = vld [vmem:[%s3204 + $0x110] sm:$0xff]
      %v3743 = vld [vmem:[%s3204 + $0x128] sm:$0xff]
      %v3744 = vld [vmem:[%s3204 + $0x130] sm:$0xff]
      %v3745 = vld [vmem:[%s3204 + $0x148] sm:$0xff]
      %v3746 = vld [vmem:[%s3204 + $0x150] sm:$0xff]
      %v3747 = vld [vmem:[%s3204 + $0x168] sm:$0xff]
      %v3748 = vld [vmem:[%s3204 + $0x170] sm:$0xff]
      %v3749 = vld [vmem:[%s3204 + $0x188] sm:$0xff]
      %v3750 = vld [vmem:[%s3204 + $0x190] sm:$0xff]
      %v3751 = vld [vmem:[%s3204 + $0x1a8] sm:$0xff]
      %v3752 = vld [vmem:[%s3204 + $0x1b0] sm:$0xff]
      %v3753 = vld [vmem:[%s3204 + $0x1c8] sm:$0xff]
      %v3754 = vld [vmem:[%s3204 + $0x1d0] sm:$0xff]
      %v3755 = vld [vmem:[%s3204 + $0x1e8] sm:$0xff]
      %v3756 = vld [vmem:[%s3204 + $0x1f0] sm:$0xff]
      %v3757 = vld [vmem:[%s3204 + $0x9] sm:$0xff]
      %v3758 = vld [vmem:[%s3204 + $0x11] sm:$0xff]
      %v3759 = vld [vmem:[%s3204 + $0x29] sm:$0xff]
      %v3760 = vld [vmem:[%s3204 + $0x31] sm:$0xff]
      %v3761 = vld [vmem:[%s3204 + $0x49] sm:$0xff]
      %v3762 = vld [vmem:[%s3204 + $0x51] sm:$0xff]
      %v3763 = vld [vmem:[%s3204 + $0x69] sm:$0xff]
      %v3764 = vld [vmem:[%s3204 + $0x71] sm:$0xff]
      %v3765 = vld [vmem:[%s3204 + $0x89] sm:$0xff]
      %v3766 = vld [vmem:[%s3204 + $0x91] sm:$0xff]
      %v3767 = vld [vmem:[%s3204 + $0xa9] sm:$0xff]
      %v3768 = vld [vmem:[%s3204 + $0xb1] sm:$0xff]
      %v3769 = vld [vmem:[%s3204 + $0xc9] sm:$0xff]
      %v3770 = vld [vmem:[%s3204 + $0xd1] sm:$0xff]
      %v3771 = vld [vmem:[%s3204 + $0xe9] sm:$0xff]
      %v3772 = vld [vmem:[%s3204 + $0xf1] sm:$0xff]
      %v3773 = vld [vmem:[%s3204 + $0x109] sm:$0xff]
      %v3774 = vld [vmem:[%s3204 + $0x111] sm:$0xff]
      %v3775 = vld [vmem:[%s3204 + $0x129] sm:$0xff]
      %v3776 = vld [vmem:[%s3204 + $0x131] sm:$0xff]
      %v3777 = vld [vmem:[%s3204 + $0x149] sm:$0xff]
      %v3778 = vld [vmem:[%s3204 + $0x151] sm:$0xff]
      %v3779 = vld [vmem:[%s3204 + $0x169] sm:$0xff]
      %v3780 = vld [vmem:[%s3204 + $0x171] sm:$0xff]
      %v3781 = vld [vmem:[%s3204 + $0x189] sm:$0xff]
      %v3782 = vld [vmem:[%s3204 + $0x191] sm:$0xff]
      %v3783 = vld [vmem:[%s3204 + $0x1a9] sm:$0xff]
      %v3784 = vld [vmem:[%s3204 + $0x1b1] sm:$0xff]
      %v3785 = vld [vmem:[%s3204 + $0x1c9] sm:$0xff]
      %v3786 = vld [vmem:[%s3204 + $0x1d1] sm:$0xff]
      %v3787 = vld [vmem:[%s3204 + $0x1e9] sm:$0xff]
      %v3788 = vld [vmem:[%s3204 + $0x1f1] sm:$0xff]
      %s3789 = scalar_lea.vmem [#allocation2], 64
      %v3790 = vld [vmem:[%s3789 + $0x7] sm:$0xff]
      %v3791 = vld [vmem:[%s3789 + $0xf] sm:$0xff]
      %v3792 = vld [vmem:[%s3789 + $0x27] sm:$0xff]
      %v3793 = vld [vmem:[%s3789 + $0x2f] sm:$0xff]
      %v3794 = vld [vmem:[%s3789 + $0x47] sm:$0xff]
      %v3795 = vld [vmem:[%s3789 + $0x4f] sm:$0xff]
      %v3796 = vld [vmem:[%s3789 + $0x67] sm:$0xff]
      %v3797 = vld [vmem:[%s3789 + $0x6f] sm:$0xff]
      %v3798 = vld [vmem:[%s3789 + $0x87] sm:$0xff]
      %v3799 = vld [vmem:[%s3789 + $0x8f] sm:$0xff]
      %v3800 = vld [vmem:[%s3789 + $0xa7] sm:$0xff]
      %v3801 = vld [vmem:[%s3789 + $0xaf] sm:$0xff]
      %v3802 = vld [vmem:[%s3789 + $0xc7] sm:$0xff]
      %v3803 = vld [vmem:[%s3789 + $0xcf] sm:$0xff]
      %v3804 = vld [vmem:[%s3789 + $0xe7] sm:$0xff]
      %v3805 = vld [vmem:[%s3789 + $0xef] sm:$0xff]
      %v3806 = vld [vmem:[%s3789 + $0x107] sm:$0xff]
      %v3807 = vld [vmem:[%s3789 + $0x10f] sm:$0xff]
      %v3808 = vld [vmem:[%s3789 + $0x127] sm:$0xff]
      %v3809 = vld [vmem:[%s3789 + $0x12f] sm:$0xff]
      %v3810 = vld [vmem:[%s3789 + $0x147] sm:$0xff]
      %v3811 = vld [vmem:[%s3789 + $0x14f] sm:$0xff]
      %v3812 = vld [vmem:[%s3789 + $0x167] sm:$0xff]
      %v3813 = vld [vmem:[%s3789 + $0x16f] sm:$0xff]
      %v3814 = vld [vmem:[%s3789 + $0x187] sm:$0xff]
      %v3815 = vld [vmem:[%s3789 + $0x18f] sm:$0xff]
      %v3816 = vld [vmem:[%s3789 + $0x1a7] sm:$0xff]
      %v3817 = vld [vmem:[%s3789 + $0x1af] sm:$0xff]
      %v3818 = vld [vmem:[%s3789 + $0x1c7] sm:$0xff]
      %v3819 = vld [vmem:[%s3789 + $0x1cf] sm:$0xff]
      %v3820 = vld [vmem:[%s3789 + $0x1e7] sm:$0xff]
      %v3821 = vld [vmem:[%s3789 + $0x1ef] sm:$0xff]
      %v3822 = vld [vmem:[%s3789 + $0x8] sm:$0xff]
      %v3823 = vld [vmem:[%s3789 + $0x10] sm:$0xff]
      %v3824 = vld [vmem:[%s3789 + $0x28] sm:$0xff]
      %v3825 = vld [vmem:[%s3789 + $0x30] sm:$0xff]
      %v3826 = vld [vmem:[%s3789 + $0x48] sm:$0xff]
      %v3827 = vld [vmem:[%s3789 + $0x50] sm:$0xff]
      %v3828 = vld [vmem:[%s3789 + $0x68] sm:$0xff]
      %v3829 = vld [vmem:[%s3789 + $0x70] sm:$0xff]
      %v3830 = vld [vmem:[%s3789 + $0x88] sm:$0xff]
      %v3831 = vld [vmem:[%s3789 + $0x90] sm:$0xff]
      %v3832 = vld [vmem:[%s3789 + $0xa8] sm:$0xff]
      %v3833 = vld [vmem:[%s3789 + $0xb0] sm:$0xff]
      %v3834 = vld [vmem:[%s3789 + $0xc8] sm:$0xff]
      %v3835 = vld [vmem:[%s3789 + $0xd0] sm:$0xff]
      %v3836 = vld [vmem:[%s3789 + $0xe8] sm:$0xff]
      %v3837 = vld [vmem:[%s3789 + $0xf0] sm:$0xff]
      %v3838 = vld [vmem:[%s3789 + $0x108] sm:$0xff]
      %v3839 = vld [vmem:[%s3789 + $0x110] sm:$0xff]
      %v3840 = vld [vmem:[%s3789 + $0x128] sm:$0xff]
      %v3841 = vld [vmem:[%s3789 + $0x130] sm:$0xff]
      %v3842 = vld [vmem:[%s3789 + $0x148] sm:$0xff]
      %v3843 = vld [vmem:[%s3789 + $0x150] sm:$0xff]
      %v3844 = vld [vmem:[%s3789 + $0x168] sm:$0xff]
      %v3845 = vld [vmem:[%s3789 + $0x170] sm:$0xff]
      %v3846 = vld [vmem:[%s3789 + $0x188] sm:$0xff]
      %v3847 = vld [vmem:[%s3789 + $0x190] sm:$0xff]
      %v3848 = vld [vmem:[%s3789 + $0x1a8] sm:$0xff]
      %v3849 = vld [vmem:[%s3789 + $0x1b0] sm:$0xff]
      %v3850 = vld [vmem:[%s3789 + $0x1c8] sm:$0xff]
      %v3851 = vld [vmem:[%s3789 + $0x1d0] sm:$0xff]
      %v3852 = vld [vmem:[%s3789 + $0x1e8] sm:$0xff]
      %v3853 = vld [vmem:[%s3789 + $0x1f0] sm:$0xff]
      %v3854 = vld [vmem:[%s3789 + $0x9] sm:$0xff]
      %v3855 = vld [vmem:[%s3789 + $0x11] sm:$0xff]
      %v3856 = vld [vmem:[%s3789 + $0x29] sm:$0xff]
      %v3857 = vld [vmem:[%s3789 + $0x31] sm:$0xff]
      %v3858 = vld [vmem:[%s3789 + $0x49] sm:$0xff]
      %v3859 = vld [vmem:[%s3789 + $0x51] sm:$0xff]
      %v3860 = vld [vmem:[%s3789 + $0x69] sm:$0xff]
      %v3861 = vld [vmem:[%s3789 + $0x71] sm:$0xff]
      %v3862 = vld [vmem:[%s3789 + $0x89] sm:$0xff]
      %v3863 = vld [vmem:[%s3789 + $0x91] sm:$0xff]
      %v3864 = vld [vmem:[%s3789 + $0xa9] sm:$0xff]
      %v3865 = vld [vmem:[%s3789 + $0xb1] sm:$0xff]
      %v3866 = vld [vmem:[%s3789 + $0xc9] sm:$0xff]
      %v3867 = vld [vmem:[%s3789 + $0xd1] sm:$0xff]
      %v3868 = vld [vmem:[%s3789 + $0xe9] sm:$0xff]
      %v3869 = vld [vmem:[%s3789 + $0xf1] sm:$0xff]
      %v3870 = vld [vmem:[%s3789 + $0x109] sm:$0xff]
      %v3871 = vld [vmem:[%s3789 + $0x111] sm:$0xff]
      %v3872 = vld [vmem:[%s3789 + $0x129] sm:$0xff]
      %v3873 = vld [vmem:[%s3789 + $0x131] sm:$0xff]
      %v3874 = vld [vmem:[%s3789 + $0x149] sm:$0xff]
      %v3875 = vld [vmem:[%s3789 + $0x151] sm:$0xff]
      %v3876 = vld [vmem:[%s3789 + $0x169] sm:$0xff]
      %v3877 = vld [vmem:[%s3789 + $0x171] sm:$0xff]
      %v3878 = vld [vmem:[%s3789 + $0x189] sm:$0xff]
      %v3879 = vld [vmem:[%s3789 + $0x191] sm:$0xff]
      %v3880 = vld [vmem:[%s3789 + $0x1a9] sm:$0xff]
      %v3881 = vld [vmem:[%s3789 + $0x1b1] sm:$0xff]
      %v3882 = vld [vmem:[%s3789 + $0x1c9] sm:$0xff]
      %v3883 = vld [vmem:[%s3789 + $0x1d1] sm:$0xff]
      %v3884 = vld [vmem:[%s3789 + $0x1e9] sm:$0xff]
      %v3885 = vld [vmem:[%s3789 + $0x1f1] sm:$0xff]
      %3918 = vrot.lane.b32.xlu0 %v3629, 4
      %v3919 = vpop.permute.xlu0 %3918
      %3920 = vrot.lane.b32.xlu0 %v3630, 4
      %v3921 = vpop.permute.xlu0 %3920
      %3922 = vrot.lane.b32.xlu0 %v3631, 4
      %v3923 = vpop.permute.xlu0 %3922
      %3924 = vrot.lane.b32.xlu0 %v3632, 4
      %v3925 = vpop.permute.xlu0 %3924
      %3926 = vrot.lane.b32.xlu0 %v3633, 4
      %v3927 = vpop.permute.xlu0 %3926
      %3928 = vrot.lane.b32.xlu0 %v3634, 4
      %v3929 = vpop.permute.xlu0 %3928
      %3930 = vrot.lane.b32.xlu0 %v3635, 4
      %v3931 = vpop.permute.xlu0 %3930
      %3932 = vrot.lane.b32.xlu0 %v3636, 4
      %v3933 = vpop.permute.xlu0 %3932
      %3934 = vrot.lane.b32.xlu0 %v3637, 4
      %v3935 = vpop.permute.xlu0 %3934
      %3936 = vrot.lane.b32.xlu0 %v3638, 4
      %v3937 = vpop.permute.xlu0 %3936
      %3938 = vrot.lane.b32.xlu0 %v3639, 4
      %v3939 = vpop.permute.xlu0 %3938
      %3940 = vrot.lane.b32.xlu0 %v3640, 4
      %v3941 = vpop.permute.xlu0 %3940
      %3942 = vrot.lane.b32.xlu0 %v3641, 4
      %v3943 = vpop.permute.xlu0 %3942
      %3944 = vrot.lane.b32.xlu0 %v3642, 4
      %v3945 = vpop.permute.xlu0 %3944
      %3946 = vrot.lane.b32.xlu0 %v3643, 4
      %v3947 = vpop.permute.xlu0 %3946
      %3948 = vrot.lane.b32.xlu0 %v3644, 4
      %v3949 = vpop.permute.xlu0 %3948
      %3950 = vrot.lane.b32.xlu0 %v3645, 4
      %v3951 = vpop.permute.xlu0 %3950
      %3952 = vrot.lane.b32.xlu0 %v3646, 4
      %v3953 = vpop.permute.xlu0 %3952
      %3954 = vrot.lane.b32.xlu0 %v3647, 4
      %v3955 = vpop.permute.xlu0 %3954
      %3956 = vrot.lane.b32.xlu0 %v3648, 4
      %v3957 = vpop.permute.xlu0 %3956
      %3958 = vrot.lane.b32.xlu0 %v3649, 4
      %v3959 = vpop.permute.xlu0 %3958
      %3960 = vrot.lane.b32.xlu0 %v3650, 4
      %v3961 = vpop.permute.xlu0 %3960
      %3962 = vrot.lane.b32.xlu0 %v3651, 4
      %v3963 = vpop.permute.xlu0 %3962
      %3964 = vrot.lane.b32.xlu0 %v3652, 4
      %v3965 = vpop.permute.xlu0 %3964
      %3966 = vrot.lane.b32.xlu0 %v3653, 4
      %v3967 = vpop.permute.xlu0 %3966
      %3968 = vrot.lane.b32.xlu0 %v3654, 4
      %v3969 = vpop.permute.xlu0 %3968
      %3970 = vrot.lane.b32.xlu0 %v3655, 4
      %v3971 = vpop.permute.xlu0 %3970
      %3972 = vrot.lane.b32.xlu0 %v3656, 4
      %v3973 = vpop.permute.xlu0 %3972
      %3974 = vrot.lane.b32.xlu0 %v3657, 4
      %v3975 = vpop.permute.xlu0 %3974
      %3976 = vrot.lane.b32.xlu0 %v3658, 4
      %v3977 = vpop.permute.xlu0 %3976
      %3978 = vrot.lane.b32.xlu0 %v3659, 4
      %v3979 = vpop.permute.xlu0 %3978
      %3980 = vrot.lane.b32.xlu0 %v3660, 4
      %v3981 = vpop.permute.xlu0 %3980
      %4046 = vrot.lane.b32.xlu0 %v3661, 8
      %v4047 = vpop.permute.xlu0 %4046
      %4048 = vrot.lane.b32.xlu0 %v3662, 8
      %v4049 = vpop.permute.xlu0 %4048
      %4050 = vrot.lane.b32.xlu0 %v3663, 8
      %v4051 = vpop.permute.xlu0 %4050
      %4052 = vrot.lane.b32.xlu0 %v3664, 8
      %v4053 = vpop.permute.xlu0 %4052
      %4054 = vrot.lane.b32.xlu0 %v3665, 8
      %v4055 = vpop.permute.xlu0 %4054
      %4056 = vrot.lane.b32.xlu0 %v3666, 8
      %v4057 = vpop.permute.xlu0 %4056
      %4058 = vrot.lane.b32.xlu0 %v3667, 8
      %v4059 = vpop.permute.xlu0 %4058
      %4060 = vrot.lane.b32.xlu0 %v3668, 8
      %v4061 = vpop.permute.xlu0 %4060
      %4062 = vrot.lane.b32.xlu0 %v3669, 8
      %v4063 = vpop.permute.xlu0 %4062
      %4064 = vrot.lane.b32.xlu0 %v3670, 8
      %v4065 = vpop.permute.xlu0 %4064
      %4066 = vrot.lane.b32.xlu0 %v3671, 8
      %v4067 = vpop.permute.xlu0 %4066
      %4068 = vrot.lane.b32.xlu0 %v3672, 8
      %v4069 = vpop.permute.xlu0 %4068
      %4070 = vrot.lane.b32.xlu0 %v3673, 8
      %v4071 = vpop.permute.xlu0 %4070
      %4072 = vrot.lane.b32.xlu0 %v3674, 8
      %v4073 = vpop.permute.xlu0 %4072
      %4074 = vrot.lane.b32.xlu0 %v3675, 8
      %v4075 = vpop.permute.xlu0 %4074
      %4076 = vrot.lane.b32.xlu0 %v3676, 8
      %v4077 = vpop.permute.xlu0 %4076
      %4078 = vrot.lane.b32.xlu0 %v3677, 8
      %v4079 = vpop.permute.xlu0 %4078
      %4080 = vrot.lane.b32.xlu0 %v3678, 8
      %v4081 = vpop.permute.xlu0 %4080
      %4082 = vrot.lane.b32.xlu0 %v3679, 8
      %v4083 = vpop.permute.xlu0 %4082
      %4084 = vrot.lane.b32.xlu0 %v3680, 8
      %v4085 = vpop.permute.xlu0 %4084
      %4086 = vrot.lane.b32.xlu0 %v3681, 8
      %v4087 = vpop.permute.xlu0 %4086
      %4088 = vrot.lane.b32.xlu0 %v3682, 8
      %v4089 = vpop.permute.xlu0 %4088
      %4090 = vrot.lane.b32.xlu0 %v3683, 8
      %v4091 = vpop.permute.xlu0 %4090
      %4092 = vrot.lane.b32.xlu0 %v3684, 8
      %v4093 = vpop.permute.xlu0 %4092
      %4094 = vrot.lane.b32.xlu0 %v3685, 8
      %v4095 = vpop.permute.xlu0 %4094
      %4096 = vrot.lane.b32.xlu0 %v3686, 8
      %v4097 = vpop.permute.xlu0 %4096
      %4098 = vrot.lane.b32.xlu0 %v3687, 8
      %v4099 = vpop.permute.xlu0 %4098
      %4100 = vrot.lane.b32.xlu0 %v3688, 8
      %v4101 = vpop.permute.xlu0 %4100
      %4102 = vrot.lane.b32.xlu0 %v3689, 8
      %v4103 = vpop.permute.xlu0 %4102
      %4104 = vrot.lane.b32.xlu0 %v3690, 8
      %v4105 = vpop.permute.xlu0 %4104
      %4106 = vrot.lane.b32.xlu0 %v3691, 8
      %v4107 = vpop.permute.xlu0 %4106
      %4108 = vrot.lane.b32.xlu0 %v3692, 8
      %v4109 = vpop.permute.xlu0 %4108
      %4174 = vrot.lane.b32.xlu0 %v3693, 12
      %v4175 = vpop.permute.xlu0 %4174
      %4176 = vrot.lane.b32.xlu0 %v3694, 12
      %v4177 = vpop.permute.xlu0 %4176
      %4178 = vrot.lane.b32.xlu0 %v3695, 12
      %v4179 = vpop.permute.xlu0 %4178
      %4180 = vrot.lane.b32.xlu0 %v3696, 12
      %v4181 = vpop.permute.xlu0 %4180
      %4182 = vrot.lane.b32.xlu0 %v3697, 12
      %v4183 = vpop.permute.xlu0 %4182
      %4184 = vrot.lane.b32.xlu0 %v3698, 12
      %v4185 = vpop.permute.xlu0 %4184
      %4186 = vrot.lane.b32.xlu0 %v3699, 12
      %v4187 = vpop.permute.xlu0 %4186
      %4188 = vrot.lane.b32.xlu0 %v3700, 12
      %v4189 = vpop.permute.xlu0 %4188
      %4190 = vrot.lane.b32.xlu0 %v3701, 12
      %v4191 = vpop.permute.xlu0 %4190
      %4192 = vrot.lane.b32.xlu0 %v3702, 12
      %v4193 = vpop.permute.xlu0 %4192
      %4194 = vrot.lane.b32.xlu0 %v3703, 12
      %v4195 = vpop.permute.xlu0 %4194
      %4196 = vrot.lane.b32.xlu0 %v3704, 12
      %v4197 = vpop.permute.xlu0 %4196
      %4198 = vrot.lane.b32.xlu0 %v3705, 12
      %v4199 = vpop.permute.xlu0 %4198
      %4200 = vrot.lane.b32.xlu0 %v3706, 12
      %v4201 = vpop.permute.xlu0 %4200
      %4202 = vrot.lane.b32.xlu0 %v3707, 12
      %v4203 = vpop.permute.xlu0 %4202
      %4204 = vrot.lane.b32.xlu0 %v3708, 12
      %v4205 = vpop.permute.xlu0 %4204
      %4206 = vrot.lane.b32.xlu0 %v3709, 12
      %v4207 = vpop.permute.xlu0 %4206
      %4208 = vrot.lane.b32.xlu0 %v3710, 12
      %v4209 = vpop.permute.xlu0 %4208
      %4210 = vrot.lane.b32.xlu0 %v3711, 12
      %v4211 = vpop.permute.xlu0 %4210
      %4212 = vrot.lane.b32.xlu0 %v3712, 12
      %v4213 = vpop.permute.xlu0 %4212
      %4214 = vrot.lane.b32.xlu0 %v3713, 12
      %v4215 = vpop.permute.xlu0 %4214
      %4216 = vrot.lane.b32.xlu0 %v3714, 12
      %v4217 = vpop.permute.xlu0 %4216
      %4218 = vrot.lane.b32.xlu0 %v3715, 12
      %v4219 = vpop.permute.xlu0 %4218
      %4220 = vrot.lane.b32.xlu0 %v3716, 12
      %v4221 = vpop.permute.xlu0 %4220
      %4222 = vrot.lane.b32.xlu0 %v3717, 12
      %v4223 = vpop.permute.xlu0 %4222
      %4224 = vrot.lane.b32.xlu0 %v3718, 12
      %v4225 = vpop.permute.xlu0 %4224
      %4226 = vrot.lane.b32.xlu0 %v3719, 12
      %v4227 = vpop.permute.xlu0 %4226
      %4228 = vrot.lane.b32.xlu0 %v3720, 12
      %v4229 = vpop.permute.xlu0 %4228
      %4230 = vrot.lane.b32.xlu0 %v3721, 12
      %v4231 = vpop.permute.xlu0 %4230
      %4232 = vrot.lane.b32.xlu0 %v3722, 12
      %v4233 = vpop.permute.xlu0 %4232
      %4234 = vrot.lane.b32.xlu0 %v3723, 12
      %v4235 = vpop.permute.xlu0 %4234
      %4236 = vrot.lane.b32.xlu0 %v3724, 12
      %v4237 = vpop.permute.xlu0 %4236
      %4302 = vrot.lane.b32.xlu0 %v3725, 16
      %v4303 = vpop.permute.xlu0 %4302
      %4304 = vrot.lane.b32.xlu0 %v3726, 16
      %v4305 = vpop.permute.xlu0 %4304
      %4306 = vrot.lane.b32.xlu0 %v3727, 16
      %v4307 = vpop.permute.xlu0 %4306
      %4308 = vrot.lane.b32.xlu0 %v3728, 16
      %v4309 = vpop.permute.xlu0 %4308
      %4310 = vrot.lane.b32.xlu0 %v3729, 16
      %v4311 = vpop.permute.xlu0 %4310
      %4312 = vrot.lane.b32.xlu0 %v3730, 16
      %v4313 = vpop.permute.xlu0 %4312
      %4314 = vrot.lane.b32.xlu0 %v3731, 16
      %v4315 = vpop.permute.xlu0 %4314
      %4316 = vrot.lane.b32.xlu0 %v3732, 16
      %v4317 = vpop.permute.xlu0 %4316
      %4318 = vrot.lane.b32.xlu0 %v3733, 16
      %v4319 = vpop.permute.xlu0 %4318
      %4320 = vrot.lane.b32.xlu0 %v3734, 16
      %v4321 = vpop.permute.xlu0 %4320
      %4322 = vrot.lane.b32.xlu0 %v3735, 16
      %v4323 = vpop.permute.xlu0 %4322
      %4324 = vrot.lane.b32.xlu0 %v3736, 16
      %v4325 = vpop.permute.xlu0 %4324
      %4326 = vrot.lane.b32.xlu0 %v3737, 16
      %v4327 = vpop.permute.xlu0 %4326
      %4328 = vrot.lane.b32.xlu0 %v3738, 16
      %v4329 = vpop.permute.xlu0 %4328
      %4330 = vrot.lane.b32.xlu0 %v3739, 16
      %v4331 = vpop.permute.xlu0 %4330
      %4332 = vrot.lane.b32.xlu0 %v3740, 16
      %v4333 = vpop.permute.xlu0 %4332
      %4334 = vrot.lane.b32.xlu0 %v3741, 16
      %v4335 = vpop.permute.xlu0 %4334
      %4336 = vrot.lane.b32.xlu0 %v3742, 16
      %v4337 = vpop.permute.xlu0 %4336
      %4338 = vrot.lane.b32.xlu0 %v3743, 16
      %v4339 = vpop.permute.xlu0 %4338
      %4340 = vrot.lane.b32.xlu0 %v3744, 16
      %v4341 = vpop.permute.xlu0 %4340
      %4342 = vrot.lane.b32.xlu0 %v3745, 16
      %v4343 = vpop.permute.xlu0 %4342
      %4344 = vrot.lane.b32.xlu0 %v3746, 16
      %v4345 = vpop.permute.xlu0 %4344
      %4346 = vrot.lane.b32.xlu0 %v3747, 16
      %v4347 = vpop.permute.xlu0 %4346
      %4348 = vrot.lane.b32.xlu0 %v3748, 16
      %v4349 = vpop.permute.xlu0 %4348
      %4350 = vrot.lane.b32.xlu0 %v3749, 16
      %v4351 = vpop.permute.xlu0 %4350
      %4352 = vrot.lane.b32.xlu0 %v3750, 16
      %v4353 = vpop.permute.xlu0 %4352
      %4354 = vrot.lane.b32.xlu0 %v3751, 16
      %v4355 = vpop.permute.xlu0 %4354
      %4356 = vrot.lane.b32.xlu0 %v3752, 16
      %v4357 = vpop.permute.xlu0 %4356
      %4358 = vrot.lane.b32.xlu0 %v3753, 16
      %v4359 = vpop.permute.xlu0 %4358
      %4360 = vrot.lane.b32.xlu0 %v3754, 16
      %v4361 = vpop.permute.xlu0 %4360
      %4362 = vrot.lane.b32.xlu0 %v3755, 16
      %v4363 = vpop.permute.xlu0 %4362
      %4364 = vrot.lane.b32.xlu0 %v3756, 16
      %v4365 = vpop.permute.xlu0 %4364
      %4430 = vrot.lane.b32.xlu0 %v3757, 20
      %v4431 = vpop.permute.xlu0 %4430
      %4432 = vrot.lane.b32.xlu0 %v3758, 20
      %v4433 = vpop.permute.xlu0 %4432
      %4434 = vrot.lane.b32.xlu0 %v3759, 20
      %v4435 = vpop.permute.xlu0 %4434
      %4436 = vrot.lane.b32.xlu0 %v3760, 20
      %v4437 = vpop.permute.xlu0 %4436
      %4438 = vrot.lane.b32.xlu0 %v3761, 20
      %v4439 = vpop.permute.xlu0 %4438
      %4440 = vrot.lane.b32.xlu0 %v3762, 20
      %v4441 = vpop.permute.xlu0 %4440
      %4442 = vrot.lane.b32.xlu0 %v3763, 20
      %v4443 = vpop.permute.xlu0 %4442
      %4444 = vrot.lane.b32.xlu0 %v3764, 20
      %v4445 = vpop.permute.xlu0 %4444
      %4446 = vrot.lane.b32.xlu0 %v3765, 20
      %v4447 = vpop.permute.xlu0 %4446
      %4448 = vrot.lane.b32.xlu0 %v3766, 20
      %v4449 = vpop.permute.xlu0 %4448
      %4450 = vrot.lane.b32.xlu0 %v3767, 20
      %v4451 = vpop.permute.xlu0 %4450
      %4452 = vrot.lane.b32.xlu0 %v3768, 20
      %v4453 = vpop.permute.xlu0 %4452
      %4454 = vrot.lane.b32.xlu0 %v3769, 20
      %v4455 = vpop.permute.xlu0 %4454
      %4456 = vrot.lane.b32.xlu0 %v3770, 20
      %v4457 = vpop.permute.xlu0 %4456
      %4458 = vrot.lane.b32.xlu0 %v3771, 20
      %v4459 = vpop.permute.xlu0 %4458
      %4460 = vrot.lane.b32.xlu0 %v3772, 20
      %v4461 = vpop.permute.xlu0 %4460
      %4462 = vrot.lane.b32.xlu0 %v3773, 20
      %v4463 = vpop.permute.xlu0 %4462
      %4464 = vrot.lane.b32.xlu0 %v3774, 20
      %v4465 = vpop.permute.xlu0 %4464
      %4466 = vrot.lane.b32.xlu0 %v3775, 20
      %v4467 = vpop.permute.xlu0 %4466
      %4468 = vrot.lane.b32.xlu0 %v3776, 20
      %v4469 = vpop.permute.xlu0 %4468
      %4470 = vrot.lane.b32.xlu0 %v3777, 20
      %v4471 = vpop.permute.xlu0 %4470
      %4472 = vrot.lane.b32.xlu0 %v3778, 20
      %v4473 = vpop.permute.xlu0 %4472
      %4474 = vrot.lane.b32.xlu0 %v3779, 20
      %v4475 = vpop.permute.xlu0 %4474
      %4476 = vrot.lane.b32.xlu0 %v3780, 20
      %v4477 = vpop.permute.xlu0 %4476
      %4478 = vrot.lane.b32.xlu0 %v3781, 20
      %v4479 = vpop.permute.xlu0 %4478
      %4480 = vrot.lane.b32.xlu0 %v3782, 20
      %v4481 = vpop.permute.xlu0 %4480
      %4482 = vrot.lane.b32.xlu0 %v3783, 20
      %v4483 = vpop.permute.xlu0 %4482
      %4484 = vrot.lane.b32.xlu0 %v3784, 20
      %v4485 = vpop.permute.xlu0 %4484
      %4486 = vrot.lane.b32.xlu0 %v3785, 20
      %v4487 = vpop.permute.xlu0 %4486
      %4488 = vrot.lane.b32.xlu0 %v3786, 20
      %v4489 = vpop.permute.xlu0 %4488
      %4490 = vrot.lane.b32.xlu0 %v3787, 20
      %v4491 = vpop.permute.xlu0 %4490
      %4492 = vrot.lane.b32.xlu0 %v3788, 20
      %v4493 = vpop.permute.xlu0 %4492
      %4558 = vrot.lane.b32.xlu0 %v3790, 24
      %v4559 = vpop.permute.xlu0 %4558
      %4560 = vrot.lane.b32.xlu0 %v3791, 24
      %v4561 = vpop.permute.xlu0 %4560
      %4562 = vrot.lane.b32.xlu0 %v3792, 24
      %v4563 = vpop.permute.xlu0 %4562
      %4564 = vrot.lane.b32.xlu0 %v3793, 24
      %v4565 = vpop.permute.xlu0 %4564
      %4566 = vrot.lane.b32.xlu0 %v3794, 24
      %v4567 = vpop.permute.xlu0 %4566
      %4568 = vrot.lane.b32.xlu0 %v3795, 24
      %v4569 = vpop.permute.xlu0 %4568
      %4570 = vrot.lane.b32.xlu0 %v3796, 24
      %v4571 = vpop.permute.xlu0 %4570
      %4572 = vrot.lane.b32.xlu0 %v3797, 24
      %v4573 = vpop.permute.xlu0 %4572
      %4574 = vrot.lane.b32.xlu0 %v3798, 24
      %v4575 = vpop.permute.xlu0 %4574
      %4576 = vrot.lane.b32.xlu0 %v3799, 24
      %v4577 = vpop.permute.xlu0 %4576
      %4578 = vrot.lane.b32.xlu0 %v3800, 24
      %v4579 = vpop.permute.xlu0 %4578
      %4580 = vrot.lane.b32.xlu0 %v3801, 24
      %v4581 = vpop.permute.xlu0 %4580
      %4582 = vrot.lane.b32.xlu0 %v3802, 24
      %v4583 = vpop.permute.xlu0 %4582
      %4584 = vrot.lane.b32.xlu0 %v3803, 24
      %v4585 = vpop.permute.xlu0 %4584
      %4586 = vrot.lane.b32.xlu0 %v3804, 24
      %v4587 = vpop.permute.xlu0 %4586
      %4588 = vrot.lane.b32.xlu0 %v3805, 24
      %v4589 = vpop.permute.xlu0 %4588
      %4590 = vrot.lane.b32.xlu0 %v3806, 24
      %v4591 = vpop.permute.xlu0 %4590
      %4592 = vrot.lane.b32.xlu0 %v3807, 24
      %v4593 = vpop.permute.xlu0 %4592
      %4594 = vrot.lane.b32.xlu0 %v3808, 24
      %v4595 = vpop.permute.xlu0 %4594
      %4596 = vrot.lane.b32.xlu0 %v3809, 24
      %v4597 = vpop.permute.xlu0 %4596
      %4598 = vrot.lane.b32.xlu0 %v3810, 24
      %v4599 = vpop.permute.xlu0 %4598
      %4600 = vrot.lane.b32.xlu0 %v3811, 24
      %v4601 = vpop.permute.xlu0 %4600
      %4602 = vrot.lane.b32.xlu0 %v3812, 24
      %v4603 = vpop.permute.xlu0 %4602
      %4604 = vrot.lane.b32.xlu0 %v3813, 24
      %v4605 = vpop.permute.xlu0 %4604
      %4606 = vrot.lane.b32.xlu0 %v3814, 24
      %v4607 = vpop.permute.xlu0 %4606
      %4608 = vrot.lane.b32.xlu0 %v3815, 24
      %v4609 = vpop.permute.xlu0 %4608
      %4610 = vrot.lane.b32.xlu0 %v3816, 24
      %v4611 = vpop.permute.xlu0 %4610
      %4612 = vrot.lane.b32.xlu0 %v3817, 24
      %v4613 = vpop.permute.xlu0 %4612
      %4614 = vrot.lane.b32.xlu0 %v3818, 24
      %v4615 = vpop.permute.xlu0 %4614
      %4616 = vrot.lane.b32.xlu0 %v3819, 24
      %v4617 = vpop.permute.xlu0 %4616
      %4618 = vrot.lane.b32.xlu0 %v3820, 24
      %v4619 = vpop.permute.xlu0 %4618
      %4620 = vrot.lane.b32.xlu0 %v3821, 24
      %v4621 = vpop.permute.xlu0 %4620
      %4686 = vrot.lane.b32.xlu0 %v3822, 28
      %v4687 = vpop.permute.xlu0 %4686
      %4688 = vrot.lane.b32.xlu0 %v3823, 28
      %v4689 = vpop.permute.xlu0 %4688
      %4690 = vrot.lane.b32.xlu0 %v3824, 28
      %v4691 = vpop.permute.xlu0 %4690
      %4692 = vrot.lane.b32.xlu0 %v3825, 28
      %v4693 = vpop.permute.xlu0 %4692
      %4694 = vrot.lane.b32.xlu0 %v3826, 28
      %v4695 = vpop.permute.xlu0 %4694
      %4696 = vrot.lane.b32.xlu0 %v3827, 28
      %v4697 = vpop.permute.xlu0 %4696
      %4698 = vrot.lane.b32.xlu0 %v3828, 28
      %v4699 = vpop.permute.xlu0 %4698
      %4700 = vrot.lane.b32.xlu0 %v3829, 28
      %v4701 = vpop.permute.xlu0 %4700
      %4702 = vrot.lane.b32.xlu0 %v3830, 28
      %v4703 = vpop.permute.xlu0 %4702
      %4704 = vrot.lane.b32.xlu0 %v3831, 28
      %v4705 = vpop.permute.xlu0 %4704
      %4706 = vrot.lane.b32.xlu0 %v3832, 28
      %v4707 = vpop.permute.xlu0 %4706
      %4708 = vrot.lane.b32.xlu0 %v3833, 28
      %v4709 = vpop.permute.xlu0 %4708
      %4710 = vrot.lane.b32.xlu0 %v3834, 28
      %v4711 = vpop.permute.xlu0 %4710
      %4712 = vrot.lane.b32.xlu0 %v3835, 28
      %v4713 = vpop.permute.xlu0 %4712
      %4714 = vrot.lane.b32.xlu0 %v3836, 28
      %v4715 = vpop.permute.xlu0 %4714
      %4716 = vrot.lane.b32.xlu0 %v3837, 28
      %v4717 = vpop.permute.xlu0 %4716
      %4718 = vrot.lane.b32.xlu0 %v3838, 28
      %v4719 = vpop.permute.xlu0 %4718
      %4720 = vrot.lane.b32.xlu0 %v3839, 28
      %v4721 = vpop.permute.xlu0 %4720
      %4722 = vrot.lane.b32.xlu0 %v3840, 28
      %v4723 = vpop.permute.xlu0 %4722
      %4724 = vrot.lane.b32.xlu0 %v3841, 28
      %v4725 = vpop.permute.xlu0 %4724
      %4726 = vrot.lane.b32.xlu0 %v3842, 28
      %v4727 = vpop.permute.xlu0 %4726
      %4728 = vrot.lane.b32.xlu0 %v3843, 28
      %v4729 = vpop.permute.xlu0 %4728
      %4730 = vrot.lane.b32.xlu0 %v3844, 28
      %v4731 = vpop.permute.xlu0 %4730
      %4732 = vrot.lane.b32.xlu0 %v3845, 28
      %v4733 = vpop.permute.xlu0 %4732
      %4734 = vrot.lane.b32.xlu0 %v3846, 28
      %v4735 = vpop.permute.xlu0 %4734
      %4736 = vrot.lane.b32.xlu0 %v3847, 28
      %v4737 = vpop.permute.xlu0 %4736
      %4738 = vrot.lane.b32.xlu0 %v3848, 28
      %v4739 = vpop.permute.xlu0 %4738
      %4740 = vrot.lane.b32.xlu0 %v3849, 28
      %v4741 = vpop.permute.xlu0 %4740
      %4742 = vrot.lane.b32.xlu0 %v3850, 28
      %v4743 = vpop.permute.xlu0 %4742
      %4744 = vrot.lane.b32.xlu0 %v3851, 28
      %v4745 = vpop.permute.xlu0 %4744
      %4746 = vrot.lane.b32.xlu0 %v3852, 28
      %v4747 = vpop.permute.xlu0 %4746
      %4748 = vrot.lane.b32.xlu0 %v3853, 28
      %v4749 = vpop.permute.xlu0 %4748
      %4814 = vrot.lane.b32.xlu0 %v3854, 32
      %v4815 = vpop.permute.xlu0 %4814
      %4816 = vrot.lane.b32.xlu0 %v3855, 32
      %v4817 = vpop.permute.xlu0 %4816
      %4818 = vrot.lane.b32.xlu0 %v3856, 32
      %v4819 = vpop.permute.xlu0 %4818
      %4820 = vrot.lane.b32.xlu0 %v3857, 32
      %v4821 = vpop.permute.xlu0 %4820
      %4822 = vrot.lane.b32.xlu0 %v3858, 32
      %v4823 = vpop.permute.xlu0 %4822
      %4824 = vrot.lane.b32.xlu0 %v3859, 32
      %v4825 = vpop.permute.xlu0 %4824
      %4826 = vrot.lane.b32.xlu0 %v3860, 32
      %v4827 = vpop.permute.xlu0 %4826
      %4828 = vrot.lane.b32.xlu0 %v3861, 32
      %v4829 = vpop.permute.xlu0 %4828
      %4830 = vrot.lane.b32.xlu0 %v3862, 32
      %v4831 = vpop.permute.xlu0 %4830
      %4832 = vrot.lane.b32.xlu0 %v3863, 32
      %v4833 = vpop.permute.xlu0 %4832
      %4834 = vrot.lane.b32.xlu0 %v3864, 32
      %v4835 = vpop.permute.xlu0 %4834
      %4836 = vrot.lane.b32.xlu0 %v3865, 32
      %v4837 = vpop.permute.xlu0 %4836
      %4838 = vrot.lane.b32.xlu0 %v3866, 32
      %v4839 = vpop.permute.xlu0 %4838
      %4840 = vrot.lane.b32.xlu0 %v3867, 32
      %v4841 = vpop.permute.xlu0 %4840
      %4842 = vrot.lane.b32.xlu0 %v3868, 32
      %v4843 = vpop.permute.xlu0 %4842
      %4844 = vrot.lane.b32.xlu0 %v3869, 32
      %v4845 = vpop.permute.xlu0 %4844
      %4846 = vrot.lane.b32.xlu0 %v3870, 32
      %v4847 = vpop.permute.xlu0 %4846
      %4848 = vrot.lane.b32.xlu0 %v3871, 32
      %v4849 = vpop.permute.xlu0 %4848
      %4850 = vrot.lane.b32.xlu0 %v3872, 32
      %v4851 = vpop.permute.xlu0 %4850
      %4852 = vrot.lane.b32.xlu0 %v3873, 32
      %v4853 = vpop.permute.xlu0 %4852
      %4854 = vrot.lane.b32.xlu0 %v3874, 32
      %v4855 = vpop.permute.xlu0 %4854
      %4856 = vrot.lane.b32.xlu0 %v3875, 32
      %v4857 = vpop.permute.xlu0 %4856
      %4858 = vrot.lane.b32.xlu0 %v3876, 32
      %v4859 = vpop.permute.xlu0 %4858
      %4860 = vrot.lane.b32.xlu0 %v3877, 32
      %v4861 = vpop.permute.xlu0 %4860
      %4862 = vrot.lane.b32.xlu0 %v3878, 32
      %v4863 = vpop.permute.xlu0 %4862
      %4864 = vrot.lane.b32.xlu0 %v3879, 32
      %v4865 = vpop.permute.xlu0 %4864
      %4866 = vrot.lane.b32.xlu0 %v3880, 32
      %v4867 = vpop.permute.xlu0 %4866
      %4868 = vrot.lane.b32.xlu0 %v3881, 32
      %v4869 = vpop.permute.xlu0 %4868
      %4870 = vrot.lane.b32.xlu0 %v3882, 32
      %v4871 = vpop.permute.xlu0 %4870
      %4872 = vrot.lane.b32.xlu0 %v3883, 32
      %v4873 = vpop.permute.xlu0 %4872
      %4874 = vrot.lane.b32.xlu0 %v3884, 32
      %v4875 = vpop.permute.xlu0 %4874
      %4876 = vrot.lane.b32.xlu0 %v3885, 32
      %v4877 = vpop.permute.xlu0 %4876
      %v4910 = vsel %vm366, %v3597, %v3919
      %v4911 = vsel %vm366, %v3598, %v3921
      %v4912 = vsel %vm366, %v3599, %v3923
      %v4913 = vsel %vm366, %v3600, %v3925
      %v4914 = vsel %vm366, %v3601, %v3927
      %v4915 = vsel %vm366, %v3602, %v3929
      %v4916 = vsel %vm366, %v3603, %v3931
      %v4917 = vsel %vm366, %v3604, %v3933
      %v4918 = vsel %vm366, %v3605, %v3935
      %v4919 = vsel %vm366, %v3606, %v3937
      %v4920 = vsel %vm366, %v3607, %v3939
      %v4921 = vsel %vm366, %v3608, %v3941
      %v4922 = vsel %vm366, %v3609, %v3943
      %v4923 = vsel %vm366, %v3610, %v3945
      %v4924 = vsel %vm366, %v3611, %v3947
      %v4925 = vsel %vm366, %v3612, %v3949
      %v4926 = vsel %vm366, %v3613, %v3951
      %v4927 = vsel %vm366, %v3614, %v3953
      %v4928 = vsel %vm366, %v3615, %v3955
      %v4929 = vsel %vm366, %v3616, %v3957
      %v4930 = vsel %vm366, %v3617, %v3959
      %v4931 = vsel %vm366, %v3618, %v3961
      %v4932 = vsel %vm366, %v3619, %v3963
      %v4933 = vsel %vm366, %v3620, %v3965
      %v4934 = vsel %vm366, %v3621, %v3967
      %v4935 = vsel %vm366, %v3622, %v3969
      %v4936 = vsel %vm366, %v3623, %v3971
      %v4937 = vsel %vm366, %v3624, %v3973
      %v4938 = vsel %vm366, %v3625, %v3975
      %v4939 = vsel %vm366, %v3626, %v3977
      %v4940 = vsel %vm366, %v3627, %v3979
      %v4941 = vsel %vm366, %v3628, %v3981
      %vm4942 = vcmask 64512
      %v4943 = vsel %vm4942, %v4910, %v4047
      %v4944 = vsel %vm4942, %v4911, %v4049
      %v4945 = vsel %vm4942, %v4912, %v4051
      %v4946 = vsel %vm4942, %v4913, %v4053
      %v4947 = vsel %vm4942, %v4914, %v4055
      %v4948 = vsel %vm4942, %v4915, %v4057
      %v4949 = vsel %vm4942, %v4916, %v4059
      %v4950 = vsel %vm4942, %v4917, %v4061
      %v4951 = vsel %vm4942, %v4918, %v4063
      %v4952 = vsel %vm4942, %v4919, %v4065
      %v4953 = vsel %vm4942, %v4920, %v4067
      %v4954 = vsel %vm4942, %v4921, %v4069
      %v4955 = vsel %vm4942, %v4922, %v4071
      %v4956 = vsel %vm4942, %v4923, %v4073
      %v4957 = vsel %vm4942, %v4924, %v4075
      %v4958 = vsel %vm4942, %v4925, %v4077
      %v4959 = vsel %vm4942, %v4926, %v4079
      %v4960 = vsel %vm4942, %v4927, %v4081
      %v4961 = vsel %vm4942, %v4928, %v4083
      %v4962 = vsel %vm4942, %v4929, %v4085
      %v4963 = vsel %vm4942, %v4930, %v4087
      %v4964 = vsel %vm4942, %v4931, %v4089
      %v4965 = vsel %vm4942, %v4932, %v4091
      %v4966 = vsel %vm4942, %v4933, %v4093
      %v4967 = vsel %vm4942, %v4934, %v4095
      %v4968 = vsel %vm4942, %v4935, %v4097
      %v4969 = vsel %vm4942, %v4936, %v4099
      %v4970 = vsel %vm4942, %v4937, %v4101
      %v4971 = vsel %vm4942, %v4938, %v4103
      %v4972 = vsel %vm4942, %v4939, %v4105
      %v4973 = vsel %vm4942, %v4940, %v4107
      %v4974 = vsel %vm4942, %v4941, %v4109
      %vm4975 = vcmask 97280
      %v4976 = vsel %vm4975, %v4943, %v4175
      %v4977 = vsel %vm4975, %v4944, %v4177
      %v4978 = vsel %vm4975, %v4945, %v4179
      %v4979 = vsel %vm4975, %v4946, %v4181
      %v4980 = vsel %vm4975, %v4947, %v4183
      %v4981 = vsel %vm4975, %v4948, %v4185
      %v4982 = vsel %vm4975, %v4949, %v4187
      %v4983 = vsel %vm4975, %v4950, %v4189
      %v4984 = vsel %vm4975, %v4951, %v4191
      %v4985 = vsel %vm4975, %v4952, %v4193
      %v4986 = vsel %vm4975, %v4953, %v4195
      %v4987 = vsel %vm4975, %v4954, %v4197
      %v4988 = vsel %vm4975, %v4955, %v4199
      %v4989 = vsel %vm4975, %v4956, %v4201
      %v4990 = vsel %vm4975, %v4957, %v4203
      %v4991 = vsel %vm4975, %v4958, %v4205
      %v4992 = vsel %vm4975, %v4959, %v4207
      %v4993 = vsel %vm4975, %v4960, %v4209
      %v4994 = vsel %vm4975, %v4961, %v4211
      %v4995 = vsel %vm4975, %v4962, %v4213
      %v4996 = vsel %vm4975, %v4963, %v4215
      %v4997 = vsel %vm4975, %v4964, %v4217
      %v4998 = vsel %vm4975, %v4965, %v4219
      %v4999 = vsel %vm4975, %v4966, %v4221
      %v5000 = vsel %vm4975, %v4967, %v4223
      %v5001 = vsel %vm4975, %v4968, %v4225
      %v5002 = vsel %vm4975, %v4969, %v4227
      %v5003 = vsel %vm4975, %v4970, %v4229
      %v5004 = vsel %vm4975, %v4971, %v4231
      %v5005 = vsel %vm4975, %v4972, %v4233
      %v5006 = vsel %vm4975, %v4973, %v4235
      %v5007 = vsel %vm4975, %v4974, %v4237
      %vm5008 = vcmask 130048
      %v5009 = vsel %vm5008, %v4976, %v4303
      %v5010 = vsel %vm5008, %v4977, %v4305
      %v5011 = vsel %vm5008, %v4978, %v4307
      %v5012 = vsel %vm5008, %v4979, %v4309
      %v5013 = vsel %vm5008, %v4980, %v4311
      %v5014 = vsel %vm5008, %v4981, %v4313
      %v5015 = vsel %vm5008, %v4982, %v4315
      %v5016 = vsel %vm5008, %v4983, %v4317
      %v5017 = vsel %vm5008, %v4984, %v4319
      %v5018 = vsel %vm5008, %v4985, %v4321
      %v5019 = vsel %vm5008, %v4986, %v4323
      %v5020 = vsel %vm5008, %v4987, %v4325
      %v5021 = vsel %vm5008, %v4988, %v4327
      %v5022 = vsel %vm5008, %v4989, %v4329
      %v5023 = vsel %vm5008, %v4990, %v4331
      %v5024 = vsel %vm5008, %v4991, %v4333
      %v5025 = vsel %vm5008, %v4992, %v4335
      %v5026 = vsel %vm5008, %v4993, %v4337
      %v5027 = vsel %vm5008, %v4994, %v4339
      %v5028 = vsel %vm5008, %v4995, %v4341
      %v5029 = vsel %vm5008, %v4996, %v4343
      %v5030 = vsel %vm5008, %v4997, %v4345
      %v5031 = vsel %vm5008, %v4998, %v4347
      %v5032 = vsel %vm5008, %v4999, %v4349
      %v5033 = vsel %vm5008, %v5000, %v4351
      %v5034 = vsel %vm5008, %v5001, %v4353
      %v5035 = vsel %vm5008, %v5002, %v4355
      %v5036 = vsel %vm5008, %v5003, %v4357
      %v5037 = vsel %vm5008, %v5004, %v4359
      %v5038 = vsel %vm5008, %v5005, %v4361
      %v5039 = vsel %vm5008, %v5006, %v4363
      %v5040 = vsel %vm5008, %v5007, %v4365
      %vm5041 = vcmask 162816
      %v5042 = vsel %vm5041, %v5009, %v4431
      %v5043 = vsel %vm5041, %v5010, %v4433
      %v5044 = vsel %vm5041, %v5011, %v4435
      %v5045 = vsel %vm5041, %v5012, %v4437
      %v5046 = vsel %vm5041, %v5013, %v4439
      %v5047 = vsel %vm5041, %v5014, %v4441
      %v5048 = vsel %vm5041, %v5015, %v4443
      %v5049 = vsel %vm5041, %v5016, %v4445
      %v5050 = vsel %vm5041, %v5017, %v4447
      %v5051 = vsel %vm5041, %v5018, %v4449
      %v5052 = vsel %vm5041, %v5019, %v4451
      %v5053 = vsel %vm5041, %v5020, %v4453
      %v5054 = vsel %vm5041, %v5021, %v4455
      %v5055 = vsel %vm5041, %v5022, %v4457
      %v5056 = vsel %vm5041, %v5023, %v4459
      %v5057 = vsel %vm5041, %v5024, %v4461
      %v5058 = vsel %vm5041, %v5025, %v4463
      %v5059 = vsel %vm5041, %v5026, %v4465
      %v5060 = vsel %vm5041, %v5027, %v4467
      %v5061 = vsel %vm5041, %v5028, %v4469
      %v5062 = vsel %vm5041, %v5029, %v4471
      %v5063 = vsel %vm5041, %v5030, %v4473
      %v5064 = vsel %vm5041, %v5031, %v4475
      %v5065 = vsel %vm5041, %v5032, %v4477
      %v5066 = vsel %vm5041, %v5033, %v4479
      %v5067 = vsel %vm5041, %v5034, %v4481
      %v5068 = vsel %vm5041, %v5035, %v4483
      %v5069 = vsel %vm5041, %v5036, %v4485
      %v5070 = vsel %vm5041, %v5037, %v4487
      %v5071 = vsel %vm5041, %v5038, %v4489
      %v5072 = vsel %vm5041, %v5039, %v4491
      %v5073 = vsel %vm5041, %v5040, %v4493
      %vm5074 = vcmask 195584
      %v5075 = vsel %vm5074, %v5042, %v4559
      %v5076 = vsel %vm5074, %v5043, %v4561
      %v5077 = vsel %vm5074, %v5044, %v4563
      %v5078 = vsel %vm5074, %v5045, %v4565
      %v5079 = vsel %vm5074, %v5046, %v4567
      %v5080 = vsel %vm5074, %v5047, %v4569
      %v5081 = vsel %vm5074, %v5048, %v4571
      %v5082 = vsel %vm5074, %v5049, %v4573
      %v5083 = vsel %vm5074, %v5050, %v4575
      %v5084 = vsel %vm5074, %v5051, %v4577
      %v5085 = vsel %vm5074, %v5052, %v4579
      %v5086 = vsel %vm5074, %v5053, %v4581
      %v5087 = vsel %vm5074, %v5054, %v4583
      %v5088 = vsel %vm5074, %v5055, %v4585
      %v5089 = vsel %vm5074, %v5056, %v4587
      %v5090 = vsel %vm5074, %v5057, %v4589
      %v5091 = vsel %vm5074, %v5058, %v4591
      %v5092 = vsel %vm5074, %v5059, %v4593
      %v5093 = vsel %vm5074, %v5060, %v4595
      %v5094 = vsel %vm5074, %v5061, %v4597
      %v5095 = vsel %vm5074, %v5062, %v4599
      %v5096 = vsel %vm5074, %v5063, %v4601
      %v5097 = vsel %vm5074, %v5064, %v4603
      %v5098 = vsel %vm5074, %v5065, %v4605
      %v5099 = vsel %vm5074, %v5066, %v4607
      %v5100 = vsel %vm5074, %v5067, %v4609
      %v5101 = vsel %vm5074, %v5068, %v4611
      %v5102 = vsel %vm5074, %v5069, %v4613
      %v5103 = vsel %vm5074, %v5070, %v4615
      %v5104 = vsel %vm5074, %v5071, %v4617
      %v5105 = vsel %vm5074, %v5072, %v4619
      %v5106 = vsel %vm5074, %v5073, %v4621
      %vm5107 = vcmask 228352
      %v5108 = vsel %vm5107, %v5075, %v4687
      %v5109 = vsel %vm5107, %v5076, %v4689
      %v5110 = vsel %vm5107, %v5077, %v4691
      %v5111 = vsel %vm5107, %v5078, %v4693
      %v5112 = vsel %vm5107, %v5079, %v4695
      %v5113 = vsel %vm5107, %v5080, %v4697
      %v5114 = vsel %vm5107, %v5081, %v4699
      %v5115 = vsel %vm5107, %v5082, %v4701
      %v5116 = vsel %vm5107, %v5083, %v4703
      %v5117 = vsel %vm5107, %v5084, %v4705
      %v5118 = vsel %vm5107, %v5085, %v4707
      %v5119 = vsel %vm5107, %v5086, %v4709
      %v5120 = vsel %vm5107, %v5087, %v4711
      %v5121 = vsel %vm5107, %v5088, %v4713
      %v5122 = vsel %vm5107, %v5089, %v4715
      %v5123 = vsel %vm5107, %v5090, %v4717
      %v5124 = vsel %vm5107, %v5091, %v4719
      %v5125 = vsel %vm5107, %v5092, %v4721
      %v5126 = vsel %vm5107, %v5093, %v4723
      %v5127 = vsel %vm5107, %v5094, %v4725
      %v5128 = vsel %vm5107, %v5095, %v4727
      %v5129 = vsel %vm5107, %v5096, %v4729
      %v5130 = vsel %vm5107, %v5097, %v4731
      %v5131 = vsel %vm5107, %v5098, %v4733
      %v5132 = vsel %vm5107, %v5099, %v4735
      %v5133 = vsel %vm5107, %v5100, %v4737
      %v5134 = vsel %vm5107, %v5101, %v4739
      %v5135 = vsel %vm5107, %v5102, %v4741
      %v5136 = vsel %vm5107, %v5103, %v4743
      %v5137 = vsel %vm5107, %v5104, %v4745
      %v5138 = vsel %vm5107, %v5105, %v4747
      %v5139 = vsel %vm5107, %v5106, %v4749
      %vm5140 = vcmask 261120
      %v5141 = vsel %vm5140, %v5108, %v4815
      %v5142 = vsel %vm5140, %v5109, %v4817
      %v5143 = vsel %vm5140, %v5110, %v4819
      %v5144 = vsel %vm5140, %v5111, %v4821
      %v5145 = vsel %vm5140, %v5112, %v4823
      %v5146 = vsel %vm5140, %v5113, %v4825
      %v5147 = vsel %vm5140, %v5114, %v4827
      %v5148 = vsel %vm5140, %v5115, %v4829
      %v5149 = vsel %vm5140, %v5116, %v4831
      %v5150 = vsel %vm5140, %v5117, %v4833
      %v5151 = vsel %vm5140, %v5118, %v4835
      %v5152 = vsel %vm5140, %v5119, %v4837
      %v5153 = vsel %vm5140, %v5120, %v4839
      %v5154 = vsel %vm5140, %v5121, %v4841
      %v5155 = vsel %vm5140, %v5122, %v4843
      %v5156 = vsel %vm5140, %v5123, %v4845
      %v5157 = vsel %vm5140, %v5124, %v4847
      %v5158 = vsel %vm5140, %v5125, %v4849
      %v5159 = vsel %vm5140, %v5126, %v4851
      %v5160 = vsel %vm5140, %v5127, %v4853
      %v5161 = vsel %vm5140, %v5128, %v4855
      %v5162 = vsel %vm5140, %v5129, %v4857
      %v5163 = vsel %vm5140, %v5130, %v4859
      %v5164 = vsel %vm5140, %v5131, %v4861
      %v5165 = vsel %vm5140, %v5132, %v4863
      %v5166 = vsel %vm5140, %v5133, %v4865
      %v5167 = vsel %vm5140, %v5134, %v4867
      %v5168 = vsel %vm5140, %v5135, %v4869
      %v5169 = vsel %vm5140, %v5136, %v4871
      %v5170 = vsel %vm5140, %v5137, %v4873
      %v5171 = vsel %vm5140, %v5138, %v4875
      %v5172 = vsel %vm5140, %v5139, %v4877
      %v5173 = vld [vmem:[%s4] sm:$0xff]
      %v5174 = vld [vmem:[%s4 + $0x8] sm:$0xff]
      %v5175 = vld [vmem:[%s4 + $0x10] sm:$0xff]
      %v5176 = vld [vmem:[%s4 + $0x18] sm:$0xff]
      %v5177 = vld [vmem:[%s4 + $0x20] sm:$0xf]
      %v5178 = vld [vmem:[#allocation3 + $0x7] sm:$0xff]
      %v5179 = vld [vmem:[#allocation3 + $0xf] sm:$0xff]
      %v5180 = vld [vmem:[#allocation3 + $0x27] sm:$0xff]
      %v5181 = vld [vmem:[#allocation3 + $0x2f] sm:$0xff]
      %v5182 = vld [vmem:[#allocation3 + $0x47] sm:$0xff]
      %v5183 = vld [vmem:[#allocation3 + $0x4f] sm:$0xff]
      %v5184 = vld [vmem:[#allocation3 + $0x67] sm:$0xff]
      %v5185 = vld [vmem:[#allocation3 + $0x6f] sm:$0xff]
      %v5186 = vld [vmem:[#allocation3 + $0x87] sm:$0xff]
      %v5187 = vld [vmem:[#allocation3 + $0x8f] sm:$0xff]
      %v5188 = vld [vmem:[#allocation3 + $0xa7] sm:$0xff]
      %v5189 = vld [vmem:[#allocation3 + $0xaf] sm:$0xff]
      %v5190 = vld [vmem:[#allocation3 + $0xc7] sm:$0xff]
      %v5191 = vld [vmem:[#allocation3 + $0xcf] sm:$0xff]
      %v5192 = vld [vmem:[#allocation3 + $0xe7] sm:$0xff]
      %v5193 = vld [vmem:[#allocation3 + $0xef] sm:$0xff]
      %v5194 = vld [vmem:[#allocation3 + $0x107] sm:$0xff]
      %v5195 = vld [vmem:[#allocation3 + $0x10f] sm:$0xff]
      %v5196 = vld [vmem:[#allocation3 + $0x127] sm:$0xff]
      %v5197 = vld [vmem:[#allocation3 + $0x12f] sm:$0xff]
      %v5198 = vld [vmem:[#allocation3 + $0x147] sm:$0xff]
      %v5199 = vld [vmem:[#allocation3 + $0x14f] sm:$0xff]
      %v5200 = vld [vmem:[#allocation3 + $0x167] sm:$0xff]
      %v5201 = vld [vmem:[#allocation3 + $0x16f] sm:$0xff]
      %v5202 = vld [vmem:[#allocation3 + $0x187] sm:$0xff]
      %v5203 = vld [vmem:[#allocation3 + $0x18f] sm:$0xff]
      %v5204 = vld [vmem:[#allocation3 + $0x1a7] sm:$0xff]
      %v5205 = vld [vmem:[#allocation3 + $0x1af] sm:$0xff]
      %v5206 = vld [vmem:[#allocation3 + $0x1c7] sm:$0xff]
      %v5207 = vld [vmem:[#allocation3 + $0x1cf] sm:$0xff]
      %v5208 = vld [vmem:[#allocation3 + $0x1e7] sm:$0xff]
      %v5209 = vld [vmem:[#allocation3 + $0x1ef] sm:$0xff]
      %v5210 = vld [vmem:[#allocation3 + $0x8] sm:$0xff]
      %v5211 = vld [vmem:[#allocation3 + $0x10] sm:$0xff]
      %v5212 = vld [vmem:[#allocation3 + $0x28] sm:$0xff]
      %v5213 = vld [vmem:[#allocation3 + $0x30] sm:$0xff]
      %v5214 = vld [vmem:[#allocation3 + $0x48] sm:$0xff]
      %v5215 = vld [vmem:[#allocation3 + $0x50] sm:$0xff]
      %v5216 = vld [vmem:[#allocation3 + $0x68] sm:$0xff]
      %v5217 = vld [vmem:[#allocation3 + $0x70] sm:$0xff]
      %v5218 = vld [vmem:[#allocation3 + $0x88] sm:$0xff]
      %v5219 = vld [vmem:[#allocation3 + $0x90] sm:$0xff]
      %v5220 = vld [vmem:[#allocation3 + $0xa8] sm:$0xff]
      %v5221 = vld [vmem:[#allocation3 + $0xb0] sm:$0xff]
      %v5222 = vld [vmem:[#allocation3 + $0xc8] sm:$0xff]
      %v5223 = vld [vmem:[#allocation3 + $0xd0] sm:$0xff]
      %v5224 = vld [vmem:[#allocation3 + $0xe8] sm:$0xff]
      %v5225 = vld [vmem:[#allocation3 + $0xf0] sm:$0xff]
      %v5226 = vld [vmem:[#allocation3 + $0x108] sm:$0xff]
      %v5227 = vld [vmem:[#allocation3 + $0x110] sm:$0xff]
      %v5228 = vld [vmem:[#allocation3 + $0x128] sm:$0xff]
      %v5229 = vld [vmem:[#allocation3 + $0x130] sm:$0xff]
      %v5230 = vld [vmem:[#allocation3 + $0x148] sm:$0xff]
      %v5231 = vld [vmem:[#allocation3 + $0x150] sm:$0xff]
      %v5232 = vld [vmem:[#allocation3 + $0x168] sm:$0xff]
      %v5233 = vld [vmem:[#allocation3 + $0x170] sm:$0xff]
      %v5234 = vld [vmem:[#allocation3 + $0x188] sm:$0xff]
      %v5235 = vld [vmem:[#allocation3 + $0x190] sm:$0xff]
      %v5236 = vld [vmem:[#allocation3 + $0x1a8] sm:$0xff]
      %v5237 = vld [vmem:[#allocation3 + $0x1b0] sm:$0xff]
      %v5238 = vld [vmem:[#allocation3 + $0x1c8] sm:$0xff]
      %v5239 = vld [vmem:[#allocation3 + $0x1d0] sm:$0xff]
      %v5240 = vld [vmem:[#allocation3 + $0x1e8] sm:$0xff]
      %v5241 = vld [vmem:[#allocation3 + $0x1f0] sm:$0xff]
      %v5242 = vld [vmem:[#allocation3 + $0x9] sm:$0xff]
      %v5243 = vld [vmem:[#allocation3 + $0x11] sm:$0xff]
      %v5244 = vld [vmem:[#allocation3 + $0x29] sm:$0xff]
      %v5245 = vld [vmem:[#allocation3 + $0x31] sm:$0xff]
      %v5246 = vld [vmem:[#allocation3 + $0x49] sm:$0xff]
      %v5247 = vld [vmem:[#allocation3 + $0x51] sm:$0xff]
      %v5248 = vld [vmem:[#allocation3 + $0x69] sm:$0xff]
      %v5249 = vld [vmem:[#allocation3 + $0x71] sm:$0xff]
      %v5250 = vld [vmem:[#allocation3 + $0x89] sm:$0xff]
      %v5251 = vld [vmem:[#allocation3 + $0x91] sm:$0xff]
      %v5252 = vld [vmem:[#allocation3 + $0xa9] sm:$0xff]
      %v5253 = vld [vmem:[#allocation3 + $0xb1] sm:$0xff]
      %v5254 = vld [vmem:[#allocation3 + $0xc9] sm:$0xff]
      %v5255 = vld [vmem:[#allocation3 + $0xd1] sm:$0xff]
      %v5256 = vld [vmem:[#allocation3 + $0xe9] sm:$0xff]
      %v5257 = vld [vmem:[#allocation3 + $0xf1] sm:$0xff]
      %v5258 = vld [vmem:[#allocation3 + $0x109] sm:$0xff]
      %v5259 = vld [vmem:[#allocation3 + $0x111] sm:$0xff]
      %v5260 = vld [vmem:[#allocation3 + $0x129] sm:$0xff]
      %v5261 = vld [vmem:[#allocation3 + $0x131] sm:$0xff]
      %v5262 = vld [vmem:[#allocation3 + $0x149] sm:$0xff]
      %v5263 = vld [vmem:[#allocation3 + $0x151] sm:$0xff]
      %v5264 = vld [vmem:[#allocation3 + $0x169] sm:$0xff]
      %v5265 = vld [vmem:[#allocation3 + $0x171] sm:$0xff]
      %v5266 = vld [vmem:[#allocation3 + $0x189] sm:$0xff]
      %v5267 = vld [vmem:[#allocation3 + $0x191] sm:$0xff]
      %v5268 = vld [vmem:[#allocation3 + $0x1a9] sm:$0xff]
      %v5269 = vld [vmem:[#allocation3 + $0x1b1] sm:$0xff]
      %v5270 = vld [vmem:[#allocation3 + $0x1c9] sm:$0xff]
      %v5271 = vld [vmem:[#allocation3 + $0x1d1] sm:$0xff]
      %v5272 = vld [vmem:[#allocation3 + $0x1e9] sm:$0xff]
      %v5273 = vld [vmem:[#allocation3 + $0x1f1] sm:$0xff]
      %v5274 = vld [vmem:[%s3564 + $0x7] sm:$0xff]
      %v5275 = vld [vmem:[%s3564 + $0xf] sm:$0xff]
      %v5276 = vld [vmem:[%s3564 + $0x27] sm:$0xff]
      %v5277 = vld [vmem:[%s3564 + $0x2f] sm:$0xff]
      %v5278 = vld [vmem:[%s3564 + $0x47] sm:$0xff]
      %v5279 = vld [vmem:[%s3564 + $0x4f] sm:$0xff]
      %v5280 = vld [vmem:[%s3564 + $0x67] sm:$0xff]
      %v5281 = vld [vmem:[%s3564 + $0x6f] sm:$0xff]
      %v5282 = vld [vmem:[%s3564 + $0x87] sm:$0xff]
      %v5283 = vld [vmem:[%s3564 + $0x8f] sm:$0xff]
      %v5284 = vld [vmem:[%s3564 + $0xa7] sm:$0xff]
      %v5285 = vld [vmem:[%s3564 + $0xaf] sm:$0xff]
      %v5286 = vld [vmem:[%s3564 + $0xc7] sm:$0xff]
      %v5287 = vld [vmem:[%s3564 + $0xcf] sm:$0xff]
      %v5288 = vld [vmem:[%s3564 + $0xe7] sm:$0xff]
      %v5289 = vld [vmem:[%s3564 + $0xef] sm:$0xff]
      %v5290 = vld [vmem:[%s3564 + $0x107] sm:$0xff]
      %v5291 = vld [vmem:[%s3564 + $0x10f] sm:$0xff]
      %v5292 = vld [vmem:[%s3564 + $0x127] sm:$0xff]
      %v5293 = vld [vmem:[%s3564 + $0x12f] sm:$0xff]
      %v5294 = vld [vmem:[%s3564 + $0x147] sm:$0xff]
      %v5295 = vld [vmem:[%s3564 + $0x14f] sm:$0xff]
      %v5296 = vld [vmem:[%s3564 + $0x167] sm:$0xff]
      %v5297 = vld [vmem:[%s3564 + $0x16f] sm:$0xff]
      %v5298 = vld [vmem:[%s3564 + $0x187] sm:$0xff]
      %v5299 = vld [vmem:[%s3564 + $0x18f] sm:$0xff]
      %v5300 = vld [vmem:[%s3564 + $0x1a7] sm:$0xff]
      %v5301 = vld [vmem:[%s3564 + $0x1af] sm:$0xff]
      %v5302 = vld [vmem:[%s3564 + $0x1c7] sm:$0xff]
      %v5303 = vld [vmem:[%s3564 + $0x1cf] sm:$0xff]
      %v5304 = vld [vmem:[%s3564 + $0x1e7] sm:$0xff]
      %v5305 = vld [vmem:[%s3564 + $0x1ef] sm:$0xff]
      %v5306 = vld [vmem:[%s3564 + $0x8] sm:$0xff]
      %v5307 = vld [vmem:[%s3564 + $0x10] sm:$0xff]
      %v5308 = vld [vmem:[%s3564 + $0x28] sm:$0xff]
      %v5309 = vld [vmem:[%s3564 + $0x30] sm:$0xff]
      %v5310 = vld [vmem:[%s3564 + $0x48] sm:$0xff]
      %v5311 = vld [vmem:[%s3564 + $0x50] sm:$0xff]
      %v5312 = vld [vmem:[%s3564 + $0x68] sm:$0xff]
      %v5313 = vld [vmem:[%s3564 + $0x70] sm:$0xff]
      %v5314 = vld [vmem:[%s3564 + $0x88] sm:$0xff]
      %v5315 = vld [vmem:[%s3564 + $0x90] sm:$0xff]
      %v5316 = vld [vmem:[%s3564 + $0xa8] sm:$0xff]
      %v5317 = vld [vmem:[%s3564 + $0xb0] sm:$0xff]
      %v5318 = vld [vmem:[%s3564 + $0xc8] sm:$0xff]
      %v5319 = vld [vmem:[%s3564 + $0xd0] sm:$0xff]
      %v5320 = vld [vmem:[%s3564 + $0xe8] sm:$0xff]
      %v5321 = vld [vmem:[%s3564 + $0xf0] sm:$0xff]
      %v5322 = vld [vmem:[%s3564 + $0x108] sm:$0xff]
      %v5323 = vld [vmem:[%s3564 + $0x110] sm:$0xff]
      %v5324 = vld [vmem:[%s3564 + $0x128] sm:$0xff]
      %v5325 = vld [vmem:[%s3564 + $0x130] sm:$0xff]
      %v5326 = vld [vmem:[%s3564 + $0x148] sm:$0xff]
      %v5327 = vld [vmem:[%s3564 + $0x150] sm:$0xff]
      %v5328 = vld [vmem:[%s3564 + $0x168] sm:$0xff]
      %v5329 = vld [vmem:[%s3564 + $0x170] sm:$0xff]
      %v5330 = vld [vmem:[%s3564 + $0x188] sm:$0xff]
      %v5331 = vld [vmem:[%s3564 + $0x190] sm:$0xff]
      %v5332 = vld [vmem:[%s3564 + $0x1a8] sm:$0xff]
      %v5333 = vld [vmem:[%s3564 + $0x1b0] sm:$0xff]
      %v5334 = vld [vmem:[%s3564 + $0x1c8] sm:$0xff]
      %v5335 = vld [vmem:[%s3564 + $0x1d0] sm:$0xff]
      %v5336 = vld [vmem:[%s3564 + $0x1e8] sm:$0xff]
      %v5337 = vld [vmem:[%s3564 + $0x1f0] sm:$0xff]
      %v5338 = vld [vmem:[%s3564 + $0x9] sm:$0xff]
      %v5339 = vld [vmem:[%s3564 + $0x11] sm:$0xff]
      %v5340 = vld [vmem:[%s3564 + $0x29] sm:$0xff]
      %v5341 = vld [vmem:[%s3564 + $0x31] sm:$0xff]
      %v5342 = vld [vmem:[%s3564 + $0x49] sm:$0xff]
      %v5343 = vld [vmem:[%s3564 + $0x51] sm:$0xff]
      %v5344 = vld [vmem:[%s3564 + $0x69] sm:$0xff]
      %v5345 = vld [vmem:[%s3564 + $0x71] sm:$0xff]
      %v5346 = vld [vmem:[%s3564 + $0x89] sm:$0xff]
      %v5347 = vld [vmem:[%s3564 + $0x91] sm:$0xff]
      %v5348 = vld [vmem:[%s3564 + $0xa9] sm:$0xff]
      %v5349 = vld [vmem:[%s3564 + $0xb1] sm:$0xff]
      %v5350 = vld [vmem:[%s3564 + $0xc9] sm:$0xff]
      %v5351 = vld [vmem:[%s3564 + $0xd1] sm:$0xff]
      %v5352 = vld [vmem:[%s3564 + $0xe9] sm:$0xff]
      %v5353 = vld [vmem:[%s3564 + $0xf1] sm:$0xff]
      %v5354 = vld [vmem:[%s3564 + $0x109] sm:$0xff]
      %v5355 = vld [vmem:[%s3564 + $0x111] sm:$0xff]
      %v5356 = vld [vmem:[%s3564 + $0x129] sm:$0xff]
      %v5357 = vld [vmem:[%s3564 + $0x131] sm:$0xff]
      %v5358 = vld [vmem:[%s3564 + $0x149] sm:$0xff]
      %v5359 = vld [vmem:[%s3564 + $0x151] sm:$0xff]
      %v5360 = vld [vmem:[%s3564 + $0x169] sm:$0xff]
      %v5361 = vld [vmem:[%s3564 + $0x171] sm:$0xff]
      %v5362 = vld [vmem:[%s3564 + $0x189] sm:$0xff]
      %v5363 = vld [vmem:[%s3564 + $0x191] sm:$0xff]
      %v5364 = vld [vmem:[%s3564 + $0x1a9] sm:$0xff]
      %v5365 = vld [vmem:[%s3564 + $0x1b1] sm:$0xff]
      %v5366 = vld [vmem:[%s3564 + $0x1c9] sm:$0xff]
      %v5367 = vld [vmem:[%s3564 + $0x1d1] sm:$0xff]
      %v5368 = vld [vmem:[%s3564 + $0x1e9] sm:$0xff]
      %v5369 = vld [vmem:[%s3564 + $0x1f1] sm:$0xff]
      %s5370 = scalar_lea.vmem [#allocation3], 64
      %v5371 = vld [vmem:[%s5370 + $0x7] sm:$0xff]
      %v5372 = vld [vmem:[%s5370 + $0xf] sm:$0xff]
      %v5373 = vld [vmem:[%s5370 + $0x27] sm:$0xff]
      %v5374 = vld [vmem:[%s5370 + $0x2f] sm:$0xff]
      %v5375 = vld [vmem:[%s5370 + $0x47] sm:$0xff]
      %v5376 = vld [vmem:[%s5370 + $0x4f] sm:$0xff]
      %v5377 = vld [vmem:[%s5370 + $0x67] sm:$0xff]
      %v5378 = vld [vmem:[%s5370 + $0x6f] sm:$0xff]
      %v5379 = vld [vmem:[%s5370 + $0x87] sm:$0xff]
      %v5380 = vld [vmem:[%s5370 + $0x8f] sm:$0xff]
      %v5381 = vld [vmem:[%s5370 + $0xa7] sm:$0xff]
      %v5382 = vld [vmem:[%s5370 + $0xaf] sm:$0xff]
      %v5383 = vld [vmem:[%s5370 + $0xc7] sm:$0xff]
      %v5384 = vld [vmem:[%s5370 + $0xcf] sm:$0xff]
      %v5385 = vld [vmem:[%s5370 + $0xe7] sm:$0xff]
      %v5386 = vld [vmem:[%s5370 + $0xef] sm:$0xff]
      %v5387 = vld [vmem:[%s5370 + $0x107] sm:$0xff]
      %v5388 = vld [vmem:[%s5370 + $0x10f] sm:$0xff]
      %v5389 = vld [vmem:[%s5370 + $0x127] sm:$0xff]
      %v5390 = vld [vmem:[%s5370 + $0x12f] sm:$0xff]
      %v5391 = vld [vmem:[%s5370 + $0x147] sm:$0xff]
      %v5392 = vld [vmem:[%s5370 + $0x14f] sm:$0xff]
      %v5393 = vld [vmem:[%s5370 + $0x167] sm:$0xff]
      %v5394 = vld [vmem:[%s5370 + $0x16f] sm:$0xff]
      %v5395 = vld [vmem:[%s5370 + $0x187] sm:$0xff]
      %v5396 = vld [vmem:[%s5370 + $0x18f] sm:$0xff]
      %v5397 = vld [vmem:[%s5370 + $0x1a7] sm:$0xff]
      %v5398 = vld [vmem:[%s5370 + $0x1af] sm:$0xff]
      %v5399 = vld [vmem:[%s5370 + $0x1c7] sm:$0xff]
      %v5400 = vld [vmem:[%s5370 + $0x1cf] sm:$0xff]
      %v5401 = vld [vmem:[%s5370 + $0x1e7] sm:$0xff]
      %v5402 = vld [vmem:[%s5370 + $0x1ef] sm:$0xff]
      %v5403 = vld [vmem:[%s5370 + $0x8] sm:$0xff]
      %v5404 = vld [vmem:[%s5370 + $0x10] sm:$0xff]
      %v5405 = vld [vmem:[%s5370 + $0x28] sm:$0xff]
      %v5406 = vld [vmem:[%s5370 + $0x30] sm:$0xff]
      %v5407 = vld [vmem:[%s5370 + $0x48] sm:$0xff]
      %v5408 = vld [vmem:[%s5370 + $0x50] sm:$0xff]
      %v5409 = vld [vmem:[%s5370 + $0x68] sm:$0xff]
      %v5410 = vld [vmem:[%s5370 + $0x70] sm:$0xff]
      %v5411 = vld [vmem:[%s5370 + $0x88] sm:$0xff]
      %v5412 = vld [vmem:[%s5370 + $0x90] sm:$0xff]
      %v5413 = vld [vmem:[%s5370 + $0xa8] sm:$0xff]
      %v5414 = vld [vmem:[%s5370 + $0xb0] sm:$0xff]
      %v5415 = vld [vmem:[%s5370 + $0xc8] sm:$0xff]
      %v5416 = vld [vmem:[%s5370 + $0xd0] sm:$0xff]
      %v5417 = vld [vmem:[%s5370 + $0xe8] sm:$0xff]
      %v5418 = vld [vmem:[%s5370 + $0xf0] sm:$0xff]
      %v5419 = vld [vmem:[%s5370 + $0x108] sm:$0xff]
      %v5420 = vld [vmem:[%s5370 + $0x110] sm:$0xff]
      %v5421 = vld [vmem:[%s5370 + $0x128] sm:$0xff]
      %v5422 = vld [vmem:[%s5370 + $0x130] sm:$0xff]
      %v5423 = vld [vmem:[%s5370 + $0x148] sm:$0xff]
      %v5424 = vld [vmem:[%s5370 + $0x150] sm:$0xff]
      %v5425 = vld [vmem:[%s5370 + $0x168] sm:$0xff]
      %v5426 = vld [vmem:[%s5370 + $0x170] sm:$0xff]
      %v5427 = vld [vmem:[%s5370 + $0x188] sm:$0xff]
      %v5428 = vld [vmem:[%s5370 + $0x190] sm:$0xff]
      %v5429 = vld [vmem:[%s5370 + $0x1a8] sm:$0xff]
      %v5430 = vld [vmem:[%s5370 + $0x1b0] sm:$0xff]
      %v5431 = vld [vmem:[%s5370 + $0x1c8] sm:$0xff]
      %v5432 = vld [vmem:[%s5370 + $0x1d0] sm:$0xff]
      %v5433 = vld [vmem:[%s5370 + $0x1e8] sm:$0xff]
      %v5434 = vld [vmem:[%s5370 + $0x1f0] sm:$0xff]
      %v5435 = vld [vmem:[%s5370 + $0x9] sm:$0xff]
      %v5436 = vld [vmem:[%s5370 + $0x11] sm:$0xff]
      %v5437 = vld [vmem:[%s5370 + $0x29] sm:$0xff]
      %v5438 = vld [vmem:[%s5370 + $0x31] sm:$0xff]
      %v5439 = vld [vmem:[%s5370 + $0x49] sm:$0xff]
      %v5440 = vld [vmem:[%s5370 + $0x51] sm:$0xff]
      %v5441 = vld [vmem:[%s5370 + $0x69] sm:$0xff]
      %v5442 = vld [vmem:[%s5370 + $0x71] sm:$0xff]
      %v5443 = vld [vmem:[%s5370 + $0x89] sm:$0xff]
      %v5444 = vld [vmem:[%s5370 + $0x91] sm:$0xff]
      %v5445 = vld [vmem:[%s5370 + $0xa9] sm:$0xff]
      %v5446 = vld [vmem:[%s5370 + $0xb1] sm:$0xff]
      %v5447 = vld [vmem:[%s5370 + $0xc9] sm:$0xff]
      %v5448 = vld [vmem:[%s5370 + $0xd1] sm:$0xff]
      %v5449 = vld [vmem:[%s5370 + $0xe9] sm:$0xff]
      %v5450 = vld [vmem:[%s5370 + $0xf1] sm:$0xff]
      %v5451 = vld [vmem:[%s5370 + $0x109] sm:$0xff]
      %v5452 = vld [vmem:[%s5370 + $0x111] sm:$0xff]
      %v5453 = vld [vmem:[%s5370 + $0x129] sm:$0xff]
      %v5454 = vld [vmem:[%s5370 + $0x131] sm:$0xff]
      %v5455 = vld [vmem:[%s5370 + $0x149] sm:$0xff]
      %v5456 = vld [vmem:[%s5370 + $0x151] sm:$0xff]
      %v5457 = vld [vmem:[%s5370 + $0x169] sm:$0xff]
      %v5458 = vld [vmem:[%s5370 + $0x171] sm:$0xff]
      %v5459 = vld [vmem:[%s5370 + $0x189] sm:$0xff]
      %v5460 = vld [vmem:[%s5370 + $0x191] sm:$0xff]
      %v5461 = vld [vmem:[%s5370 + $0x1a9] sm:$0xff]
      %v5462 = vld [vmem:[%s5370 + $0x1b1] sm:$0xff]
      %v5463 = vld [vmem:[%s5370 + $0x1c9] sm:$0xff]
      %v5464 = vld [vmem:[%s5370 + $0x1d1] sm:$0xff]
      %v5465 = vld [vmem:[%s5370 + $0x1e9] sm:$0xff]
      %v5466 = vld [vmem:[%s5370 + $0x1f1] sm:$0xff]
      %5499 = vrot.lane.b32.xlu0 %v5210, 4
      %v5500 = vpop.permute.xlu0 %5499
      %5501 = vrot.lane.b32.xlu0 %v5211, 4
      %v5502 = vpop.permute.xlu0 %5501
      %5503 = vrot.lane.b32.xlu0 %v5212, 4
      %v5504 = vpop.permute.xlu0 %5503
      %5505 = vrot.lane.b32.xlu0 %v5213, 4
      %v5506 = vpop.permute.xlu0 %5505
      %5507 = vrot.lane.b32.xlu0 %v5214, 4
      %v5508 = vpop.permute.xlu0 %5507
      %5509 = vrot.lane.b32.xlu0 %v5215, 4
      %v5510 = vpop.permute.xlu0 %5509
      %5511 = vrot.lane.b32.xlu0 %v5216, 4
      %v5512 = vpop.permute.xlu0 %5511
      %5513 = vrot.lane.b32.xlu0 %v5217, 4
      %v5514 = vpop.permute.xlu0 %5513
      %5515 = vrot.lane.b32.xlu0 %v5218, 4
      %v5516 = vpop.permute.xlu0 %5515
      %5517 = vrot.lane.b32.xlu0 %v5219, 4
      %v5518 = vpop.permute.xlu0 %5517
      %5519 = vrot.lane.b32.xlu0 %v5220, 4
      %v5520 = vpop.permute.xlu0 %5519
      %5521 = vrot.lane.b32.xlu0 %v5221, 4
      %v5522 = vpop.permute.xlu0 %5521
      %5523 = vrot.lane.b32.xlu0 %v5222, 4
      %v5524 = vpop.permute.xlu0 %5523
      %5525 = vrot.lane.b32.xlu0 %v5223, 4
      %v5526 = vpop.permute.xlu0 %5525
      %5527 = vrot.lane.b32.xlu0 %v5224, 4
      %v5528 = vpop.permute.xlu0 %5527
      %5529 = vrot.lane.b32.xlu0 %v5225, 4
      %v5530 = vpop.permute.xlu0 %5529
      %5531 = vrot.lane.b32.xlu0 %v5226, 4
      %v5532 = vpop.permute.xlu0 %5531
      %5533 = vrot.lane.b32.xlu0 %v5227, 4
      %v5534 = vpop.permute.xlu0 %5533
      %5535 = vrot.lane.b32.xlu0 %v5228, 4
      %v5536 = vpop.permute.xlu0 %5535
      %5537 = vrot.lane.b32.xlu0 %v5229, 4
      %v5538 = vpop.permute.xlu0 %5537
      %5539 = vrot.lane.b32.xlu0 %v5230, 4
      %v5540 = vpop.permute.xlu0 %5539
      %5541 = vrot.lane.b32.xlu0 %v5231, 4
      %v5542 = vpop.permute.xlu0 %5541
      %5543 = vrot.lane.b32.xlu0 %v5232, 4
      %v5544 = vpop.permute.xlu0 %5543
      %5545 = vrot.lane.b32.xlu0 %v5233, 4
      %v5546 = vpop.permute.xlu0 %5545
      %5547 = vrot.lane.b32.xlu0 %v5234, 4
      %v5548 = vpop.permute.xlu0 %5547
      %5549 = vrot.lane.b32.xlu0 %v5235, 4
      %v5550 = vpop.permute.xlu0 %5549
      %5551 = vrot.lane.b32.xlu0 %v5236, 4
      %v5552 = vpop.permute.xlu0 %5551
      %5553 = vrot.lane.b32.xlu0 %v5237, 4
      %v5554 = vpop.permute.xlu0 %5553
      %5555 = vrot.lane.b32.xlu0 %v5238, 4
      %v5556 = vpop.permute.xlu0 %5555
      %5557 = vrot.lane.b32.xlu0 %v5239, 4
      %v5558 = vpop.permute.xlu0 %5557
      %5559 = vrot.lane.b32.xlu0 %v5240, 4
      %v5560 = vpop.permute.xlu0 %5559
      %5561 = vrot.lane.b32.xlu0 %v5241, 4
      %v5562 = vpop.permute.xlu0 %5561
      %5627 = vrot.lane.b32.xlu0 %v5242, 8
      %v5628 = vpop.permute.xlu0 %5627
      %5629 = vrot.lane.b32.xlu0 %v5243, 8
      %v5630 = vpop.permute.xlu0 %5629
      %5631 = vrot.lane.b32.xlu0 %v5244, 8
      %v5632 = vpop.permute.xlu0 %5631
      %5633 = vrot.lane.b32.xlu0 %v5245, 8
      %v5634 = vpop.permute.xlu0 %5633
      %5635 = vrot.lane.b32.xlu0 %v5246, 8
      %v5636 = vpop.permute.xlu0 %5635
      %5637 = vrot.lane.b32.xlu0 %v5247, 8
      %v5638 = vpop.permute.xlu0 %5637
      %5639 = vrot.lane.b32.xlu0 %v5248, 8
      %v5640 = vpop.permute.xlu0 %5639
      %5641 = vrot.lane.b32.xlu0 %v5249, 8
      %v5642 = vpop.permute.xlu0 %5641
      %5643 = vrot.lane.b32.xlu0 %v5250, 8
      %v5644 = vpop.permute.xlu0 %5643
      %5645 = vrot.lane.b32.xlu0 %v5251, 8
      %v5646 = vpop.permute.xlu0 %5645
      %5647 = vrot.lane.b32.xlu0 %v5252, 8
      %v5648 = vpop.permute.xlu0 %5647
      %5649 = vrot.lane.b32.xlu0 %v5253, 8
      %v5650 = vpop.permute.xlu0 %5649
      %5651 = vrot.lane.b32.xlu0 %v5254, 8
      %v5652 = vpop.permute.xlu0 %5651
      %5653 = vrot.lane.b32.xlu0 %v5255, 8
      %v5654 = vpop.permute.xlu0 %5653
      %5655 = vrot.lane.b32.xlu0 %v5256, 8
      %v5656 = vpop.permute.xlu0 %5655
      %5657 = vrot.lane.b32.xlu0 %v5257, 8
      %v5658 = vpop.permute.xlu0 %5657
      %5659 = vrot.lane.b32.xlu0 %v5258, 8
      %v5660 = vpop.permute.xlu0 %5659
      %5661 = vrot.lane.b32.xlu0 %v5259, 8
      %v5662 = vpop.permute.xlu0 %5661
      %5663 = vrot.lane.b32.xlu0 %v5260, 8
      %v5664 = vpop.permute.xlu0 %5663
      %5665 = vrot.lane.b32.xlu0 %v5261, 8
      %v5666 = vpop.permute.xlu0 %5665
      %5667 = vrot.lane.b32.xlu0 %v5262, 8
      %v5668 = vpop.permute.xlu0 %5667
      %5669 = vrot.lane.b32.xlu0 %v5263, 8
      %v5670 = vpop.permute.xlu0 %5669
      %5671 = vrot.lane.b32.xlu0 %v5264, 8
      %v5672 = vpop.permute.xlu0 %5671
      %5673 = vrot.lane.b32.xlu0 %v5265, 8
      %v5674 = vpop.permute.xlu0 %5673
      %5675 = vrot.lane.b32.xlu0 %v5266, 8
      %v5676 = vpop.permute.xlu0 %5675
      %5677 = vrot.lane.b32.xlu0 %v5267, 8
      %v5678 = vpop.permute.xlu0 %5677
      %5679 = vrot.lane.b32.xlu0 %v5268, 8
      %v5680 = vpop.permute.xlu0 %5679
      %5681 = vrot.lane.b32.xlu0 %v5269, 8
      %v5682 = vpop.permute.xlu0 %5681
      %5683 = vrot.lane.b32.xlu0 %v5270, 8
      %v5684 = vpop.permute.xlu0 %5683
      %5685 = vrot.lane.b32.xlu0 %v5271, 8
      %v5686 = vpop.permute.xlu0 %5685
      %5687 = vrot.lane.b32.xlu0 %v5272, 8
      %v5688 = vpop.permute.xlu0 %5687
      %5689 = vrot.lane.b32.xlu0 %v5273, 8
      %v5690 = vpop.permute.xlu0 %5689
      %5755 = vrot.lane.b32.xlu0 %v5274, 12
      %v5756 = vpop.permute.xlu0 %5755
      %5757 = vrot.lane.b32.xlu0 %v5275, 12
      %v5758 = vpop.permute.xlu0 %5757
      %5759 = vrot.lane.b32.xlu0 %v5276, 12
      %v5760 = vpop.permute.xlu0 %5759
      %5761 = vrot.lane.b32.xlu0 %v5277, 12
      %v5762 = vpop.permute.xlu0 %5761
      %5763 = vrot.lane.b32.xlu0 %v5278, 12
      %v5764 = vpop.permute.xlu0 %5763
      %5765 = vrot.lane.b32.xlu0 %v5279, 12
      %v5766 = vpop.permute.xlu0 %5765
      %5767 = vrot.lane.b32.xlu0 %v5280, 12
      %v5768 = vpop.permute.xlu0 %5767
      %5769 = vrot.lane.b32.xlu0 %v5281, 12
      %v5770 = vpop.permute.xlu0 %5769
      %5771 = vrot.lane.b32.xlu0 %v5282, 12
      %v5772 = vpop.permute.xlu0 %5771
      %5773 = vrot.lane.b32.xlu0 %v5283, 12
      %v5774 = vpop.permute.xlu0 %5773
      %5775 = vrot.lane.b32.xlu0 %v5284, 12
      %v5776 = vpop.permute.xlu0 %5775
      %5777 = vrot.lane.b32.xlu0 %v5285, 12
      %v5778 = vpop.permute.xlu0 %5777
      %5779 = vrot.lane.b32.xlu0 %v5286, 12
      %v5780 = vpop.permute.xlu0 %5779
      %5781 = vrot.lane.b32.xlu0 %v5287, 12
      %v5782 = vpop.permute.xlu0 %5781
      %5783 = vrot.lane.b32.xlu0 %v5288, 12
      %v5784 = vpop.permute.xlu0 %5783
      %5785 = vrot.lane.b32.xlu0 %v5289, 12
      %v5786 = vpop.permute.xlu0 %5785
      %5787 = vrot.lane.b32.xlu0 %v5290, 12
      %v5788 = vpop.permute.xlu0 %5787
      %5789 = vrot.lane.b32.xlu0 %v5291, 12
      %v5790 = vpop.permute.xlu0 %5789
      %5791 = vrot.lane.b32.xlu0 %v5292, 12
      %v5792 = vpop.permute.xlu0 %5791
      %5793 = vrot.lane.b32.xlu0 %v5293, 12
      %v5794 = vpop.permute.xlu0 %5793
      %5795 = vrot.lane.b32.xlu0 %v5294, 12
      %v5796 = vpop.permute.xlu0 %5795
      %5797 = vrot.lane.b32.xlu0 %v5295, 12
      %v5798 = vpop.permute.xlu0 %5797
      %5799 = vrot.lane.b32.xlu0 %v5296, 12
      %v5800 = vpop.permute.xlu0 %5799
      %5801 = vrot.lane.b32.xlu0 %v5297, 12
      %v5802 = vpop.permute.xlu0 %5801
      %5803 = vrot.lane.b32.xlu0 %v5298, 12
      %v5804 = vpop.permute.xlu0 %5803
      %5805 = vrot.lane.b32.xlu0 %v5299, 12
      %v5806 = vpop.permute.xlu0 %5805
      %5807 = vrot.lane.b32.xlu0 %v5300, 12
      %v5808 = vpop.permute.xlu0 %5807
      %5809 = vrot.lane.b32.xlu0 %v5301, 12
      %v5810 = vpop.permute.xlu0 %5809
      %5811 = vrot.lane.b32.xlu0 %v5302, 12
      %v5812 = vpop.permute.xlu0 %5811
      %5813 = vrot.lane.b32.xlu0 %v5303, 12
      %v5814 = vpop.permute.xlu0 %5813
      %5815 = vrot.lane.b32.xlu0 %v5304, 12
      %v5816 = vpop.permute.xlu0 %5815
      %5817 = vrot.lane.b32.xlu0 %v5305, 12
      %v5818 = vpop.permute.xlu0 %5817
      %5883 = vrot.lane.b32.xlu0 %v5306, 16
      %v5884 = vpop.permute.xlu0 %5883
      %5885 = vrot.lane.b32.xlu0 %v5307, 16
      %v5886 = vpop.permute.xlu0 %5885
      %5887 = vrot.lane.b32.xlu0 %v5308, 16
      %v5888 = vpop.permute.xlu0 %5887
      %5889 = vrot.lane.b32.xlu0 %v5309, 16
      %v5890 = vpop.permute.xlu0 %5889
      %5891 = vrot.lane.b32.xlu0 %v5310, 16
      %v5892 = vpop.permute.xlu0 %5891
      %5893 = vrot.lane.b32.xlu0 %v5311, 16
      %v5894 = vpop.permute.xlu0 %5893
      %5895 = vrot.lane.b32.xlu0 %v5312, 16
      %v5896 = vpop.permute.xlu0 %5895
      %5897 = vrot.lane.b32.xlu0 %v5313, 16
      %v5898 = vpop.permute.xlu0 %5897
      %5899 = vrot.lane.b32.xlu0 %v5314, 16
      %v5900 = vpop.permute.xlu0 %5899
      %5901 = vrot.lane.b32.xlu0 %v5315, 16
      %v5902 = vpop.permute.xlu0 %5901
      %5903 = vrot.lane.b32.xlu0 %v5316, 16
      %v5904 = vpop.permute.xlu0 %5903
      %5905 = vrot.lane.b32.xlu0 %v5317, 16
      %v5906 = vpop.permute.xlu0 %5905
      %5907 = vrot.lane.b32.xlu0 %v5318, 16
      %v5908 = vpop.permute.xlu0 %5907
      %5909 = vrot.lane.b32.xlu0 %v5319, 16
      %v5910 = vpop.permute.xlu0 %5909
      %5911 = vrot.lane.b32.xlu0 %v5320, 16
      %v5912 = vpop.permute.xlu0 %5911
      %5913 = vrot.lane.b32.xlu0 %v5321, 16
      %v5914 = vpop.permute.xlu0 %5913
      %5915 = vrot.lane.b32.xlu0 %v5322, 16
      %v5916 = vpop.permute.xlu0 %5915
      %5917 = vrot.lane.b32.xlu0 %v5323, 16
      %v5918 = vpop.permute.xlu0 %5917
      %5919 = vrot.lane.b32.xlu0 %v5324, 16
      %v5920 = vpop.permute.xlu0 %5919
      %5921 = vrot.lane.b32.xlu0 %v5325, 16
      %v5922 = vpop.permute.xlu0 %5921
      %5923 = vrot.lane.b32.xlu0 %v5326, 16
      %v5924 = vpop.permute.xlu0 %5923
      %5925 = vrot.lane.b32.xlu0 %v5327, 16
      %v5926 = vpop.permute.xlu0 %5925
      %5927 = vrot.lane.b32.xlu0 %v5328, 16
      %v5928 = vpop.permute.xlu0 %5927
      %5929 = vrot.lane.b32.xlu0 %v5329, 16
      %v5930 = vpop.permute.xlu0 %5929
      %5931 = vrot.lane.b32.xlu0 %v5330, 16
      %v5932 = vpop.permute.xlu0 %5931
      %5933 = vrot.lane.b32.xlu0 %v5331, 16
      %v5934 = vpop.permute.xlu0 %5933
      %5935 = vrot.lane.b32.xlu0 %v5332, 16
      %v5936 = vpop.permute.xlu0 %5935
      %5937 = vrot.lane.b32.xlu0 %v5333, 16
      %v5938 = vpop.permute.xlu0 %5937
      %5939 = vrot.lane.b32.xlu0 %v5334, 16
      %v5940 = vpop.permute.xlu0 %5939
      %5941 = vrot.lane.b32.xlu0 %v5335, 16
      %v5942 = vpop.permute.xlu0 %5941
      %5943 = vrot.lane.b32.xlu0 %v5336, 16
      %v5944 = vpop.permute.xlu0 %5943
      %5945 = vrot.lane.b32.xlu0 %v5337, 16
      %v5946 = vpop.permute.xlu0 %5945
      %6011 = vrot.lane.b32.xlu0 %v5338, 20
      %v6012 = vpop.permute.xlu0 %6011
      %6013 = vrot.lane.b32.xlu0 %v5339, 20
      %v6014 = vpop.permute.xlu0 %6013
      %6015 = vrot.lane.b32.xlu0 %v5340, 20
      %v6016 = vpop.permute.xlu0 %6015
      %6017 = vrot.lane.b32.xlu0 %v5341, 20
      %v6018 = vpop.permute.xlu0 %6017
      %6019 = vrot.lane.b32.xlu0 %v5342, 20
      %v6020 = vpop.permute.xlu0 %6019
      %6021 = vrot.lane.b32.xlu0 %v5343, 20
      %v6022 = vpop.permute.xlu0 %6021
      %6023 = vrot.lane.b32.xlu0 %v5344, 20
      %v6024 = vpop.permute.xlu0 %6023
      %6025 = vrot.lane.b32.xlu0 %v5345, 20
      %v6026 = vpop.permute.xlu0 %6025
      %6027 = vrot.lane.b32.xlu0 %v5346, 20
      %v6028 = vpop.permute.xlu0 %6027
      %6029 = vrot.lane.b32.xlu0 %v5347, 20
      %v6030 = vpop.permute.xlu0 %6029
      %6031 = vrot.lane.b32.xlu0 %v5348, 20
      %v6032 = vpop.permute.xlu0 %6031
      %6033 = vrot.lane.b32.xlu0 %v5349, 20
      %v6034 = vpop.permute.xlu0 %6033
      %6035 = vrot.lane.b32.xlu0 %v5350, 20
      %v6036 = vpop.permute.xlu0 %6035
      %6037 = vrot.lane.b32.xlu0 %v5351, 20
      %v6038 = vpop.permute.xlu0 %6037
      %6039 = vrot.lane.b32.xlu0 %v5352, 20
      %v6040 = vpop.permute.xlu0 %6039
      %6041 = vrot.lane.b32.xlu0 %v5353, 20
      %v6042 = vpop.permute.xlu0 %6041
      %6043 = vrot.lane.b32.xlu0 %v5354, 20
      %v6044 = vpop.permute.xlu0 %6043
      %6045 = vrot.lane.b32.xlu0 %v5355, 20
      %v6046 = vpop.permute.xlu0 %6045
      %6047 = vrot.lane.b32.xlu0 %v5356, 20
      %v6048 = vpop.permute.xlu0 %6047
      %6049 = vrot.lane.b32.xlu0 %v5357, 20
      %v6050 = vpop.permute.xlu0 %6049
      %6051 = vrot.lane.b32.xlu0 %v5358, 20
      %v6052 = vpop.permute.xlu0 %6051
      %6053 = vrot.lane.b32.xlu0 %v5359, 20
      %v6054 = vpop.permute.xlu0 %6053
      %6055 = vrot.lane.b32.xlu0 %v5360, 20
      %v6056 = vpop.permute.xlu0 %6055
      %6057 = vrot.lane.b32.xlu0 %v5361, 20
      %v6058 = vpop.permute.xlu0 %6057
      %6059 = vrot.lane.b32.xlu0 %v5362, 20
      %v6060 = vpop.permute.xlu0 %6059
      %6061 = vrot.lane.b32.xlu0 %v5363, 20
      %v6062 = vpop.permute.xlu0 %6061
      %6063 = vrot.lane.b32.xlu0 %v5364, 20
      %v6064 = vpop.permute.xlu0 %6063
      %6065 = vrot.lane.b32.xlu0 %v5365, 20
      %v6066 = vpop.permute.xlu0 %6065
      %6067 = vrot.lane.b32.xlu0 %v5366, 20
      %v6068 = vpop.permute.xlu0 %6067
      %6069 = vrot.lane.b32.xlu0 %v5367, 20
      %v6070 = vpop.permute.xlu0 %6069
      %6071 = vrot.lane.b32.xlu0 %v5368, 20
      %v6072 = vpop.permute.xlu0 %6071
      %6073 = vrot.lane.b32.xlu0 %v5369, 20
      %v6074 = vpop.permute.xlu0 %6073
      %6139 = vrot.lane.b32.xlu0 %v5371, 24
      %v6140 = vpop.permute.xlu0 %6139
      %6141 = vrot.lane.b32.xlu0 %v5372, 24
      %v6142 = vpop.permute.xlu0 %6141
      %6143 = vrot.lane.b32.xlu0 %v5373, 24
      %v6144 = vpop.permute.xlu0 %6143
      %6145 = vrot.lane.b32.xlu0 %v5374, 24
      %v6146 = vpop.permute.xlu0 %6145
      %6147 = vrot.lane.b32.xlu0 %v5375, 24
      %v6148 = vpop.permute.xlu0 %6147
      %6149 = vrot.lane.b32.xlu0 %v5376, 24
      %v6150 = vpop.permute.xlu0 %6149
      %6151 = vrot.lane.b32.xlu0 %v5377, 24
      %v6152 = vpop.permute.xlu0 %6151
      %6153 = vrot.lane.b32.xlu0 %v5378, 24
      %v6154 = vpop.permute.xlu0 %6153
      %6155 = vrot.lane.b32.xlu0 %v5379, 24
      %v6156 = vpop.permute.xlu0 %6155
      %6157 = vrot.lane.b32.xlu0 %v5380, 24
      %v6158 = vpop.permute.xlu0 %6157
      %6159 = vrot.lane.b32.xlu0 %v5381, 24
      %v6160 = vpop.permute.xlu0 %6159
      %6161 = vrot.lane.b32.xlu0 %v5382, 24
      %v6162 = vpop.permute.xlu0 %6161
      %6163 = vrot.lane.b32.xlu0 %v5383, 24
      %v6164 = vpop.permute.xlu0 %6163
      %6165 = vrot.lane.b32.xlu0 %v5384, 24
      %v6166 = vpop.permute.xlu0 %6165
      %6167 = vrot.lane.b32.xlu0 %v5385, 24
      %v6168 = vpop.permute.xlu0 %6167
      %6169 = vrot.lane.b32.xlu0 %v5386, 24
      %v6170 = vpop.permute.xlu0 %6169
      %6171 = vrot.lane.b32.xlu0 %v5387, 24
      %v6172 = vpop.permute.xlu0 %6171
      %6173 = vrot.lane.b32.xlu0 %v5388, 24
      %v6174 = vpop.permute.xlu0 %6173
      %6175 = vrot.lane.b32.xlu0 %v5389, 24
      %v6176 = vpop.permute.xlu0 %6175
      %6177 = vrot.lane.b32.xlu0 %v5390, 24
      %v6178 = vpop.permute.xlu0 %6177
      %6179 = vrot.lane.b32.xlu0 %v5391, 24
      %v6180 = vpop.permute.xlu0 %6179
      %6181 = vrot.lane.b32.xlu0 %v5392, 24
      %v6182 = vpop.permute.xlu0 %6181
      %6183 = vrot.lane.b32.xlu0 %v5393, 24
      %v6184 = vpop.permute.xlu0 %6183
      %6185 = vrot.lane.b32.xlu0 %v5394, 24
      %v6186 = vpop.permute.xlu0 %6185
      %6187 = vrot.lane.b32.xlu0 %v5395, 24
      %v6188 = vpop.permute.xlu0 %6187
      %6189 = vrot.lane.b32.xlu0 %v5396, 24
      %v6190 = vpop.permute.xlu0 %6189
      %6191 = vrot.lane.b32.xlu0 %v5397, 24
      %v6192 = vpop.permute.xlu0 %6191
      %6193 = vrot.lane.b32.xlu0 %v5398, 24
      %v6194 = vpop.permute.xlu0 %6193
      %6195 = vrot.lane.b32.xlu0 %v5399, 24
      %v6196 = vpop.permute.xlu0 %6195
      %6197 = vrot.lane.b32.xlu0 %v5400, 24
      %v6198 = vpop.permute.xlu0 %6197
      %6199 = vrot.lane.b32.xlu0 %v5401, 24
      %v6200 = vpop.permute.xlu0 %6199
      %6201 = vrot.lane.b32.xlu0 %v5402, 24
      %v6202 = vpop.permute.xlu0 %6201
      %6267 = vrot.lane.b32.xlu0 %v5403, 28
      %v6268 = vpop.permute.xlu0 %6267
      %6269 = vrot.lane.b32.xlu0 %v5404, 28
      %v6270 = vpop.permute.xlu0 %6269
      %6271 = vrot.lane.b32.xlu0 %v5405, 28
      %v6272 = vpop.permute.xlu0 %6271
      %6273 = vrot.lane.b32.xlu0 %v5406, 28
      %v6274 = vpop.permute.xlu0 %6273
      %6275 = vrot.lane.b32.xlu0 %v5407, 28
      %v6276 = vpop.permute.xlu0 %6275
      %6277 = vrot.lane.b32.xlu0 %v5408, 28
      %v6278 = vpop.permute.xlu0 %6277
      %6279 = vrot.lane.b32.xlu0 %v5409, 28
      %v6280 = vpop.permute.xlu0 %6279
      %6281 = vrot.lane.b32.xlu0 %v5410, 28
      %v6282 = vpop.permute.xlu0 %6281
      %6283 = vrot.lane.b32.xlu0 %v5411, 28
      %v6284 = vpop.permute.xlu0 %6283
      %6285 = vrot.lane.b32.xlu0 %v5412, 28
      %v6286 = vpop.permute.xlu0 %6285
      %6287 = vrot.lane.b32.xlu0 %v5413, 28
      %v6288 = vpop.permute.xlu0 %6287
      %6289 = vrot.lane.b32.xlu0 %v5414, 28
      %v6290 = vpop.permute.xlu0 %6289
      %6291 = vrot.lane.b32.xlu0 %v5415, 28
      %v6292 = vpop.permute.xlu0 %6291
      %6293 = vrot.lane.b32.xlu0 %v5416, 28
      %v6294 = vpop.permute.xlu0 %6293
      %6295 = vrot.lane.b32.xlu0 %v5417, 28
      %v6296 = vpop.permute.xlu0 %6295
      %6297 = vrot.lane.b32.xlu0 %v5418, 28
      %v6298 = vpop.permute.xlu0 %6297
      %6299 = vrot.lane.b32.xlu0 %v5419, 28
      %v6300 = vpop.permute.xlu0 %6299
      %6301 = vrot.lane.b32.xlu0 %v5420, 28
      %v6302 = vpop.permute.xlu0 %6301
      %6303 = vrot.lane.b32.xlu0 %v5421, 28
      %v6304 = vpop.permute.xlu0 %6303
      %6305 = vrot.lane.b32.xlu0 %v5422, 28
      %v6306 = vpop.permute.xlu0 %6305
      %6307 = vrot.lane.b32.xlu0 %v5423, 28
      %v6308 = vpop.permute.xlu0 %6307
      %6309 = vrot.lane.b32.xlu0 %v5424, 28
      %v6310 = vpop.permute.xlu0 %6309
      %6311 = vrot.lane.b32.xlu0 %v5425, 28
      %v6312 = vpop.permute.xlu0 %6311
      %6313 = vrot.lane.b32.xlu0 %v5426, 28
      %v6314 = vpop.permute.xlu0 %6313
      %6315 = vrot.lane.b32.xlu0 %v5427, 28
      %v6316 = vpop.permute.xlu0 %6315
      %6317 = vrot.lane.b32.xlu0 %v5428, 28
      %v6318 = vpop.permute.xlu0 %6317
      %6319 = vrot.lane.b32.xlu0 %v5429, 28
      %v6320 = vpop.permute.xlu0 %6319
      %6321 = vrot.lane.b32.xlu0 %v5430, 28
      %v6322 = vpop.permute.xlu0 %6321
      %6323 = vrot.lane.b32.xlu0 %v5431, 28
      %v6324 = vpop.permute.xlu0 %6323
      %6325 = vrot.lane.b32.xlu0 %v5432, 28
      %v6326 = vpop.permute.xlu0 %6325
      %6327 = vrot.lane.b32.xlu0 %v5433, 28
      %v6328 = vpop.permute.xlu0 %6327
      %6329 = vrot.lane.b32.xlu0 %v5434, 28
      %v6330 = vpop.permute.xlu0 %6329
      %6395 = vrot.lane.b32.xlu0 %v5435, 32
      %v6396 = vpop.permute.xlu0 %6395
      %6397 = vrot.lane.b32.xlu0 %v5436, 32
      %v6398 = vpop.permute.xlu0 %6397
      %6399 = vrot.lane.b32.xlu0 %v5437, 32
      %v6400 = vpop.permute.xlu0 %6399
      %6401 = vrot.lane.b32.xlu0 %v5438, 32
      %v6402 = vpop.permute.xlu0 %6401
      %6403 = vrot.lane.b32.xlu0 %v5439, 32
      %v6404 = vpop.permute.xlu0 %6403
      %6405 = vrot.lane.b32.xlu0 %v5440, 32
      %v6406 = vpop.permute.xlu0 %6405
      %6407 = vrot.lane.b32.xlu0 %v5441, 32
      %v6408 = vpop.permute.xlu0 %6407
      %6409 = vrot.lane.b32.xlu0 %v5442, 32
      %v6410 = vpop.permute.xlu0 %6409
      %6411 = vrot.lane.b32.xlu0 %v5443, 32
      %v6412 = vpop.permute.xlu0 %6411
      %6413 = vrot.lane.b32.xlu0 %v5444, 32
      %v6414 = vpop.permute.xlu0 %6413
      %6415 = vrot.lane.b32.xlu0 %v5445, 32
      %v6416 = vpop.permute.xlu0 %6415
      %6417 = vrot.lane.b32.xlu0 %v5446, 32
      %v6418 = vpop.permute.xlu0 %6417
      %6419 = vrot.lane.b32.xlu0 %v5447, 32
      %v6420 = vpop.permute.xlu0 %6419
      %6421 = vrot.lane.b32.xlu0 %v5448, 32
      %v6422 = vpop.permute.xlu0 %6421
      %6423 = vrot.lane.b32.xlu0 %v5449, 32
      %v6424 = vpop.permute.xlu0 %6423
      %6425 = vrot.lane.b32.xlu0 %v5450, 32
      %v6426 = vpop.permute.xlu0 %6425
      %6427 = vrot.lane.b32.xlu0 %v5451, 32
      %v6428 = vpop.permute.xlu0 %6427
      %6429 = vrot.lane.b32.xlu0 %v5452, 32
      %v6430 = vpop.permute.xlu0 %6429
      %6431 = vrot.lane.b32.xlu0 %v5453, 32
      %v6432 = vpop.permute.xlu0 %6431
      %6433 = vrot.lane.b32.xlu0 %v5454, 32
      %v6434 = vpop.permute.xlu0 %6433
      %6435 = vrot.lane.b32.xlu0 %v5455, 32
      %v6436 = vpop.permute.xlu0 %6435
      %6437 = vrot.lane.b32.xlu0 %v5456, 32
      %v6438 = vpop.permute.xlu0 %6437
      %6439 = vrot.lane.b32.xlu0 %v5457, 32
      %v6440 = vpop.permute.xlu0 %6439
      %6441 = vrot.lane.b32.xlu0 %v5458, 32
      %v6442 = vpop.permute.xlu0 %6441
      %6443 = vrot.lane.b32.xlu0 %v5459, 32
      %v6444 = vpop.permute.xlu0 %6443
      %6445 = vrot.lane.b32.xlu0 %v5460, 32
      %v6446 = vpop.permute.xlu0 %6445
      %6447 = vrot.lane.b32.xlu0 %v5461, 32
      %v6448 = vpop.permute.xlu0 %6447
      %6449 = vrot.lane.b32.xlu0 %v5462, 32
      %v6450 = vpop.permute.xlu0 %6449
      %6451 = vrot.lane.b32.xlu0 %v5463, 32
      %v6452 = vpop.permute.xlu0 %6451
      %6453 = vrot.lane.b32.xlu0 %v5464, 32
      %v6454 = vpop.permute.xlu0 %6453
      %6455 = vrot.lane.b32.xlu0 %v5465, 32
      %v6456 = vpop.permute.xlu0 %6455
      %6457 = vrot.lane.b32.xlu0 %v5466, 32
      %v6458 = vpop.permute.xlu0 %6457
      %v6491 = vsel %vm366, %v5178, %v5500
      %v6492 = vsel %vm366, %v5179, %v5502
      %v6493 = vsel %vm366, %v5180, %v5504
      %v6494 = vsel %vm366, %v5181, %v5506
      %v6495 = vsel %vm366, %v5182, %v5508
      %v6496 = vsel %vm366, %v5183, %v5510
      %v6497 = vsel %vm366, %v5184, %v5512
      %v6498 = vsel %vm366, %v5185, %v5514
      %v6499 = vsel %vm366, %v5186, %v5516
      %v6500 = vsel %vm366, %v5187, %v5518
      %v6501 = vsel %vm366, %v5188, %v5520
      %v6502 = vsel %vm366, %v5189, %v5522
      %v6503 = vsel %vm366, %v5190, %v5524
      %v6504 = vsel %vm366, %v5191, %v5526
      %v6505 = vsel %vm366, %v5192, %v5528
      %v6506 = vsel %vm366, %v5193, %v5530
      %v6507 = vsel %vm366, %v5194, %v5532
      %v6508 = vsel %vm366, %v5195, %v5534
      %v6509 = vsel %vm366, %v5196, %v5536
      %v6510 = vsel %vm366, %v5197, %v5538
      %v6511 = vsel %vm366, %v5198, %v5540
      %v6512 = vsel %vm366, %v5199, %v5542
      %v6513 = vsel %vm366, %v5200, %v5544
      %v6514 = vsel %vm366, %v5201, %v5546
      %v6515 = vsel %vm366, %v5202, %v5548
      %v6516 = vsel %vm366, %v5203, %v5550
      %v6517 = vsel %vm366, %v5204, %v5552
      %v6518 = vsel %vm366, %v5205, %v5554
      %v6519 = vsel %vm366, %v5206, %v5556
      %v6520 = vsel %vm366, %v5207, %v5558
      %v6521 = vsel %vm366, %v5208, %v5560
      %v6522 = vsel %vm366, %v5209, %v5562
      %v6523 = vsel %vm4942, %v6491, %v5628
      %v6524 = vsel %vm4942, %v6492, %v5630
      %v6525 = vsel %vm4942, %v6493, %v5632
      %v6526 = vsel %vm4942, %v6494, %v5634
      %v6527 = vsel %vm4942, %v6495, %v5636
      %v6528 = vsel %vm4942, %v6496, %v5638
      %v6529 = vsel %vm4942, %v6497, %v5640
      %v6530 = vsel %vm4942, %v6498, %v5642
      %v6531 = vsel %vm4942, %v6499, %v5644
      %v6532 = vsel %vm4942, %v6500, %v5646
      %v6533 = vsel %vm4942, %v6501, %v5648
      %v6534 = vsel %vm4942, %v6502, %v5650
      %v6535 = vsel %vm4942, %v6503, %v5652
      %v6536 = vsel %vm4942, %v6504, %v5654
      %v6537 = vsel %vm4942, %v6505, %v5656
      %v6538 = vsel %vm4942, %v6506, %v5658
      %v6539 = vsel %vm4942, %v6507, %v5660
      %v6540 = vsel %vm4942, %v6508, %v5662
      %v6541 = vsel %vm4942, %v6509, %v5664
      %v6542 = vsel %vm4942, %v6510, %v5666
      %v6543 = vsel %vm4942, %v6511, %v5668
      %v6544 = vsel %vm4942, %v6512, %v5670
      %v6545 = vsel %vm4942, %v6513, %v5672
      %v6546 = vsel %vm4942, %v6514, %v5674
      %v6547 = vsel %vm4942, %v6515, %v5676
      %v6548 = vsel %vm4942, %v6516, %v5678
      %v6549 = vsel %vm4942, %v6517, %v5680
      %v6550 = vsel %vm4942, %v6518, %v5682
      %v6551 = vsel %vm4942, %v6519, %v5684
      %v6552 = vsel %vm4942, %v6520, %v5686
      %v6553 = vsel %vm4942, %v6521, %v5688
      %v6554 = vsel %vm4942, %v6522, %v5690
      %v6555 = vsel %vm4975, %v6523, %v5756
      %v6556 = vsel %vm4975, %v6524, %v5758
      %v6557 = vsel %vm4975, %v6525, %v5760
      %v6558 = vsel %vm4975, %v6526, %v5762
      %v6559 = vsel %vm4975, %v6527, %v5764
      %v6560 = vsel %vm4975, %v6528, %v5766
      %v6561 = vsel %vm4975, %v6529, %v5768
      %v6562 = vsel %vm4975, %v6530, %v5770
      %v6563 = vsel %vm4975, %v6531, %v5772
      %v6564 = vsel %vm4975, %v6532, %v5774
      %v6565 = vsel %vm4975, %v6533, %v5776
      %v6566 = vsel %vm4975, %v6534, %v5778
      %v6567 = vsel %vm4975, %v6535, %v5780
      %v6568 = vsel %vm4975, %v6536, %v5782
      %v6569 = vsel %vm4975, %v6537, %v5784
      %v6570 = vsel %vm4975, %v6538, %v5786
      %v6571 = vsel %vm4975, %v6539, %v5788
      %v6572 = vsel %vm4975, %v6540, %v5790
      %v6573 = vsel %vm4975, %v6541, %v5792
      %v6574 = vsel %vm4975, %v6542, %v5794
      %v6575 = vsel %vm4975, %v6543, %v5796
      %v6576 = vsel %vm4975, %v6544, %v5798
      %v6577 = vsel %vm4975, %v6545, %v5800
      %v6578 = vsel %vm4975, %v6546, %v5802
      %v6579 = vsel %vm4975, %v6547, %v5804
      %v6580 = vsel %vm4975, %v6548, %v5806
      %v6581 = vsel %vm4975, %v6549, %v5808
      %v6582 = vsel %vm4975, %v6550, %v5810
      %v6583 = vsel %vm4975, %v6551, %v5812
      %v6584 = vsel %vm4975, %v6552, %v5814
      %v6585 = vsel %vm4975, %v6553, %v5816
      %v6586 = vsel %vm4975, %v6554, %v5818
      %v6587 = vsel %vm5008, %v6555, %v5884
      %v6588 = vsel %vm5008, %v6556, %v5886
      %v6589 = vsel %vm5008, %v6557, %v5888
      %v6590 = vsel %vm5008, %v6558, %v5890
      %v6591 = vsel %vm5008, %v6559, %v5892
      %v6592 = vsel %vm5008, %v6560, %v5894
      %v6593 = vsel %vm5008, %v6561, %v5896
      %v6594 = vsel %vm5008, %v6562, %v5898
      %v6595 = vsel %vm5008, %v6563, %v5900
      %v6596 = vsel %vm5008, %v6564, %v5902
      %v6597 = vsel %vm5008, %v6565, %v5904
      %v6598 = vsel %vm5008, %v6566, %v5906
      %v6599 = vsel %vm5008, %v6567, %v5908
      %v6600 = vsel %vm5008, %v6568, %v5910
      %v6601 = vsel %vm5008, %v6569, %v5912
      %v6602 = vsel %vm5008, %v6570, %v5914
      %v6603 = vsel %vm5008, %v6571, %v5916
      %v6604 = vsel %vm5008, %v6572, %v5918
      %v6605 = vsel %vm5008, %v6573, %v5920
      %v6606 = vsel %vm5008, %v6574, %v5922
      %v6607 = vsel %vm5008, %v6575, %v5924
      %v6608 = vsel %vm5008, %v6576, %v5926
      %v6609 = vsel %vm5008, %v6577, %v5928
      %v6610 = vsel %vm5008, %v6578, %v5930
      %v6611 = vsel %vm5008, %v6579, %v5932
      %v6612 = vsel %vm5008, %v6580, %v5934
      %v6613 = vsel %vm5008, %v6581, %v5936
      %v6614 = vsel %vm5008, %v6582, %v5938
      %v6615 = vsel %vm5008, %v6583, %v5940
      %v6616 = vsel %vm5008, %v6584, %v5942
      %v6617 = vsel %vm5008, %v6585, %v5944
      %v6618 = vsel %vm5008, %v6586, %v5946
      %v6619 = vsel %vm5041, %v6587, %v6012
      %v6620 = vsel %vm5041, %v6588, %v6014
      %v6621 = vsel %vm5041, %v6589, %v6016
      %v6622 = vsel %vm5041, %v6590, %v6018
      %v6623 = vsel %vm5041, %v6591, %v6020
      %v6624 = vsel %vm5041, %v6592, %v6022
      %v6625 = vsel %vm5041, %v6593, %v6024
      %v6626 = vsel %vm5041, %v6594, %v6026
      %v6627 = vsel %vm5041, %v6595, %v6028
      %v6628 = vsel %vm5041, %v6596, %v6030
      %v6629 = vsel %vm5041, %v6597, %v6032
      %v6630 = vsel %vm5041, %v6598, %v6034
      %v6631 = vsel %vm5041, %v6599, %v6036
      %v6632 = vsel %vm5041, %v6600, %v6038
      %v6633 = vsel %vm5041, %v6601, %v6040
      %v6634 = vsel %vm5041, %v6602, %v6042
      %v6635 = vsel %vm5041, %v6603, %v6044
      %v6636 = vsel %vm5041, %v6604, %v6046
      %v6637 = vsel %vm5041, %v6605, %v6048
      %v6638 = vsel %vm5041, %v6606, %v6050
      %v6639 = vsel %vm5041, %v6607, %v6052
      %v6640 = vsel %vm5041, %v6608, %v6054
      %v6641 = vsel %vm5041, %v6609, %v6056
      %v6642 = vsel %vm5041, %v6610, %v6058
      %v6643 = vsel %vm5041, %v6611, %v6060
      %v6644 = vsel %vm5041, %v6612, %v6062
      %v6645 = vsel %vm5041, %v6613, %v6064
      %v6646 = vsel %vm5041, %v6614, %v6066
      %v6647 = vsel %vm5041, %v6615, %v6068
      %v6648 = vsel %vm5041, %v6616, %v6070
      %v6649 = vsel %vm5041, %v6617, %v6072
      %v6650 = vsel %vm5041, %v6618, %v6074
      %v6651 = vsel %vm5074, %v6619, %v6140
      %v6652 = vsel %vm5074, %v6620, %v6142
      %v6653 = vsel %vm5074, %v6621, %v6144
      %v6654 = vsel %vm5074, %v6622, %v6146
      %v6655 = vsel %vm5074, %v6623, %v6148
      %v6656 = vsel %vm5074, %v6624, %v6150
      %v6657 = vsel %vm5074, %v6625, %v6152
      %v6658 = vsel %vm5074, %v6626, %v6154
      %v6659 = vsel %vm5074, %v6627, %v6156
      %v6660 = vsel %vm5074, %v6628, %v6158
      %v6661 = vsel %vm5074, %v6629, %v6160
      %v6662 = vsel %vm5074, %v6630, %v6162
      %v6663 = vsel %vm5074, %v6631, %v6164
      %v6664 = vsel %vm5074, %v6632, %v6166
      %v6665 = vsel %vm5074, %v6633, %v6168
      %v6666 = vsel %vm5074, %v6634, %v6170
      %v6667 = vsel %vm5074, %v6635, %v6172
      %v6668 = vsel %vm5074, %v6636, %v6174
      %v6669 = vsel %vm5074, %v6637, %v6176
      %v6670 = vsel %vm5074, %v6638, %v6178
      %v6671 = vsel %vm5074, %v6639, %v6180
      %v6672 = vsel %vm5074, %v6640, %v6182
      %v6673 = vsel %vm5074, %v6641, %v6184
      %v6674 = vsel %vm5074, %v6642, %v6186
      %v6675 = vsel %vm5074, %v6643, %v6188
      %v6676 = vsel %vm5074, %v6644, %v6190
      %v6677 = vsel %vm5074, %v6645, %v6192
      %v6678 = vsel %vm5074, %v6646, %v6194
      %v6679 = vsel %vm5074, %v6647, %v6196
      %v6680 = vsel %vm5074, %v6648, %v6198
      %v6681 = vsel %vm5074, %v6649, %v6200
      %v6682 = vsel %vm5074, %v6650, %v6202
      %v6683 = vsel %vm5107, %v6651, %v6268
      %v6684 = vsel %vm5107, %v6652, %v6270
      %v6685 = vsel %vm5107, %v6653, %v6272
      %v6686 = vsel %vm5107, %v6654, %v6274
      %v6687 = vsel %vm5107, %v6655, %v6276
      %v6688 = vsel %vm5107, %v6656, %v6278
      %v6689 = vsel %vm5107, %v6657, %v6280
      %v6690 = vsel %vm5107, %v6658, %v6282
      %v6691 = vsel %vm5107, %v6659, %v6284
      %v6692 = vsel %vm5107, %v6660, %v6286
      %v6693 = vsel %vm5107, %v6661, %v6288
      %v6694 = vsel %vm5107, %v6662, %v6290
      %v6695 = vsel %vm5107, %v6663, %v6292
      %v6696 = vsel %vm5107, %v6664, %v6294
      %v6697 = vsel %vm5107, %v6665, %v6296
      %v6698 = vsel %vm5107, %v6666, %v6298
      %v6699 = vsel %vm5107, %v6667, %v6300
      %v6700 = vsel %vm5107, %v6668, %v6302
      %v6701 = vsel %vm5107, %v6669, %v6304
      %v6702 = vsel %vm5107, %v6670, %v6306
      %v6703 = vsel %vm5107, %v6671, %v6308
      %v6704 = vsel %vm5107, %v6672, %v6310
      %v6705 = vsel %vm5107, %v6673, %v6312
      %v6706 = vsel %vm5107, %v6674, %v6314
      %v6707 = vsel %vm5107, %v6675, %v6316
      %v6708 = vsel %vm5107, %v6676, %v6318
      %v6709 = vsel %vm5107, %v6677, %v6320
      %v6710 = vsel %vm5107, %v6678, %v6322
      %v6711 = vsel %vm5107, %v6679, %v6324
      %v6712 = vsel %vm5107, %v6680, %v6326
      %v6713 = vsel %vm5107, %v6681, %v6328
      %v6714 = vsel %vm5107, %v6682, %v6330
      %v6715 = vsel %vm5140, %v6683, %v6396
      %v6716 = vsel %vm5140, %v6684, %v6398
      %v6717 = vsel %vm5140, %v6685, %v6400
      %v6718 = vsel %vm5140, %v6686, %v6402
      %v6719 = vsel %vm5140, %v6687, %v6404
      %v6720 = vsel %vm5140, %v6688, %v6406
      %v6721 = vsel %vm5140, %v6689, %v6408
      %v6722 = vsel %vm5140, %v6690, %v6410
      %v6723 = vsel %vm5140, %v6691, %v6412
      %v6724 = vsel %vm5140, %v6692, %v6414
      %v6725 = vsel %vm5140, %v6693, %v6416
      %v6726 = vsel %vm5140, %v6694, %v6418
      %v6727 = vsel %vm5140, %v6695, %v6420
      %v6728 = vsel %vm5140, %v6696, %v6422
      %v6729 = vsel %vm5140, %v6697, %v6424
      %v6730 = vsel %vm5140, %v6698, %v6426
      %v6731 = vsel %vm5140, %v6699, %v6428
      %v6732 = vsel %vm5140, %v6700, %v6430
      %v6733 = vsel %vm5140, %v6701, %v6432
      %v6734 = vsel %vm5140, %v6702, %v6434
      %v6735 = vsel %vm5140, %v6703, %v6436
      %v6736 = vsel %vm5140, %v6704, %v6438
      %v6737 = vsel %vm5140, %v6705, %v6440
      %v6738 = vsel %vm5140, %v6706, %v6442
      %v6739 = vsel %vm5140, %v6707, %v6444
      %v6740 = vsel %vm5140, %v6708, %v6446
      %v6741 = vsel %vm5140, %v6709, %v6448
      %v6742 = vsel %vm5140, %v6710, %v6450
      %v6743 = vsel %vm5140, %v6711, %v6452
      %v6744 = vsel %vm5140, %v6712, %v6454
      %v6745 = vsel %vm5140, %v6713, %v6456
      %v6746 = vsel %vm5140, %v6714, %v6458
      %v6747 = vld [vmem:[%s5] sm:$0xff]
      %v6748 = vld [vmem:[%s5 + $0x8] sm:$0xff]
      %v6749 = vld [vmem:[%s5 + $0x10] sm:$0xff]
      %v6750 = vld [vmem:[%s5 + $0x18] sm:$0xff]
      %v6751 = vld [vmem:[%s5 + $0x20] sm:$0xf]
      %vm6752 = vcmask 293888
      %v6754 = vsel %vm6752, %v6715, 0
      %v6757 = vsel %vm6752, %v6716, 0
      %v6760 = vsel %vm6752, %v6717, 0
      %v6763 = vsel %vm6752, %v6718, 0
      %v6766 = vsel %vm6752, %v6719, 0
      %v6769 = vsel %vm6752, %v6720, 0
      %v6772 = vsel %vm6752, %v6721, 0
      %v6775 = vsel %vm6752, %v6722, 0
      %v6778 = vsel %vm6752, %v6723, 0
      %v6781 = vsel %vm6752, %v6724, 0
      %v6784 = vsel %vm6752, %v6725, 0
      %v6787 = vsel %vm6752, %v6726, 0
      %v6790 = vsel %vm6752, %v6727, 0
      %v6793 = vsel %vm6752, %v6728, 0
      %v6796 = vsel %vm6752, %v6729, 0
      %v6799 = vsel %vm6752, %v6730, 0
      %v6802 = vsel %vm6752, %v6731, 0
      %v6805 = vsel %vm6752, %v6732, 0
      %v6808 = vsel %vm6752, %v6733, 0
      %v6811 = vsel %vm6752, %v6734, 0
      %v6814 = vsel %vm6752, %v6735, 0
      %v6817 = vsel %vm6752, %v6736, 0
      %v6820 = vsel %vm6752, %v6737, 0
      %v6823 = vsel %vm6752, %v6738, 0
      %v6826 = vsel %vm6752, %v6739, 0
      %v6829 = vsel %vm6752, %v6740, 0
      %v6832 = vsel %vm6752, %v6741, 0
      %v6835 = vsel %vm6752, %v6742, 0
      %v6838 = vsel %vm6752, %v6743, 0
      %v6841 = vsel %vm6752, %v6744, 0
      %v6844 = vsel %vm6752, %v6745, 0
      %v6847 = vsel %vm6752, %v6746, 0
      %v6850 = vsel %vm391, %v6751, 0
      %6852 = vmatpush.msra.mxu0 0.0
      %6853 = vmatpush.msra.mxu0 0.0
      %6854 = vmatpush.msra.mxu0 0.0
      %6855 = vmatpush.msra.mxu0 0.0
      %6856 = vmatpush.msra.mxu0 0.0
      %6857 = vmatpush.msra.mxu0 0.0
      %6858 = vmatpush.msra.mxu0 0.0
      %6859 = vmatpush.msra.mxu0 0.0
      %6860 = vmatpush.msra.mxu0 0.0
      %6861 = vmatpush.msra.mxu0 0.0
      %6862 = vmatpush.msra.mxu0 0.0
      %6863 = vmatpush.msra.mxu0 %v6850
      %6864 = vmatpush.msra.mxu0 %v6750
      %6865 = vmatpush.msra.mxu0 %v6749
      %6866 = vmatpush.msra.mxu0 %v6748
      %6867 = vmatpush.msra.mxu0 %v6747
      %6868 = vmatmul.f32.gmra.mxu0 %v6754
      %v6869 = vpop.f32.mrf.mxu0
      %v6870 = vadd.f32 0.0, %v6869
      %6871 = vmatmul.f32.gmra.mxu0 %v6757
      %v6872 = vpop.f32.mrf.mxu0
      %v6873 = vadd.f32 0.0, %v6872
      %6874 = vmatmul.f32.gmra.mxu0 %v6760
      %v6875 = vpop.f32.mrf.mxu0
      %v6876 = vadd.f32 0.0, %v6875
      %6877 = vmatmul.f32.gmra.mxu0 %v6763
      %v6878 = vpop.f32.mrf.mxu0
      %v6879 = vadd.f32 0.0, %v6878
      %6880 = vmatmul.f32.gmra.mxu0 %v6766
      %v6881 = vpop.f32.mrf.mxu0
      %v6882 = vadd.f32 0.0, %v6881
      %6883 = vmatmul.f32.gmra.mxu0 %v6769
      %v6884 = vpop.f32.mrf.mxu0
      %v6885 = vadd.f32 0.0, %v6884
      %6886 = vmatmul.f32.gmra.mxu0 %v6772
      %v6887 = vpop.f32.mrf.mxu0
      %v6888 = vadd.f32 0.0, %v6887
      %6889 = vmatmul.f32.gmra.mxu0 %v6775
      %v6890 = vpop.f32.mrf.mxu0
      %v6891 = vadd.f32 0.0, %v6890
      %6892 = vmatmul.f32.gmra.mxu0 %v6778
      %v6893 = vpop.f32.mrf.mxu0
      %v6894 = vadd.f32 0.0, %v6893
      %6895 = vmatmul.f32.gmra.mxu0 %v6781
      %v6896 = vpop.f32.mrf.mxu0
      %v6897 = vadd.f32 0.0, %v6896
      %6898 = vmatmul.f32.gmra.mxu0 %v6784
      %v6899 = vpop.f32.mrf.mxu0
      %v6900 = vadd.f32 0.0, %v6899
      %6901 = vmatmul.f32.gmra.mxu0 %v6787
      %v6902 = vpop.f32.mrf.mxu0
      %v6903 = vadd.f32 0.0, %v6902
      %6904 = vmatmul.f32.gmra.mxu0 %v6790
      %v6905 = vpop.f32.mrf.mxu0
      %v6906 = vadd.f32 0.0, %v6905
      %6907 = vmatmul.f32.gmra.mxu0 %v6793
      %v6908 = vpop.f32.mrf.mxu0
      %v6909 = vadd.f32 0.0, %v6908
      %6910 = vmatmul.f32.gmra.mxu0 %v6796
      %v6911 = vpop.f32.mrf.mxu0
      %v6912 = vadd.f32 0.0, %v6911
      %6913 = vmatmul.f32.gmra.mxu0 %v6799
      %v6914 = vpop.f32.mrf.mxu0
      %v6915 = vadd.f32 0.0, %v6914
      %6916 = vmatmul.f32.gmra.mxu0 %v6802
      %v6917 = vpop.f32.mrf.mxu0
      %v6918 = vadd.f32 0.0, %v6917
      %6919 = vmatmul.f32.gmra.mxu0 %v6805
      %v6920 = vpop.f32.mrf.mxu0
      %v6921 = vadd.f32 0.0, %v6920
      %6922 = vmatmul.f32.gmra.mxu0 %v6808
      %v6923 = vpop.f32.mrf.mxu0
      %v6924 = vadd.f32 0.0, %v6923
      %6925 = vmatmul.f32.gmra.mxu0 %v6811
      %v6926 = vpop.f32.mrf.mxu0
      %v6927 = vadd.f32 0.0, %v6926
      %6928 = vmatmul.f32.gmra.mxu0 %v6814
      %v6929 = vpop.f32.mrf.mxu0
      %v6930 = vadd.f32 0.0, %v6929
      %6931 = vmatmul.f32.gmra.mxu0 %v6817
      %v6932 = vpop.f32.mrf.mxu0
      %v6933 = vadd.f32 0.0, %v6932
      %6934 = vmatmul.f32.gmra.mxu0 %v6820
      %v6935 = vpop.f32.mrf.mxu0
      %v6936 = vadd.f32 0.0, %v6935
      %6937 = vmatmul.f32.gmra.mxu0 %v6823
      %v6938 = vpop.f32.mrf.mxu0
      %v6939 = vadd.f32 0.0, %v6938
      %6940 = vmatmul.f32.gmra.mxu0 %v6826
      %v6941 = vpop.f32.mrf.mxu0
      %v6942 = vadd.f32 0.0, %v6941
      %6943 = vmatmul.f32.gmra.mxu0 %v6829
      %v6944 = vpop.f32.mrf.mxu0
      %v6945 = vadd.f32 0.0, %v6944
      %6946 = vmatmul.f32.gmra.mxu0 %v6832
      %v6947 = vpop.f32.mrf.mxu0
      %v6948 = vadd.f32 0.0, %v6947
      %6949 = vmatmul.f32.gmra.mxu0 %v6835
      %v6950 = vpop.f32.mrf.mxu0
      %v6951 = vadd.f32 0.0, %v6950
      %6952 = vmatmul.f32.gmra.mxu0 %v6838
      %v6953 = vpop.f32.mrf.mxu0
      %v6954 = vadd.f32 0.0, %v6953
      %6955 = vmatmul.f32.gmra.mxu0 %v6841
      %v6956 = vpop.f32.mrf.mxu0
      %v6957 = vadd.f32 0.0, %v6956
      %6958 = vmatmul.f32.gmra.mxu0 %v6844
      %v6959 = vpop.f32.mrf.mxu0
      %v6960 = vadd.f32 0.0, %v6959
      %6961 = vmatmul.f32.gmra.mxu0 %v6847
      %v6962 = vpop.f32.mrf.mxu0
      %v6963 = vadd.f32 0.0, %v6962
      %6964 = vdwg.mxu0
      %v6966 = vsel %vm6752, %v5141, 0
      %v6969 = vsel %vm6752, %v5142, 0
      %v6972 = vsel %vm6752, %v5143, 0
      %v6975 = vsel %vm6752, %v5144, 0
      %v6978 = vsel %vm6752, %v5145, 0
      %v6981 = vsel %vm6752, %v5146, 0
      %v6984 = vsel %vm6752, %v5147, 0
      %v6987 = vsel %vm6752, %v5148, 0
      %v6990 = vsel %vm6752, %v5149, 0
      %v6993 = vsel %vm6752, %v5150, 0
      %v6996 = vsel %vm6752, %v5151, 0
      %v6999 = vsel %vm6752, %v5152, 0
      %v7002 = vsel %vm6752, %v5153, 0
      %v7005 = vsel %vm6752, %v5154, 0
      %v7008 = vsel %vm6752, %v5155, 0
      %v7011 = vsel %vm6752, %v5156, 0
      %v7014 = vsel %vm6752, %v5157, 0
      %v7017 = vsel %vm6752, %v5158, 0
      %v7020 = vsel %vm6752, %v5159, 0
      %v7023 = vsel %vm6752, %v5160, 0
      %v7026 = vsel %vm6752, %v5161, 0
      %v7029 = vsel %vm6752, %v5162, 0
      %v7032 = vsel %vm6752, %v5163, 0
      %v7035 = vsel %vm6752, %v5164, 0
      %v7038 = vsel %vm6752, %v5165, 0
      %v7041 = vsel %vm6752, %v5166, 0
      %v7044 = vsel %vm6752, %v5167, 0
      %v7047 = vsel %vm6752, %v5168, 0
      %v7050 = vsel %vm6752, %v5169, 0
      %v7053 = vsel %vm6752, %v5170, 0
      %v7056 = vsel %vm6752, %v5171, 0
      %v7059 = vsel %vm6752, %v5172, 0
      %v7062 = vsel %vm391, %v5177, 0
      %7064 = vmatpush.msra.mxu0 0.0
      %7065 = vmatpush.msra.mxu0 0.0
      %7066 = vmatpush.msra.mxu0 0.0
      %7067 = vmatpush.msra.mxu0 0.0
      %7068 = vmatpush.msra.mxu0 0.0
      %7069 = vmatpush.msra.mxu0 0.0
      %7070 = vmatpush.msra.mxu0 0.0
      %7071 = vmatpush.msra.mxu0 0.0
      %7072 = vmatpush.msra.mxu0 0.0
      %7073 = vmatpush.msra.mxu0 0.0
      %7074 = vmatpush.msra.mxu0 0.0
      %7075 = vmatpush.msra.mxu0 %v7062
      %7076 = vmatpush.msra.mxu0 %v5176
      %7077 = vmatpush.msra.mxu0 %v5175
      %7078 = vmatpush.msra.mxu0 %v5174
      %7079 = vmatpush.msra.mxu0 %v5173
      %7080 = vmatmul.f32.gmra.mxu0 %v6966
      %v7081 = vpop.f32.mrf.mxu0
      %v7082 = vadd.f32 %v6870, %v7081
      %7083 = vmatmul.f32.gmra.mxu0 %v6969
      %v7084 = vpop.f32.mrf.mxu0
      %v7085 = vadd.f32 %v6873, %v7084
      %7086 = vmatmul.f32.gmra.mxu0 %v6972
      %v7087 = vpop.f32.mrf.mxu0
      %v7088 = vadd.f32 %v6876, %v7087
      %7089 = vmatmul.f32.gmra.mxu0 %v6975
      %v7090 = vpop.f32.mrf.mxu0
      %v7091 = vadd.f32 %v6879, %v7090
      %7092 = vmatmul.f32.gmra.mxu0 %v6978
      %v7093 = vpop.f32.mrf.mxu0
      %v7094 = vadd.f32 %v6882, %v7093
      %7095 = vmatmul.f32.gmra.mxu0 %v6981
      %v7096 = vpop.f32.mrf.mxu0
      %v7097 = vadd.f32 %v6885, %v7096
      %7098 = vmatmul.f32.gmra.mxu0 %v6984
      %v7099 = vpop.f32.mrf.mxu0
      %v7100 = vadd.f32 %v6888, %v7099
      %7101 = vmatmul.f32.gmra.mxu0 %v6987
      %v7102 = vpop.f32.mrf.mxu0
      %v7103 = vadd.f32 %v6891, %v7102
      %7104 = vmatmul.f32.gmra.mxu0 %v6990
      %v7105 = vpop.f32.mrf.mxu0
      %v7106 = vadd.f32 %v6894, %v7105
      %7107 = vmatmul.f32.gmra.mxu0 %v6993
      %v7108 = vpop.f32.mrf.mxu0
      %v7109 = vadd.f32 %v6897, %v7108
      %7110 = vmatmul.f32.gmra.mxu0 %v6996
      %v7111 = vpop.f32.mrf.mxu0
      %v7112 = vadd.f32 %v6900, %v7111
      %7113 = vmatmul.f32.gmra.mxu0 %v6999
      %v7114 = vpop.f32.mrf.mxu0
      %v7115 = vadd.f32 %v6903, %v7114
      %7116 = vmatmul.f32.gmra.mxu0 %v7002
      %v7117 = vpop.f32.mrf.mxu0
      %v7118 = vadd.f32 %v6906, %v7117
      %7119 = vmatmul.f32.gmra.mxu0 %v7005
      %v7120 = vpop.f32.mrf.mxu0
      %v7121 = vadd.f32 %v6909, %v7120
      %7122 = vmatmul.f32.gmra.mxu0 %v7008
      %v7123 = vpop.f32.mrf.mxu0
      %v7124 = vadd.f32 %v6912, %v7123
      %7125 = vmatmul.f32.gmra.mxu0 %v7011
      %v7126 = vpop.f32.mrf.mxu0
      %v7127 = vadd.f32 %v6915, %v7126
      %7128 = vmatmul.f32.gmra.mxu0 %v7014
      %v7129 = vpop.f32.mrf.mxu0
      %v7130 = vadd.f32 %v6918, %v7129
      %7131 = vmatmul.f32.gmra.mxu0 %v7017
      %v7132 = vpop.f32.mrf.mxu0
      %v7133 = vadd.f32 %v6921, %v7132
      %7134 = vmatmul.f32.gmra.mxu0 %v7020
      %v7135 = vpop.f32.mrf.mxu0
      %v7136 = vadd.f32 %v6924, %v7135
      %7137 = vmatmul.f32.gmra.mxu0 %v7023
      %v7138 = vpop.f32.mrf.mxu0
      %v7139 = vadd.f32 %v6927, %v7138
      %7140 = vmatmul.f32.gmra.mxu0 %v7026
      %v7141 = vpop.f32.mrf.mxu0
      %v7142 = vadd.f32 %v6930, %v7141
      %7143 = vmatmul.f32.gmra.mxu0 %v7029
      %v7144 = vpop.f32.mrf.mxu0
      %v7145 = vadd.f32 %v6933, %v7144
      %7146 = vmatmul.f32.gmra.mxu0 %v7032
      %v7147 = vpop.f32.mrf.mxu0
      %v7148 = vadd.f32 %v6936, %v7147
      %7149 = vmatmul.f32.gmra.mxu0 %v7035
      %v7150 = vpop.f32.mrf.mxu0
      %v7151 = vadd.f32 %v6939, %v7150
      %7152 = vmatmul.f32.gmra.mxu0 %v7038
      %v7153 = vpop.f32.mrf.mxu0
      %v7154 = vadd.f32 %v6942, %v7153
      %7155 = vmatmul.f32.gmra.mxu0 %v7041
      %v7156 = vpop.f32.mrf.mxu0
      %v7157 = vadd.f32 %v6945, %v7156
      %7158 = vmatmul.f32.gmra.mxu0 %v7044
      %v7159 = vpop.f32.mrf.mxu0
      %v7160 = vadd.f32 %v6948, %v7159
      %7161 = vmatmul.f32.gmra.mxu0 %v7047
      %v7162 = vpop.f32.mrf.mxu0
      %v7163 = vadd.f32 %v6951, %v7162
      %7164 = vmatmul.f32.gmra.mxu0 %v7050
      %v7165 = vpop.f32.mrf.mxu0
      %v7166 = vadd.f32 %v6954, %v7165
      %7167 = vmatmul.f32.gmra.mxu0 %v7053
      %v7168 = vpop.f32.mrf.mxu0
      %v7169 = vadd.f32 %v6957, %v7168
      %7170 = vmatmul.f32.gmra.mxu0 %v7056
      %v7171 = vpop.f32.mrf.mxu0
      %v7172 = vadd.f32 %v6960, %v7171
      %7173 = vmatmul.f32.gmra.mxu0 %v7059
      %v7174 = vpop.f32.mrf.mxu0
      %v7175 = vadd.f32 %v6963, %v7174
      %7176 = vdwg.mxu0
      %v7177 = vld [vmem:[%s6] sm:$0x1]
      %v7179 = vperm.slane %v7177, 0
      %v7181 = vadd.f32 %v7082, %v7179
      %v7182 = vadd.f32 %v7085, %v7179
      %v7183 = vadd.f32 %v7088, %v7179
      %v7184 = vadd.f32 %v7091, %v7179
      %v7185 = vadd.f32 %v7094, %v7179
      %v7186 = vadd.f32 %v7097, %v7179
      %v7187 = vadd.f32 %v7100, %v7179
      %v7188 = vadd.f32 %v7103, %v7179
      %v7189 = vadd.f32 %v7106, %v7179
      %v7190 = vadd.f32 %v7109, %v7179
      %v7191 = vadd.f32 %v7112, %v7179
      %v7192 = vadd.f32 %v7115, %v7179
      %v7193 = vadd.f32 %v7118, %v7179
      %v7194 = vadd.f32 %v7121, %v7179
      %v7195 = vadd.f32 %v7124, %v7179
      %v7196 = vadd.f32 %v7127, %v7179
      %v7197 = vadd.f32 %v7130, %v7179
      %v7198 = vadd.f32 %v7133, %v7179
      %v7199 = vadd.f32 %v7136, %v7179
      %v7200 = vadd.f32 %v7139, %v7179
      %v7201 = vadd.f32 %v7142, %v7179
      %v7202 = vadd.f32 %v7145, %v7179
      %v7203 = vadd.f32 %v7148, %v7179
      %v7204 = vadd.f32 %v7151, %v7179
      %v7205 = vadd.f32 %v7154, %v7179
      %v7206 = vadd.f32 %v7157, %v7179
      %v7207 = vadd.f32 %v7160, %v7179
      %v7208 = vadd.f32 %v7163, %v7179
      %v7209 = vadd.f32 %v7166, %v7179
      %v7210 = vadd.f32 %v7169, %v7179
      %v7211 = vadd.f32 %v7172, %v7179
      %v7212 = vadd.f32 %v7175, %v7179
      %v7213 = vmax.f32 %v7181, 0.0
      %v7214 = vmax.f32 %v7182, 0.0
      %v7215 = vmax.f32 %v7183, 0.0
      %v7216 = vmax.f32 %v7184, 0.0
      %v7217 = vmax.f32 %v7185, 0.0
      %v7218 = vmax.f32 %v7186, 0.0
      %v7219 = vmax.f32 %v7187, 0.0
      %v7220 = vmax.f32 %v7188, 0.0
      %v7221 = vmax.f32 %v7189, 0.0
      %v7222 = vmax.f32 %v7190, 0.0
      %v7223 = vmax.f32 %v7191, 0.0
      %v7224 = vmax.f32 %v7192, 0.0
      %v7225 = vmax.f32 %v7193, 0.0
      %v7226 = vmax.f32 %v7194, 0.0
      %v7227 = vmax.f32 %v7195, 0.0
      %v7228 = vmax.f32 %v7196, 0.0
      %v7229 = vmax.f32 %v7197, 0.0
      %v7230 = vmax.f32 %v7198, 0.0
      %v7231 = vmax.f32 %v7199, 0.0
      %v7232 = vmax.f32 %v7200, 0.0
      %v7233 = vmax.f32 %v7201, 0.0
      %v7234 = vmax.f32 %v7202, 0.0
      %v7235 = vmax.f32 %v7203, 0.0
      %v7236 = vmax.f32 %v7204, 0.0
      %v7237 = vmax.f32 %v7205, 0.0
      %v7238 = vmax.f32 %v7206, 0.0
      %v7239 = vmax.f32 %v7207, 0.0
      %v7240 = vmax.f32 %v7208, 0.0
      %v7241 = vmax.f32 %v7209, 0.0
      %v7242 = vmax.f32 %v7210, 0.0
      %v7243 = vmax.f32 %v7211, 0.0
      %v7244 = vmax.f32 %v7212, 0.0
      %7245 = vst.msk [vmem:[#allocation4] sm:$0xff] %vm366, 0.0
      %7246 = vst.msk [vmem:[#allocation4 + $0x8] sm:$0xff] %vm366, 0.0
      %7247 = vst.msk [vmem:[#allocation4 + $0x10] sm:$0xff] %vm366, 0.0
      %7248 = vst.msk [vmem:[#allocation4 + $0x18] sm:$0x1] %vm3030, 0.0
      %7249 = vst.msk [vmem:[#allocation4 + $0x20] sm:$0xff] %vm366, 0.0
      %7250 = vst.msk [vmem:[#allocation4 + $0x28] sm:$0xff] %vm366, 0.0
      %7251 = vst.msk [vmem:[#allocation4 + $0x30] sm:$0xff] %vm366, 0.0
      %7252 = vst.msk [vmem:[#allocation4 + $0x38] sm:$0x1] %vm3030, 0.0
      %7253 = vst.msk [vmem:[#allocation4 + $0x40] sm:$0xff] %vm366, 0.0
      %7254 = vst.msk [vmem:[#allocation4 + $0x48] sm:$0xff] %vm366, 0.0
      %7255 = vst.msk [vmem:[#allocation4 + $0x50] sm:$0xff] %vm366, 0.0
      %7256 = vst.msk [vmem:[#allocation4 + $0x58] sm:$0x1] %vm3030, 0.0
      %7257 = vst.msk [vmem:[#allocation4 + $0x60] sm:$0xff] %vm366, 0.0
      %7258 = vst.msk [vmem:[#allocation4 + $0x68] sm:$0xff] %vm366, 0.0
      %7259 = vst.msk [vmem:[#allocation4 + $0x70] sm:$0xff] %vm366, 0.0
      %7260 = vst.msk [vmem:[#allocation4 + $0x78] sm:$0x1] %vm3030, 0.0
      %7261 = vst.msk [vmem:[#allocation4 + $0x80] sm:$0xff] %vm366, 0.0
      %7262 = vst.msk [vmem:[#allocation4 + $0x88] sm:$0xff] %vm366, 0.0
      %7263 = vst.msk [vmem:[#allocation4 + $0x90] sm:$0xff] %vm366, 0.0
      %7264 = vst.msk [vmem:[#allocation4 + $0x98] sm:$0x1] %vm3030, 0.0
      %7265 = vst.msk [vmem:[#allocation4 + $0xa0] sm:$0xff] %vm366, 0.0
      %7266 = vst.msk [vmem:[#allocation4 + $0xa8] sm:$0xff] %vm366, 0.0
      %7267 = vst.msk [vmem:[#allocation4 + $0xb0] sm:$0xff] %vm366, 0.0
      %7268 = vst.msk [vmem:[#allocation4 + $0xb8] sm:$0x1] %vm3030, 0.0
      %7269 = vst.msk [vmem:[#allocation4 + $0xc0] sm:$0xff] %vm366, 0.0
      %7270 = vst.msk [vmem:[#allocation4 + $0xc8] sm:$0xff] %vm366, 0.0
      %7271 = vst.msk [vmem:[#allocation4 + $0xd0] sm:$0xff] %vm366, 0.0
      %7272 = vst.msk [vmem:[#allocation4 + $0xd8] sm:$0x1] %vm3030, 0.0
      %7273 = vst.msk [vmem:[#allocation4 + $0xe0] sm:$0xff] %vm366, 0.0
      %7274 = vst.msk [vmem:[#allocation4 + $0xe8] sm:$0xff] %vm366, 0.0
      %7275 = vst.msk [vmem:[#allocation4 + $0xf0] sm:$0xff] %vm366, 0.0
      %7276 = vst.msk [vmem:[#allocation4 + $0xf8] sm:$0x1] %vm3030, 0.0
      %7277 = vst.msk [vmem:[#allocation4 + $0x100] sm:$0xff] %vm366, 0.0
      %7278 = vst.msk [vmem:[#allocation4 + $0x108] sm:$0xff] %vm366, 0.0
      %7279 = vst.msk [vmem:[#allocation4 + $0x110] sm:$0xff] %vm366, 0.0
      %7280 = vst.msk [vmem:[#allocation4 + $0x118] sm:$0x1] %vm3030, 0.0
      %7281 = vst.msk [vmem:[#allocation4 + $0x120] sm:$0xff] %vm366, 0.0
      %7282 = vst.msk [vmem:[#allocation4 + $0x128] sm:$0xff] %vm366, 0.0
      %7283 = vst.msk [vmem:[#allocation4 + $0x130] sm:$0xff] %vm366, 0.0
      %7284 = vst.msk [vmem:[#allocation4 + $0x138] sm:$0x1] %vm3030, 0.0
      %7285 = vst.msk [vmem:[#allocation4 + $0x140] sm:$0xff] %vm366, 0.0
      %7286 = vst.msk [vmem:[#allocation4 + $0x148] sm:$0xff] %vm366, 0.0
      %7287 = vst.msk [vmem:[#allocation4 + $0x150] sm:$0xff] %vm366, 0.0
      %7288 = vst.msk [vmem:[#allocation4 + $0x158] sm:$0x1] %vm3030, 0.0
      %7289 = vst.msk [vmem:[#allocation4 + $0x160] sm:$0xff] %vm366, 0.0
      %7290 = vst.msk [vmem:[#allocation4 + $0x168] sm:$0xff] %vm366, 0.0
      %7291 = vst.msk [vmem:[#allocation4 + $0x170] sm:$0xff] %vm366, 0.0
      %7292 = vst.msk [vmem:[#allocation4 + $0x178] sm:$0x1] %vm3030, 0.0
      %7293 = vst.msk [vmem:[#allocation4 + $0x180] sm:$0xff] %vm366, 0.0
      %7294 = vst.msk [vmem:[#allocation4 + $0x188] sm:$0xff] %vm366, 0.0
      %7295 = vst.msk [vmem:[#allocation4 + $0x190] sm:$0xff] %vm366, 0.0
      %7296 = vst.msk [vmem:[#allocation4 + $0x198] sm:$0x1] %vm3030, 0.0
      %7297 = vst.msk [vmem:[#allocation4 + $0x1a0] sm:$0xff] %vm366, 0.0
      %7298 = vst.msk [vmem:[#allocation4 + $0x1a8] sm:$0xff] %vm366, 0.0
      %7299 = vst.msk [vmem:[#allocation4 + $0x1b0] sm:$0xff] %vm366, 0.0
      %7300 = vst.msk [vmem:[#allocation4 + $0x1b8] sm:$0x1] %vm3030, 0.0
      %7301 = vst.msk [vmem:[#allocation4 + $0x1c0] sm:$0xff] %vm366, 0.0
      %7302 = vst.msk [vmem:[#allocation4 + $0x1c8] sm:$0xff] %vm366, 0.0
      %7303 = vst.msk [vmem:[#allocation4 + $0x1d0] sm:$0xff] %vm366, 0.0
      %7304 = vst.msk [vmem:[#allocation4 + $0x1d8] sm:$0x1] %vm3030, 0.0
      %7305 = vst.msk [vmem:[#allocation4 + $0x1e0] sm:$0xff] %vm366, 0.0
      %7306 = vst.msk [vmem:[#allocation4 + $0x1e8] sm:$0xff] %vm366, 0.0
      %7307 = vst.msk [vmem:[#allocation4 + $0x1f0] sm:$0xff] %vm366, 0.0
      %7308 = vst.msk [vmem:[#allocation4 + $0x1f8] sm:$0x1] %vm3030, 0.0
      %7309 = vst.msk [vmem:[#allocation4 + $0x200] sm:$0xff] %vm366, 0.0
      %7310 = vst.msk [vmem:[#allocation4 + $0x208] sm:$0xff] %vm366, 0.0
      %7311 = vst.msk [vmem:[#allocation4 + $0x210] sm:$0xff] %vm366, 0.0
      %7312 = vst.msk [vmem:[#allocation4 + $0x218] sm:$0x1] %vm3030, 0.0
      %7313 = vst.msk [vmem:[#allocation4 + $0x220] sm:$0xff] %vm366, 0.0
      %7314 = vst.msk [vmem:[#allocation4 + $0x228] sm:$0xff] %vm366, 0.0
      %7315 = vst.msk [vmem:[#allocation4 + $0x230] sm:$0xff] %vm366, 0.0
      %7316 = vst.msk [vmem:[#allocation4 + $0x238] sm:$0x1] %vm3030, 0.0
      %s7317 = scalar_lea.vmem [#allocation4], 32
      %7318 = vst.msk [vmem:[%s7317 + $0x8] sm:$0xff] %vm366, %v7213
      %7319 = vst.msk [vmem:[%s7317 + $0x10] sm:$0xff] %vm366, %v7214
      %7320 = vst.msk [vmem:[%s7317 + $0x28] sm:$0xff] %vm366, %v7215
      %7321 = vst.msk [vmem:[%s7317 + $0x30] sm:$0xff] %vm366, %v7216
      %7322 = vst.msk [vmem:[%s7317 + $0x48] sm:$0xff] %vm366, %v7217
      %7323 = vst.msk [vmem:[%s7317 + $0x50] sm:$0xff] %vm366, %v7218
      %7324 = vst.msk [vmem:[%s7317 + $0x68] sm:$0xff] %vm366, %v7219
      %7325 = vst.msk [vmem:[%s7317 + $0x70] sm:$0xff] %vm366, %v7220
      %7326 = vst.msk [vmem:[%s7317 + $0x88] sm:$0xff] %vm366, %v7221
      %7327 = vst.msk [vmem:[%s7317 + $0x90] sm:$0xff] %vm366, %v7222
      %7328 = vst.msk [vmem:[%s7317 + $0xa8] sm:$0xff] %vm366, %v7223
      %7329 = vst.msk [vmem:[%s7317 + $0xb0] sm:$0xff] %vm366, %v7224
      %7330 = vst.msk [vmem:[%s7317 + $0xc8] sm:$0xff] %vm366, %v7225
      %7331 = vst.msk [vmem:[%s7317 + $0xd0] sm:$0xff] %vm366, %v7226
      %7332 = vst.msk [vmem:[%s7317 + $0xe8] sm:$0xff] %vm366, %v7227
      %7333 = vst.msk [vmem:[%s7317 + $0xf0] sm:$0xff] %vm366, %v7228
      %7334 = vst.msk [vmem:[%s7317 + $0x108] sm:$0xff] %vm366, %v7229
      %7335 = vst.msk [vmem:[%s7317 + $0x110] sm:$0xff] %vm366, %v7230
      %7336 = vst.msk [vmem:[%s7317 + $0x128] sm:$0xff] %vm366, %v7231
      %7337 = vst.msk [vmem:[%s7317 + $0x130] sm:$0xff] %vm366, %v7232
      %7338 = vst.msk [vmem:[%s7317 + $0x148] sm:$0xff] %vm366, %v7233
      %7339 = vst.msk [vmem:[%s7317 + $0x150] sm:$0xff] %vm366, %v7234
      %7340 = vst.msk [vmem:[%s7317 + $0x168] sm:$0xff] %vm366, %v7235
      %7341 = vst.msk [vmem:[%s7317 + $0x170] sm:$0xff] %vm366, %v7236
      %7342 = vst.msk [vmem:[%s7317 + $0x188] sm:$0xff] %vm366, %v7237
      %7343 = vst.msk [vmem:[%s7317 + $0x190] sm:$0xff] %vm366, %v7238
      %7344 = vst.msk [vmem:[%s7317 + $0x1a8] sm:$0xff] %vm366, %v7239
      %7345 = vst.msk [vmem:[%s7317 + $0x1b0] sm:$0xff] %vm366, %v7240
      %7346 = vst.msk [vmem:[%s7317 + $0x1c8] sm:$0xff] %vm366, %v7241
      %7347 = vst.msk [vmem:[%s7317 + $0x1d0] sm:$0xff] %vm366, %v7242
      %7348 = vst.msk [vmem:[%s7317 + $0x1e8] sm:$0xff] %vm366, %v7243
      %7349 = vst.msk [vmem:[%s7317 + $0x1f0] sm:$0xff] %vm366, %v7244
      %v7350 = vld [vmem:[#allocation4 + $0x7] sm:$0xff]
      %v7351 = vld [vmem:[#allocation4 + $0xf] sm:$0xff]
      %v7352 = vld [vmem:[#allocation4 + $0x27] sm:$0xff]
      %v7353 = vld [vmem:[#allocation4 + $0x2f] sm:$0xff]
      %v7354 = vld [vmem:[#allocation4 + $0x47] sm:$0xff]
      %v7355 = vld [vmem:[#allocation4 + $0x4f] sm:$0xff]
      %v7356 = vld [vmem:[#allocation4 + $0x67] sm:$0xff]
      %v7357 = vld [vmem:[#allocation4 + $0x6f] sm:$0xff]
      %v7358 = vld [vmem:[#allocation4 + $0x87] sm:$0xff]
      %v7359 = vld [vmem:[#allocation4 + $0x8f] sm:$0xff]
      %v7360 = vld [vmem:[#allocation4 + $0xa7] sm:$0xff]
      %v7361 = vld [vmem:[#allocation4 + $0xaf] sm:$0xff]
      %v7362 = vld [vmem:[#allocation4 + $0xc7] sm:$0xff]
      %v7363 = vld [vmem:[#allocation4 + $0xcf] sm:$0xff]
      %v7364 = vld [vmem:[#allocation4 + $0xe7] sm:$0xff]
      %v7365 = vld [vmem:[#allocation4 + $0xef] sm:$0xff]
      %v7366 = vld [vmem:[#allocation4 + $0x107] sm:$0xff]
      %v7367 = vld [vmem:[#allocation4 + $0x10f] sm:$0xff]
      %v7368 = vld [vmem:[#allocation4 + $0x127] sm:$0xff]
      %v7369 = vld [vmem:[#allocation4 + $0x12f] sm:$0xff]
      %v7370 = vld [vmem:[#allocation4 + $0x147] sm:$0xff]
      %v7371 = vld [vmem:[#allocation4 + $0x14f] sm:$0xff]
      %v7372 = vld [vmem:[#allocation4 + $0x167] sm:$0xff]
      %v7373 = vld [vmem:[#allocation4 + $0x16f] sm:$0xff]
      %v7374 = vld [vmem:[#allocation4 + $0x187] sm:$0xff]
      %v7375 = vld [vmem:[#allocation4 + $0x18f] sm:$0xff]
      %v7376 = vld [vmem:[#allocation4 + $0x1a7] sm:$0xff]
      %v7377 = vld [vmem:[#allocation4 + $0x1af] sm:$0xff]
      %v7378 = vld [vmem:[#allocation4 + $0x1c7] sm:$0xff]
      %v7379 = vld [vmem:[#allocation4 + $0x1cf] sm:$0xff]
      %v7380 = vld [vmem:[#allocation4 + $0x1e7] sm:$0xff]
      %v7381 = vld [vmem:[#allocation4 + $0x1ef] sm:$0xff]
      %v7382 = vld [vmem:[#allocation4 + $0x8] sm:$0xff]
      %v7383 = vld [vmem:[#allocation4 + $0x10] sm:$0xff]
      %v7384 = vld [vmem:[#allocation4 + $0x28] sm:$0xff]
      %v7385 = vld [vmem:[#allocation4 + $0x30] sm:$0xff]
      %v7386 = vld [vmem:[#allocation4 + $0x48] sm:$0xff]
      %v7387 = vld [vmem:[#allocation4 + $0x50] sm:$0xff]
      %v7388 = vld [vmem:[#allocation4 + $0x68] sm:$0xff]
      %v7389 = vld [vmem:[#allocation4 + $0x70] sm:$0xff]
      %v7390 = vld [vmem:[#allocation4 + $0x88] sm:$0xff]
      %v7391 = vld [vmem:[#allocation4 + $0x90] sm:$0xff]
      %v7392 = vld [vmem:[#allocation4 + $0xa8] sm:$0xff]
      %v7393 = vld [vmem:[#allocation4 + $0xb0] sm:$0xff]
      %v7394 = vld [vmem:[#allocation4 + $0xc8] sm:$0xff]
      %v7395 = vld [vmem:[#allocation4 + $0xd0] sm:$0xff]
      %v7396 = vld [vmem:[#allocation4 + $0xe8] sm:$0xff]
      %v7397 = vld [vmem:[#allocation4 + $0xf0] sm:$0xff]
      %v7398 = vld [vmem:[#allocation4 + $0x108] sm:$0xff]
      %v7399 = vld [vmem:[#allocation4 + $0x110] sm:$0xff]
      %v7400 = vld [vmem:[#allocation4 + $0x128] sm:$0xff]
      %v7401 = vld [vmem:[#allocation4 + $0x130] sm:$0xff]
      %v7402 = vld [vmem:[#allocation4 + $0x148] sm:$0xff]
      %v7403 = vld [vmem:[#allocation4 + $0x150] sm:$0xff]
      %v7404 = vld [vmem:[#allocation4 + $0x168] sm:$0xff]
      %v7405 = vld [vmem:[#allocation4 + $0x170] sm:$0xff]
      %v7406 = vld [vmem:[#allocation4 + $0x188] sm:$0xff]
      %v7407 = vld [vmem:[#allocation4 + $0x190] sm:$0xff]
      %v7408 = vld [vmem:[#allocation4 + $0x1a8] sm:$0xff]
      %v7409 = vld [vmem:[#allocation4 + $0x1b0] sm:$0xff]
      %v7410 = vld [vmem:[#allocation4 + $0x1c8] sm:$0xff]
      %v7411 = vld [vmem:[#allocation4 + $0x1d0] sm:$0xff]
      %v7412 = vld [vmem:[#allocation4 + $0x1e8] sm:$0xff]
      %v7413 = vld [vmem:[#allocation4 + $0x1f0] sm:$0xff]
      %v7414 = vld [vmem:[#allocation4 + $0x9] sm:$0xff]
      %v7415 = vld [vmem:[#allocation4 + $0x11] sm:$0xff]
      %v7416 = vld [vmem:[#allocation4 + $0x29] sm:$0xff]
      %v7417 = vld [vmem:[#allocation4 + $0x31] sm:$0xff]
      %v7418 = vld [vmem:[#allocation4 + $0x49] sm:$0xff]
      %v7419 = vld [vmem:[#allocation4 + $0x51] sm:$0xff]
      %v7420 = vld [vmem:[#allocation4 + $0x69] sm:$0xff]
      %v7421 = vld [vmem:[#allocation4 + $0x71] sm:$0xff]
      %v7422 = vld [vmem:[#allocation4 + $0x89] sm:$0xff]
      %v7423 = vld [vmem:[#allocation4 + $0x91] sm:$0xff]
      %v7424 = vld [vmem:[#allocation4 + $0xa9] sm:$0xff]
      %v7425 = vld [vmem:[#allocation4 + $0xb1] sm:$0xff]
      %v7426 = vld [vmem:[#allocation4 + $0xc9] sm:$0xff]
      %v7427 = vld [vmem:[#allocation4 + $0xd1] sm:$0xff]
      %v7428 = vld [vmem:[#allocation4 + $0xe9] sm:$0xff]
      %v7429 = vld [vmem:[#allocation4 + $0xf1] sm:$0xff]
      %v7430 = vld [vmem:[#allocation4 + $0x109] sm:$0xff]
      %v7431 = vld [vmem:[#allocation4 + $0x111] sm:$0xff]
      %v7432 = vld [vmem:[#allocation4 + $0x129] sm:$0xff]
      %v7433 = vld [vmem:[#allocation4 + $0x131] sm:$0xff]
      %v7434 = vld [vmem:[#allocation4 + $0x149] sm:$0xff]
      %v7435 = vld [vmem:[#allocation4 + $0x151] sm:$0xff]
      %v7436 = vld [vmem:[#allocation4 + $0x169] sm:$0xff]
      %v7437 = vld [vmem:[#allocation4 + $0x171] sm:$0xff]
      %v7438 = vld [vmem:[#allocation4 + $0x189] sm:$0xff]
      %v7439 = vld [vmem:[#allocation4 + $0x191] sm:$0xff]
      %v7440 = vld [vmem:[#allocation4 + $0x1a9] sm:$0xff]
      %v7441 = vld [vmem:[#allocation4 + $0x1b1] sm:$0xff]
      %v7442 = vld [vmem:[#allocation4 + $0x1c9] sm:$0xff]
      %v7443 = vld [vmem:[#allocation4 + $0x1d1] sm:$0xff]
      %v7444 = vld [vmem:[#allocation4 + $0x1e9] sm:$0xff]
      %v7445 = vld [vmem:[#allocation4 + $0x1f1] sm:$0xff]
      %v7446 = vld [vmem:[%s7317 + $0x7] sm:$0xff]
      %v7447 = vld [vmem:[%s7317 + $0xf] sm:$0xff]
      %v7448 = vld [vmem:[%s7317 + $0x27] sm:$0xff]
      %v7449 = vld [vmem:[%s7317 + $0x2f] sm:$0xff]
      %v7450 = vld [vmem:[%s7317 + $0x47] sm:$0xff]
      %v7451 = vld [vmem:[%s7317 + $0x4f] sm:$0xff]
      %v7452 = vld [vmem:[%s7317 + $0x67] sm:$0xff]
      %v7453 = vld [vmem:[%s7317 + $0x6f] sm:$0xff]
      %v7454 = vld [vmem:[%s7317 + $0x87] sm:$0xff]
      %v7455 = vld [vmem:[%s7317 + $0x8f] sm:$0xff]
      %v7456 = vld [vmem:[%s7317 + $0xa7] sm:$0xff]
      %v7457 = vld [vmem:[%s7317 + $0xaf] sm:$0xff]
      %v7458 = vld [vmem:[%s7317 + $0xc7] sm:$0xff]
      %v7459 = vld [vmem:[%s7317 + $0xcf] sm:$0xff]
      %v7460 = vld [vmem:[%s7317 + $0xe7] sm:$0xff]
      %v7461 = vld [vmem:[%s7317 + $0xef] sm:$0xff]
      %v7462 = vld [vmem:[%s7317 + $0x107] sm:$0xff]
      %v7463 = vld [vmem:[%s7317 + $0x10f] sm:$0xff]
      %v7464 = vld [vmem:[%s7317 + $0x127] sm:$0xff]
      %v7465 = vld [vmem:[%s7317 + $0x12f] sm:$0xff]
      %v7466 = vld [vmem:[%s7317 + $0x147] sm:$0xff]
      %v7467 = vld [vmem:[%s7317 + $0x14f] sm:$0xff]
      %v7468 = vld [vmem:[%s7317 + $0x167] sm:$0xff]
      %v7469 = vld [vmem:[%s7317 + $0x16f] sm:$0xff]
      %v7470 = vld [vmem:[%s7317 + $0x187] sm:$0xff]
      %v7471 = vld [vmem:[%s7317 + $0x18f] sm:$0xff]
      %v7472 = vld [vmem:[%s7317 + $0x1a7] sm:$0xff]
      %v7473 = vld [vmem:[%s7317 + $0x1af] sm:$0xff]
      %v7474 = vld [vmem:[%s7317 + $0x1c7] sm:$0xff]
      %v7475 = vld [vmem:[%s7317 + $0x1cf] sm:$0xff]
      %v7476 = vld [vmem:[%s7317 + $0x1e7] sm:$0xff]
      %v7477 = vld [vmem:[%s7317 + $0x1ef] sm:$0xff]
      %v7478 = vld [vmem:[%s7317 + $0x8] sm:$0xff]
      %v7479 = vld [vmem:[%s7317 + $0x10] sm:$0xff]
      %v7480 = vld [vmem:[%s7317 + $0x28] sm:$0xff]
      %v7481 = vld [vmem:[%s7317 + $0x30] sm:$0xff]
      %v7482 = vld [vmem:[%s7317 + $0x48] sm:$0xff]
      %v7483 = vld [vmem:[%s7317 + $0x50] sm:$0xff]
      %v7484 = vld [vmem:[%s7317 + $0x68] sm:$0xff]
      %v7485 = vld [vmem:[%s7317 + $0x70] sm:$0xff]
      %v7486 = vld [vmem:[%s7317 + $0x88] sm:$0xff]
      %v7487 = vld [vmem:[%s7317 + $0x90] sm:$0xff]
      %v7488 = vld [vmem:[%s7317 + $0xa8] sm:$0xff]
      %v7489 = vld [vmem:[%s7317 + $0xb0] sm:$0xff]
      %v7490 = vld [vmem:[%s7317 + $0xc8] sm:$0xff]
      %v7491 = vld [vmem:[%s7317 + $0xd0] sm:$0xff]
      %v7492 = vld [vmem:[%s7317 + $0xe8] sm:$0xff]
      %v7493 = vld [vmem:[%s7317 + $0xf0] sm:$0xff]
      %v7494 = vld [vmem:[%s7317 + $0x108] sm:$0xff]
      %v7495 = vld [vmem:[%s7317 + $0x110] sm:$0xff]
      %v7496 = vld [vmem:[%s7317 + $0x128] sm:$0xff]
      %v7497 = vld [vmem:[%s7317 + $0x130] sm:$0xff]
      %v7498 = vld [vmem:[%s7317 + $0x148] sm:$0xff]
      %v7499 = vld [vmem:[%s7317 + $0x150] sm:$0xff]
      %v7500 = vld [vmem:[%s7317 + $0x168] sm:$0xff]
      %v7501 = vld [vmem:[%s7317 + $0x170] sm:$0xff]
      %v7502 = vld [vmem:[%s7317 + $0x188] sm:$0xff]
      %v7503 = vld [vmem:[%s7317 + $0x190] sm:$0xff]
      %v7504 = vld [vmem:[%s7317 + $0x1a8] sm:$0xff]
      %v7505 = vld [vmem:[%s7317 + $0x1b0] sm:$0xff]
      %v7506 = vld [vmem:[%s7317 + $0x1c8] sm:$0xff]
      %v7507 = vld [vmem:[%s7317 + $0x1d0] sm:$0xff]
      %v7508 = vld [vmem:[%s7317 + $0x1e8] sm:$0xff]
      %v7509 = vld [vmem:[%s7317 + $0x1f0] sm:$0xff]
      %v7510 = vld [vmem:[%s7317 + $0x9] sm:$0xff]
      %v7511 = vld [vmem:[%s7317 + $0x11] sm:$0xff]
      %v7512 = vld [vmem:[%s7317 + $0x29] sm:$0xff]
      %v7513 = vld [vmem:[%s7317 + $0x31] sm:$0xff]
      %v7514 = vld [vmem:[%s7317 + $0x49] sm:$0xff]
      %v7515 = vld [vmem:[%s7317 + $0x51] sm:$0xff]
      %v7516 = vld [vmem:[%s7317 + $0x69] sm:$0xff]
      %v7517 = vld [vmem:[%s7317 + $0x71] sm:$0xff]
      %v7518 = vld [vmem:[%s7317 + $0x89] sm:$0xff]
      %v7519 = vld [vmem:[%s7317 + $0x91] sm:$0xff]
      %v7520 = vld [vmem:[%s7317 + $0xa9] sm:$0xff]
      %v7521 = vld [vmem:[%s7317 + $0xb1] sm:$0xff]
      %v7522 = vld [vmem:[%s7317 + $0xc9] sm:$0xff]
      %v7523 = vld [vmem:[%s7317 + $0xd1] sm:$0xff]
      %v7524 = vld [vmem:[%s7317 + $0xe9] sm:$0xff]
      %v7525 = vld [vmem:[%s7317 + $0xf1] sm:$0xff]
      %v7526 = vld [vmem:[%s7317 + $0x109] sm:$0xff]
      %v7527 = vld [vmem:[%s7317 + $0x111] sm:$0xff]
      %v7528 = vld [vmem:[%s7317 + $0x129] sm:$0xff]
      %v7529 = vld [vmem:[%s7317 + $0x131] sm:$0xff]
      %v7530 = vld [vmem:[%s7317 + $0x149] sm:$0xff]
      %v7531 = vld [vmem:[%s7317 + $0x151] sm:$0xff]
      %v7532 = vld [vmem:[%s7317 + $0x169] sm:$0xff]
      %v7533 = vld [vmem:[%s7317 + $0x171] sm:$0xff]
      %v7534 = vld [vmem:[%s7317 + $0x189] sm:$0xff]
      %v7535 = vld [vmem:[%s7317 + $0x191] sm:$0xff]
      %v7536 = vld [vmem:[%s7317 + $0x1a9] sm:$0xff]
      %v7537 = vld [vmem:[%s7317 + $0x1b1] sm:$0xff]
      %v7538 = vld [vmem:[%s7317 + $0x1c9] sm:$0xff]
      %v7539 = vld [vmem:[%s7317 + $0x1d1] sm:$0xff]
      %v7540 = vld [vmem:[%s7317 + $0x1e9] sm:$0xff]
      %v7541 = vld [vmem:[%s7317 + $0x1f1] sm:$0xff]
      %s7542 = scalar_lea.vmem [#allocation4], 64
      %v7543 = vld [vmem:[%s7542 + $0x7] sm:$0xff]
      %v7544 = vld [vmem:[%s7542 + $0xf] sm:$0xff]
      %v7545 = vld [vmem:[%s7542 + $0x27] sm:$0xff]
      %v7546 = vld [vmem:[%s7542 + $0x2f] sm:$0xff]
      %v7547 = vld [vmem:[%s7542 + $0x47] sm:$0xff]
      %v7548 = vld [vmem:[%s7542 + $0x4f] sm:$0xff]
      %v7549 = vld [vmem:[%s7542 + $0x67] sm:$0xff]
      %v7550 = vld [vmem:[%s7542 + $0x6f] sm:$0xff]
      %v7551 = vld [vmem:[%s7542 + $0x87] sm:$0xff]
      %v7552 = vld [vmem:[%s7542 + $0x8f] sm:$0xff]
      %v7553 = vld [vmem:[%s7542 + $0xa7] sm:$0xff]
      %v7554 = vld [vmem:[%s7542 + $0xaf] sm:$0xff]
      %v7555 = vld [vmem:[%s7542 + $0xc7] sm:$0xff]
      %v7556 = vld [vmem:[%s7542 + $0xcf] sm:$0xff]
      %v7557 = vld [vmem:[%s7542 + $0xe7] sm:$0xff]
      %v7558 = vld [vmem:[%s7542 + $0xef] sm:$0xff]
      %v7559 = vld [vmem:[%s7542 + $0x107] sm:$0xff]
      %v7560 = vld [vmem:[%s7542 + $0x10f] sm:$0xff]
      %v7561 = vld [vmem:[%s7542 + $0x127] sm:$0xff]
      %v7562 = vld [vmem:[%s7542 + $0x12f] sm:$0xff]
      %v7563 = vld [vmem:[%s7542 + $0x147] sm:$0xff]
      %v7564 = vld [vmem:[%s7542 + $0x14f] sm:$0xff]
      %v7565 = vld [vmem:[%s7542 + $0x167] sm:$0xff]
      %v7566 = vld [vmem:[%s7542 + $0x16f] sm:$0xff]
      %v7567 = vld [vmem:[%s7542 + $0x187] sm:$0xff]
      %v7568 = vld [vmem:[%s7542 + $0x18f] sm:$0xff]
      %v7569 = vld [vmem:[%s7542 + $0x1a7] sm:$0xff]
      %v7570 = vld [vmem:[%s7542 + $0x1af] sm:$0xff]
      %v7571 = vld [vmem:[%s7542 + $0x1c7] sm:$0xff]
      %v7572 = vld [vmem:[%s7542 + $0x1cf] sm:$0xff]
      %v7573 = vld [vmem:[%s7542 + $0x1e7] sm:$0xff]
      %v7574 = vld [vmem:[%s7542 + $0x1ef] sm:$0xff]
      %v7575 = vld [vmem:[%s7542 + $0x8] sm:$0xff]
      %v7576 = vld [vmem:[%s7542 + $0x10] sm:$0xff]
      %v7577 = vld [vmem:[%s7542 + $0x28] sm:$0xff]
      %v7578 = vld [vmem:[%s7542 + $0x30] sm:$0xff]
      %v7579 = vld [vmem:[%s7542 + $0x48] sm:$0xff]
      %v7580 = vld [vmem:[%s7542 + $0x50] sm:$0xff]
      %v7581 = vld [vmem:[%s7542 + $0x68] sm:$0xff]
      %v7582 = vld [vmem:[%s7542 + $0x70] sm:$0xff]
      %v7583 = vld [vmem:[%s7542 + $0x88] sm:$0xff]
      %v7584 = vld [vmem:[%s7542 + $0x90] sm:$0xff]
      %v7585 = vld [vmem:[%s7542 + $0xa8] sm:$0xff]
      %v7586 = vld [vmem:[%s7542 + $0xb0] sm:$0xff]
      %v7587 = vld [vmem:[%s7542 + $0xc8] sm:$0xff]
      %v7588 = vld [vmem:[%s7542 + $0xd0] sm:$0xff]
      %v7589 = vld [vmem:[%s7542 + $0xe8] sm:$0xff]
      %v7590 = vld [vmem:[%s7542 + $0xf0] sm:$0xff]
      %v7591 = vld [vmem:[%s7542 + $0x108] sm:$0xff]
      %v7592 = vld [vmem:[%s7542 + $0x110] sm:$0xff]
      %v7593 = vld [vmem:[%s7542 + $0x128] sm:$0xff]
      %v7594 = vld [vmem:[%s7542 + $0x130] sm:$0xff]
      %v7595 = vld [vmem:[%s7542 + $0x148] sm:$0xff]
      %v7596 = vld [vmem:[%s7542 + $0x150] sm:$0xff]
      %v7597 = vld [vmem:[%s7542 + $0x168] sm:$0xff]
      %v7598 = vld [vmem:[%s7542 + $0x170] sm:$0xff]
      %v7599 = vld [vmem:[%s7542 + $0x188] sm:$0xff]
      %v7600 = vld [vmem:[%s7542 + $0x190] sm:$0xff]
      %v7601 = vld [vmem:[%s7542 + $0x1a8] sm:$0xff]
      %v7602 = vld [vmem:[%s7542 + $0x1b0] sm:$0xff]
      %v7603 = vld [vmem:[%s7542 + $0x1c8] sm:$0xff]
      %v7604 = vld [vmem:[%s7542 + $0x1d0] sm:$0xff]
      %v7605 = vld [vmem:[%s7542 + $0x1e8] sm:$0xff]
      %v7606 = vld [vmem:[%s7542 + $0x1f0] sm:$0xff]
      %v7607 = vld [vmem:[%s7542 + $0x9] sm:$0xff]
      %v7608 = vld [vmem:[%s7542 + $0x11] sm:$0xff]
      %v7609 = vld [vmem:[%s7542 + $0x29] sm:$0xff]
      %v7610 = vld [vmem:[%s7542 + $0x31] sm:$0xff]
      %v7611 = vld [vmem:[%s7542 + $0x49] sm:$0xff]
      %v7612 = vld [vmem:[%s7542 + $0x51] sm:$0xff]
      %v7613 = vld [vmem:[%s7542 + $0x69] sm:$0xff]
      %v7614 = vld [vmem:[%s7542 + $0x71] sm:$0xff]
      %v7615 = vld [vmem:[%s7542 + $0x89] sm:$0xff]
      %v7616 = vld [vmem:[%s7542 + $0x91] sm:$0xff]
      %v7617 = vld [vmem:[%s7542 + $0xa9] sm:$0xff]
      %v7618 = vld [vmem:[%s7542 + $0xb1] sm:$0xff]
      %v7619 = vld [vmem:[%s7542 + $0xc9] sm:$0xff]
      %v7620 = vld [vmem:[%s7542 + $0xd1] sm:$0xff]
      %v7621 = vld [vmem:[%s7542 + $0xe9] sm:$0xff]
      %v7622 = vld [vmem:[%s7542 + $0xf1] sm:$0xff]
      %v7623 = vld [vmem:[%s7542 + $0x109] sm:$0xff]
      %v7624 = vld [vmem:[%s7542 + $0x111] sm:$0xff]
      %v7625 = vld [vmem:[%s7542 + $0x129] sm:$0xff]
      %v7626 = vld [vmem:[%s7542 + $0x131] sm:$0xff]
      %v7627 = vld [vmem:[%s7542 + $0x149] sm:$0xff]
      %v7628 = vld [vmem:[%s7542 + $0x151] sm:$0xff]
      %v7629 = vld [vmem:[%s7542 + $0x169] sm:$0xff]
      %v7630 = vld [vmem:[%s7542 + $0x171] sm:$0xff]
      %v7631 = vld [vmem:[%s7542 + $0x189] sm:$0xff]
      %v7632 = vld [vmem:[%s7542 + $0x191] sm:$0xff]
      %v7633 = vld [vmem:[%s7542 + $0x1a9] sm:$0xff]
      %v7634 = vld [vmem:[%s7542 + $0x1b1] sm:$0xff]
      %v7635 = vld [vmem:[%s7542 + $0x1c9] sm:$0xff]
      %v7636 = vld [vmem:[%s7542 + $0x1d1] sm:$0xff]
      %v7637 = vld [vmem:[%s7542 + $0x1e9] sm:$0xff]
      %v7638 = vld [vmem:[%s7542 + $0x1f1] sm:$0xff]
      %7671 = vrot.lane.b32.xlu0 %v7382, 4
      %v7672 = vpop.permute.xlu0 %7671
      %7673 = vrot.lane.b32.xlu0 %v7383, 4
      %v7674 = vpop.permute.xlu0 %7673
      %7675 = vrot.lane.b32.xlu0 %v7384, 4
      %v7676 = vpop.permute.xlu0 %7675
      %7677 = vrot.lane.b32.xlu0 %v7385, 4
      %v7678 = vpop.permute.xlu0 %7677
      %7679 = vrot.lane.b32.xlu0 %v7386, 4
      %v7680 = vpop.permute.xlu0 %7679
      %7681 = vrot.lane.b32.xlu0 %v7387, 4
      %v7682 = vpop.permute.xlu0 %7681
      %7683 = vrot.lane.b32.xlu0 %v7388, 4
      %v7684 = vpop.permute.xlu0 %7683
      %7685 = vrot.lane.b32.xlu0 %v7389, 4
      %v7686 = vpop.permute.xlu0 %7685
      %7687 = vrot.lane.b32.xlu0 %v7390, 4
      %v7688 = vpop.permute.xlu0 %7687
      %7689 = vrot.lane.b32.xlu0 %v7391, 4
      %v7690 = vpop.permute.xlu0 %7689
      %7691 = vrot.lane.b32.xlu0 %v7392, 4
      %v7692 = vpop.permute.xlu0 %7691
      %7693 = vrot.lane.b32.xlu0 %v7393, 4
      %v7694 = vpop.permute.xlu0 %7693
      %7695 = vrot.lane.b32.xlu0 %v7394, 4
      %v7696 = vpop.permute.xlu0 %7695
      %7697 = vrot.lane.b32.xlu0 %v7395, 4
      %v7698 = vpop.permute.xlu0 %7697
      %7699 = vrot.lane.b32.xlu0 %v7396, 4
      %v7700 = vpop.permute.xlu0 %7699
      %7701 = vrot.lane.b32.xlu0 %v7397, 4
      %v7702 = vpop.permute.xlu0 %7701
      %7703 = vrot.lane.b32.xlu0 %v7398, 4
      %v7704 = vpop.permute.xlu0 %7703
      %7705 = vrot.lane.b32.xlu0 %v7399, 4
      %v7706 = vpop.permute.xlu0 %7705
      %7707 = vrot.lane.b32.xlu0 %v7400, 4
      %v7708 = vpop.permute.xlu0 %7707
      %7709 = vrot.lane.b32.xlu0 %v7401, 4
      %v7710 = vpop.permute.xlu0 %7709
      %7711 = vrot.lane.b32.xlu0 %v7402, 4
      %v7712 = vpop.permute.xlu0 %7711
      %7713 = vrot.lane.b32.xlu0 %v7403, 4
      %v7714 = vpop.permute.xlu0 %7713
      %7715 = vrot.lane.b32.xlu0 %v7404, 4
      %v7716 = vpop.permute.xlu0 %7715
      %7717 = vrot.lane.b32.xlu0 %v7405, 4
      %v7718 = vpop.permute.xlu0 %7717
      %7719 = vrot.lane.b32.xlu0 %v7406, 4
      %v7720 = vpop.permute.xlu0 %7719
      %7721 = vrot.lane.b32.xlu0 %v7407, 4
      %v7722 = vpop.permute.xlu0 %7721
      %7723 = vrot.lane.b32.xlu0 %v7408, 4
      %v7724 = vpop.permute.xlu0 %7723
      %7725 = vrot.lane.b32.xlu0 %v7409, 4
      %v7726 = vpop.permute.xlu0 %7725
      %7727 = vrot.lane.b32.xlu0 %v7410, 4
      %v7728 = vpop.permute.xlu0 %7727
      %7729 = vrot.lane.b32.xlu0 %v7411, 4
      %v7730 = vpop.permute.xlu0 %7729
      %7731 = vrot.lane.b32.xlu0 %v7412, 4
      %v7732 = vpop.permute.xlu0 %7731
      %7733 = vrot.lane.b32.xlu0 %v7413, 4
      %v7734 = vpop.permute.xlu0 %7733
      %7799 = vrot.lane.b32.xlu0 %v7414, 8
      %v7800 = vpop.permute.xlu0 %7799
      %7801 = vrot.lane.b32.xlu0 %v7415, 8
      %v7802 = vpop.permute.xlu0 %7801
      %7803 = vrot.lane.b32.xlu0 %v7416, 8
      %v7804 = vpop.permute.xlu0 %7803
      %7805 = vrot.lane.b32.xlu0 %v7417, 8
      %v7806 = vpop.permute.xlu0 %7805
      %7807 = vrot.lane.b32.xlu0 %v7418, 8
      %v7808 = vpop.permute.xlu0 %7807
      %7809 = vrot.lane.b32.xlu0 %v7419, 8
      %v7810 = vpop.permute.xlu0 %7809
      %7811 = vrot.lane.b32.xlu0 %v7420, 8
      %v7812 = vpop.permute.xlu0 %7811
      %7813 = vrot.lane.b32.xlu0 %v7421, 8
      %v7814 = vpop.permute.xlu0 %7813
      %7815 = vrot.lane.b32.xlu0 %v7422, 8
      %v7816 = vpop.permute.xlu0 %7815
      %7817 = vrot.lane.b32.xlu0 %v7423, 8
      %v7818 = vpop.permute.xlu0 %7817
      %7819 = vrot.lane.b32.xlu0 %v7424, 8
      %v7820 = vpop.permute.xlu0 %7819
      %7821 = vrot.lane.b32.xlu0 %v7425, 8
      %v7822 = vpop.permute.xlu0 %7821
      %7823 = vrot.lane.b32.xlu0 %v7426, 8
      %v7824 = vpop.permute.xlu0 %7823
      %7825 = vrot.lane.b32.xlu0 %v7427, 8
      %v7826 = vpop.permute.xlu0 %7825
      %7827 = vrot.lane.b32.xlu0 %v7428, 8
      %v7828 = vpop.permute.xlu0 %7827
      %7829 = vrot.lane.b32.xlu0 %v7429, 8
      %v7830 = vpop.permute.xlu0 %7829
      %7831 = vrot.lane.b32.xlu0 %v7430, 8
      %v7832 = vpop.permute.xlu0 %7831
      %7833 = vrot.lane.b32.xlu0 %v7431, 8
      %v7834 = vpop.permute.xlu0 %7833
      %7835 = vrot.lane.b32.xlu0 %v7432, 8
      %v7836 = vpop.permute.xlu0 %7835
      %7837 = vrot.lane.b32.xlu0 %v7433, 8
      %v7838 = vpop.permute.xlu0 %7837
      %7839 = vrot.lane.b32.xlu0 %v7434, 8
      %v7840 = vpop.permute.xlu0 %7839
      %7841 = vrot.lane.b32.xlu0 %v7435, 8
      %v7842 = vpop.permute.xlu0 %7841
      %7843 = vrot.lane.b32.xlu0 %v7436, 8
      %v7844 = vpop.permute.xlu0 %7843
      %7845 = vrot.lane.b32.xlu0 %v7437, 8
      %v7846 = vpop.permute.xlu0 %7845
      %7847 = vrot.lane.b32.xlu0 %v7438, 8
      %v7848 = vpop.permute.xlu0 %7847
      %7849 = vrot.lane.b32.xlu0 %v7439, 8
      %v7850 = vpop.permute.xlu0 %7849
      %7851 = vrot.lane.b32.xlu0 %v7440, 8
      %v7852 = vpop.permute.xlu0 %7851
      %7853 = vrot.lane.b32.xlu0 %v7441, 8
      %v7854 = vpop.permute.xlu0 %7853
      %7855 = vrot.lane.b32.xlu0 %v7442, 8
      %v7856 = vpop.permute.xlu0 %7855
      %7857 = vrot.lane.b32.xlu0 %v7443, 8
      %v7858 = vpop.permute.xlu0 %7857
      %7859 = vrot.lane.b32.xlu0 %v7444, 8
      %v7860 = vpop.permute.xlu0 %7859
      %7861 = vrot.lane.b32.xlu0 %v7445, 8
      %v7862 = vpop.permute.xlu0 %7861
      %7927 = vrot.lane.b32.xlu0 %v7446, 12
      %v7928 = vpop.permute.xlu0 %7927
      %7929 = vrot.lane.b32.xlu0 %v7447, 12
      %v7930 = vpop.permute.xlu0 %7929
      %7931 = vrot.lane.b32.xlu0 %v7448, 12
      %v7932 = vpop.permute.xlu0 %7931
      %7933 = vrot.lane.b32.xlu0 %v7449, 12
      %v7934 = vpop.permute.xlu0 %7933
      %7935 = vrot.lane.b32.xlu0 %v7450, 12
      %v7936 = vpop.permute.xlu0 %7935
      %7937 = vrot.lane.b32.xlu0 %v7451, 12
      %v7938 = vpop.permute.xlu0 %7937
      %7939 = vrot.lane.b32.xlu0 %v7452, 12
      %v7940 = vpop.permute.xlu0 %7939
      %7941 = vrot.lane.b32.xlu0 %v7453, 12
      %v7942 = vpop.permute.xlu0 %7941
      %7943 = vrot.lane.b32.xlu0 %v7454, 12
      %v7944 = vpop.permute.xlu0 %7943
      %7945 = vrot.lane.b32.xlu0 %v7455, 12
      %v7946 = vpop.permute.xlu0 %7945
      %7947 = vrot.lane.b32.xlu0 %v7456, 12
      %v7948 = vpop.permute.xlu0 %7947
      %7949 = vrot.lane.b32.xlu0 %v7457, 12
      %v7950 = vpop.permute.xlu0 %7949
      %7951 = vrot.lane.b32.xlu0 %v7458, 12
      %v7952 = vpop.permute.xlu0 %7951
      %7953 = vrot.lane.b32.xlu0 %v7459, 12
      %v7954 = vpop.permute.xlu0 %7953
      %7955 = vrot.lane.b32.xlu0 %v7460, 12
      %v7956 = vpop.permute.xlu0 %7955
      %7957 = vrot.lane.b32.xlu0 %v7461, 12
      %v7958 = vpop.permute.xlu0 %7957
      %7959 = vrot.lane.b32.xlu0 %v7462, 12
      %v7960 = vpop.permute.xlu0 %7959
      %7961 = vrot.lane.b32.xlu0 %v7463, 12
      %v7962 = vpop.permute.xlu0 %7961
      %7963 = vrot.lane.b32.xlu0 %v7464, 12
      %v7964 = vpop.permute.xlu0 %7963
      %7965 = vrot.lane.b32.xlu0 %v7465, 12
      %v7966 = vpop.permute.xlu0 %7965
      %7967 = vrot.lane.b32.xlu0 %v7466, 12
      %v7968 = vpop.permute.xlu0 %7967
      %7969 = vrot.lane.b32.xlu0 %v7467, 12
      %v7970 = vpop.permute.xlu0 %7969
      %7971 = vrot.lane.b32.xlu0 %v7468, 12
      %v7972 = vpop.permute.xlu0 %7971
      %7973 = vrot.lane.b32.xlu0 %v7469, 12
      %v7974 = vpop.permute.xlu0 %7973
      %7975 = vrot.lane.b32.xlu0 %v7470, 12
      %v7976 = vpop.permute.xlu0 %7975
      %7977 = vrot.lane.b32.xlu0 %v7471, 12
      %v7978 = vpop.permute.xlu0 %7977
      %7979 = vrot.lane.b32.xlu0 %v7472, 12
      %v7980 = vpop.permute.xlu0 %7979
      %7981 = vrot.lane.b32.xlu0 %v7473, 12
      %v7982 = vpop.permute.xlu0 %7981
      %7983 = vrot.lane.b32.xlu0 %v7474, 12
      %v7984 = vpop.permute.xlu0 %7983
      %7985 = vrot.lane.b32.xlu0 %v7475, 12
      %v7986 = vpop.permute.xlu0 %7985
      %7987 = vrot.lane.b32.xlu0 %v7476, 12
      %v7988 = vpop.permute.xlu0 %7987
      %7989 = vrot.lane.b32.xlu0 %v7477, 12
      %v7990 = vpop.permute.xlu0 %7989
      %8055 = vrot.lane.b32.xlu0 %v7478, 16
      %v8056 = vpop.permute.xlu0 %8055
      %8057 = vrot.lane.b32.xlu0 %v7479, 16
      %v8058 = vpop.permute.xlu0 %8057
      %8059 = vrot.lane.b32.xlu0 %v7480, 16
      %v8060 = vpop.permute.xlu0 %8059
      %8061 = vrot.lane.b32.xlu0 %v7481, 16
      %v8062 = vpop.permute.xlu0 %8061
      %8063 = vrot.lane.b32.xlu0 %v7482, 16
      %v8064 = vpop.permute.xlu0 %8063
      %8065 = vrot.lane.b32.xlu0 %v7483, 16
      %v8066 = vpop.permute.xlu0 %8065
      %8067 = vrot.lane.b32.xlu0 %v7484, 16
      %v8068 = vpop.permute.xlu0 %8067
      %8069 = vrot.lane.b32.xlu0 %v7485, 16
      %v8070 = vpop.permute.xlu0 %8069
      %8071 = vrot.lane.b32.xlu0 %v7486, 16
      %v8072 = vpop.permute.xlu0 %8071
      %8073 = vrot.lane.b32.xlu0 %v7487, 16
      %v8074 = vpop.permute.xlu0 %8073
      %8075 = vrot.lane.b32.xlu0 %v7488, 16
      %v8076 = vpop.permute.xlu0 %8075
      %8077 = vrot.lane.b32.xlu0 %v7489, 16
      %v8078 = vpop.permute.xlu0 %8077
      %8079 = vrot.lane.b32.xlu0 %v7490, 16
      %v8080 = vpop.permute.xlu0 %8079
      %8081 = vrot.lane.b32.xlu0 %v7491, 16
      %v8082 = vpop.permute.xlu0 %8081
      %8083 = vrot.lane.b32.xlu0 %v7492, 16
      %v8084 = vpop.permute.xlu0 %8083
      %8085 = vrot.lane.b32.xlu0 %v7493, 16
      %v8086 = vpop.permute.xlu0 %8085
      %8087 = vrot.lane.b32.xlu0 %v7494, 16
      %v8088 = vpop.permute.xlu0 %8087
      %8089 = vrot.lane.b32.xlu0 %v7495, 16
      %v8090 = vpop.permute.xlu0 %8089
      %8091 = vrot.lane.b32.xlu0 %v7496, 16
      %v8092 = vpop.permute.xlu0 %8091
      %8093 = vrot.lane.b32.xlu0 %v7497, 16
      %v8094 = vpop.permute.xlu0 %8093
      %8095 = vrot.lane.b32.xlu0 %v7498, 16
      %v8096 = vpop.permute.xlu0 %8095
      %8097 = vrot.lane.b32.xlu0 %v7499, 16
      %v8098 = vpop.permute.xlu0 %8097
      %8099 = vrot.lane.b32.xlu0 %v7500, 16
      %v8100 = vpop.permute.xlu0 %8099
      %8101 = vrot.lane.b32.xlu0 %v7501, 16
      %v8102 = vpop.permute.xlu0 %8101
      %8103 = vrot.lane.b32.xlu0 %v7502, 16
      %v8104 = vpop.permute.xlu0 %8103
      %8105 = vrot.lane.b32.xlu0 %v7503, 16
      %v8106 = vpop.permute.xlu0 %8105
      %8107 = vrot.lane.b32.xlu0 %v7504, 16
      %v8108 = vpop.permute.xlu0 %8107
      %8109 = vrot.lane.b32.xlu0 %v7505, 16
      %v8110 = vpop.permute.xlu0 %8109
      %8111 = vrot.lane.b32.xlu0 %v7506, 16
      %v8112 = vpop.permute.xlu0 %8111
      %8113 = vrot.lane.b32.xlu0 %v7507, 16
      %v8114 = vpop.permute.xlu0 %8113
      %8115 = vrot.lane.b32.xlu0 %v7508, 16
      %v8116 = vpop.permute.xlu0 %8115
      %8117 = vrot.lane.b32.xlu0 %v7509, 16
      %v8118 = vpop.permute.xlu0 %8117
      %8183 = vrot.lane.b32.xlu0 %v7510, 20
      %v8184 = vpop.permute.xlu0 %8183
      %8185 = vrot.lane.b32.xlu0 %v7511, 20
      %v8186 = vpop.permute.xlu0 %8185
      %8187 = vrot.lane.b32.xlu0 %v7512, 20
      %v8188 = vpop.permute.xlu0 %8187
      %8189 = vrot.lane.b32.xlu0 %v7513, 20
      %v8190 = vpop.permute.xlu0 %8189
      %8191 = vrot.lane.b32.xlu0 %v7514, 20
      %v8192 = vpop.permute.xlu0 %8191
      %8193 = vrot.lane.b32.xlu0 %v7515, 20
      %v8194 = vpop.permute.xlu0 %8193
      %8195 = vrot.lane.b32.xlu0 %v7516, 20
      %v8196 = vpop.permute.xlu0 %8195
      %8197 = vrot.lane.b32.xlu0 %v7517, 20
      %v8198 = vpop.permute.xlu0 %8197
      %8199 = vrot.lane.b32.xlu0 %v7518, 20
      %v8200 = vpop.permute.xlu0 %8199
      %8201 = vrot.lane.b32.xlu0 %v7519, 20
      %v8202 = vpop.permute.xlu0 %8201
      %8203 = vrot.lane.b32.xlu0 %v7520, 20
      %v8204 = vpop.permute.xlu0 %8203
      %8205 = vrot.lane.b32.xlu0 %v7521, 20
      %v8206 = vpop.permute.xlu0 %8205
      %8207 = vrot.lane.b32.xlu0 %v7522, 20
      %v8208 = vpop.permute.xlu0 %8207
      %8209 = vrot.lane.b32.xlu0 %v7523, 20
      %v8210 = vpop.permute.xlu0 %8209
      %8211 = vrot.lane.b32.xlu0 %v7524, 20
      %v8212 = vpop.permute.xlu0 %8211
      %8213 = vrot.lane.b32.xlu0 %v7525, 20
      %v8214 = vpop.permute.xlu0 %8213
      %8215 = vrot.lane.b32.xlu0 %v7526, 20
      %v8216 = vpop.permute.xlu0 %8215
      %8217 = vrot.lane.b32.xlu0 %v7527, 20
      %v8218 = vpop.permute.xlu0 %8217
      %8219 = vrot.lane.b32.xlu0 %v7528, 20
      %v8220 = vpop.permute.xlu0 %8219
      %8221 = vrot.lane.b32.xlu0 %v7529, 20
      %v8222 = vpop.permute.xlu0 %8221
      %8223 = vrot.lane.b32.xlu0 %v7530, 20
      %v8224 = vpop.permute.xlu0 %8223
      %8225 = vrot.lane.b32.xlu0 %v7531, 20
      %v8226 = vpop.permute.xlu0 %8225
      %8227 = vrot.lane.b32.xlu0 %v7532, 20
      %v8228 = vpop.permute.xlu0 %8227
      %8229 = vrot.lane.b32.xlu0 %v7533, 20
      %v8230 = vpop.permute.xlu0 %8229
      %8231 = vrot.lane.b32.xlu0 %v7534, 20
      %v8232 = vpop.permute.xlu0 %8231
      %8233 = vrot.lane.b32.xlu0 %v7535, 20
      %v8234 = vpop.permute.xlu0 %8233
      %8235 = vrot.lane.b32.xlu0 %v7536, 20
      %v8236 = vpop.permute.xlu0 %8235
      %8237 = vrot.lane.b32.xlu0 %v7537, 20
      %v8238 = vpop.permute.xlu0 %8237
      %8239 = vrot.lane.b32.xlu0 %v7538, 20
      %v8240 = vpop.permute.xlu0 %8239
      %8241 = vrot.lane.b32.xlu0 %v7539, 20
      %v8242 = vpop.permute.xlu0 %8241
      %8243 = vrot.lane.b32.xlu0 %v7540, 20
      %v8244 = vpop.permute.xlu0 %8243
      %8245 = vrot.lane.b32.xlu0 %v7541, 20
      %v8246 = vpop.permute.xlu0 %8245
      %8311 = vrot.lane.b32.xlu0 %v7543, 24
      %v8312 = vpop.permute.xlu0 %8311
      %8313 = vrot.lane.b32.xlu0 %v7544, 24
      %v8314 = vpop.permute.xlu0 %8313
      %8315 = vrot.lane.b32.xlu0 %v7545, 24
      %v8316 = vpop.permute.xlu0 %8315
      %8317 = vrot.lane.b32.xlu0 %v7546, 24
      %v8318 = vpop.permute.xlu0 %8317
      %8319 = vrot.lane.b32.xlu0 %v7547, 24
      %v8320 = vpop.permute.xlu0 %8319
      %8321 = vrot.lane.b32.xlu0 %v7548, 24
      %v8322 = vpop.permute.xlu0 %8321
      %8323 = vrot.lane.b32.xlu0 %v7549, 24
      %v8324 = vpop.permute.xlu0 %8323
      %8325 = vrot.lane.b32.xlu0 %v7550, 24
      %v8326 = vpop.permute.xlu0 %8325
      %8327 = vrot.lane.b32.xlu0 %v7551, 24
      %v8328 = vpop.permute.xlu0 %8327
      %8329 = vrot.lane.b32.xlu0 %v7552, 24
      %v8330 = vpop.permute.xlu0 %8329
      %8331 = vrot.lane.b32.xlu0 %v7553, 24
      %v8332 = vpop.permute.xlu0 %8331
      %8333 = vrot.lane.b32.xlu0 %v7554, 24
      %v8334 = vpop.permute.xlu0 %8333
      %8335 = vrot.lane.b32.xlu0 %v7555, 24
      %v8336 = vpop.permute.xlu0 %8335
      %8337 = vrot.lane.b32.xlu0 %v7556, 24
      %v8338 = vpop.permute.xlu0 %8337
      %8339 = vrot.lane.b32.xlu0 %v7557, 24
      %v8340 = vpop.permute.xlu0 %8339
      %8341 = vrot.lane.b32.xlu0 %v7558, 24
      %v8342 = vpop.permute.xlu0 %8341
      %8343 = vrot.lane.b32.xlu0 %v7559, 24
      %v8344 = vpop.permute.xlu0 %8343
      %8345 = vrot.lane.b32.xlu0 %v7560, 24
      %v8346 = vpop.permute.xlu0 %8345
      %8347 = vrot.lane.b32.xlu0 %v7561, 24
      %v8348 = vpop.permute.xlu0 %8347
      %8349 = vrot.lane.b32.xlu0 %v7562, 24
      %v8350 = vpop.permute.xlu0 %8349
      %8351 = vrot.lane.b32.xlu0 %v7563, 24
      %v8352 = vpop.permute.xlu0 %8351
      %8353 = vrot.lane.b32.xlu0 %v7564, 24
      %v8354 = vpop.permute.xlu0 %8353
      %8355 = vrot.lane.b32.xlu0 %v7565, 24
      %v8356 = vpop.permute.xlu0 %8355
      %8357 = vrot.lane.b32.xlu0 %v7566, 24
      %v8358 = vpop.permute.xlu0 %8357
      %8359 = vrot.lane.b32.xlu0 %v7567, 24
      %v8360 = vpop.permute.xlu0 %8359
      %8361 = vrot.lane.b32.xlu0 %v7568, 24
      %v8362 = vpop.permute.xlu0 %8361
      %8363 = vrot.lane.b32.xlu0 %v7569, 24
      %v8364 = vpop.permute.xlu0 %8363
      %8365 = vrot.lane.b32.xlu0 %v7570, 24
      %v8366 = vpop.permute.xlu0 %8365
      %8367 = vrot.lane.b32.xlu0 %v7571, 24
      %v8368 = vpop.permute.xlu0 %8367
      %8369 = vrot.lane.b32.xlu0 %v7572, 24
      %v8370 = vpop.permute.xlu0 %8369
      %8371 = vrot.lane.b32.xlu0 %v7573, 24
      %v8372 = vpop.permute.xlu0 %8371
      %8373 = vrot.lane.b32.xlu0 %v7574, 24
      %v8374 = vpop.permute.xlu0 %8373
      %8439 = vrot.lane.b32.xlu0 %v7575, 28
      %v8440 = vpop.permute.xlu0 %8439
      %8441 = vrot.lane.b32.xlu0 %v7576, 28
      %v8442 = vpop.permute.xlu0 %8441
      %8443 = vrot.lane.b32.xlu0 %v7577, 28
      %v8444 = vpop.permute.xlu0 %8443
      %8445 = vrot.lane.b32.xlu0 %v7578, 28
      %v8446 = vpop.permute.xlu0 %8445
      %8447 = vrot.lane.b32.xlu0 %v7579, 28
      %v8448 = vpop.permute.xlu0 %8447
      %8449 = vrot.lane.b32.xlu0 %v7580, 28
      %v8450 = vpop.permute.xlu0 %8449
      %8451 = vrot.lane.b32.xlu0 %v7581, 28
      %v8452 = vpop.permute.xlu0 %8451
      %8453 = vrot.lane.b32.xlu0 %v7582, 28
      %v8454 = vpop.permute.xlu0 %8453
      %8455 = vrot.lane.b32.xlu0 %v7583, 28
      %v8456 = vpop.permute.xlu0 %8455
      %8457 = vrot.lane.b32.xlu0 %v7584, 28
      %v8458 = vpop.permute.xlu0 %8457
      %8459 = vrot.lane.b32.xlu0 %v7585, 28
      %v8460 = vpop.permute.xlu0 %8459
      %8461 = vrot.lane.b32.xlu0 %v7586, 28
      %v8462 = vpop.permute.xlu0 %8461
      %8463 = vrot.lane.b32.xlu0 %v7587, 28
      %v8464 = vpop.permute.xlu0 %8463
      %8465 = vrot.lane.b32.xlu0 %v7588, 28
      %v8466 = vpop.permute.xlu0 %8465
      %8467 = vrot.lane.b32.xlu0 %v7589, 28
      %v8468 = vpop.permute.xlu0 %8467
      %8469 = vrot.lane.b32.xlu0 %v7590, 28
      %v8470 = vpop.permute.xlu0 %8469
      %8471 = vrot.lane.b32.xlu0 %v7591, 28
      %v8472 = vpop.permute.xlu0 %8471
      %8473 = vrot.lane.b32.xlu0 %v7592, 28
      %v8474 = vpop.permute.xlu0 %8473
      %8475 = vrot.lane.b32.xlu0 %v7593, 28
      %v8476 = vpop.permute.xlu0 %8475
      %8477 = vrot.lane.b32.xlu0 %v7594, 28
      %v8478 = vpop.permute.xlu0 %8477
      %8479 = vrot.lane.b32.xlu0 %v7595, 28
      %v8480 = vpop.permute.xlu0 %8479
      %8481 = vrot.lane.b32.xlu0 %v7596, 28
      %v8482 = vpop.permute.xlu0 %8481
      %8483 = vrot.lane.b32.xlu0 %v7597, 28
      %v8484 = vpop.permute.xlu0 %8483
      %8485 = vrot.lane.b32.xlu0 %v7598, 28
      %v8486 = vpop.permute.xlu0 %8485
      %8487 = vrot.lane.b32.xlu0 %v7599, 28
      %v8488 = vpop.permute.xlu0 %8487
      %8489 = vrot.lane.b32.xlu0 %v7600, 28
      %v8490 = vpop.permute.xlu0 %8489
      %8491 = vrot.lane.b32.xlu0 %v7601, 28
      %v8492 = vpop.permute.xlu0 %8491
      %8493 = vrot.lane.b32.xlu0 %v7602, 28
      %v8494 = vpop.permute.xlu0 %8493
      %8495 = vrot.lane.b32.xlu0 %v7603, 28
      %v8496 = vpop.permute.xlu0 %8495
      %8497 = vrot.lane.b32.xlu0 %v7604, 28
      %v8498 = vpop.permute.xlu0 %8497
      %8499 = vrot.lane.b32.xlu0 %v7605, 28
      %v8500 = vpop.permute.xlu0 %8499
      %8501 = vrot.lane.b32.xlu0 %v7606, 28
      %v8502 = vpop.permute.xlu0 %8501
      %8567 = vrot.lane.b32.xlu0 %v7607, 32
      %v8568 = vpop.permute.xlu0 %8567
      %8569 = vrot.lane.b32.xlu0 %v7608, 32
      %v8570 = vpop.permute.xlu0 %8569
      %8571 = vrot.lane.b32.xlu0 %v7609, 32
      %v8572 = vpop.permute.xlu0 %8571
      %8573 = vrot.lane.b32.xlu0 %v7610, 32
      %v8574 = vpop.permute.xlu0 %8573
      %8575 = vrot.lane.b32.xlu0 %v7611, 32
      %v8576 = vpop.permute.xlu0 %8575
      %8577 = vrot.lane.b32.xlu0 %v7612, 32
      %v8578 = vpop.permute.xlu0 %8577
      %8579 = vrot.lane.b32.xlu0 %v7613, 32
      %v8580 = vpop.permute.xlu0 %8579
      %8581 = vrot.lane.b32.xlu0 %v7614, 32
      %v8582 = vpop.permute.xlu0 %8581
      %8583 = vrot.lane.b32.xlu0 %v7615, 32
      %v8584 = vpop.permute.xlu0 %8583
      %8585 = vrot.lane.b32.xlu0 %v7616, 32
      %v8586 = vpop.permute.xlu0 %8585
      %8587 = vrot.lane.b32.xlu0 %v7617, 32
      %v8588 = vpop.permute.xlu0 %8587
      %8589 = vrot.lane.b32.xlu0 %v7618, 32
      %v8590 = vpop.permute.xlu0 %8589
      %8591 = vrot.lane.b32.xlu0 %v7619, 32
      %v8592 = vpop.permute.xlu0 %8591
      %8593 = vrot.lane.b32.xlu0 %v7620, 32
      %v8594 = vpop.permute.xlu0 %8593
      %8595 = vrot.lane.b32.xlu0 %v7621, 32
      %v8596 = vpop.permute.xlu0 %8595
      %8597 = vrot.lane.b32.xlu0 %v7622, 32
      %v8598 = vpop.permute.xlu0 %8597
      %8599 = vrot.lane.b32.xlu0 %v7623, 32
      %v8600 = vpop.permute.xlu0 %8599
      %8601 = vrot.lane.b32.xlu0 %v7624, 32
      %v8602 = vpop.permute.xlu0 %8601
      %8603 = vrot.lane.b32.xlu0 %v7625, 32
      %v8604 = vpop.permute.xlu0 %8603
      %8605 = vrot.lane.b32.xlu0 %v7626, 32
      %v8606 = vpop.permute.xlu0 %8605
      %8607 = vrot.lane.b32.xlu0 %v7627, 32
      %v8608 = vpop.permute.xlu0 %8607
      %8609 = vrot.lane.b32.xlu0 %v7628, 32
      %v8610 = vpop.permute.xlu0 %8609
      %8611 = vrot.lane.b32.xlu0 %v7629, 32
      %v8612 = vpop.permute.xlu0 %8611
      %8613 = vrot.lane.b32.xlu0 %v7630, 32
      %v8614 = vpop.permute.xlu0 %8613
      %8615 = vrot.lane.b32.xlu0 %v7631, 32
      %v8616 = vpop.permute.xlu0 %8615
      %8617 = vrot.lane.b32.xlu0 %v7632, 32
      %v8618 = vpop.permute.xlu0 %8617
      %8619 = vrot.lane.b32.xlu0 %v7633, 32
      %v8620 = vpop.permute.xlu0 %8619
      %8621 = vrot.lane.b32.xlu0 %v7634, 32
      %v8622 = vpop.permute.xlu0 %8621
      %8623 = vrot.lane.b32.xlu0 %v7635, 32
      %v8624 = vpop.permute.xlu0 %8623
      %8625 = vrot.lane.b32.xlu0 %v7636, 32
      %v8626 = vpop.permute.xlu0 %8625
      %8627 = vrot.lane.b32.xlu0 %v7637, 32
      %v8628 = vpop.permute.xlu0 %8627
      %8629 = vrot.lane.b32.xlu0 %v7638, 32
      %v8630 = vpop.permute.xlu0 %8629
      %v8663 = vsel %vm366, %v7350, %v7672
      %v8664 = vsel %vm366, %v7351, %v7674
      %v8665 = vsel %vm366, %v7352, %v7676
      %v8666 = vsel %vm366, %v7353, %v7678
      %v8667 = vsel %vm366, %v7354, %v7680
      %v8668 = vsel %vm366, %v7355, %v7682
      %v8669 = vsel %vm366, %v7356, %v7684
      %v8670 = vsel %vm366, %v7357, %v7686
      %v8671 = vsel %vm366, %v7358, %v7688
      %v8672 = vsel %vm366, %v7359, %v7690
      %v8673 = vsel %vm366, %v7360, %v7692
      %v8674 = vsel %vm366, %v7361, %v7694
      %v8675 = vsel %vm366, %v7362, %v7696
      %v8676 = vsel %vm366, %v7363, %v7698
      %v8677 = vsel %vm366, %v7364, %v7700
      %v8678 = vsel %vm366, %v7365, %v7702
      %v8679 = vsel %vm366, %v7366, %v7704
      %v8680 = vsel %vm366, %v7367, %v7706
      %v8681 = vsel %vm366, %v7368, %v7708
      %v8682 = vsel %vm366, %v7369, %v7710
      %v8683 = vsel %vm366, %v7370, %v7712
      %v8684 = vsel %vm366, %v7371, %v7714
      %v8685 = vsel %vm366, %v7372, %v7716
      %v8686 = vsel %vm366, %v7373, %v7718
      %v8687 = vsel %vm366, %v7374, %v7720
      %v8688 = vsel %vm366, %v7375, %v7722
      %v8689 = vsel %vm366, %v7376, %v7724
      %v8690 = vsel %vm366, %v7377, %v7726
      %v8691 = vsel %vm366, %v7378, %v7728
      %v8692 = vsel %vm366, %v7379, %v7730
      %v8693 = vsel %vm366, %v7380, %v7732
      %v8694 = vsel %vm366, %v7381, %v7734
      %v8695 = vsel %vm4942, %v8663, %v7800
      %v8696 = vsel %vm4942, %v8664, %v7802
      %v8697 = vsel %vm4942, %v8665, %v7804
      %v8698 = vsel %vm4942, %v8666, %v7806
      %v8699 = vsel %vm4942, %v8667, %v7808
      %v8700 = vsel %vm4942, %v8668, %v7810
      %v8701 = vsel %vm4942, %v8669, %v7812
      %v8702 = vsel %vm4942, %v8670, %v7814
      %v8703 = vsel %vm4942, %v8671, %v7816
      %v8704 = vsel %vm4942, %v8672, %v7818
      %v8705 = vsel %vm4942, %v8673, %v7820
      %v8706 = vsel %vm4942, %v8674, %v7822
      %v8707 = vsel %vm4942, %v8675, %v7824
      %v8708 = vsel %vm4942, %v8676, %v7826
      %v8709 = vsel %vm4942, %v8677, %v7828
      %v8710 = vsel %vm4942, %v8678, %v7830
      %v8711 = vsel %vm4942, %v8679, %v7832
      %v8712 = vsel %vm4942, %v8680, %v7834
      %v8713 = vsel %vm4942, %v8681, %v7836
      %v8714 = vsel %vm4942, %v8682, %v7838
      %v8715 = vsel %vm4942, %v8683, %v7840
      %v8716 = vsel %vm4942, %v8684, %v7842
      %v8717 = vsel %vm4942, %v8685, %v7844
      %v8718 = vsel %vm4942, %v8686, %v7846
      %v8719 = vsel %vm4942, %v8687, %v7848
      %v8720 = vsel %vm4942, %v8688, %v7850
      %v8721 = vsel %vm4942, %v8689, %v7852
      %v8722 = vsel %vm4942, %v8690, %v7854
      %v8723 = vsel %vm4942, %v8691, %v7856
      %v8724 = vsel %vm4942, %v8692, %v7858
      %v8725 = vsel %vm4942, %v8693, %v7860
      %v8726 = vsel %vm4942, %v8694, %v7862
      %v8727 = vsel %vm4975, %v8695, %v7928
      %v8728 = vsel %vm4975, %v8696, %v7930
      %v8729 = vsel %vm4975, %v8697, %v7932
      %v8730 = vsel %vm4975, %v8698, %v7934
      %v8731 = vsel %vm4975, %v8699, %v7936
      %v8732 = vsel %vm4975, %v8700, %v7938
      %v8733 = vsel %vm4975, %v8701, %v7940
      %v8734 = vsel %vm4975, %v8702, %v7942
      %v8735 = vsel %vm4975, %v8703, %v7944
      %v8736 = vsel %vm4975, %v8704, %v7946
      %v8737 = vsel %vm4975, %v8705, %v7948
      %v8738 = vsel %vm4975, %v8706, %v7950
      %v8739 = vsel %vm4975, %v8707, %v7952
      %v8740 = vsel %vm4975, %v8708, %v7954
      %v8741 = vsel %vm4975, %v8709, %v7956
      %v8742 = vsel %vm4975, %v8710, %v7958
      %v8743 = vsel %vm4975, %v8711, %v7960
      %v8744 = vsel %vm4975, %v8712, %v7962
      %v8745 = vsel %vm4975, %v8713, %v7964
      %v8746 = vsel %vm4975, %v8714, %v7966
      %v8747 = vsel %vm4975, %v8715, %v7968
      %v8748 = vsel %vm4975, %v8716, %v7970
      %v8749 = vsel %vm4975, %v8717, %v7972
      %v8750 = vsel %vm4975, %v8718, %v7974
      %v8751 = vsel %vm4975, %v8719, %v7976
      %v8752 = vsel %vm4975, %v8720, %v7978
      %v8753 = vsel %vm4975, %v8721, %v7980
      %v8754 = vsel %vm4975, %v8722, %v7982
      %v8755 = vsel %vm4975, %v8723, %v7984
      %v8756 = vsel %vm4975, %v8724, %v7986
      %v8757 = vsel %vm4975, %v8725, %v7988
      %v8758 = vsel %vm4975, %v8726, %v7990
      %v8759 = vsel %vm5008, %v8727, %v8056
      %v8760 = vsel %vm5008, %v8728, %v8058
      %v8761 = vsel %vm5008, %v8729, %v8060
      %v8762 = vsel %vm5008, %v8730, %v8062
      %v8763 = vsel %vm5008, %v8731, %v8064
      %v8764 = vsel %vm5008, %v8732, %v8066
      %v8765 = vsel %vm5008, %v8733, %v8068
      %v8766 = vsel %vm5008, %v8734, %v8070
      %v8767 = vsel %vm5008, %v8735, %v8072
      %v8768 = vsel %vm5008, %v8736, %v8074
      %v8769 = vsel %vm5008, %v8737, %v8076
      %v8770 = vsel %vm5008, %v8738, %v8078
      %v8771 = vsel %vm5008, %v8739, %v8080
      %v8772 = vsel %vm5008, %v8740, %v8082
      %v8773 = vsel %vm5008, %v8741, %v8084
      %v8774 = vsel %vm5008, %v8742, %v8086
      %v8775 = vsel %vm5008, %v8743, %v8088
      %v8776 = vsel %vm5008, %v8744, %v8090
      %v8777 = vsel %vm5008, %v8745, %v8092
      %v8778 = vsel %vm5008, %v8746, %v8094
      %v8779 = vsel %vm5008, %v8747, %v8096
      %v8780 = vsel %vm5008, %v8748, %v8098
      %v8781 = vsel %vm5008, %v8749, %v8100
      %v8782 = vsel %vm5008, %v8750, %v8102
      %v8783 = vsel %vm5008, %v8751, %v8104
      %v8784 = vsel %vm5008, %v8752, %v8106
      %v8785 = vsel %vm5008, %v8753, %v8108
      %v8786 = vsel %vm5008, %v8754, %v8110
      %v8787 = vsel %vm5008, %v8755, %v8112
      %v8788 = vsel %vm5008, %v8756, %v8114
      %v8789 = vsel %vm5008, %v8757, %v8116
      %v8790 = vsel %vm5008, %v8758, %v8118
      %v8791 = vsel %vm5041, %v8759, %v8184
      %v8792 = vsel %vm5041, %v8760, %v8186
      %v8793 = vsel %vm5041, %v8761, %v8188
      %v8794 = vsel %vm5041, %v8762, %v8190
      %v8795 = vsel %vm5041, %v8763, %v8192
      %v8796 = vsel %vm5041, %v8764, %v8194
      %v8797 = vsel %vm5041, %v8765, %v8196
      %v8798 = vsel %vm5041, %v8766, %v8198
      %v8799 = vsel %vm5041, %v8767, %v8200
      %v8800 = vsel %vm5041, %v8768, %v8202
      %v8801 = vsel %vm5041, %v8769, %v8204
      %v8802 = vsel %vm5041, %v8770, %v8206
      %v8803 = vsel %vm5041, %v8771, %v8208
      %v8804 = vsel %vm5041, %v8772, %v8210
      %v8805 = vsel %vm5041, %v8773, %v8212
      %v8806 = vsel %vm5041, %v8774, %v8214
      %v8807 = vsel %vm5041, %v8775, %v8216
      %v8808 = vsel %vm5041, %v8776, %v8218
      %v8809 = vsel %vm5041, %v8777, %v8220
      %v8810 = vsel %vm5041, %v8778, %v8222
      %v8811 = vsel %vm5041, %v8779, %v8224
      %v8812 = vsel %vm5041, %v8780, %v8226
      %v8813 = vsel %vm5041, %v8781, %v8228
      %v8814 = vsel %vm5041, %v8782, %v8230
      %v8815 = vsel %vm5041, %v8783, %v8232
      %v8816 = vsel %vm5041, %v8784, %v8234
      %v8817 = vsel %vm5041, %v8785, %v8236
      %v8818 = vsel %vm5041, %v8786, %v8238
      %v8819 = vsel %vm5041, %v8787, %v8240
      %v8820 = vsel %vm5041, %v8788, %v8242
      %v8821 = vsel %vm5041, %v8789, %v8244
      %v8822 = vsel %vm5041, %v8790, %v8246
      %v8823 = vsel %vm5074, %v8791, %v8312
      %v8824 = vsel %vm5074, %v8792, %v8314
      %v8825 = vsel %vm5074, %v8793, %v8316
      %v8826 = vsel %vm5074, %v8794, %v8318
      %v8827 = vsel %vm5074, %v8795, %v8320
      %v8828 = vsel %vm5074, %v8796, %v8322
      %v8829 = vsel %vm5074, %v8797, %v8324
      %v8830 = vsel %vm5074, %v8798, %v8326
      %v8831 = vsel %vm5074, %v8799, %v8328
      %v8832 = vsel %vm5074, %v8800, %v8330
      %v8833 = vsel %vm5074, %v8801, %v8332
      %v8834 = vsel %vm5074, %v8802, %v8334
      %v8835 = vsel %vm5074, %v8803, %v8336
      %v8836 = vsel %vm5074, %v8804, %v8338
      %v8837 = vsel %vm5074, %v8805, %v8340
      %v8838 = vsel %vm5074, %v8806, %v8342
      %v8839 = vsel %vm5074, %v8807, %v8344
      %v8840 = vsel %vm5074, %v8808, %v8346
      %v8841 = vsel %vm5074, %v8809, %v8348
      %v8842 = vsel %vm5074, %v8810, %v8350
      %v8843 = vsel %vm5074, %v8811, %v8352
      %v8844 = vsel %vm5074, %v8812, %v8354
      %v8845 = vsel %vm5074, %v8813, %v8356
      %v8846 = vsel %vm5074, %v8814, %v8358
      %v8847 = vsel %vm5074, %v8815, %v8360
      %v8848 = vsel %vm5074, %v8816, %v8362
      %v8849 = vsel %vm5074, %v8817, %v8364
      %v8850 = vsel %vm5074, %v8818, %v8366
      %v8851 = vsel %vm5074, %v8819, %v8368
      %v8852 = vsel %vm5074, %v8820, %v8370
      %v8853 = vsel %vm5074, %v8821, %v8372
      %v8854 = vsel %vm5074, %v8822, %v8374
      %v8855 = vsel %vm5107, %v8823, %v8440
      %v8856 = vsel %vm5107, %v8824, %v8442
      %v8857 = vsel %vm5107, %v8825, %v8444
      %v8858 = vsel %vm5107, %v8826, %v8446
      %v8859 = vsel %vm5107, %v8827, %v8448
      %v8860 = vsel %vm5107, %v8828, %v8450
      %v8861 = vsel %vm5107, %v8829, %v8452
      %v8862 = vsel %vm5107, %v8830, %v8454
      %v8863 = vsel %vm5107, %v8831, %v8456
      %v8864 = vsel %vm5107, %v8832, %v8458
      %v8865 = vsel %vm5107, %v8833, %v8460
      %v8866 = vsel %vm5107, %v8834, %v8462
      %v8867 = vsel %vm5107, %v8835, %v8464
      %v8868 = vsel %vm5107, %v8836, %v8466
      %v8869 = vsel %vm5107, %v8837, %v8468
      %v8870 = vsel %vm5107, %v8838, %v8470
      %v8871 = vsel %vm5107, %v8839, %v8472
      %v8872 = vsel %vm5107, %v8840, %v8474
      %v8873 = vsel %vm5107, %v8841, %v8476
      %v8874 = vsel %vm5107, %v8842, %v8478
      %v8875 = vsel %vm5107, %v8843, %v8480
      %v8876 = vsel %vm5107, %v8844, %v8482
      %v8877 = vsel %vm5107, %v8845, %v8484
      %v8878 = vsel %vm5107, %v8846, %v8486
      %v8879 = vsel %vm5107, %v8847, %v8488
      %v8880 = vsel %vm5107, %v8848, %v8490
      %v8881 = vsel %vm5107, %v8849, %v8492
      %v8882 = vsel %vm5107, %v8850, %v8494
      %v8883 = vsel %vm5107, %v8851, %v8496
      %v8884 = vsel %vm5107, %v8852, %v8498
      %v8885 = vsel %vm5107, %v8853, %v8500
      %v8886 = vsel %vm5107, %v8854, %v8502
      %v8887 = vsel %vm5140, %v8855, %v8568
      %v8888 = vsel %vm5140, %v8856, %v8570
      %v8889 = vsel %vm5140, %v8857, %v8572
      %v8890 = vsel %vm5140, %v8858, %v8574
      %v8891 = vsel %vm5140, %v8859, %v8576
      %v8892 = vsel %vm5140, %v8860, %v8578
      %v8893 = vsel %vm5140, %v8861, %v8580
      %v8894 = vsel %vm5140, %v8862, %v8582
      %v8895 = vsel %vm5140, %v8863, %v8584
      %v8896 = vsel %vm5140, %v8864, %v8586
      %v8897 = vsel %vm5140, %v8865, %v8588
      %v8898 = vsel %vm5140, %v8866, %v8590
      %v8899 = vsel %vm5140, %v8867, %v8592
      %v8900 = vsel %vm5140, %v8868, %v8594
      %v8901 = vsel %vm5140, %v8869, %v8596
      %v8902 = vsel %vm5140, %v8870, %v8598
      %v8903 = vsel %vm5140, %v8871, %v8600
      %v8904 = vsel %vm5140, %v8872, %v8602
      %v8905 = vsel %vm5140, %v8873, %v8604
      %v8906 = vsel %vm5140, %v8874, %v8606
      %v8907 = vsel %vm5140, %v8875, %v8608
      %v8908 = vsel %vm5140, %v8876, %v8610
      %v8909 = vsel %vm5140, %v8877, %v8612
      %v8910 = vsel %vm5140, %v8878, %v8614
      %v8911 = vsel %vm5140, %v8879, %v8616
      %v8912 = vsel %vm5140, %v8880, %v8618
      %v8913 = vsel %vm5140, %v8881, %v8620
      %v8914 = vsel %vm5140, %v8882, %v8622
      %v8915 = vsel %vm5140, %v8883, %v8624
      %v8916 = vsel %vm5140, %v8884, %v8626
      %v8917 = vsel %vm5140, %v8885, %v8628
      %v8918 = vsel %vm5140, %v8886, %v8630
      %v8919 = vld [vmem:[%s7] sm:$0xff]
      %v8920 = vld [vmem:[%s7 + $0x8] sm:$0xff]
      %v8921 = vld [vmem:[%s7 + $0x10] sm:$0xff]
      %v8922 = vld [vmem:[%s7 + $0x18] sm:$0xff]
      %v8923 = vld [vmem:[%s7 + $0x20] sm:$0xf]
      %v8924 = vld [vmem:[%s8] sm:$0x1]
      %v8926 = vperm.slane %v8924, 0
      %v8929 = vsel %vm6752, %v8887, 0
      %v8932 = vsel %vm6752, %v8888, 0
      %v8935 = vsel %vm6752, %v8889, 0
      %v8938 = vsel %vm6752, %v8890, 0
      %v8941 = vsel %vm6752, %v8891, 0
      %v8944 = vsel %vm6752, %v8892, 0
      %v8947 = vsel %vm6752, %v8893, 0
      %v8950 = vsel %vm6752, %v8894, 0
      %v8953 = vsel %vm6752, %v8895, 0
      %v8956 = vsel %vm6752, %v8896, 0
      %v8959 = vsel %vm6752, %v8897, 0
      %v8962 = vsel %vm6752, %v8898, 0
      %v8965 = vsel %vm6752, %v8899, 0
      %v8968 = vsel %vm6752, %v8900, 0
      %v8971 = vsel %vm6752, %v8901, 0
      %v8974 = vsel %vm6752, %v8902, 0
      %v8977 = vsel %vm6752, %v8903, 0
      %v8980 = vsel %vm6752, %v8904, 0
      %v8983 = vsel %vm6752, %v8905, 0
      %v8986 = vsel %vm6752, %v8906, 0
      %v8989 = vsel %vm6752, %v8907, 0
      %v8992 = vsel %vm6752, %v8908, 0
      %v8995 = vsel %vm6752, %v8909, 0
      %v8998 = vsel %vm6752, %v8910, 0
      %v9001 = vsel %vm6752, %v8911, 0
      %v9004 = vsel %vm6752, %v8912, 0
      %v9007 = vsel %vm6752, %v8913, 0
      %v9010 = vsel %vm6752, %v8914, 0
      %v9013 = vsel %vm6752, %v8915, 0
      %v9016 = vsel %vm6752, %v8916, 0
      %v9019 = vsel %vm6752, %v8917, 0
      %v9022 = vsel %vm6752, %v8918, 0
      %v9025 = vsel %vm391, %v8923, 0
      %9027 = vmatpush.msra.mxu0 0.0
      %9028 = vmatpush.msra.mxu0 0.0
      %9029 = vmatpush.msra.mxu0 0.0
      %9030 = vmatpush.msra.mxu0 0.0
      %9031 = vmatpush.msra.mxu0 0.0
      %9032 = vmatpush.msra.mxu0 0.0
      %9033 = vmatpush.msra.mxu0 0.0
      %9034 = vmatpush.msra.mxu0 0.0
      %9035 = vmatpush.msra.mxu0 0.0
      %9036 = vmatpush.msra.mxu0 0.0
      %9037 = vmatpush.msra.mxu0 0.0
      %9038 = vmatpush.msra.mxu0 %v9025
      %9039 = vmatpush.msra.mxu0 %v8922
      %9040 = vmatpush.msra.mxu0 %v8921
      %9041 = vmatpush.msra.mxu0 %v8920
      %9042 = vmatpush.msra.mxu0 %v8919
      %9043 = vmatmul.f32.gmra.mxu0 %v8929
      %v9044 = vpop.f32.mrf.mxu0
      %v9045 = vadd.f32 %v8926, %v9044
      %9046 = vmatmul.f32.gmra.mxu0 %v8932
      %v9047 = vpop.f32.mrf.mxu0
      %v9048 = vadd.f32 %v8926, %v9047
      %9049 = vmatmul.f32.gmra.mxu0 %v8935
      %v9050 = vpop.f32.mrf.mxu0
      %v9051 = vadd.f32 %v8926, %v9050
      %9052 = vmatmul.f32.gmra.mxu0 %v8938
      %v9053 = vpop.f32.mrf.mxu0
      %v9054 = vadd.f32 %v8926, %v9053
      %9055 = vmatmul.f32.gmra.mxu0 %v8941
      %v9056 = vpop.f32.mrf.mxu0
      %v9057 = vadd.f32 %v8926, %v9056
      %9058 = vmatmul.f32.gmra.mxu0 %v8944
      %v9059 = vpop.f32.mrf.mxu0
      %v9060 = vadd.f32 %v8926, %v9059
      %9061 = vmatmul.f32.gmra.mxu0 %v8947
      %v9062 = vpop.f32.mrf.mxu0
      %v9063 = vadd.f32 %v8926, %v9062
      %9064 = vmatmul.f32.gmra.mxu0 %v8950
      %v9065 = vpop.f32.mrf.mxu0
      %v9066 = vadd.f32 %v8926, %v9065
      %9067 = vmatmul.f32.gmra.mxu0 %v8953
      %v9068 = vpop.f32.mrf.mxu0
      %v9069 = vadd.f32 %v8926, %v9068
      %9070 = vmatmul.f32.gmra.mxu0 %v8956
      %v9071 = vpop.f32.mrf.mxu0
      %v9072 = vadd.f32 %v8926, %v9071
      %9073 = vmatmul.f32.gmra.mxu0 %v8959
      %v9074 = vpop.f32.mrf.mxu0
      %v9075 = vadd.f32 %v8926, %v9074
      %9076 = vmatmul.f32.gmra.mxu0 %v8962
      %v9077 = vpop.f32.mrf.mxu0
      %v9078 = vadd.f32 %v8926, %v9077
      %9079 = vmatmul.f32.gmra.mxu0 %v8965
      %v9080 = vpop.f32.mrf.mxu0
      %v9081 = vadd.f32 %v8926, %v9080
      %9082 = vmatmul.f32.gmra.mxu0 %v8968
      %v9083 = vpop.f32.mrf.mxu0
      %v9084 = vadd.f32 %v8926, %v9083
      %9085 = vmatmul.f32.gmra.mxu0 %v8971
      %v9086 = vpop.f32.mrf.mxu0
      %v9087 = vadd.f32 %v8926, %v9086
      %9088 = vmatmul.f32.gmra.mxu0 %v8974
      %v9089 = vpop.f32.mrf.mxu0
      %v9090 = vadd.f32 %v8926, %v9089
      %9091 = vmatmul.f32.gmra.mxu0 %v8977
      %v9092 = vpop.f32.mrf.mxu0
      %v9093 = vadd.f32 %v8926, %v9092
      %9094 = vmatmul.f32.gmra.mxu0 %v8980
      %v9095 = vpop.f32.mrf.mxu0
      %v9096 = vadd.f32 %v8926, %v9095
      %9097 = vmatmul.f32.gmra.mxu0 %v8983
      %v9098 = vpop.f32.mrf.mxu0
      %v9099 = vadd.f32 %v8926, %v9098
      %9100 = vmatmul.f32.gmra.mxu0 %v8986
      %v9101 = vpop.f32.mrf.mxu0
      %v9102 = vadd.f32 %v8926, %v9101
      %9103 = vmatmul.f32.gmra.mxu0 %v8989
      %v9104 = vpop.f32.mrf.mxu0
      %v9105 = vadd.f32 %v8926, %v9104
      %9106 = vmatmul.f32.gmra.mxu0 %v8992
      %v9107 = vpop.f32.mrf.mxu0
      %v9108 = vadd.f32 %v8926, %v9107
      %9109 = vmatmul.f32.gmra.mxu0 %v8995
      %v9110 = vpop.f32.mrf.mxu0
      %v9111 = vadd.f32 %v8926, %v9110
      %9112 = vmatmul.f32.gmra.mxu0 %v8998
      %v9113 = vpop.f32.mrf.mxu0
      %v9114 = vadd.f32 %v8926, %v9113
      %9115 = vmatmul.f32.gmra.mxu0 %v9001
      %v9116 = vpop.f32.mrf.mxu0
      %v9117 = vadd.f32 %v8926, %v9116
      %9118 = vmatmul.f32.gmra.mxu0 %v9004
      %v9119 = vpop.f32.mrf.mxu0
      %v9120 = vadd.f32 %v8926, %v9119
      %9121 = vmatmul.f32.gmra.mxu0 %v9007
      %v9122 = vpop.f32.mrf.mxu0
      %v9123 = vadd.f32 %v8926, %v9122
      %9124 = vmatmul.f32.gmra.mxu0 %v9010
      %v9125 = vpop.f32.mrf.mxu0
      %v9126 = vadd.f32 %v8926, %v9125
      %9127 = vmatmul.f32.gmra.mxu0 %v9013
      %v9128 = vpop.f32.mrf.mxu0
      %v9129 = vadd.f32 %v8926, %v9128
      %9130 = vmatmul.f32.gmra.mxu0 %v9016
      %v9131 = vpop.f32.mrf.mxu0
      %v9132 = vadd.f32 %v8926, %v9131
      %9133 = vmatmul.f32.gmra.mxu0 %v9019
      %v9134 = vpop.f32.mrf.mxu0
      %v9135 = vadd.f32 %v8926, %v9134
      %9136 = vmatmul.f32.gmra.mxu0 %v9022
      %v9137 = vpop.f32.mrf.mxu0
      %v9138 = vadd.f32 %v8926, %v9137
      %9139 = vdwg.mxu0
      %v9140 = vmax.f32 %v9045, 0.0
      %v9141 = vmax.f32 %v9048, 0.0
      %v9142 = vmax.f32 %v9051, 0.0
      %v9143 = vmax.f32 %v9054, 0.0
      %v9144 = vmax.f32 %v9057, 0.0
      %v9145 = vmax.f32 %v9060, 0.0
      %v9146 = vmax.f32 %v9063, 0.0
      %v9147 = vmax.f32 %v9066, 0.0
      %v9148 = vmax.f32 %v9069, 0.0
      %v9149 = vmax.f32 %v9072, 0.0
      %v9150 = vmax.f32 %v9075, 0.0
      %v9151 = vmax.f32 %v9078, 0.0
      %v9152 = vmax.f32 %v9081, 0.0
      %v9153 = vmax.f32 %v9084, 0.0
      %v9154 = vmax.f32 %v9087, 0.0
      %v9155 = vmax.f32 %v9090, 0.0
      %v9156 = vmax.f32 %v9093, 0.0
      %v9157 = vmax.f32 %v9096, 0.0
      %v9158 = vmax.f32 %v9099, 0.0
      %v9159 = vmax.f32 %v9102, 0.0
      %v9160 = vmax.f32 %v9105, 0.0
      %v9161 = vmax.f32 %v9108, 0.0
      %v9162 = vmax.f32 %v9111, 0.0
      %v9163 = vmax.f32 %v9114, 0.0
      %v9164 = vmax.f32 %v9117, 0.0
      %v9165 = vmax.f32 %v9120, 0.0
      %v9166 = vmax.f32 %v9123, 0.0
      %v9167 = vmax.f32 %v9126, 0.0
      %v9168 = vmax.f32 %v9129, 0.0
      %v9169 = vmax.f32 %v9132, 0.0
      %v9170 = vmax.f32 %v9135, 0.0
      %v9171 = vmax.f32 %v9138, 0.0
      %9172 = vst.msk [vmem:[%s352] sm:$0xff] %vm366, %v9140
      %9173 = vst.msk [vmem:[%s352 + $0x8] sm:$0xff] %vm366, %v9141
      %9174 = vst.msk [vmem:[%s352 + $0x10] sm:$0xff] %vm366, %v9142
      %9175 = vst.msk [vmem:[%s352 + $0x18] sm:$0xff] %vm366, %v9143
      %9176 = vst.msk [vmem:[%s352 + $0x20] sm:$0xff] %vm366, %v9144
      %9177 = vst.msk [vmem:[%s352 + $0x28] sm:$0xff] %vm366, %v9145
      %9178 = vst.msk [vmem:[%s352 + $0x30] sm:$0xff] %vm366, %v9146
      %9179 = vst.msk [vmem:[%s352 + $0x38] sm:$0xff] %vm366, %v9147
      %9180 = vst.msk [vmem:[%s352 + $0x40] sm:$0xff] %vm366, %v9148
      %9181 = vst.msk [vmem:[%s352 + $0x48] sm:$0xff] %vm366, %v9149
      %9182 = vst.msk [vmem:[%s352 + $0x50] sm:$0xff] %vm366, %v9150
      %9183 = vst.msk [vmem:[%s352 + $0x58] sm:$0xff] %vm366, %v9151
      %9184 = vst.msk [vmem:[%s352 + $0x60] sm:$0xff] %vm366, %v9152
      %9185 = vst.msk [vmem:[%s352 + $0x68] sm:$0xff] %vm366, %v9153
      %9186 = vst.msk [vmem:[%s352 + $0x70] sm:$0xff] %vm366, %v9154
      %9187 = vst.msk [vmem:[%s352 + $0x78] sm:$0xff] %vm366, %v9155
      %9188 = vst.msk [vmem:[%s352 + $0x80] sm:$0xff] %vm366, %v9156
      %9189 = vst.msk [vmem:[%s352 + $0x88] sm:$0xff] %vm366, %v9157
      %9190 = vst.msk [vmem:[%s352 + $0x90] sm:$0xff] %vm366, %v9158
      %9191 = vst.msk [vmem:[%s352 + $0x98] sm:$0xff] %vm366, %v9159
      %9192 = vst.msk [vmem:[%s352 + $0xa0] sm:$0xff] %vm366, %v9160
      %9193 = vst.msk [vmem:[%s352 + $0xa8] sm:$0xff] %vm366, %v9161
      %9194 = vst.msk [vmem:[%s352 + $0xb0] sm:$0xff] %vm366, %v9162
      %9195 = vst.msk [vmem:[%s352 + $0xb8] sm:$0xff] %vm366, %v9163
      %9196 = vst.msk [vmem:[%s352 + $0xc0] sm:$0xff] %vm366, %v9164
      %9197 = vst.msk [vmem:[%s352 + $0xc8] sm:$0xff] %vm366, %v9165
      %9198 = vst.msk [vmem:[%s352 + $0xd0] sm:$0xff] %vm366, %v9166
      %9199 = vst.msk [vmem:[%s352 + $0xd8] sm:$0xff] %vm366, %v9167
      %9200 = vst.msk [vmem:[%s352 + $0xe0] sm:$0xff] %vm366, %v9168
      %9201 = vst.msk [vmem:[%s352 + $0xe8] sm:$0xff] %vm366, %v9169
      %9202 = vst.msk [vmem:[%s352 + $0xf0] sm:$0xff] %vm366, %v9170
      %9203 = vst.msk [vmem:[%s352 + $0xf8] sm:$0xff] %vm366, %v9171
      %p9204 = scmp.lt.s32.totalorder %s20, 1
      %s9205 = scalar_select %p9204, %s20, 1
      %s9206 = smul.addr %s9205, 32
      %s9207 = smul.addr %s9206, 8
      %s9208 = scalar_lea.vmem %s9, %s9207
      // Predicated region
      $region57: #{up_forward.1} parent=55 // pred_check
        %p9209 = pneg %p237
      $region58: #{up_forward.1} parent=55 // pred_check_branch
        %9211 = sbr.rel (%p9209) target = $region60
      $region59: #{up_forward.1} parent=55 // pred_region
        _
      $region60: #{up_forward.1} parent=55 // pred_fallthru
        _
    $region56: #{up_forward.1} parent=5 // pred_fallthru
      _
    %p9212 = scmp.le.s32.totalorder 2, %s15
    // Predicated region
    $region61: #{up_forward.1} parent=5 // pred_check
      %p9213 = pneg %p9212
    $region62: #{up_forward.1} parent=5 // pred_check_branch
      %9215 = sbr.rel (%p9213) target = $region64
    $region63: #{up_forward.1} parent=5 // pred_region
      %s9216 = ssub.s32 %s15, 2
      // Predicated region
      $region65: #{up_forward.1} parent=63 // pred_check
        %p9217 = pneg %p243
      $region66: #{up_forward.1} parent=63 // pred_check_branch
        %9219 = sbr.rel (%p9217) target = $region68
      $region67: #{up_forward.1} parent=63 // pred_region
        %p9220 = scmp.lt.s32.totalorder %s21, 1
        %s9221 = scalar_select %p9220, %s21, 1
        %s9222 = smul.addr %s9221, 32
        %s9223 = smul.addr %s9222, 8
        %s9224 = scalar_lea.vmem %s9, %s9223
      $region68: #{up_forward.1} parent=63 // pred_fallthru
        _
    $region64: #{up_forward.1} parent=5 // pred_fallthru
      _
  $region6: #{up_forward.1} parent=0 // loop_footer
    %s19 = sadd.s32 1, %s15
  $region7: #{up_forward.1} parent=0 // loop_footer_branch
    %14 = sbr.rel target = $region3
  $region8: #{up_forward.1} parent=0 // loop_exit
    _

</llo_original>
